<compile_context>
chip_gen: v6e
topology: v6e:2x2x1
jax: 0.10.0
libtpu: 0.0.40
codegen_flags: <defaults>
</compile_context>

<pallas_src>
import math

import jax
import jax.numpy as jnp
from jax import lax
from jax.experimental import pallas as pl
from jax.experimental.pallas import tpu as pltpu

SEQ_LEN = 8
INPUT_DIM = 1
OUTPUT_DIM = 1
HIDDEN = 32          # d_model == dim_feedforward in the reference module
NUM_LAYERS = 2
NHEAD = 1
LN_EPS = 1e-5
ATTN_SCALE = 1.0 / math.sqrt(HIDDEN // NHEAD)

_VMEM = pltpu.MemorySpace.VMEM


# ---------------- in-kernel building blocks (operate on values / Ref dicts) ----------------

def _layer_norm(y, g, b):
    # PyTorch LayerNorm: biased variance, eps inside rsqrt.
    mu = jnp.mean(y, axis=-1, keepdims=True)
    var = jnp.mean((y - mu) ** 2, axis=-1, keepdims=True)
    return (y - mu) * lax.rsqrt(var + LN_EPS) * g + b


def _attention(q_in, kv_in, ap):
    # Single-head (nhead=1) attention: proj -> scaled scores -> softmax -> out proj.
    q = jnp.dot(q_in, ap["wq"][...], preferred_element_type=jnp.float32) + ap["bq"][...]
    k = jnp.dot(kv_in, ap["wk"][...], preferred_element_type=jnp.float32) + ap["bk"][...]
    v = jnp.dot(kv_in, ap["wv"][...], preferred_element_type=jnp.float32) + ap["bv"][...]
    # Contract on the last dim of both q and k (no explicit transpose/relayout).
    s = lax.dot_general(q, k, (((1,), (1,)), ((), ())),
                        preferred_element_type=jnp.float32) * ATTN_SCALE
    m = jnp.max(s, axis=-1, keepdims=True)
    e = jnp.exp(s - m)
    p = e * pl.reciprocal(jnp.sum(e, axis=-1, keepdims=True), approx=True)
    ctx = jnp.dot(p, v, preferred_element_type=jnp.float32)
    return jnp.dot(ctx, ap["wo"][...], preferred_element_type=jnp.float32) + ap["bo"][...]


def _ffn(x, lp):
    h = jnp.maximum(
        jnp.dot(x, lp["ff1_w"][...], preferred_element_type=jnp.float32) + lp["ff1_b"][...],
        0.0)
    return jnp.dot(h, lp["ff2_w"][...], preferred_element_type=jnp.float32) + lp["ff2_b"][...]


def _encoder_layer(x, lp):
    x = _layer_norm(x + _attention(x, x, lp["self_attn"]), lp["ln1_g"][...], lp["ln1_b"][...])
    x = _layer_norm(x + _ffn(x, lp), lp["ln2_g"][...], lp["ln2_b"][...])
    return x


def _decoder_layer(y, mem, lp):
    y = _layer_norm(y + _attention(y, y, lp["self_attn"]), lp["ln1_g"][...], lp["ln1_b"][...])
    y = _layer_norm(y + _attention(y, mem, lp["cross_attn"]), lp["ln2_g"][...], lp["ln2_b"][...])
    y = _layer_norm(y + _ffn(y, lp), lp["ln3_g"][...], lp["ln3_b"][...])
    return y


# ---------------- the single fused kernel ----------------

def _make_fused_kernel(treedef, n_leaves):
    def kernel(*refs):
        x_ref = refs[0]                                   # (S, 1) f32
        o_ref = refs[1 + n_leaves]                        # (S, 1) f32
        p = jax.tree_util.tree_unflatten(treedef, refs[1:1 + n_leaves])

        s = x_ref.shape[0]

        # Embedding: contraction length is INPUT_DIM == 1 -> skip the MXU, do a
        # VPU broadcast/outer-product instead of a degenerate matmul.
        emb = x_ref[...] * p["embedding"]["w"][...] + p["embedding"]["b"][...]      # (S, H)

        # tgt = [zeros(1,H); emb[:-1]] built entirely in VMEM (no wrapper concat,
        # no HBM round trip of emb).  A tiny constant sub-diagonal shift matrix
        # does the row shift + zeroing in one well-supported MXU op.
        r = lax.broadcasted_iota(jnp.int32, (s, s), 0)
        c = lax.broadcasted_iota(jnp.int32, (s, s), 1)
        shift_mat = (r == c + 1).astype(jnp.float32)                                # (S, S)
        tgt = jnp.dot(shift_mat, emb, preferred_element_type=jnp.float32)           # (S, H)

        # TODO(synk): nn.Transformer default dropout p=0.1 is train-time only; eval-mode identity.
        # Encoder stack (unrolled) + final encoder LayerNorm.
        mem = emb
        for lp in p["encoder_layers"]:
            mem = _encoder_layer(mem, lp)
        mem = _layer_norm(mem, p["encoder_norm"]["g"][...], p["encoder_norm"]["b"][...])

        # Decoder stack (unrolled) + final decoder LayerNorm.
        # NOTE: the reference forward() passes no tgt_mask, so (matching it) the
        # decoder self-attention is intentionally unmasked.
        out = tgt
        for lp in p["decoder_layers"]:
            out = _decoder_layer(out, mem, lp)
        out = _layer_norm(out, p["decoder_norm"]["g"][...], p["decoder_norm"]["b"][...])

        # Head: OUTPUT_DIM == 1 -> lane reduction on the VPU/XLU, no MXU pass.
        o_ref[...] = (jnp.sum(out * p["fc"]["wt"][...], axis=-1, keepdims=True)
                      + p["fc"]["b"][...])
    return kernel


# ---------------- deterministic parameter init ----------------

def _attn_init(key, scale=0.05):
    p = {}
    for name, k in zip("qkvo", jax.random.split(key, 4)):
        p["w" + name] = scale * jax.random.normal(k, (HIDDEN, HIDDEN), jnp.float32)
        p["b" + name] = jnp.zeros((1, HIDDEN), jnp.float32)
    return p


def _dense_init(key, din, dout, scale=0.05):
    return (scale * jax.random.normal(key, (din, dout), jnp.float32),
            jnp.zeros((1, dout), jnp.float32))


def _ln_init():
    return jnp.ones((1, HIDDEN), jnp.float32), jnp.zeros((1, HIDDEN), jnp.float32)


def init_params(key):
    # TODO(synk): PyTorch uses xavier/kaiming defaults; this deterministic init is for kernel
    # benchmarking/correctness of the Pallas graph, not checkpoint-level numerical parity.
    ki = iter(jax.random.split(key, 64))
    params = {}

    ew, eb = _dense_init(next(ki), INPUT_DIM, HIDDEN)
    params["embedding"] = {"w": ew, "b": eb}                      # w: (1, H) row

    enc = []
    for _ in range(NUM_LAYERS):
        lp = {"self_attn": _attn_init(next(ki))}
        lp["ff1_w"], lp["ff1_b"] = _dense_init(next(ki), HIDDEN, HIDDEN)
        lp["ff2_w"], lp["ff2_b"] = _dense_init(next(ki), HIDDEN, HIDDEN)
        lp["ln1_g"], lp["ln1_b"] = _ln_init()
        lp["ln2_g"], lp["ln2_b"] = _ln_init()
        enc.append(lp)
    params["encoder_layers"] = enc

    dec = []
    for _ in range(NUM_LAYERS):
        lp = {"self_attn": _attn_init(next(ki)), "cross_attn": _attn_init(next(ki))}
        lp["ff1_w"], lp["ff1_b"] = _dense_init(next(ki), HIDDEN, HIDDEN)
        lp["ff2_w"], lp["ff2_b"] = _dense_init(next(ki), HIDDEN, HIDDEN)
        lp["ln1_g"], lp["ln1_b"] = _ln_init()
        lp["ln2_g"], lp["ln2_b"] = _ln_init()
        lp["ln3_g"], lp["ln3_b"] = _ln_init()
        dec.append(lp)
    params["decoder_layers"] = dec

    g, b = _ln_init(); params["encoder_norm"] = {"g": g, "b": b}
    g, b = _ln_init(); params["decoder_norm"] = {"g": g, "b": b}

    fw, _ = _dense_init(next(ki), HIDDEN, OUTPUT_DIM)
    params["fc"] = {"wt": fw.T,                                   # (1, H): row form for lane reduce
                    "b": jnp.zeros((1, OUTPUT_DIM), jnp.float32)}
    return params


# ---------------- model forward: ONE pallas_call for the whole network ----------------

def transformer_forward(params, x):
    # x: (S, 1, input_dim), sequence-first like the PyTorch module input (N == 1).
    s = x.shape[0]
    leaves, treedef = jax.tree_util.tree_flatten(params)
    kernel = _make_fused_kernel(treedef, len(leaves))
    out = pl.pallas_call(
        kernel,
        out_shape=jax.ShapeDtypeStruct((s, OUTPUT_DIM), jnp.float32),
        in_specs=[pl.BlockSpec(memory_space=_VMEM)] * (1 + len(leaves)),
        out_specs=pl.BlockSpec(memory_space=_VMEM),
    )(x.reshape(s, INPUT_DIM), *leaves)
    return out.reshape(s, 1, OUTPUT_DIM)


if __name__ == "__main__":
    key = jax.random.PRNGKey(0)
    pkey, xkey = jax.random.split(key)
    params = init_params(pkey)
    x = jax.random.normal(xkey, (SEQ_LEN, 1, INPUT_DIM), jnp.float32)
    out = jax.jit(transformer_forward)(params, x)
    jax.block_until_ready(out)
    assert out.shape == (SEQ_LEN, 1, OUTPUT_DIM) and out.dtype == jnp.float32
    assert bool(jnp.all(jnp.isfinite(out)))
    print("KERNEL_OK")
</pallas_src>

<mosaic_0001>
module attributes {stable_mosaic.version = 11 : i64} {
  func.func @kernel(%arg0: memref<8x1xf32, #tpu.memory_space<vmem>>, %arg1: memref<1x32xf32, #tpu.memory_space<vmem>>, %arg2: memref<1x32xf32, #tpu.memory_space<vmem>>, %arg3: memref<1x32xf32, #tpu.memory_space<vmem>>, %arg4: memref<1x32xf32, #tpu.memory_space<vmem>>, %arg5: memref<32x32xf32, #tpu.memory_space<vmem>>, %arg6: memref<32x32xf32, #tpu.memory_space<vmem>>, %arg7: memref<32x32xf32, #tpu.memory_space<vmem>>, %arg8: memref<32x32xf32, #tpu.memory_space<vmem>>, %arg9: memref<1x32xf32, #tpu.memory_space<vmem>>, %arg10: memref<32x32xf32, #tpu.memory_space<vmem>>, %arg11: memref<1x32xf32, #tpu.memory_space<vmem>>, %arg12: memref<32x32xf32, #tpu.memory_space<vmem>>, %arg13: memref<1x32xf32, #tpu.memory_space<vmem>>, %arg14: memref<1x32xf32, #tpu.memory_space<vmem>>, %arg15: memref<1x32xf32, #tpu.memory_space<vmem>>, %arg16: memref<1x32xf32, #tpu.memory_space<vmem>>, %arg17: memref<1x32xf32, #tpu.memory_space<vmem>>, %arg18: memref<1x32xf32, #tpu.memory_space<vmem>>, %arg19: memref<1x32xf32, #tpu.memory_space<vmem>>, %arg20: memref<1x32xf32, #tpu.memory_space<vmem>>, %arg21: memref<1x32xf32, #tpu.memory_space<vmem>>, %arg22: memref<1x32xf32, #tpu.memory_space<vmem>>, %arg23: memref<32x32xf32, #tpu.memory_space<vmem>>, %arg24: memref<32x32xf32, #tpu.memory_space<vmem>>, %arg25: memref<32x32xf32, #tpu.memory_space<vmem>>, %arg26: memref<32x32xf32, #tpu.memory_space<vmem>>, %arg27: memref<1x32xf32, #tpu.memory_space<vmem>>, %arg28: memref<1x32xf32, #tpu.memory_space<vmem>>, %arg29: memref<1x32xf32, #tpu.memory_space<vmem>>, %arg30: memref<1x32xf32, #tpu.memory_space<vmem>>, %arg31: memref<32x32xf32, #tpu.memory_space<vmem>>, %arg32: memref<32x32xf32, #tpu.memory_space<vmem>>, %arg33: memref<32x32xf32, #tpu.memory_space<vmem>>, %arg34: memref<32x32xf32, #tpu.memory_space<vmem>>, %arg35: memref<1x32xf32, #tpu.memory_space<vmem>>, %arg36: memref<32x32xf32, #tpu.memory_space<vmem>>, %arg37: memref<1x32xf32, #tpu.memory_space<vmem>>, %arg38: memref<32x32xf32, #tpu.memory_space<vmem>>, %arg39: memref<1x32xf32, #tpu.memory_space<vmem>>, %arg40: memref<1x32xf32, #tpu.memory_space<vmem>>, %arg41: memref<1x32xf32, #tpu.memory_space<vmem>>, %arg42: memref<1x32xf32, #tpu.memory_space<vmem>>, %arg43: memref<1x32xf32, #tpu.memory_space<vmem>>, %arg44: memref<1x32xf32, #tpu.memory_space<vmem>>, %arg45: memref<1x32xf32, #tpu.memory_space<vmem>>, %arg46: memref<1x32xf32, #tpu.memory_space<vmem>>, %arg47: memref<1x32xf32, #tpu.memory_space<vmem>>, %arg48: memref<1x32xf32, #tpu.memory_space<vmem>>, %arg49: memref<32x32xf32, #tpu.memory_space<vmem>>, %arg50: memref<32x32xf32, #tpu.memory_space<vmem>>, %arg51: memref<32x32xf32, #tpu.memory_space<vmem>>, %arg52: memref<32x32xf32, #tpu.memory_space<vmem>>, %arg53: memref<1x32xf32, #tpu.memory_space<vmem>>, %arg54: memref<1x32xf32, #tpu.memory_space<vmem>>, %arg55: memref<1x32xf32, #tpu.memory_space<vmem>>, %arg56: memref<1x32xf32, #tpu.memory_space<vmem>>, %arg57: memref<1x32xf32, #tpu.memory_space<vmem>>, %arg58: memref<32x32xf32, #tpu.memory_space<vmem>>, %arg59: memref<1x32xf32, #tpu.memory_space<vmem>>, %arg60: memref<32x32xf32, #tpu.memory_space<vmem>>, %arg61: memref<1x32xf32, #tpu.memory_space<vmem>>, %arg62: memref<1x32xf32, #tpu.memory_space<vmem>>, %arg63: memref<1x32xf32, #tpu.memory_space<vmem>>, %arg64: memref<1x32xf32, #tpu.memory_space<vmem>>, %arg65: memref<1x32xf32, #tpu.memory_space<vmem>>, %arg66: memref<1x32xf32, #tpu.memory_space<vmem>>, %arg67: memref<1x32xf32, #tpu.memory_space<vmem>>, %arg68: memref<1x32xf32, #tpu.memory_space<vmem>>, %arg69: memref<32x32xf32, #tpu.memory_space<vmem>>, %arg70: memref<32x32xf32, #tpu.memory_space<vmem>>, %arg71: memref<32x32xf32, #tpu.memory_space<vmem>>, %arg72: memref<32x32xf32, #tpu.memory_space<vmem>>, %arg73: memref<1x32xf32, #tpu.memory_space<vmem>>, %arg74: memref<32x32xf32, #tpu.memory_space<vmem>>, %arg75: memref<1x32xf32, #tpu.memory_space<vmem>>, %arg76: memref<32x32xf32, #tpu.memory_space<vmem>>, %arg77: memref<1x32xf32, #tpu.memory_space<vmem>>, %arg78: memref<1x32xf32, #tpu.memory_space<vmem>>, %arg79: memref<1x32xf32, #tpu.memory_space<vmem>>, %arg80: memref<1x32xf32, #tpu.memory_space<vmem>>, %arg81: memref<1x32xf32, #tpu.memory_space<vmem>>, %arg82: memref<1x32xf32, #tpu.memory_space<vmem>>, %arg83: memref<1x32xf32, #tpu.memory_space<vmem>>, %arg84: memref<1x32xf32, #tpu.memory_space<vmem>>, %arg85: memref<32x32xf32, #tpu.memory_space<vmem>>, %arg86: memref<32x32xf32, #tpu.memory_space<vmem>>, %arg87: memref<32x32xf32, #tpu.memory_space<vmem>>, %arg88: memref<32x32xf32, #tpu.memory_space<vmem>>, %arg89: memref<1x32xf32, #tpu.memory_space<vmem>>, %arg90: memref<1x32xf32, #tpu.memory_space<vmem>>, %arg91: memref<1x1xf32, #tpu.memory_space<vmem>>, %arg92: memref<1x32xf32, #tpu.memory_space<vmem>>, %arg93: memref<8x1xf32, #tpu.memory_space<vmem>>) attributes {dimension_semantics = [], scalar_prefetch = 0 : i64, scratch_operands = 0 : i64, tpu.core_type = #tpu.core_type<tc>} {
    %c0 = arith.constant 0 : index
    %c0_0 = arith.constant 0 : index
    %0 = vector.load %arg0[%c0, %c0_0] : memref<8x1xf32, #tpu.memory_space<vmem>>, vector<8x1xf32>
    %c0_1 = arith.constant 0 : index
    %c0_2 = arith.constant 0 : index
    %1 = vector.load %arg56[%c0_1, %c0_2] : memref<1x32xf32, #tpu.memory_space<vmem>>, vector<1x32xf32>
    %2 = vector.broadcast %0 : vector<8x1xf32> to vector<8x32xf32>
    %3 = vector.broadcast %1 : vector<1x32xf32> to vector<8x32xf32>
    %4 = arith.mulf %2, %3 : vector<8x32xf32>
    %c0_3 = arith.constant 0 : index
    %c0_4 = arith.constant 0 : index
    %5 = vector.load %arg55[%c0_3, %c0_4] : memref<1x32xf32, #tpu.memory_space<vmem>>, vector<1x32xf32>
    %6 = vector.broadcast %5 : vector<1x32xf32> to vector<8x32xf32>
    %7 = arith.addf %4, %6 : vector<8x32xf32>
    %8 = tpu.iota {dimensions = array<i32: 0>} : vector<8x8xi32>
    %9 = tpu.iota {dimensions = array<i32: 1>} : vector<8x8xi32>
    %c1_i32 = arith.constant 1 : i32
    %10 = vector.broadcast %c1_i32 : i32 to vector<8x8xi32>
    %11 = arith.addi %9, %10 : vector<8x8xi32>
    %12 = arith.cmpi eq, %8, %11 : vector<8x8xi32>
    %13 = arith.extui %12 : vector<8x8xi1> to vector<8x8xi32>
    %14 = arith.sitofp %13 : vector<8x8xi32> to vector<8x8xf32>
    %cst = arith.constant dense<0.000000e+00> : vector<8x32xf32>
    %15 = tpu.matmul %14, %7, %cst {dimension_numbers = #tpu.dot_dimension_numbers<[1], [0], [0], [1], [0, 0, 1, 1], [], []>} : vector<8x8xf32>, vector<8x32xf32>, vector<8x32xf32> -> vector<8x32xf32>
    %c0_5 = arith.constant 0 : index
    %c0_6 = arith.constant 0 : index
    %16 = vector.load %arg71[%c0_5, %c0_6] : memref<32x32xf32, #tpu.memory_space<vmem>>, vector<32x32xf32>
    %cst_7 = arith.constant dense<0.000000e+00> : vector<8x32xf32>
    %17 = tpu.matmul %7, %16, %cst_7 {dimension_numbers = #tpu.dot_dimension_numbers<[1], [0], [0], [1], [0, 0, 1, 1], [], []>} : vector<8x32xf32>, vector<32x32xf32>, vector<8x32xf32> -> vector<8x32xf32>
    %c0_8 = arith.constant 0 : index
    %c0_9 = arith.constant 0 : index
    %18 = vector.load %arg67[%c0_8, %c0_9] : memref<1x32xf32, #tpu.memory_space<vmem>>, vector<1x32xf32>
    %19 = vector.broadcast %18 : vector<1x32xf32> to vector<8x32xf32>
    %20 = arith.addf %17, %19 : vector<8x32xf32>
    %c0_10 = arith.constant 0 : index
    %c0_11 = arith.constant 0 : index
    %21 = vector.load %arg69[%c0_10, %c0_11] : memref<32x32xf32, #tpu.memory_space<vmem>>, vector<32x32xf32>
    %cst_12 = arith.constant dense<0.000000e+00> : vector<8x32xf32>
    %22 = tpu.matmul %7, %21, %cst_12 {dimension_numbers = #tpu.dot_dimension_numbers<[1], [0], [0], [1], [0, 0, 1, 1], [], []>} : vector<8x32xf32>, vector<32x32xf32>, vector<8x32xf32> -> vector<8x32xf32>
    %c0_13 = arith.constant 0 : index
    %c0_14 = arith.constant 0 : index
    %23 = vector.load %arg65[%c0_13, %c0_14] : memref<1x32xf32, #tpu.memory_space<vmem>>, vector<1x32xf32>
    %24 = vector.broadcast %23 : vector<1x32xf32> to vector<8x32xf32>
    %25 = arith.addf %22, %24 : vector<8x32xf32>
    %c0_15 = arith.constant 0 : index
    %c0_16 = arith.constant 0 : index
    %26 = vector.load %arg72[%c0_15, %c0_16] : memref<32x32xf32, #tpu.memory_space<vmem>>, vector<32x32xf32>
    %cst_17 = arith.constant dense<0.000000e+00> : vector<8x32xf32>
    %27 = tpu.matmul %7, %26, %cst_17 {dimension_numbers = #tpu.dot_dimension_numbers<[1], [0], [0], [1], [0, 0, 1, 1], [], []>} : vector<8x32xf32>, vector<32x32xf32>, vector<8x32xf32> -> vector<8x32xf32>
    %c0_18 = arith.constant 0 : index
    %c0_19 = arith.constant 0 : index
    %28 = vector.load %arg68[%c0_18, %c0_19] : memref<1x32xf32, #tpu.memory_space<vmem>>, vector<1x32xf32>
    %29 = vector.broadcast %28 : vector<1x32xf32> to vector<8x32xf32>
    %30 = arith.addf %27, %29 : vector<8x32xf32>
    %cst_20 = arith.constant dense<0.000000e+00> : vector<8x8xf32>
    %31 = tpu.matmul %20, %25, %cst_20 {dimension_numbers = #tpu.dot_dimension_numbers<[1], [1], [0], [0], [0, 0, 1, 0], [], []>} : vector<8x32xf32>, vector<8x32xf32>, vector<8x8xf32> -> vector<8x8xf32>
    %cst_21 = arith.constant 0.176776692 : f32
    %32 = vector.broadcast %cst_21 : f32 to vector<8x8xf32>
    %33 = arith.mulf %31, %32 : vector<8x8xf32>
    %cst_22 = arith.constant dense<0xFF800000> : vector<8xf32>
    %34 = vector.multi_reduction <maximumf>, %33, %cst_22 [1] : vector<8x8xf32> to vector<8xf32>
    %35 = vector.shape_cast %34 : vector<8xf32> to vector<8x1xf32>
    %36 = vector.broadcast %35 : vector<8x1xf32> to vector<8x8xf32>
    %37 = arith.subf %33, %36 : vector<8x8xf32>
    %38 = math.exp %37 : vector<8x8xf32>
    %cst_23 = arith.constant dense<0.000000e+00> : vector<8xf32>
    %39 = vector.multi_reduction <add>, %38, %cst_23 [1] : vector<8x8xf32> to vector<8xf32>
    %40 = vector.shape_cast %39 : vector<8xf32> to vector<8x1xf32>
    %41 = tpu.reciprocal %40 {approx = true} : vector<8x1xf32> -> vector<8x1xf32>
    %42 = vector.broadcast %41 : vector<8x1xf32> to vector<8x8xf32>
    %43 = arith.mulf %38, %42 : vector<8x8xf32>
    %cst_24 = arith.constant dense<0.000000e+00> : vector<8x32xf32>
    %44 = tpu.matmul %43, %30, %cst_24 {dimension_numbers = #tpu.dot_dimension_numbers<[1], [0], [0], [1], [0, 0, 1, 1], [], []>} : vector<8x8xf32>, vector<8x32xf32>, vector<8x32xf32> -> vector<8x32xf32>
    %c0_25 = arith.constant 0 : index
    %c0_26 = arith.constant 0 : index
    %45 = vector.load %arg70[%c0_25, %c0_26] : memref<32x32xf32, #tpu.memory_space<vmem>>, vector<32x32xf32>
    %cst_27 = arith.constant dense<0.000000e+00> : vector<8x32xf32>
    %46 = tpu.matmul %44, %45, %cst_27 {dimension_numbers = #tpu.dot_dimension_numbers<[1], [0], [0], [1], [0, 0, 1, 1], [], []>} : vector<8x32xf32>, vector<32x32xf32>, vector<8x32xf32> -> vector<8x32xf32>
    %c0_28 = arith.constant 0 : index
    %c0_29 = arith.constant 0 : index
    %47 = vector.load %arg66[%c0_28, %c0_29] : memref<1x32xf32, #tpu.memory_space<vmem>>, vector<1x32xf32>
    %48 = vector.broadcast %47 : vector<1x32xf32> to vector<8x32xf32>
    %49 = arith.addf %46, %48 : vector<8x32xf32>
    %50 = arith.addf %7, %49 : vector<8x32xf32>
    %c0_30 = arith.constant 0 : index
    %c0_31 = arith.constant 0 : index
    %51 = vector.load %arg62[%c0_30, %c0_31] : memref<1x32xf32, #tpu.memory_space<vmem>>, vector<1x32xf32>
    %c0_32 = arith.constant 0 : index
    %c0_33 = arith.constant 0 : index
    %52 = vector.load %arg61[%c0_32, %c0_33] : memref<1x32xf32, #tpu.memory_space<vmem>>, vector<1x32xf32>
    %cst_34 = arith.constant dense<0.000000e+00> : vector<8xf32>
    %53 = vector.multi_reduction <add>, %50, %cst_34 [1] : vector<8x32xf32> to vector<8xf32>
    %54 = vector.shape_cast %53 : vector<8xf32> to vector<8x1xf32>
    %cst_35 = arith.constant 3.200000e+01 : f32
    %55 = vector.broadcast %cst_35 : f32 to vector<8x1xf32>
    %56 = arith.divf %54, %55 : vector<8x1xf32>
    %57 = vector.broadcast %56 : vector<8x1xf32> to vector<8x32xf32>
    %58 = arith.subf %50, %57 : vector<8x32xf32>
    %59 = arith.mulf %58, %58 : vector<8x32xf32>
    %cst_36 = arith.constant dense<0.000000e+00> : vector<8xf32>
    %60 = vector.multi_reduction <add>, %59, %cst_36 [1] : vector<8x32xf32> to vector<8xf32>
    %61 = vector.shape_cast %60 : vector<8xf32> to vector<8x1xf32>
    %cst_37 = arith.constant 3.200000e+01 : f32
    %62 = vector.broadcast %cst_37 : f32 to vector<8x1xf32>
    %63 = arith.divf %61, %62 : vector<8x1xf32>
    %64 = vector.broadcast %56 : vector<8x1xf32> to vector<8x32xf32>
    %65 = arith.subf %50, %64 : vector<8x32xf32>
    %cst_38 = arith.constant 9.99999974E-6 : f32
    %66 = vector.broadcast %cst_38 : f32 to vector<8x1xf32>
    %67 = arith.addf %63, %66 : vector<8x1xf32>
    %68 = math.rsqrt %67 : vector<8x1xf32>
    %69 = vector.broadcast %68 : vector<8x1xf32> to vector<8x32xf32>
    %70 = arith.mulf %65, %69 : vector<8x32xf32>
    %71 = vector.broadcast %51 : vector<1x32xf32> to vector<8x32xf32>
    %72 = arith.mulf %70, %71 : vector<8x32xf32>
    %73 = vector.broadcast %52 : vector<1x32xf32> to vector<8x32xf32>
    %74 = arith.addf %72, %73 : vector<8x32xf32>
    %c0_39 = arith.constant 0 : index
    %c0_40 = arith.constant 0 : index
    %75 = vector.load %arg58[%c0_39, %c0_40] : memref<32x32xf32, #tpu.memory_space<vmem>>, vector<32x32xf32>
    %cst_41 = arith.constant dense<0.000000e+00> : vector<8x32xf32>
    %76 = tpu.matmul %74, %75, %cst_41 {dimension_numbers = #tpu.dot_dimension_numbers<[1], [0], [0], [1], [0, 0, 1, 1], [], []>} : vector<8x32xf32>, vector<32x32xf32>, vector<8x32xf32> -> vector<8x32xf32>
    %c0_42 = arith.constant 0 : index
    %c0_43 = arith.constant 0 : index
    %77 = vector.load %arg57[%c0_42, %c0_43] : memref<1x32xf32, #tpu.memory_space<vmem>>, vector<1x32xf32>
    %78 = vector.broadcast %77 : vector<1x32xf32> to vector<8x32xf32>
    %79 = arith.addf %76, %78 : vector<8x32xf32>
    %cst_44 = arith.constant 0.000000e+00 : f32
    %80 = vector.broadcast %cst_44 : f32 to vector<8x32xf32>
    %81 = arith.maximumf %79, %80 : vector<8x32xf32>
    %c0_45 = arith.constant 0 : index
    %c0_46 = arith.constant 0 : index
    %82 = vector.load %arg60[%c0_45, %c0_46] : memref<32x32xf32, #tpu.memory_space<vmem>>, vector<32x32xf32>
    %cst_47 = arith.constant dense<0.000000e+00> : vector<8x32xf32>
    %83 = tpu.matmul %81, %82, %cst_47 {dimension_numbers = #tpu.dot_dimension_numbers<[1], [0], [0], [1], [0, 0, 1, 1], [], []>} : vector<8x32xf32>, vector<32x32xf32>, vector<8x32xf32> -> vector<8x32xf32>
    %c0_48 = arith.constant 0 : index
    %c0_49 = arith.constant 0 : index
    %84 = vector.load %arg59[%c0_48, %c0_49] : memref<1x32xf32, #tpu.memory_space<vmem>>, vector<1x32xf32>
    %85 = vector.broadcast %84 : vector<1x32xf32> to vector<8x32xf32>
    %86 = arith.addf %83, %85 : vector<8x32xf32>
    %87 = arith.addf %74, %86 : vector<8x32xf32>
    %c0_50 = arith.constant 0 : index
    %c0_51 = arith.constant 0 : index
    %88 = vector.load %arg64[%c0_50, %c0_51] : memref<1x32xf32, #tpu.memory_space<vmem>>, vector<1x32xf32>
    %c0_52 = arith.constant 0 : index
    %c0_53 = arith.constant 0 : index
    %89 = vector.load %arg63[%c0_52, %c0_53] : memref<1x32xf32, #tpu.memory_space<vmem>>, vector<1x32xf32>
    %cst_54 = arith.constant dense<0.000000e+00> : vector<8xf32>
    %90 = vector.multi_reduction <add>, %87, %cst_54 [1] : vector<8x32xf32> to vector<8xf32>
    %91 = vector.shape_cast %90 : vector<8xf32> to vector<8x1xf32>
    %cst_55 = arith.constant 3.200000e+01 : f32
    %92 = vector.broadcast %cst_55 : f32 to vector<8x1xf32>
    %93 = arith.divf %91, %92 : vector<8x1xf32>
    %94 = vector.broadcast %93 : vector<8x1xf32> to vector<8x32xf32>
    %95 = arith.subf %87, %94 : vector<8x32xf32>
    %96 = arith.mulf %95, %95 : vector<8x32xf32>
    %cst_56 = arith.constant dense<0.000000e+00> : vector<8xf32>
    %97 = vector.multi_reduction <add>, %96, %cst_56 [1] : vector<8x32xf32> to vector<8xf32>
    %98 = vector.shape_cast %97 : vector<8xf32> to vector<8x1xf32>
    %cst_57 = arith.constant 3.200000e+01 : f32
    %99 = vector.broadcast %cst_57 : f32 to vector<8x1xf32>
    %100 = arith.divf %98, %99 : vector<8x1xf32>
    %101 = vector.broadcast %93 : vector<8x1xf32> to vector<8x32xf32>
    %102 = arith.subf %87, %101 : vector<8x32xf32>
    %cst_58 = arith.constant 9.99999974E-6 : f32
    %103 = vector.broadcast %cst_58 : f32 to vector<8x1xf32>
    %104 = arith.addf %100, %103 : vector<8x1xf32>
    %105 = math.rsqrt %104 : vector<8x1xf32>
    %106 = vector.broadcast %105 : vector<8x1xf32> to vector<8x32xf32>
    %107 = arith.mulf %102, %106 : vector<8x32xf32>
    %108 = vector.broadcast %88 : vector<1x32xf32> to vector<8x32xf32>
    %109 = arith.mulf %107, %108 : vector<8x32xf32>
    %110 = vector.broadcast %89 : vector<1x32xf32> to vector<8x32xf32>
    %111 = arith.addf %109, %110 : vector<8x32xf32>
    %c0_59 = arith.constant 0 : index
    %c0_60 = arith.constant 0 : index
    %112 = vector.load %arg87[%c0_59, %c0_60] : memref<32x32xf32, #tpu.memory_space<vmem>>, vector<32x32xf32>
    %cst_61 = arith.constant dense<0.000000e+00> : vector<8x32xf32>
    %113 = tpu.matmul %111, %112, %cst_61 {dimension_numbers = #tpu.dot_dimension_numbers<[1], [0], [0], [1], [0, 0, 1, 1], [], []>} : vector<8x32xf32>, vector<32x32xf32>, vector<8x32xf32> -> vector<8x32xf32>
    %c0_62 = arith.constant 0 : index
    %c0_63 = arith.constant 0 : index
    %114 = vector.load %arg83[%c0_62, %c0_63] : memref<1x32xf32, #tpu.memory_space<vmem>>, vector<1x32xf32>
    %115 = vector.broadcast %114 : vector<1x32xf32> to vector<8x32xf32>
    %116 = arith.addf %113, %115 : vector<8x32xf32>
    %c0_64 = arith.constant 0 : index
    %c0_65 = arith.constant 0 : index
    %117 = vector.load %arg85[%c0_64, %c0_65] : memref<32x32xf32, #tpu.memory_space<vmem>>, vector<32x32xf32>
    %cst_66 = arith.constant dense<0.000000e+00> : vector<8x32xf32>
    %118 = tpu.matmul %111, %117, %cst_66 {dimension_numbers = #tpu.dot_dimension_numbers<[1], [0], [0], [1], [0, 0, 1, 1], [], []>} : vector<8x32xf32>, vector<32x32xf32>, vector<8x32xf32> -> vector<8x32xf32>
    %c0_67 = arith.constant 0 : index
    %c0_68 = arith.constant 0 : index
    %119 = vector.load %arg81[%c0_67, %c0_68] : memref<1x32xf32, #tpu.memory_space<vmem>>, vector<1x32xf32>
    %120 = vector.broadcast %119 : vector<1x32xf32> to vector<8x32xf32>
    %121 = arith.addf %118, %120 : vector<8x32xf32>
    %c0_69 = arith.constant 0 : index
    %c0_70 = arith.constant 0 : index
    %122 = vector.load %arg88[%c0_69, %c0_70] : memref<32x32xf32, #tpu.memory_space<vmem>>, vector<32x32xf32>
    %cst_71 = arith.constant dense<0.000000e+00> : vector<8x32xf32>
    %123 = tpu.matmul %111, %122, %cst_71 {dimension_numbers = #tpu.dot_dimension_numbers<[1], [0], [0], [1], [0, 0, 1, 1], [], []>} : vector<8x32xf32>, vector<32x32xf32>, vector<8x32xf32> -> vector<8x32xf32>
    %c0_72 = arith.constant 0 : index
    %c0_73 = arith.constant 0 : index
    %124 = vector.load %arg84[%c0_72, %c0_73] : memref<1x32xf32, #tpu.memory_space<vmem>>, vector<1x32xf32>
    %125 = vector.broadcast %124 : vector<1x32xf32> to vector<8x32xf32>
    %126 = arith.addf %123, %125 : vector<8x32xf32>
    %cst_74 = arith.constant dense<0.000000e+00> : vector<8x8xf32>
    %127 = tpu.matmul %116, %121, %cst_74 {dimension_numbers = #tpu.dot_dimension_numbers<[1], [1], [0], [0], [0, 0, 1, 0], [], []>} : vector<8x32xf32>, vector<8x32xf32>, vector<8x8xf32> -> vector<8x8xf32>
    %cst_75 = arith.constant 0.176776692 : f32
    %128 = vector.broadcast %cst_75 : f32 to vector<8x8xf32>
    %129 = arith.mulf %127, %128 : vector<8x8xf32>
    %cst_76 = arith.constant dense<0xFF800000> : vector<8xf32>
    %130 = vector.multi_reduction <maximumf>, %129, %cst_76 [1] : vector<8x8xf32> to vector<8xf32>
    %131 = vector.shape_cast %130 : vector<8xf32> to vector<8x1xf32>
    %132 = vector.broadcast %131 : vector<8x1xf32> to vector<8x8xf32>
    %133 = arith.subf %129, %132 : vector<8x8xf32>
    %134 = math.exp %133 : vector<8x8xf32>
    %cst_77 = arith.constant dense<0.000000e+00> : vector<8xf32>
    %135 = vector.multi_reduction <add>, %134, %cst_77 [1] : vector<8x8xf32> to vector<8xf32>
    %136 = vector.shape_cast %135 : vector<8xf32> to vector<8x1xf32>
    %137 = tpu.reciprocal %136 {approx = true} : vector<8x1xf32> -> vector<8x1xf32>
    %138 = vector.broadcast %137 : vector<8x1xf32> to vector<8x8xf32>
    %139 = arith.mulf %134, %138 : vector<8x8xf32>
    %cst_78 = arith.constant dense<0.000000e+00> : vector<8x32xf32>
    %140 = tpu.matmul %139, %126, %cst_78 {dimension_numbers = #tpu.dot_dimension_numbers<[1], [0], [0], [1], [0, 0, 1, 1], [], []>} : vector<8x8xf32>, vector<8x32xf32>, vector<8x32xf32> -> vector<8x32xf32>
    %c0_79 = arith.constant 0 : index
    %c0_80 = arith.constant 0 : index
    %141 = vector.load %arg86[%c0_79, %c0_80] : memref<32x32xf32, #tpu.memory_space<vmem>>, vector<32x32xf32>
    %cst_81 = arith.constant dense<0.000000e+00> : vector<8x32xf32>
    %142 = tpu.matmul %140, %141, %cst_81 {dimension_numbers = #tpu.dot_dimension_numbers<[1], [0], [0], [1], [0, 0, 1, 1], [], []>} : vector<8x32xf32>, vector<32x32xf32>, vector<8x32xf32> -> vector<8x32xf32>
    %c0_82 = arith.constant 0 : index
    %c0_83 = arith.constant 0 : index
    %143 = vector.load %arg82[%c0_82, %c0_83] : memref<1x32xf32, #tpu.memory_space<vmem>>, vector<1x32xf32>
    %144 = vector.broadcast %143 : vector<1x32xf32> to vector<8x32xf32>
    %145 = arith.addf %142, %144 : vector<8x32xf32>
    %146 = arith.addf %111, %145 : vector<8x32xf32>
    %c0_84 = arith.constant 0 : index
    %c0_85 = arith.constant 0 : index
    %147 = vector.load %arg78[%c0_84, %c0_85] : memref<1x32xf32, #tpu.memory_space<vmem>>, vector<1x32xf32>
    %c0_86 = arith.constant 0 : index
    %c0_87 = arith.constant 0 : index
    %148 = vector.load %arg77[%c0_86, %c0_87] : memref<1x32xf32, #tpu.memory_space<vmem>>, vector<1x32xf32>
    %cst_88 = arith.constant dense<0.000000e+00> : vector<8xf32>
    %149 = vector.multi_reduction <add>, %146, %cst_88 [1] : vector<8x32xf32> to vector<8xf32>
    %150 = vector.shape_cast %149 : vector<8xf32> to vector<8x1xf32>
    %cst_89 = arith.constant 3.200000e+01 : f32
    %151 = vector.broadcast %cst_89 : f32 to vector<8x1xf32>
    %152 = arith.divf %150, %151 : vector<8x1xf32>
    %153 = vector.broadcast %152 : vector<8x1xf32> to vector<8x32xf32>
    %154 = arith.subf %146, %153 : vector<8x32xf32>
    %155 = arith.mulf %154, %154 : vector<8x32xf32>
    %cst_90 = arith.constant dense<0.000000e+00> : vector<8xf32>
    %156 = vector.multi_reduction <add>, %155, %cst_90 [1] : vector<8x32xf32> to vector<8xf32>
    %157 = vector.shape_cast %156 : vector<8xf32> to vector<8x1xf32>
    %cst_91 = arith.constant 3.200000e+01 : f32
    %158 = vector.broadcast %cst_91 : f32 to vector<8x1xf32>
    %159 = arith.divf %157, %158 : vector<8x1xf32>
    %160 = vector.broadcast %152 : vector<8x1xf32> to vector<8x32xf32>
    %161 = arith.subf %146, %160 : vector<8x32xf32>
    %cst_92 = arith.constant 9.99999974E-6 : f32
    %162 = vector.broadcast %cst_92 : f32 to vector<8x1xf32>
    %163 = arith.addf %159, %162 : vector<8x1xf32>
    %164 = math.rsqrt %163 : vector<8x1xf32>
    %165 = vector.broadcast %164 : vector<8x1xf32> to vector<8x32xf32>
    %166 = arith.mulf %161, %165 : vector<8x32xf32>
    %167 = vector.broadcast %147 : vector<1x32xf32> to vector<8x32xf32>
    %168 = arith.mulf %166, %167 : vector<8x32xf32>
    %169 = vector.broadcast %148 : vector<1x32xf32> to vector<8x32xf32>
    %170 = arith.addf %168, %169 : vector<8x32xf32>
    %c0_93 = arith.constant 0 : index
    %c0_94 = arith.constant 0 : index
    %171 = vector.load %arg74[%c0_93, %c0_94] : memref<32x32xf32, #tpu.memory_space<vmem>>, vector<32x32xf32>
    %cst_95 = arith.constant dense<0.000000e+00> : vector<8x32xf32>
    %172 = tpu.matmul %170, %171, %cst_95 {dimension_numbers = #tpu.dot_dimension_numbers<[1], [0], [0], [1], [0, 0, 1, 1], [], []>} : vector<8x32xf32>, vector<32x32xf32>, vector<8x32xf32> -> vector<8x32xf32>
    %c0_96 = arith.constant 0 : index
    %c0_97 = arith.constant 0 : index
    %173 = vector.load %arg73[%c0_96, %c0_97] : memref<1x32xf32, #tpu.memory_space<vmem>>, vector<1x32xf32>
    %174 = vector.broadcast %173 : vector<1x32xf32> to vector<8x32xf32>
    %175 = arith.addf %172, %174 : vector<8x32xf32>
    %cst_98 = arith.constant 0.000000e+00 : f32
    %176 = vector.broadcast %cst_98 : f32 to vector<8x32xf32>
    %177 = arith.maximumf %175, %176 : vector<8x32xf32>
    %c0_99 = arith.constant 0 : index
    %c0_100 = arith.constant 0 : index
    %178 = vector.load %arg76[%c0_99, %c0_100] : memref<32x32xf32, #tpu.memory_space<vmem>>, vector<32x32xf32>
    %cst_101 = arith.constant dense<0.000000e+00> : vector<8x32xf32>
    %179 = tpu.matmul %177, %178, %cst_101 {dimension_numbers = #tpu.dot_dimension_numbers<[1], [0], [0], [1], [0, 0, 1, 1], [], []>} : vector<8x32xf32>, vector<32x32xf32>, vector<8x32xf32> -> vector<8x32xf32>
    %c0_102 = arith.constant 0 : index
    %c0_103 = arith.constant 0 : index
    %180 = vector.load %arg75[%c0_102, %c0_103] : memref<1x32xf32, #tpu.memory_space<vmem>>, vector<1x32xf32>
    %181 = vector.broadcast %180 : vector<1x32xf32> to vector<8x32xf32>
    %182 = arith.addf %179, %181 : vector<8x32xf32>
    %183 = arith.addf %170, %182 : vector<8x32xf32>
    %c0_104 = arith.constant 0 : index
    %c0_105 = arith.constant 0 : index
    %184 = vector.load %arg80[%c0_104, %c0_105] : memref<1x32xf32, #tpu.memory_space<vmem>>, vector<1x32xf32>
    %c0_106 = arith.constant 0 : index
    %c0_107 = arith.constant 0 : index
    %185 = vector.load %arg79[%c0_106, %c0_107] : memref<1x32xf32, #tpu.memory_space<vmem>>, vector<1x32xf32>
    %cst_108 = arith.constant dense<0.000000e+00> : vector<8xf32>
    %186 = vector.multi_reduction <add>, %183, %cst_108 [1] : vector<8x32xf32> to vector<8xf32>
    %187 = vector.shape_cast %186 : vector<8xf32> to vector<8x1xf32>
    %cst_109 = arith.constant 3.200000e+01 : f32
    %188 = vector.broadcast %cst_109 : f32 to vector<8x1xf32>
    %189 = arith.divf %187, %188 : vector<8x1xf32>
    %190 = vector.broadcast %189 : vector<8x1xf32> to vector<8x32xf32>
    %191 = arith.subf %183, %190 : vector<8x32xf32>
    %192 = arith.mulf %191, %191 : vector<8x32xf32>
    %cst_110 = arith.constant dense<0.000000e+00> : vector<8xf32>
    %193 = vector.multi_reduction <add>, %192, %cst_110 [1] : vector<8x32xf32> to vector<8xf32>
    %194 = vector.shape_cast %193 : vector<8xf32> to vector<8x1xf32>
    %cst_111 = arith.constant 3.200000e+01 : f32
    %195 = vector.broadcast %cst_111 : f32 to vector<8x1xf32>
    %196 = arith.divf %194, %195 : vector<8x1xf32>
    %197 = vector.broadcast %189 : vector<8x1xf32> to vector<8x32xf32>
    %198 = arith.subf %183, %197 : vector<8x32xf32>
    %cst_112 = arith.constant 9.99999974E-6 : f32
    %199 = vector.broadcast %cst_112 : f32 to vector<8x1xf32>
    %200 = arith.addf %196, %199 : vector<8x1xf32>
    %201 = math.rsqrt %200 : vector<8x1xf32>
    %202 = vector.broadcast %201 : vector<8x1xf32> to vector<8x32xf32>
    %203 = arith.mulf %198, %202 : vector<8x32xf32>
    %204 = vector.broadcast %184 : vector<1x32xf32> to vector<8x32xf32>
    %205 = arith.mulf %203, %204 : vector<8x32xf32>
    %206 = vector.broadcast %185 : vector<1x32xf32> to vector<8x32xf32>
    %207 = arith.addf %205, %206 : vector<8x32xf32>
    %c0_113 = arith.constant 0 : index
    %c0_114 = arith.constant 0 : index
    %208 = vector.load %arg90[%c0_113, %c0_114] : memref<1x32xf32, #tpu.memory_space<vmem>>, vector<1x32xf32>
    %c0_115 = arith.constant 0 : index
    %c0_116 = arith.constant 0 : index
    %209 = vector.load %arg89[%c0_115, %c0_116] : memref<1x32xf32, #tpu.memory_space<vmem>>, vector<1x32xf32>
    %cst_117 = arith.constant dense<0.000000e+00> : vector<8xf32>
    %210 = vector.multi_reduction <add>, %207, %cst_117 [1] : vector<8x32xf32> to vector<8xf32>
    %211 = vector.shape_cast %210 : vector<8xf32> to vector<8x1xf32>
    %cst_118 = arith.constant 3.200000e+01 : f32
    %212 = vector.broadcast %cst_118 : f32 to vector<8x1xf32>
    %213 = arith.divf %211, %212 : vector<8x1xf32>
    %214 = vector.broadcast %213 : vector<8x1xf32> to vector<8x32xf32>
    %215 = arith.subf %207, %214 : vector<8x32xf32>
    %216 = arith.mulf %215, %215 : vector<8x32xf32>
    %cst_119 = arith.constant dense<0.000000e+00> : vector<8xf32>
    %217 = vector.multi_reduction <add>, %216, %cst_119 [1] : vector<8x32xf32> to vector<8xf32>
    %218 = vector.shape_cast %217 : vector<8xf32> to vector<8x1xf32>
    %cst_120 = arith.constant 3.200000e+01 : f32
    %219 = vector.broadcast %cst_120 : f32 to vector<8x1xf32>
    %220 = arith.divf %218, %219 : vector<8x1xf32>
    %221 = vector.broadcast %213 : vector<8x1xf32> to vector<8x32xf32>
    %222 = arith.subf %207, %221 : vector<8x32xf32>
    %cst_121 = arith.constant 9.99999974E-6 : f32
    %223 = vector.broadcast %cst_121 : f32 to vector<8x1xf32>
    %224 = arith.addf %220, %223 : vector<8x1xf32>
    %225 = math.rsqrt %224 : vector<8x1xf32>
    %226 = vector.broadcast %225 : vector<8x1xf32> to vector<8x32xf32>
    %227 = arith.mulf %222, %226 : vector<8x32xf32>
    %228 = vector.broadcast %208 : vector<1x32xf32> to vector<8x32xf32>
    %229 = arith.mulf %227, %228 : vector<8x32xf32>
    %230 = vector.broadcast %209 : vector<1x32xf32> to vector<8x32xf32>
    %231 = arith.addf %229, %230 : vector<8x32xf32>
    %c0_122 = arith.constant 0 : index
    %c0_123 = arith.constant 0 : index
    %232 = vector.load %arg25[%c0_122, %c0_123] : memref<32x32xf32, #tpu.memory_space<vmem>>, vector<32x32xf32>
    %cst_124 = arith.constant dense<0.000000e+00> : vector<8x32xf32>
    %233 = tpu.matmul %15, %232, %cst_124 {dimension_numbers = #tpu.dot_dimension_numbers<[1], [0], [0], [1], [0, 0, 1, 1], [], []>} : vector<8x32xf32>, vector<32x32xf32>, vector<8x32xf32> -> vector<8x32xf32>
    %c0_125 = arith.constant 0 : index
    %c0_126 = arith.constant 0 : index
    %234 = vector.load %arg21[%c0_125, %c0_126] : memref<1x32xf32, #tpu.memory_space<vmem>>, vector<1x32xf32>
    %235 = vector.broadcast %234 : vector<1x32xf32> to vector<8x32xf32>
    %236 = arith.addf %233, %235 : vector<8x32xf32>
    %c0_127 = arith.constant 0 : index
    %c0_128 = arith.constant 0 : index
    %237 = vector.load %arg23[%c0_127, %c0_128] : memref<32x32xf32, #tpu.memory_space<vmem>>, vector<32x32xf32>
    %cst_129 = arith.constant dense<0.000000e+00> : vector<8x32xf32>
    %238 = tpu.matmul %15, %237, %cst_129 {dimension_numbers = #tpu.dot_dimension_numbers<[1], [0], [0], [1], [0, 0, 1, 1], [], []>} : vector<8x32xf32>, vector<32x32xf32>, vector<8x32xf32> -> vector<8x32xf32>
    %c0_130 = arith.constant 0 : index
    %c0_131 = arith.constant 0 : index
    %239 = vector.load %arg19[%c0_130, %c0_131] : memref<1x32xf32, #tpu.memory_space<vmem>>, vector<1x32xf32>
    %240 = vector.broadcast %239 : vector<1x32xf32> to vector<8x32xf32>
    %241 = arith.addf %238, %240 : vector<8x32xf32>
    %c0_132 = arith.constant 0 : index
    %c0_133 = arith.constant 0 : index
    %242 = vector.load %arg26[%c0_132, %c0_133] : memref<32x32xf32, #tpu.memory_space<vmem>>, vector<32x32xf32>
    %cst_134 = arith.constant dense<0.000000e+00> : vector<8x32xf32>
    %243 = tpu.matmul %15, %242, %cst_134 {dimension_numbers = #tpu.dot_dimension_numbers<[1], [0], [0], [1], [0, 0, 1, 1], [], []>} : vector<8x32xf32>, vector<32x32xf32>, vector<8x32xf32> -> vector<8x32xf32>
    %c0_135 = arith.constant 0 : index
    %c0_136 = arith.constant 0 : index
    %244 = vector.load %arg22[%c0_135, %c0_136] : memref<1x32xf32, #tpu.memory_space<vmem>>, vector<1x32xf32>
    %245 = vector.broadcast %244 : vector<1x32xf32> to vector<8x32xf32>
    %246 = arith.addf %243, %245 : vector<8x32xf32>
    %cst_137 = arith.constant dense<0.000000e+00> : vector<8x8xf32>
    %247 = tpu.matmul %236, %241, %cst_137 {dimension_numbers = #tpu.dot_dimension_numbers<[1], [1], [0], [0], [0, 0, 1, 0], [], []>} : vector<8x32xf32>, vector<8x32xf32>, vector<8x8xf32> -> vector<8x8xf32>
    %cst_138 = arith.constant 0.176776692 : f32
    %248 = vector.broadcast %cst_138 : f32 to vector<8x8xf32>
    %249 = arith.mulf %247, %248 : vector<8x8xf32>
    %cst_139 = arith.constant dense<0xFF800000> : vector<8xf32>
    %250 = vector.multi_reduction <maximumf>, %249, %cst_139 [1] : vector<8x8xf32> to vector<8xf32>
    %251 = vector.shape_cast %250 : vector<8xf32> to vector<8x1xf32>
    %252 = vector.broadcast %251 : vector<8x1xf32> to vector<8x8xf32>
    %253 = arith.subf %249, %252 : vector<8x8xf32>
    %254 = math.exp %253 : vector<8x8xf32>
    %cst_140 = arith.constant dense<0.000000e+00> : vector<8xf32>
    %255 = vector.multi_reduction <add>, %254, %cst_140 [1] : vector<8x8xf32> to vector<8xf32>
    %256 = vector.shape_cast %255 : vector<8xf32> to vector<8x1xf32>
    %257 = tpu.reciprocal %256 {approx = true} : vector<8x1xf32> -> vector<8x1xf32>
    %258 = vector.broadcast %257 : vector<8x1xf32> to vector<8x8xf32>
    %259 = arith.mulf %254, %258 : vector<8x8xf32>
    %cst_141 = arith.constant dense<0.000000e+00> : vector<8x32xf32>
    %260 = tpu.matmul %259, %246, %cst_141 {dimension_numbers = #tpu.dot_dimension_numbers<[1], [0], [0], [1], [0, 0, 1, 1], [], []>} : vector<8x8xf32>, vector<8x32xf32>, vector<8x32xf32> -> vector<8x32xf32>
    %c0_142 = arith.constant 0 : index
    %c0_143 = arith.constant 0 : index
    %261 = vector.load %arg24[%c0_142, %c0_143] : memref<32x32xf32, #tpu.memory_space<vmem>>, vector<32x32xf32>
    %cst_144 = arith.constant dense<0.000000e+00> : vector<8x32xf32>
    %262 = tpu.matmul %260, %261, %cst_144 {dimension_numbers = #tpu.dot_dimension_numbers<[1], [0], [0], [1], [0, 0, 1, 1], [], []>} : vector<8x32xf32>, vector<32x32xf32>, vector<8x32xf32> -> vector<8x32xf32>
    %c0_145 = arith.constant 0 : index
    %c0_146 = arith.constant 0 : index
    %263 = vector.load %arg20[%c0_145, %c0_146] : memref<1x32xf32, #tpu.memory_space<vmem>>, vector<1x32xf32>
    %264 = vector.broadcast %263 : vector<1x32xf32> to vector<8x32xf32>
    %265 = arith.addf %262, %264 : vector<8x32xf32>
    %266 = arith.addf %15, %265 : vector<8x32xf32>
    %c0_147 = arith.constant 0 : index
    %c0_148 = arith.constant 0 : index
    %267 = vector.load %arg14[%c0_147, %c0_148] : memref<1x32xf32, #tpu.memory_space<vmem>>, vector<1x32xf32>
    %c0_149 = arith.constant 0 : index
    %c0_150 = arith.constant 0 : index
    %268 = vector.load %arg13[%c0_149, %c0_150] : memref<1x32xf32, #tpu.memory_space<vmem>>, vector<1x32xf32>
    %cst_151 = arith.constant dense<0.000000e+00> : vector<8xf32>
    %269 = vector.multi_reduction <add>, %266, %cst_151 [1] : vector<8x32xf32> to vector<8xf32>
    %270 = vector.shape_cast %269 : vector<8xf32> to vector<8x1xf32>
    %cst_152 = arith.constant 3.200000e+01 : f32
    %271 = vector.broadcast %cst_152 : f32 to vector<8x1xf32>
    %272 = arith.divf %270, %271 : vector<8x1xf32>
    %273 = vector.broadcast %272 : vector<8x1xf32> to vector<8x32xf32>
    %274 = arith.subf %266, %273 : vector<8x32xf32>
    %275 = arith.mulf %274, %274 : vector<8x32xf32>
    %cst_153 = arith.constant dense<0.000000e+00> : vector<8xf32>
    %276 = vector.multi_reduction <add>, %275, %cst_153 [1] : vector<8x32xf32> to vector<8xf32>
    %277 = vector.shape_cast %276 : vector<8xf32> to vector<8x1xf32>
    %cst_154 = arith.constant 3.200000e+01 : f32
    %278 = vector.broadcast %cst_154 : f32 to vector<8x1xf32>
    %279 = arith.divf %277, %278 : vector<8x1xf32>
    %280 = vector.broadcast %272 : vector<8x1xf32> to vector<8x32xf32>
    %281 = arith.subf %266, %280 : vector<8x32xf32>
    %cst_155 = arith.constant 9.99999974E-6 : f32
    %282 = vector.broadcast %cst_155 : f32 to vector<8x1xf32>
    %283 = arith.addf %279, %282 : vector<8x1xf32>
    %284 = math.rsqrt %283 : vector<8x1xf32>
    %285 = vector.broadcast %284 : vector<8x1xf32> to vector<8x32xf32>
    %286 = arith.mulf %281, %285 : vector<8x32xf32>
    %287 = vector.broadcast %267 : vector<1x32xf32> to vector<8x32xf32>
    %288 = arith.mulf %286, %287 : vector<8x32xf32>
    %289 = vector.broadcast %268 : vector<1x32xf32> to vector<8x32xf32>
    %290 = arith.addf %288, %289 : vector<8x32xf32>
    %c0_156 = arith.constant 0 : index
    %c0_157 = arith.constant 0 : index
    %291 = vector.load %arg7[%c0_156, %c0_157] : memref<32x32xf32, #tpu.memory_space<vmem>>, vector<32x32xf32>
    %cst_158 = arith.constant dense<0.000000e+00> : vector<8x32xf32>
    %292 = tpu.matmul %290, %291, %cst_158 {dimension_numbers = #tpu.dot_dimension_numbers<[1], [0], [0], [1], [0, 0, 1, 1], [], []>} : vector<8x32xf32>, vector<32x32xf32>, vector<8x32xf32> -> vector<8x32xf32>
    %c0_159 = arith.constant 0 : index
    %c0_160 = arith.constant 0 : index
    %293 = vector.load %arg3[%c0_159, %c0_160] : memref<1x32xf32, #tpu.memory_space<vmem>>, vector<1x32xf32>
    %294 = vector.broadcast %293 : vector<1x32xf32> to vector<8x32xf32>
    %295 = arith.addf %292, %294 : vector<8x32xf32>
    %c0_161 = arith.constant 0 : index
    %c0_162 = arith.constant 0 : index
    %296 = vector.load %arg5[%c0_161, %c0_162] : memref<32x32xf32, #tpu.memory_space<vmem>>, vector<32x32xf32>
    %cst_163 = arith.constant dense<0.000000e+00> : vector<8x32xf32>
    %297 = tpu.matmul %231, %296, %cst_163 {dimension_numbers = #tpu.dot_dimension_numbers<[1], [0], [0], [1], [0, 0, 1, 1], [], []>} : vector<8x32xf32>, vector<32x32xf32>, vector<8x32xf32> -> vector<8x32xf32>
    %c0_164 = arith.constant 0 : index
    %c0_165 = arith.constant 0 : index
    %298 = vector.load %arg1[%c0_164, %c0_165] : memref<1x32xf32, #tpu.memory_space<vmem>>, vector<1x32xf32>
    %299 = vector.broadcast %298 : vector<1x32xf32> to vector<8x32xf32>
    %300 = arith.addf %297, %299 : vector<8x32xf32>
    %c0_166 = arith.constant 0 : index
    %c0_167 = arith.constant 0 : index
    %301 = vector.load %arg8[%c0_166, %c0_167] : memref<32x32xf32, #tpu.memory_space<vmem>>, vector<32x32xf32>
    %cst_168 = arith.constant dense<0.000000e+00> : vector<8x32xf32>
    %302 = tpu.matmul %231, %301, %cst_168 {dimension_numbers = #tpu.dot_dimension_numbers<[1], [0], [0], [1], [0, 0, 1, 1], [], []>} : vector<8x32xf32>, vector<32x32xf32>, vector<8x32xf32> -> vector<8x32xf32>
    %c0_169 = arith.constant 0 : index
    %c0_170 = arith.constant 0 : index
    %303 = vector.load %arg4[%c0_169, %c0_170] : memref<1x32xf32, #tpu.memory_space<vmem>>, vector<1x32xf32>
    %304 = vector.broadcast %303 : vector<1x32xf32> to vector<8x32xf32>
    %305 = arith.addf %302, %304 : vector<8x32xf32>
    %cst_171 = arith.constant dense<0.000000e+00> : vector<8x8xf32>
    %306 = tpu.matmul %295, %300, %cst_171 {dimension_numbers = #tpu.dot_dimension_numbers<[1], [1], [0], [0], [0, 0, 1, 0], [], []>} : vector<8x32xf32>, vector<8x32xf32>, vector<8x8xf32> -> vector<8x8xf32>
    %cst_172 = arith.constant 0.176776692 : f32
    %307 = vector.broadcast %cst_172 : f32 to vector<8x8xf32>
    %308 = arith.mulf %306, %307 : vector<8x8xf32>
    %cst_173 = arith.constant dense<0xFF800000> : vector<8xf32>
    %309 = vector.multi_reduction <maximumf>, %308, %cst_173 [1] : vector<8x8xf32> to vector<8xf32>
    %310 = vector.shape_cast %309 : vector<8xf32> to vector<8x1xf32>
    %311 = vector.broadcast %310 : vector<8x1xf32> to vector<8x8xf32>
    %312 = arith.subf %308, %311 : vector<8x8xf32>
    %313 = math.exp %312 : vector<8x8xf32>
    %cst_174 = arith.constant dense<0.000000e+00> : vector<8xf32>
    %314 = vector.multi_reduction <add>, %313, %cst_174 [1] : vector<8x8xf32> to vector<8xf32>
    %315 = vector.shape_cast %314 : vector<8xf32> to vector<8x1xf32>
    %316 = tpu.reciprocal %315 {approx = true} : vector<8x1xf32> -> vector<8x1xf32>
    %317 = vector.broadcast %316 : vector<8x1xf32> to vector<8x8xf32>
    %318 = arith.mulf %313, %317 : vector<8x8xf32>
    %cst_175 = arith.constant dense<0.000000e+00> : vector<8x32xf32>
    %319 = tpu.matmul %318, %305, %cst_175 {dimension_numbers = #tpu.dot_dimension_numbers<[1], [0], [0], [1], [0, 0, 1, 1], [], []>} : vector<8x8xf32>, vector<8x32xf32>, vector<8x32xf32> -> vector<8x32xf32>
    %c0_176 = arith.constant 0 : index
    %c0_177 = arith.constant 0 : index
    %320 = vector.load %arg6[%c0_176, %c0_177] : memref<32x32xf32, #tpu.memory_space<vmem>>, vector<32x32xf32>
    %cst_178 = arith.constant dense<0.000000e+00> : vector<8x32xf32>
    %321 = tpu.matmul %319, %320, %cst_178 {dimension_numbers = #tpu.dot_dimension_numbers<[1], [0], [0], [1], [0, 0, 1, 1], [], []>} : vector<8x32xf32>, vector<32x32xf32>, vector<8x32xf32> -> vector<8x32xf32>
    %c0_179 = arith.constant 0 : index
    %c0_180 = arith.constant 0 : index
    %322 = vector.load %arg2[%c0_179, %c0_180] : memref<1x32xf32, #tpu.memory_space<vmem>>, vector<1x32xf32>
    %323 = vector.broadcast %322 : vector<1x32xf32> to vector<8x32xf32>
    %324 = arith.addf %321, %323 : vector<8x32xf32>
    %325 = arith.addf %290, %324 : vector<8x32xf32>
    %c0_181 = arith.constant 0 : index
    %c0_182 = arith.constant 0 : index
    %326 = vector.load %arg16[%c0_181, %c0_182] : memref<1x32xf32, #tpu.memory_space<vmem>>, vector<1x32xf32>
    %c0_183 = arith.constant 0 : index
    %c0_184 = arith.constant 0 : index
    %327 = vector.load %arg15[%c0_183, %c0_184] : memref<1x32xf32, #tpu.memory_space<vmem>>, vector<1x32xf32>
    %cst_185 = arith.constant dense<0.000000e+00> : vector<8xf32>
    %328 = vector.multi_reduction <add>, %325, %cst_185 [1] : vector<8x32xf32> to vector<8xf32>
    %329 = vector.shape_cast %328 : vector<8xf32> to vector<8x1xf32>
    %cst_186 = arith.constant 3.200000e+01 : f32
    %330 = vector.broadcast %cst_186 : f32 to vector<8x1xf32>
    %331 = arith.divf %329, %330 : vector<8x1xf32>
    %332 = vector.broadcast %331 : vector<8x1xf32> to vector<8x32xf32>
    %333 = arith.subf %325, %332 : vector<8x32xf32>
    %334 = arith.mulf %333, %333 : vector<8x32xf32>
    %cst_187 = arith.constant dense<0.000000e+00> : vector<8xf32>
    %335 = vector.multi_reduction <add>, %334, %cst_187 [1] : vector<8x32xf32> to vector<8xf32>
    %336 = vector.shape_cast %335 : vector<8xf32> to vector<8x1xf32>
    %cst_188 = arith.constant 3.200000e+01 : f32
    %337 = vector.broadcast %cst_188 : f32 to vector<8x1xf32>
    %338 = arith.divf %336, %337 : vector<8x1xf32>
    %339 = vector.broadcast %331 : vector<8x1xf32> to vector<8x32xf32>
    %340 = arith.subf %325, %339 : vector<8x32xf32>
    %cst_189 = arith.constant 9.99999974E-6 : f32
    %341 = vector.broadcast %cst_189 : f32 to vector<8x1xf32>
    %342 = arith.addf %338, %341 : vector<8x1xf32>
    %343 = math.rsqrt %342 : vector<8x1xf32>
    %344 = vector.broadcast %343 : vector<8x1xf32> to vector<8x32xf32>
    %345 = arith.mulf %340, %344 : vector<8x32xf32>
    %346 = vector.broadcast %326 : vector<1x32xf32> to vector<8x32xf32>
    %347 = arith.mulf %345, %346 : vector<8x32xf32>
    %348 = vector.broadcast %327 : vector<1x32xf32> to vector<8x32xf32>
    %349 = arith.addf %347, %348 : vector<8x32xf32>
    %c0_190 = arith.constant 0 : index
    %c0_191 = arith.constant 0 : index
    %350 = vector.load %arg10[%c0_190, %c0_191] : memref<32x32xf32, #tpu.memory_space<vmem>>, vector<32x32xf32>
    %cst_192 = arith.constant dense<0.000000e+00> : vector<8x32xf32>
    %351 = tpu.matmul %349, %350, %cst_192 {dimension_numbers = #tpu.dot_dimension_numbers<[1], [0], [0], [1], [0, 0, 1, 1], [], []>} : vector<8x32xf32>, vector<32x32xf32>, vector<8x32xf32> -> vector<8x32xf32>
    %c0_193 = arith.constant 0 : index
    %c0_194 = arith.constant 0 : index
    %352 = vector.load %arg9[%c0_193, %c0_194] : memref<1x32xf32, #tpu.memory_space<vmem>>, vector<1x32xf32>
    %353 = vector.broadcast %352 : vector<1x32xf32> to vector<8x32xf32>
    %354 = arith.addf %351, %353 : vector<8x32xf32>
    %cst_195 = arith.constant 0.000000e+00 : f32
    %355 = vector.broadcast %cst_195 : f32 to vector<8x32xf32>
    %356 = arith.maximumf %354, %355 : vector<8x32xf32>
    %c0_196 = arith.constant 0 : index
    %c0_197 = arith.constant 0 : index
    %357 = vector.load %arg12[%c0_196, %c0_197] : memref<32x32xf32, #tpu.memory_space<vmem>>, vector<32x32xf32>
    %cst_198 = arith.constant dense<0.000000e+00> : vector<8x32xf32>
    %358 = tpu.matmul %356, %357, %cst_198 {dimension_numbers = #tpu.dot_dimension_numbers<[1], [0], [0], [1], [0, 0, 1, 1], [], []>} : vector<8x32xf32>, vector<32x32xf32>, vector<8x32xf32> -> vector<8x32xf32>
    %c0_199 = arith.constant 0 : index
    %c0_200 = arith.constant 0 : index
    %359 = vector.load %arg11[%c0_199, %c0_200] : memref<1x32xf32, #tpu.memory_space<vmem>>, vector<1x32xf32>
    %360 = vector.broadcast %359 : vector<1x32xf32> to vector<8x32xf32>
    %361 = arith.addf %358, %360 : vector<8x32xf32>
    %362 = arith.addf %349, %361 : vector<8x32xf32>
    %c0_201 = arith.constant 0 : index
    %c0_202 = arith.constant 0 : index
    %363 = vector.load %arg18[%c0_201, %c0_202] : memref<1x32xf32, #tpu.memory_space<vmem>>, vector<1x32xf32>
    %c0_203 = arith.constant 0 : index
    %c0_204 = arith.constant 0 : index
    %364 = vector.load %arg17[%c0_203, %c0_204] : memref<1x32xf32, #tpu.memory_space<vmem>>, vector<1x32xf32>
    %cst_205 = arith.constant dense<0.000000e+00> : vector<8xf32>
    %365 = vector.multi_reduction <add>, %362, %cst_205 [1] : vector<8x32xf32> to vector<8xf32>
    %366 = vector.shape_cast %365 : vector<8xf32> to vector<8x1xf32>
    %cst_206 = arith.constant 3.200000e+01 : f32
    %367 = vector.broadcast %cst_206 : f32 to vector<8x1xf32>
    %368 = arith.divf %366, %367 : vector<8x1xf32>
    %369 = vector.broadcast %368 : vector<8x1xf32> to vector<8x32xf32>
    %370 = arith.subf %362, %369 : vector<8x32xf32>
    %371 = arith.mulf %370, %370 : vector<8x32xf32>
    %cst_207 = arith.constant dense<0.000000e+00> : vector<8xf32>
    %372 = vector.multi_reduction <add>, %371, %cst_207 [1] : vector<8x32xf32> to vector<8xf32>
    %373 = vector.shape_cast %372 : vector<8xf32> to vector<8x1xf32>
    %cst_208 = arith.constant 3.200000e+01 : f32
    %374 = vector.broadcast %cst_208 : f32 to vector<8x1xf32>
    %375 = arith.divf %373, %374 : vector<8x1xf32>
    %376 = vector.broadcast %368 : vector<8x1xf32> to vector<8x32xf32>
    %377 = arith.subf %362, %376 : vector<8x32xf32>
    %cst_209 = arith.constant 9.99999974E-6 : f32
    %378 = vector.broadcast %cst_209 : f32 to vector<8x1xf32>
    %379 = arith.addf %375, %378 : vector<8x1xf32>
    %380 = math.rsqrt %379 : vector<8x1xf32>
    %381 = vector.broadcast %380 : vector<8x1xf32> to vector<8x32xf32>
    %382 = arith.mulf %377, %381 : vector<8x32xf32>
    %383 = vector.broadcast %363 : vector<1x32xf32> to vector<8x32xf32>
    %384 = arith.mulf %382, %383 : vector<8x32xf32>
    %385 = vector.broadcast %364 : vector<1x32xf32> to vector<8x32xf32>
    %386 = arith.addf %384, %385 : vector<8x32xf32>
    %c0_210 = arith.constant 0 : index
    %c0_211 = arith.constant 0 : index
    %387 = vector.load %arg51[%c0_210, %c0_211] : memref<32x32xf32, #tpu.memory_space<vmem>>, vector<32x32xf32>
    %cst_212 = arith.constant dense<0.000000e+00> : vector<8x32xf32>
    %388 = tpu.matmul %386, %387, %cst_212 {dimension_numbers = #tpu.dot_dimension_numbers<[1], [0], [0], [1], [0, 0, 1, 1], [], []>} : vector<8x32xf32>, vector<32x32xf32>, vector<8x32xf32> -> vector<8x32xf32>
    %c0_213 = arith.constant 0 : index
    %c0_214 = arith.constant 0 : index
    %389 = vector.load %arg47[%c0_213, %c0_214] : memref<1x32xf32, #tpu.memory_space<vmem>>, vector<1x32xf32>
    %390 = vector.broadcast %389 : vector<1x32xf32> to vector<8x32xf32>
    %391 = arith.addf %388, %390 : vector<8x32xf32>
    %c0_215 = arith.constant 0 : index
    %c0_216 = arith.constant 0 : index
    %392 = vector.load %arg49[%c0_215, %c0_216] : memref<32x32xf32, #tpu.memory_space<vmem>>, vector<32x32xf32>
    %cst_217 = arith.constant dense<0.000000e+00> : vector<8x32xf32>
    %393 = tpu.matmul %386, %392, %cst_217 {dimension_numbers = #tpu.dot_dimension_numbers<[1], [0], [0], [1], [0, 0, 1, 1], [], []>} : vector<8x32xf32>, vector<32x32xf32>, vector<8x32xf32> -> vector<8x32xf32>
    %c0_218 = arith.constant 0 : index
    %c0_219 = arith.constant 0 : index
    %394 = vector.load %arg45[%c0_218, %c0_219] : memref<1x32xf32, #tpu.memory_space<vmem>>, vector<1x32xf32>
    %395 = vector.broadcast %394 : vector<1x32xf32> to vector<8x32xf32>
    %396 = arith.addf %393, %395 : vector<8x32xf32>
    %c0_220 = arith.constant 0 : index
    %c0_221 = arith.constant 0 : index
    %397 = vector.load %arg52[%c0_220, %c0_221] : memref<32x32xf32, #tpu.memory_space<vmem>>, vector<32x32xf32>
    %cst_222 = arith.constant dense<0.000000e+00> : vector<8x32xf32>
    %398 = tpu.matmul %386, %397, %cst_222 {dimension_numbers = #tpu.dot_dimension_numbers<[1], [0], [0], [1], [0, 0, 1, 1], [], []>} : vector<8x32xf32>, vector<32x32xf32>, vector<8x32xf32> -> vector<8x32xf32>
    %c0_223 = arith.constant 0 : index
    %c0_224 = arith.constant 0 : index
    %399 = vector.load %arg48[%c0_223, %c0_224] : memref<1x32xf32, #tpu.memory_space<vmem>>, vector<1x32xf32>
    %400 = vector.broadcast %399 : vector<1x32xf32> to vector<8x32xf32>
    %401 = arith.addf %398, %400 : vector<8x32xf32>
    %cst_225 = arith.constant dense<0.000000e+00> : vector<8x8xf32>
    %402 = tpu.matmul %391, %396, %cst_225 {dimension_numbers = #tpu.dot_dimension_numbers<[1], [1], [0], [0], [0, 0, 1, 0], [], []>} : vector<8x32xf32>, vector<8x32xf32>, vector<8x8xf32> -> vector<8x8xf32>
    %cst_226 = arith.constant 0.176776692 : f32
    %403 = vector.broadcast %cst_226 : f32 to vector<8x8xf32>
    %404 = arith.mulf %402, %403 : vector<8x8xf32>
    %cst_227 = arith.constant dense<0xFF800000> : vector<8xf32>
    %405 = vector.multi_reduction <maximumf>, %404, %cst_227 [1] : vector<8x8xf32> to vector<8xf32>
    %406 = vector.shape_cast %405 : vector<8xf32> to vector<8x1xf32>
    %407 = vector.broadcast %406 : vector<8x1xf32> to vector<8x8xf32>
    %408 = arith.subf %404, %407 : vector<8x8xf32>
    %409 = math.exp %408 : vector<8x8xf32>
    %cst_228 = arith.constant dense<0.000000e+00> : vector<8xf32>
    %410 = vector.multi_reduction <add>, %409, %cst_228 [1] : vector<8x8xf32> to vector<8xf32>
    %411 = vector.shape_cast %410 : vector<8xf32> to vector<8x1xf32>
    %412 = tpu.reciprocal %411 {approx = true} : vector<8x1xf32> -> vector<8x1xf32>
    %413 = vector.broadcast %412 : vector<8x1xf32> to vector<8x8xf32>
    %414 = arith.mulf %409, %413 : vector<8x8xf32>
    %cst_229 = arith.constant dense<0.000000e+00> : vector<8x32xf32>
    %415 = tpu.matmul %414, %401, %cst_229 {dimension_numbers = #tpu.dot_dimension_numbers<[1], [0], [0], [1], [0, 0, 1, 1], [], []>} : vector<8x8xf32>, vector<8x32xf32>, vector<8x32xf32> -> vector<8x32xf32>
    %c0_230 = arith.constant 0 : index
    %c0_231 = arith.constant 0 : index
    %416 = vector.load %arg50[%c0_230, %c0_231] : memref<32x32xf32, #tpu.memory_space<vmem>>, vector<32x32xf32>
    %cst_232 = arith.constant dense<0.000000e+00> : vector<8x32xf32>
    %417 = tpu.matmul %415, %416, %cst_232 {dimension_numbers = #tpu.dot_dimension_numbers<[1], [0], [0], [1], [0, 0, 1, 1], [], []>} : vector<8x32xf32>, vector<32x32xf32>, vector<8x32xf32> -> vector<8x32xf32>
    %c0_233 = arith.constant 0 : index
    %c0_234 = arith.constant 0 : index
    %418 = vector.load %arg46[%c0_233, %c0_234] : memref<1x32xf32, #tpu.memory_space<vmem>>, vector<1x32xf32>
    %419 = vector.broadcast %418 : vector<1x32xf32> to vector<8x32xf32>
    %420 = arith.addf %417, %419 : vector<8x32xf32>
    %421 = arith.addf %386, %420 : vector<8x32xf32>
    %c0_235 = arith.constant 0 : index
    %c0_236 = arith.constant 0 : index
    %422 = vector.load %arg40[%c0_235, %c0_236] : memref<1x32xf32, #tpu.memory_space<vmem>>, vector<1x32xf32>
    %c0_237 = arith.constant 0 : index
    %c0_238 = arith.constant 0 : index
    %423 = vector.load %arg39[%c0_237, %c0_238] : memref<1x32xf32, #tpu.memory_space<vmem>>, vector<1x32xf32>
    %cst_239 = arith.constant dense<0.000000e+00> : vector<8xf32>
    %424 = vector.multi_reduction <add>, %421, %cst_239 [1] : vector<8x32xf32> to vector<8xf32>
    %425 = vector.shape_cast %424 : vector<8xf32> to vector<8x1xf32>
    %cst_240 = arith.constant 3.200000e+01 : f32
    %426 = vector.broadcast %cst_240 : f32 to vector<8x1xf32>
    %427 = arith.divf %425, %426 : vector<8x1xf32>
    %428 = vector.broadcast %427 : vector<8x1xf32> to vector<8x32xf32>
    %429 = arith.subf %421, %428 : vector<8x32xf32>
    %430 = arith.mulf %429, %429 : vector<8x32xf32>
    %cst_241 = arith.constant dense<0.000000e+00> : vector<8xf32>
    %431 = vector.multi_reduction <add>, %430, %cst_241 [1] : vector<8x32xf32> to vector<8xf32>
    %432 = vector.shape_cast %431 : vector<8xf32> to vector<8x1xf32>
    %cst_242 = arith.constant 3.200000e+01 : f32
    %433 = vector.broadcast %cst_242 : f32 to vector<8x1xf32>
    %434 = arith.divf %432, %433 : vector<8x1xf32>
    %435 = vector.broadcast %427 : vector<8x1xf32> to vector<8x32xf32>
    %436 = arith.subf %421, %435 : vector<8x32xf32>
    %cst_243 = arith.constant 9.99999974E-6 : f32
    %437 = vector.broadcast %cst_243 : f32 to vector<8x1xf32>
    %438 = arith.addf %434, %437 : vector<8x1xf32>
    %439 = math.rsqrt %438 : vector<8x1xf32>
    %440 = vector.broadcast %439 : vector<8x1xf32> to vector<8x32xf32>
    %441 = arith.mulf %436, %440 : vector<8x32xf32>
    %442 = vector.broadcast %422 : vector<1x32xf32> to vector<8x32xf32>
    %443 = arith.mulf %441, %442 : vector<8x32xf32>
    %444 = vector.broadcast %423 : vector<1x32xf32> to vector<8x32xf32>
    %445 = arith.addf %443, %444 : vector<8x32xf32>
    %c0_244 = arith.constant 0 : index
    %c0_245 = arith.constant 0 : index
    %446 = vector.load %arg33[%c0_244, %c0_245] : memref<32x32xf32, #tpu.memory_space<vmem>>, vector<32x32xf32>
    %cst_246 = arith.constant dense<0.000000e+00> : vector<8x32xf32>
    %447 = tpu.matmul %445, %446, %cst_246 {dimension_numbers = #tpu.dot_dimension_numbers<[1], [0], [0], [1], [0, 0, 1, 1], [], []>} : vector<8x32xf32>, vector<32x32xf32>, vector<8x32xf32> -> vector<8x32xf32>
    %c0_247 = arith.constant 0 : index
    %c0_248 = arith.constant 0 : index
    %448 = vector.load %arg29[%c0_247, %c0_248] : memref<1x32xf32, #tpu.memory_space<vmem>>, vector<1x32xf32>
    %449 = vector.broadcast %448 : vector<1x32xf32> to vector<8x32xf32>
    %450 = arith.addf %447, %449 : vector<8x32xf32>
    %c0_249 = arith.constant 0 : index
    %c0_250 = arith.constant 0 : index
    %451 = vector.load %arg31[%c0_249, %c0_250] : memref<32x32xf32, #tpu.memory_space<vmem>>, vector<32x32xf32>
    %cst_251 = arith.constant dense<0.000000e+00> : vector<8x32xf32>
    %452 = tpu.matmul %231, %451, %cst_251 {dimension_numbers = #tpu.dot_dimension_numbers<[1], [0], [0], [1], [0, 0, 1, 1], [], []>} : vector<8x32xf32>, vector<32x32xf32>, vector<8x32xf32> -> vector<8x32xf32>
    %c0_252 = arith.constant 0 : index
    %c0_253 = arith.constant 0 : index
    %453 = vector.load %arg27[%c0_252, %c0_253] : memref<1x32xf32, #tpu.memory_space<vmem>>, vector<1x32xf32>
    %454 = vector.broadcast %453 : vector<1x32xf32> to vector<8x32xf32>
    %455 = arith.addf %452, %454 : vector<8x32xf32>
    %c0_254 = arith.constant 0 : index
    %c0_255 = arith.constant 0 : index
    %456 = vector.load %arg34[%c0_254, %c0_255] : memref<32x32xf32, #tpu.memory_space<vmem>>, vector<32x32xf32>
    %cst_256 = arith.constant dense<0.000000e+00> : vector<8x32xf32>
    %457 = tpu.matmul %231, %456, %cst_256 {dimension_numbers = #tpu.dot_dimension_numbers<[1], [0], [0], [1], [0, 0, 1, 1], [], []>} : vector<8x32xf32>, vector<32x32xf32>, vector<8x32xf32> -> vector<8x32xf32>
    %c0_257 = arith.constant 0 : index
    %c0_258 = arith.constant 0 : index
    %458 = vector.load %arg30[%c0_257, %c0_258] : memref<1x32xf32, #tpu.memory_space<vmem>>, vector<1x32xf32>
    %459 = vector.broadcast %458 : vector<1x32xf32> to vector<8x32xf32>
    %460 = arith.addf %457, %459 : vector<8x32xf32>
    %cst_259 = arith.constant dense<0.000000e+00> : vector<8x8xf32>
    %461 = tpu.matmul %450, %455, %cst_259 {dimension_numbers = #tpu.dot_dimension_numbers<[1], [1], [0], [0], [0, 0, 1, 0], [], []>} : vector<8x32xf32>, vector<8x32xf32>, vector<8x8xf32> -> vector<8x8xf32>
    %cst_260 = arith.constant 0.176776692 : f32
    %462 = vector.broadcast %cst_260 : f32 to vector<8x8xf32>
    %463 = arith.mulf %461, %462 : vector<8x8xf32>
    %cst_261 = arith.constant dense<0xFF800000> : vector<8xf32>
    %464 = vector.multi_reduction <maximumf>, %463, %cst_261 [1] : vector<8x8xf32> to vector<8xf32>
    %465 = vector.shape_cast %464 : vector<8xf32> to vector<8x1xf32>
    %466 = vector.broadcast %465 : vector<8x1xf32> to vector<8x8xf32>
    %467 = arith.subf %463, %466 : vector<8x8xf32>
    %468 = math.exp %467 : vector<8x8xf32>
    %cst_262 = arith.constant dense<0.000000e+00> : vector<8xf32>
    %469 = vector.multi_reduction <add>, %468, %cst_262 [1] : vector<8x8xf32> to vector<8xf32>
    %470 = vector.shape_cast %469 : vector<8xf32> to vector<8x1xf32>
    %471 = tpu.reciprocal %470 {approx = true} : vector<8x1xf32> -> vector<8x1xf32>
    %472 = vector.broadcast %471 : vector<8x1xf32> to vector<8x8xf32>
    %473 = arith.mulf %468, %472 : vector<8x8xf32>
    %cst_263 = arith.constant dense<0.000000e+00> : vector<8x32xf32>
    %474 = tpu.matmul %473, %460, %cst_263 {dimension_numbers = #tpu.dot_dimension_numbers<[1], [0], [0], [1], [0, 0, 1, 1], [], []>} : vector<8x8xf32>, vector<8x32xf32>, vector<8x32xf32> -> vector<8x32xf32>
    %c0_264 = arith.constant 0 : index
    %c0_265 = arith.constant 0 : index
    %475 = vector.load %arg32[%c0_264, %c0_265] : memref<32x32xf32, #tpu.memory_space<vmem>>, vector<32x32xf32>
    %cst_266 = arith.constant dense<0.000000e+00> : vector<8x32xf32>
    %476 = tpu.matmul %474, %475, %cst_266 {dimension_numbers = #tpu.dot_dimension_numbers<[1], [0], [0], [1], [0, 0, 1, 1], [], []>} : vector<8x32xf32>, vector<32x32xf32>, vector<8x32xf32> -> vector<8x32xf32>
    %c0_267 = arith.constant 0 : index
    %c0_268 = arith.constant 0 : index
    %477 = vector.load %arg28[%c0_267, %c0_268] : memref<1x32xf32, #tpu.memory_space<vmem>>, vector<1x32xf32>
    %478 = vector.broadcast %477 : vector<1x32xf32> to vector<8x32xf32>
    %479 = arith.addf %476, %478 : vector<8x32xf32>
    %480 = arith.addf %445, %479 : vector<8x32xf32>
    %c0_269 = arith.constant 0 : index
    %c0_270 = arith.constant 0 : index
    %481 = vector.load %arg42[%c0_269, %c0_270] : memref<1x32xf32, #tpu.memory_space<vmem>>, vector<1x32xf32>
    %c0_271 = arith.constant 0 : index
    %c0_272 = arith.constant 0 : index
    %482 = vector.load %arg41[%c0_271, %c0_272] : memref<1x32xf32, #tpu.memory_space<vmem>>, vector<1x32xf32>
    %cst_273 = arith.constant dense<0.000000e+00> : vector<8xf32>
    %483 = vector.multi_reduction <add>, %480, %cst_273 [1] : vector<8x32xf32> to vector<8xf32>
    %484 = vector.shape_cast %483 : vector<8xf32> to vector<8x1xf32>
    %cst_274 = arith.constant 3.200000e+01 : f32
    %485 = vector.broadcast %cst_274 : f32 to vector<8x1xf32>
    %486 = arith.divf %484, %485 : vector<8x1xf32>
    %487 = vector.broadcast %486 : vector<8x1xf32> to vector<8x32xf32>
    %488 = arith.subf %480, %487 : vector<8x32xf32>
    %489 = arith.mulf %488, %488 : vector<8x32xf32>
    %cst_275 = arith.constant dense<0.000000e+00> : vector<8xf32>
    %490 = vector.multi_reduction <add>, %489, %cst_275 [1] : vector<8x32xf32> to vector<8xf32>
    %491 = vector.shape_cast %490 : vector<8xf32> to vector<8x1xf32>
    %cst_276 = arith.constant 3.200000e+01 : f32
    %492 = vector.broadcast %cst_276 : f32 to vector<8x1xf32>
    %493 = arith.divf %491, %492 : vector<8x1xf32>
    %494 = vector.broadcast %486 : vector<8x1xf32> to vector<8x32xf32>
    %495 = arith.subf %480, %494 : vector<8x32xf32>
    %cst_277 = arith.constant 9.99999974E-6 : f32
    %496 = vector.broadcast %cst_277 : f32 to vector<8x1xf32>
    %497 = arith.addf %493, %496 : vector<8x1xf32>
    %498 = math.rsqrt %497 : vector<8x1xf32>
    %499 = vector.broadcast %498 : vector<8x1xf32> to vector<8x32xf32>
    %500 = arith.mulf %495, %499 : vector<8x32xf32>
    %501 = vector.broadcast %481 : vector<1x32xf32> to vector<8x32xf32>
    %502 = arith.mulf %500, %501 : vector<8x32xf32>
    %503 = vector.broadcast %482 : vector<1x32xf32> to vector<8x32xf32>
    %504 = arith.addf %502, %503 : vector<8x32xf32>
    %c0_278 = arith.constant 0 : index
    %c0_279 = arith.constant 0 : index
    %505 = vector.load %arg36[%c0_278, %c0_279] : memref<32x32xf32, #tpu.memory_space<vmem>>, vector<32x32xf32>
    %cst_280 = arith.constant dense<0.000000e+00> : vector<8x32xf32>
    %506 = tpu.matmul %504, %505, %cst_280 {dimension_numbers = #tpu.dot_dimension_numbers<[1], [0], [0], [1], [0, 0, 1, 1], [], []>} : vector<8x32xf32>, vector<32x32xf32>, vector<8x32xf32> -> vector<8x32xf32>
    %c0_281 = arith.constant 0 : index
    %c0_282 = arith.constant 0 : index
    %507 = vector.load %arg35[%c0_281, %c0_282] : memref<1x32xf32, #tpu.memory_space<vmem>>, vector<1x32xf32>
    %508 = vector.broadcast %507 : vector<1x32xf32> to vector<8x32xf32>
    %509 = arith.addf %506, %508 : vector<8x32xf32>
    %cst_283 = arith.constant 0.000000e+00 : f32
    %510 = vector.broadcast %cst_283 : f32 to vector<8x32xf32>
    %511 = arith.maximumf %509, %510 : vector<8x32xf32>
    %c0_284 = arith.constant 0 : index
    %c0_285 = arith.constant 0 : index
    %512 = vector.load %arg38[%c0_284, %c0_285] : memref<32x32xf32, #tpu.memory_space<vmem>>, vector<32x32xf32>
    %cst_286 = arith.constant dense<0.000000e+00> : vector<8x32xf32>
    %513 = tpu.matmul %511, %512, %cst_286 {dimension_numbers = #tpu.dot_dimension_numbers<[1], [0], [0], [1], [0, 0, 1, 1], [], []>} : vector<8x32xf32>, vector<32x32xf32>, vector<8x32xf32> -> vector<8x32xf32>
    %c0_287 = arith.constant 0 : index
    %c0_288 = arith.constant 0 : index
    %514 = vector.load %arg37[%c0_287, %c0_288] : memref<1x32xf32, #tpu.memory_space<vmem>>, vector<1x32xf32>
    %515 = vector.broadcast %514 : vector<1x32xf32> to vector<8x32xf32>
    %516 = arith.addf %513, %515 : vector<8x32xf32>
    %517 = arith.addf %504, %516 : vector<8x32xf32>
    %c0_289 = arith.constant 0 : index
    %c0_290 = arith.constant 0 : index
    %518 = vector.load %arg44[%c0_289, %c0_290] : memref<1x32xf32, #tpu.memory_space<vmem>>, vector<1x32xf32>
    %c0_291 = arith.constant 0 : index
    %c0_292 = arith.constant 0 : index
    %519 = vector.load %arg43[%c0_291, %c0_292] : memref<1x32xf32, #tpu.memory_space<vmem>>, vector<1x32xf32>
    %cst_293 = arith.constant dense<0.000000e+00> : vector<8xf32>
    %520 = vector.multi_reduction <add>, %517, %cst_293 [1] : vector<8x32xf32> to vector<8xf32>
    %521 = vector.shape_cast %520 : vector<8xf32> to vector<8x1xf32>
    %cst_294 = arith.constant 3.200000e+01 : f32
    %522 = vector.broadcast %cst_294 : f32 to vector<8x1xf32>
    %523 = arith.divf %521, %522 : vector<8x1xf32>
    %524 = vector.broadcast %523 : vector<8x1xf32> to vector<8x32xf32>
    %525 = arith.subf %517, %524 : vector<8x32xf32>
    %526 = arith.mulf %525, %525 : vector<8x32xf32>
    %cst_295 = arith.constant dense<0.000000e+00> : vector<8xf32>
    %527 = vector.multi_reduction <add>, %526, %cst_295 [1] : vector<8x32xf32> to vector<8xf32>
    %528 = vector.shape_cast %527 : vector<8xf32> to vector<8x1xf32>
    %cst_296 = arith.constant 3.200000e+01 : f32
    %529 = vector.broadcast %cst_296 : f32 to vector<8x1xf32>
    %530 = arith.divf %528, %529 : vector<8x1xf32>
    %531 = vector.broadcast %523 : vector<8x1xf32> to vector<8x32xf32>
    %532 = arith.subf %517, %531 : vector<8x32xf32>
    %cst_297 = arith.constant 9.99999974E-6 : f32
    %533 = vector.broadcast %cst_297 : f32 to vector<8x1xf32>
    %534 = arith.addf %530, %533 : vector<8x1xf32>
    %535 = math.rsqrt %534 : vector<8x1xf32>
    %536 = vector.broadcast %535 : vector<8x1xf32> to vector<8x32xf32>
    %537 = arith.mulf %532, %536 : vector<8x32xf32>
    %538 = vector.broadcast %518 : vector<1x32xf32> to vector<8x32xf32>
    %539 = arith.mulf %537, %538 : vector<8x32xf32>
    %540 = vector.broadcast %519 : vector<1x32xf32> to vector<8x32xf32>
    %541 = arith.addf %539, %540 : vector<8x32xf32>
    %c0_298 = arith.constant 0 : index
    %c0_299 = arith.constant 0 : index
    %542 = vector.load %arg54[%c0_298, %c0_299] : memref<1x32xf32, #tpu.memory_space<vmem>>, vector<1x32xf32>
    %c0_300 = arith.constant 0 : index
    %c0_301 = arith.constant 0 : index
    %543 = vector.load %arg53[%c0_300, %c0_301] : memref<1x32xf32, #tpu.memory_space<vmem>>, vector<1x32xf32>
    %cst_302 = arith.constant dense<0.000000e+00> : vector<8xf32>
    %544 = vector.multi_reduction <add>, %541, %cst_302 [1] : vector<8x32xf32> to vector<8xf32>
    %545 = vector.shape_cast %544 : vector<8xf32> to vector<8x1xf32>
    %cst_303 = arith.constant 3.200000e+01 : f32
    %546 = vector.broadcast %cst_303 : f32 to vector<8x1xf32>
    %547 = arith.divf %545, %546 : vector<8x1xf32>
    %548 = vector.broadcast %547 : vector<8x1xf32> to vector<8x32xf32>
    %549 = arith.subf %541, %548 : vector<8x32xf32>
    %550 = arith.mulf %549, %549 : vector<8x32xf32>
    %cst_304 = arith.constant dense<0.000000e+00> : vector<8xf32>
    %551 = vector.multi_reduction <add>, %550, %cst_304 [1] : vector<8x32xf32> to vector<8xf32>
    %552 = vector.shape_cast %551 : vector<8xf32> to vector<8x1xf32>
    %cst_305 = arith.constant 3.200000e+01 : f32
    %553 = vector.broadcast %cst_305 : f32 to vector<8x1xf32>
    %554 = arith.divf %552, %553 : vector<8x1xf32>
    %555 = vector.broadcast %547 : vector<8x1xf32> to vector<8x32xf32>
    %556 = arith.subf %541, %555 : vector<8x32xf32>
    %cst_306 = arith.constant 9.99999974E-6 : f32
    %557 = vector.broadcast %cst_306 : f32 to vector<8x1xf32>
    %558 = arith.addf %554, %557 : vector<8x1xf32>
    %559 = math.rsqrt %558 : vector<8x1xf32>
    %560 = vector.broadcast %559 : vector<8x1xf32> to vector<8x32xf32>
    %561 = arith.mulf %556, %560 : vector<8x32xf32>
    %562 = vector.broadcast %542 : vector<1x32xf32> to vector<8x32xf32>
    %563 = arith.mulf %561, %562 : vector<8x32xf32>
    %564 = vector.broadcast %543 : vector<1x32xf32> to vector<8x32xf32>
    %565 = arith.addf %563, %564 : vector<8x32xf32>
    %c0_307 = arith.constant 0 : index
    %c0_308 = arith.constant 0 : index
    %566 = vector.load %arg92[%c0_307, %c0_308] : memref<1x32xf32, #tpu.memory_space<vmem>>, vector<1x32xf32>
    %567 = vector.broadcast %566 : vector<1x32xf32> to vector<8x32xf32>
    %568 = arith.mulf %565, %567 : vector<8x32xf32>
    %cst_309 = arith.constant dense<0.000000e+00> : vector<8xf32>
    %569 = vector.multi_reduction <add>, %568, %cst_309 [1] : vector<8x32xf32> to vector<8xf32>
    %570 = vector.shape_cast %569 : vector<8xf32> to vector<8x1xf32>
    %c0_310 = arith.constant 0 : index
    %c0_311 = arith.constant 0 : index
    %571 = vector.load %arg91[%c0_310, %c0_311] : memref<1x1xf32, #tpu.memory_space<vmem>>, vector<1x1xf32>
    %572 = vector.broadcast %571 : vector<1x1xf32> to vector<8x1xf32>
    %573 = arith.addf %570, %572 : vector<8x1xf32>
    %c0_312 = arith.constant 0 : index
    %c0_313 = arith.constant 0 : index
    %574 = vector.load %arg93[%c0_312, %c0_313] : memref<8x1xf32, #tpu.memory_space<vmem>>, vector<8x1xf32>
    tpu.vector_store %arg93[%c0_312, %c0_313], %573 {strides = array<i32>} : memref<8x1xf32, #tpu.memory_space<vmem>>, vector<8x1xf32>,
    return
  }
}

</mosaic_0001>

<llo_original>
// kernel: transformer_forward.1
$region0: #{transformer_forward.1}
  #allocation0 [shape = 'u32[]', space=smem, size = 0x4, offset = 0x4, fixed_abs, tag = 'smem constant byte address 0x4 - core index']
  #allocation1 [shape = 'u32[144,128]{1,0:T(1,128)}', space=vmem, size = 0x12000, scoped, tag = 'internal scratch']
  #allocation2 [shape = 'f32[1,1]{1,0:T(1,128)S(1)}', space=vmem, size = 0x200, scoped, tag = 'scoped memory for transformer_forward.1']
  %s0 = inlined_call_operand.smem [shape: u32[94], index: -1, kind: input, shape index: {}]
  %s1 = sld [smem:[%s0]]
  %s2 = scalar_lea.smem %s0, 1
  %s3 = sld [smem:[%s2]]
  %s4 = scalar_lea.smem %s0, 2
  %s5 = sld [smem:[%s4]]
  %s6 = scalar_lea.smem %s0, 3
  %s7 = sld [smem:[%s6]]
  %s8 = scalar_lea.smem %s0, 4
  %s9 = sld [smem:[%s8]]
  %s10 = scalar_lea.smem %s0, 5
  %s11 = sld [smem:[%s10]]
  %s12 = scalar_lea.smem %s0, 6
  %s13 = sld [smem:[%s12]]
  %s14 = scalar_lea.smem %s0, 7
  %s15 = sld [smem:[%s14]]
  %s16 = scalar_lea.smem %s0, 8
  %s17 = sld [smem:[%s16]]
  %s18 = scalar_lea.smem %s0, 9
  %s19 = sld [smem:[%s18]]
  %s20 = scalar_lea.smem %s0, 10
  %s21 = sld [smem:[%s20]]
  %s22 = scalar_lea.smem %s0, 11
  %s23 = sld [smem:[%s22]]
  %s24 = scalar_lea.smem %s0, 12
  %s25 = sld [smem:[%s24]]
  %s26 = scalar_lea.smem %s0, 13
  %s27 = sld [smem:[%s26]]
  %s28 = scalar_lea.smem %s0, 14
  %s29 = sld [smem:[%s28]]
  %s30 = scalar_lea.smem %s0, 15
  %s31 = sld [smem:[%s30]]
  %s32 = scalar_lea.smem %s0, 16
  %s33 = sld [smem:[%s32]]
  %s34 = scalar_lea.smem %s0, 17
  %s35 = sld [smem:[%s34]]
  %s36 = scalar_lea.smem %s0, 18
  %s37 = sld [smem:[%s36]]
  %s38 = scalar_lea.smem %s0, 19
  %s39 = sld [smem:[%s38]]
  %s40 = scalar_lea.smem %s0, 20
  %s41 = sld [smem:[%s40]]
  %s42 = scalar_lea.smem %s0, 21
  %s43 = sld [smem:[%s42]]
  %s44 = scalar_lea.smem %s0, 22
  %s45 = sld [smem:[%s44]]
  %s46 = scalar_lea.smem %s0, 23
  %s47 = sld [smem:[%s46]]
  %s48 = scalar_lea.smem %s0, 24
  %s49 = sld [smem:[%s48]]
  %s50 = scalar_lea.smem %s0, 25
  %s51 = sld [smem:[%s50]]
  %s52 = scalar_lea.smem %s0, 26
  %s53 = sld [smem:[%s52]]
  %s54 = scalar_lea.smem %s0, 27
  %s55 = sld [smem:[%s54]]
  %s56 = scalar_lea.smem %s0, 28
  %s57 = sld [smem:[%s56]]
  %s58 = scalar_lea.smem %s0, 29
  %s59 = sld [smem:[%s58]]
  %s60 = scalar_lea.smem %s0, 30
  %s61 = sld [smem:[%s60]]
  %s62 = scalar_lea.smem %s0, 31
  %s63 = sld [smem:[%s62]]
  %s64 = scalar_lea.smem %s0, 32
  %s65 = sld [smem:[%s64]]
  %s66 = scalar_lea.smem %s0, 33
  %s67 = sld [smem:[%s66]]
  %s68 = scalar_lea.smem %s0, 34
  %s69 = sld [smem:[%s68]]
  %s70 = scalar_lea.smem %s0, 35
  %s71 = sld [smem:[%s70]]
  %s72 = scalar_lea.smem %s0, 36
  %s73 = sld [smem:[%s72]]
  %s74 = scalar_lea.smem %s0, 37
  %s75 = sld [smem:[%s74]]
  %s76 = scalar_lea.smem %s0, 38
  %s77 = sld [smem:[%s76]]
  %s78 = scalar_lea.smem %s0, 39
  %s79 = sld [smem:[%s78]]
  %s80 = scalar_lea.smem %s0, 40
  %s81 = sld [smem:[%s80]]
  %s82 = scalar_lea.smem %s0, 41
  %s83 = sld [smem:[%s82]]
  %s84 = scalar_lea.smem %s0, 42
  %s85 = sld [smem:[%s84]]
  %s86 = scalar_lea.smem %s0, 43
  %s87 = sld [smem:[%s86]]
  %s88 = scalar_lea.smem %s0, 44
  %s89 = sld [smem:[%s88]]
  %s90 = scalar_lea.smem %s0, 45
  %s91 = sld [smem:[%s90]]
  %s92 = scalar_lea.smem %s0, 46
  %s93 = sld [smem:[%s92]]
  %s94 = scalar_lea.smem %s0, 47
  %s95 = sld [smem:[%s94]]
  %s96 = scalar_lea.smem %s0, 48
  %s97 = sld [smem:[%s96]]
  %s98 = scalar_lea.smem %s0, 49
  %s99 = sld [smem:[%s98]]
  %s100 = scalar_lea.smem %s0, 50
  %s101 = sld [smem:[%s100]]
  %s102 = scalar_lea.smem %s0, 51
  %s103 = sld [smem:[%s102]]
  %s104 = scalar_lea.smem %s0, 52
  %s105 = sld [smem:[%s104]]
  %s106 = scalar_lea.smem %s0, 53
  %s107 = sld [smem:[%s106]]
  %s108 = scalar_lea.smem %s0, 54
  %s109 = sld [smem:[%s108]]
  %s110 = scalar_lea.smem %s0, 55
  %s111 = sld [smem:[%s110]]
  %s112 = scalar_lea.smem %s0, 56
  %s113 = sld [smem:[%s112]]
  %s114 = scalar_lea.smem %s0, 57
  %s115 = sld [smem:[%s114]]
  %s116 = scalar_lea.smem %s0, 58
  %s117 = sld [smem:[%s116]]
  %s118 = scalar_lea.smem %s0, 59
  %s119 = sld [smem:[%s118]]
  %s120 = scalar_lea.smem %s0, 60
  %s121 = sld [smem:[%s120]]
  %s122 = scalar_lea.smem %s0, 61
  %s123 = sld [smem:[%s122]]
  %s124 = scalar_lea.smem %s0, 62
  %s125 = sld [smem:[%s124]]
  %s126 = scalar_lea.smem %s0, 63
  %s127 = sld [smem:[%s126]]
  %s128 = scalar_lea.smem %s0, 64
  %s129 = sld [smem:[%s128]]
  %s130 = scalar_lea.smem %s0, 65
  %s131 = sld [smem:[%s130]]
  %s132 = scalar_lea.smem %s0, 66
  %s133 = sld [smem:[%s132]]
  %s134 = scalar_lea.smem %s0, 67
  %s135 = sld [smem:[%s134]]
  %s136 = scalar_lea.smem %s0, 68
  %s137 = sld [smem:[%s136]]
  %s138 = scalar_lea.smem %s0, 69
  %s139 = sld [smem:[%s138]]
  %s140 = scalar_lea.smem %s0, 70
  %s141 = sld [smem:[%s140]]
  %s142 = scalar_lea.smem %s0, 71
  %s143 = sld [smem:[%s142]]
  %s144 = scalar_lea.smem %s0, 72
  %s145 = sld [smem:[%s144]]
  %s146 = scalar_lea.smem %s0, 73
  %s147 = sld [smem:[%s146]]
  %s148 = scalar_lea.smem %s0, 74
  %s149 = sld [smem:[%s148]]
  %s150 = scalar_lea.smem %s0, 75
  %s151 = sld [smem:[%s150]]
  %s152 = scalar_lea.smem %s0, 76
  %s153 = sld [smem:[%s152]]
  %s154 = scalar_lea.smem %s0, 77
  %s155 = sld [smem:[%s154]]
  %s156 = scalar_lea.smem %s0, 78
  %s157 = sld [smem:[%s156]]
  %s158 = scalar_lea.smem %s0, 79
  %s159 = sld [smem:[%s158]]
  %s160 = scalar_lea.smem %s0, 80
  %s161 = sld [smem:[%s160]]
  %s162 = scalar_lea.smem %s0, 81
  %s163 = sld [smem:[%s162]]
  %s164 = scalar_lea.smem %s0, 82
  %s165 = sld [smem:[%s164]]
  %s166 = scalar_lea.smem %s0, 83
  %s167 = sld [smem:[%s166]]
  %s168 = scalar_lea.smem %s0, 84
  %s169 = sld [smem:[%s168]]
  %s170 = scalar_lea.smem %s0, 85
  %s171 = sld [smem:[%s170]]
  %s172 = scalar_lea.smem %s0, 86
  %s173 = sld [smem:[%s172]]
  %s174 = scalar_lea.smem %s0, 87
  %s175 = sld [smem:[%s174]]
  %s176 = scalar_lea.smem %s0, 88
  %s177 = sld [smem:[%s176]]
  %s178 = scalar_lea.smem %s0, 89
  %s179 = sld [smem:[%s178]]
  %s180 = scalar_lea.smem %s0, 90
  %s181 = sld [smem:[%s180]]
  %s182 = scalar_lea.smem %s0, 91
  %s183 = sld [smem:[%s182]]
  %s184 = scalar_lea.smem %s0, 92
  %s185 = sld [smem:[%s184]]
  %s186 = scalar_lea.smem %s0, 93
  %s187 = sld [smem:[%s186]]
  %s188 = sld [smem:[#allocation0]]
  $region706: #{transformer_forward.1} parent=0
    _
  %s190 = ssub.s32 1, %s188
  %s191 = scalar_select 0, %s190, %s188
  %v192 = vstv %s183
  %193 = vst [vmem:[#allocation2] sm:$0x1] %v192
  $region1: #{transformer_forward.1} parent=0
    #allocation3 [shape = 'u8[512]{0}', space=vmem, size = 0x400, scoped, tag = 'input window, operand 1, single buffered']
    #allocation4 [shape = 's32[1]{0}', space=sflag, size = 0x4, scoped, tag = 'scoped memory for transformer_forward.1']
    #allocation5 [shape = 'u8[512]{0}', space=vmem, size = 0x400, scoped, tag = 'input window, operand 2, single buffered']
    #allocation6 [shape = 's32[1]{0}', space=sflag, size = 0x4, scoped, tag = 'scoped memory for transformer_forward.1']
    #allocation7 [shape = 'u8[512]{0}', space=vmem, size = 0x400, scoped, tag = 'input window, operand 3, single buffered']
    #allocation8 [shape = 'u8[512]{0}', space=vmem, size = 0x400, scoped, tag = 'input window, operand 4, single buffered']
    #allocation9 [shape = 's32[1]{0}', space=sflag, size = 0x4, scoped, tag = 'scoped memory for transformer_forward.1']
    #allocation10 [shape = 'u8[16384]{0}', space=vmem, size = 0x4000, scoped, tag = 'input window, operand 5, single buffered']
    #allocation11 [shape = 'u8[16384]{0}', space=vmem, size = 0x4000, scoped, tag = 'input window, operand 6, single buffered']
    #allocation12 [shape = 's32[1]{0}', space=sflag, size = 0x4, scoped, tag = 'scoped memory for transformer_forward.1']
    #allocation13 [shape = 'u8[16384]{0}', space=vmem, size = 0x4000, scoped, tag = 'input window, operand 7, single buffered']
    #allocation14 [shape = 'u8[16384]{0}', space=vmem, size = 0x4000, scoped, tag = 'input window, operand 8, single buffered']
    #allocation15 [shape = 's32[1]{0}', space=sflag, size = 0x4, scoped, tag = 'scoped memory for transformer_forward.1']
    #allocation16 [shape = 'u8[512]{0}', space=vmem, size = 0x400, scoped, tag = 'input window, operand 9, single buffered']
    #allocation17 [shape = 'u8[16384]{0}', space=vmem, size = 0x4000, scoped, tag = 'input window, operand 10, single buffered']
    #allocation18 [shape = 's32[1]{0}', space=sflag, size = 0x4, scoped, tag = 'scoped memory for transformer_forward.1']
    #allocation19 [shape = 'u8[512]{0}', space=vmem, size = 0x400, scoped, tag = 'input window, operand 11, single buffered']
    #allocation20 [shape = 'u8[512]{0}', space=vmem, size = 0x400, scoped, tag = 'input window, operand 13, single buffered']
    #allocation21 [shape = 's32[1]{0}', space=sflag, size = 0x4, scoped, tag = 'scoped memory for transformer_forward.1']
    #allocation22 [shape = 'u8[512]{0}', space=vmem, size = 0x400, scoped, tag = 'input window, operand 14, single buffered']
    #allocation23 [shape = 'u8[512]{0}', space=vmem, size = 0x400, scoped, tag = 'input window, operand 15, single buffered']
    #allocation24 [shape = 's32[1]{0}', space=sflag, size = 0x4, scoped, tag = 'scoped memory for transformer_forward.1']
    #allocation25 [shape = 'u8[512]{0}', space=vmem, size = 0x400, scoped, tag = 'input window, operand 16, single buffered']
    #allocation26 [shape = 'u8[512]{0}', space=vmem, size = 0x400, scoped, tag = 'input window, operand 17, single buffered']
    #allocation27 [shape = 's32[1]{0}', space=sflag, size = 0x4, scoped, tag = 'scoped memory for transformer_forward.1']
    #allocation28 [shape = 'u8[512]{0}', space=vmem, size = 0x400, scoped, tag = 'input window, operand 18, single buffered']
    #allocation29 [shape = 'u8[512]{0}', space=vmem, size = 0x400, scoped, tag = 'input window, operand 19, single buffered']
    #allocation30 [shape = 's32[1]{0}', space=sflag, size = 0x4, scoped, tag = 'scoped memory for transformer_forward.1']
    #allocation31 [shape = 'u8[512]{0}', space=vmem, size = 0x400, scoped, tag = 'input window, operand 20, single buffered']
    #allocation32 [shape = 'u8[512]{0}', space=vmem, size = 0x400, scoped, tag = 'input window, operand 21, single buffered']
    #allocation33 [shape = 's32[1]{0}', space=sflag, size = 0x4, scoped, tag = 'scoped memory for transformer_forward.1']
    #allocation34 [shape = 'u8[512]{0}', space=vmem, size = 0x400, scoped, tag = 'input window, operand 22, single buffered']
    #allocation35 [shape = 'u8[16384]{0}', space=vmem, size = 0x4000, scoped, tag = 'input window, operand 23, single buffered']
    #allocation36 [shape = 's32[1]{0}', space=sflag, size = 0x4, scoped, tag = 'scoped memory for transformer_forward.1']
    #allocation37 [shape = 'u8[16384]{0}', space=vmem, size = 0x4000, scoped, tag = 'input window, operand 24, single buffered']
    #allocation38 [shape = 'u8[16384]{0}', space=vmem, size = 0x4000, scoped, tag = 'input window, operand 25, single buffered']
    #allocation39 [shape = 's32[1]{0}', space=sflag, size = 0x4, scoped, tag = 'scoped memory for transformer_forward.1']
    #allocation40 [shape = 'u8[16384]{0}', space=vmem, size = 0x4000, scoped, tag = 'input window, operand 26, single buffered']
    #allocation41 [shape = 'u8[512]{0}', space=vmem, size = 0x400, scoped, tag = 'input window, operand 27, single buffered']
    #allocation42 [shape = 's32[1]{0}', space=sflag, size = 0x4, scoped, tag = 'scoped memory for transformer_forward.1']
    #allocation43 [shape = 'u8[512]{0}', space=vmem, size = 0x400, scoped, tag = 'input window, operand 28, single buffered']
    #allocation44 [shape = 'u8[512]{0}', space=vmem, size = 0x400, scoped, tag = 'input window, operand 29, single buffered']
    #allocation45 [shape = 's32[1]{0}', space=sflag, size = 0x4, scoped, tag = 'scoped memory for transformer_forward.1']
    #allocation46 [shape = 'u8[512]{0}', space=vmem, size = 0x400, scoped, tag = 'input window, operand 30, single buffered']
    #allocation47 [shape = 'u8[16384]{0}', space=vmem, size = 0x4000, scoped, tag = 'input window, operand 32, single buffered']
    #allocation48 [shape = 's32[1]{0}', space=sflag, size = 0x4, scoped, tag = 'scoped memory for transformer_forward.1']
    #allocation49 [shape = 'u8[16384]{0}', space=vmem, size = 0x4000, scoped, tag = 'input window, operand 33, single buffered']
    #allocation50 [shape = 'u8[16384]{0}', space=vmem, size = 0x4000, scoped, tag = 'input window, operand 34, single buffered']
    #allocation51 [shape = 's32[1]{0}', space=sflag, size = 0x4, scoped, tag = 'scoped memory for transformer_forward.1']
    #allocation52 [shape = 'u8[512]{0}', space=vmem, size = 0x400, scoped, tag = 'input window, operand 35, single buffered']
    #allocation53 [shape = 'u8[16384]{0}', space=vmem, size = 0x4000, scoped, tag = 'input window, operand 36, single buffered']
    #allocation54 [shape = 's32[1]{0}', space=sflag, size = 0x4, scoped, tag = 'scoped memory for transformer_forward.1']
    #allocation55 [shape = 'u8[512]{0}', space=vmem, size = 0x400, scoped, tag = 'input window, operand 37, single buffered']
    #allocation56 [shape = 'u8[16384]{0}', space=vmem, size = 0x4000, scoped, tag = 'input window, operand 38, single buffered']
    #allocation57 [shape = 's32[1]{0}', space=sflag, size = 0x4, scoped, tag = 'scoped memory for transformer_forward.1']
    #allocation58 [shape = 'u8[512]{0}', space=vmem, size = 0x400, scoped, tag = 'input window, operand 39, single buffered']
    #allocation59 [shape = 'u8[512]{0}', space=vmem, size = 0x400, scoped, tag = 'input window, operand 40, single buffered']
    #allocation60 [shape = 's32[1]{0}', space=sflag, size = 0x4, scoped, tag = 'scoped memory for transformer_forward.1']
    #allocation61 [shape = 'u8[512]{0}', space=vmem, size = 0x400, scoped, tag = 'input window, operand 41, single buffered']
    #allocation62 [shape = 'u8[512]{0}', space=vmem, size = 0x400, scoped, tag = 'input window, operand 42, single buffered']
    #allocation63 [shape = 's32[1]{0}', space=sflag, size = 0x4, scoped, tag = 'scoped memory for transformer_forward.1']
    #allocation64 [shape = 'u8[512]{0}', space=vmem, size = 0x400, scoped, tag = 'input window, operand 43, single buffered']
    #allocation65 [shape = 'u8[512]{0}', space=vmem, size = 0x400, scoped, tag = 'input window, operand 44, single buffered']
    #allocation66 [shape = 's32[1]{0}', space=sflag, size = 0x4, scoped, tag = 'scoped memory for transformer_forward.1']
    #allocation67 [shape = 'u8[512]{0}', space=vmem, size = 0x400, scoped, tag = 'input window, operand 45, single buffered']
    #allocation68 [shape = 'u8[512]{0}', space=vmem, size = 0x400, scoped, tag = 'input window, operand 46, single buffered']
    #allocation69 [shape = 's32[1]{0}', space=sflag, size = 0x4, scoped, tag = 'scoped memory for transformer_forward.1']
    #allocation70 [shape = 'u8[512]{0}', space=vmem, size = 0x400, scoped, tag = 'input window, operand 47, single buffered']
    #allocation71 [shape = 'u8[512]{0}', space=vmem, size = 0x400, scoped, tag = 'input window, operand 48, single buffered']
    #allocation72 [shape = 's32[1]{0}', space=sflag, size = 0x4, scoped, tag = 'scoped memory for transformer_forward.1']
    #allocation73 [shape = 'u8[16384]{0}', space=vmem, size = 0x4000, scoped, tag = 'input window, operand 50, single buffered']
    #allocation74 [shape = 'u8[16384]{0}', space=vmem, size = 0x4000, scoped, tag = 'input window, operand 51, single buffered']
    #allocation75 [shape = 's32[1]{0}', space=sflag, size = 0x4, scoped, tag = 'scoped memory for transformer_forward.1']
    #allocation76 [shape = 'u8[16384]{0}', space=vmem, size = 0x4000, scoped, tag = 'input window, operand 52, single buffered']
    #allocation77 [shape = 'u8[512]{0}', space=vmem, size = 0x400, scoped, tag = 'input window, operand 53, single buffered']
    #allocation78 [shape = 's32[1]{0}', space=sflag, size = 0x4, scoped, tag = 'scoped memory for transformer_forward.1']
    #allocation79 [shape = 'u8[512]{0}', space=vmem, size = 0x400, scoped, tag = 'input window, operand 54, single buffered']
    #allocation80 [shape = 'u8[512]{0}', space=vmem, size = 0x400, scoped, tag = 'input window, operand 55, single buffered']
    #allocation81 [shape = 's32[1]{0}', space=sflag, size = 0x4, scoped, tag = 'scoped memory for transformer_forward.1']
    #allocation82 [shape = 'u8[512]{0}', space=vmem, size = 0x400, scoped, tag = 'input window, operand 56, single buffered']
    #allocation83 [shape = 'u8[512]{0}', space=vmem, size = 0x400, scoped, tag = 'input window, operand 57, single buffered']
    #allocation84 [shape = 's32[1]{0}', space=sflag, size = 0x4, scoped, tag = 'scoped memory for transformer_forward.1']
    #allocation85 [shape = 'u8[16384]{0}', space=vmem, size = 0x4000, scoped, tag = 'input window, operand 58, single buffered']
    #allocation86 [shape = 'u8[512]{0}', space=vmem, size = 0x400, scoped, tag = 'input window, operand 59, single buffered']
    #allocation87 [shape = 's32[1]{0}', space=sflag, size = 0x4, scoped, tag = 'scoped memory for transformer_forward.1']
    #allocation88 [shape = 'u8[16384]{0}', space=vmem, size = 0x4000, scoped, tag = 'input window, operand 60, single buffered']
    #allocation89 [shape = 'u8[512]{0}', space=vmem, size = 0x400, scoped, tag = 'input window, operand 61, single buffered']
    #allocation90 [shape = 's32[1]{0}', space=sflag, size = 0x4, scoped, tag = 'scoped memory for transformer_forward.1']
    #allocation91 [shape = 'u8[512]{0}', space=vmem, size = 0x400, scoped, tag = 'input window, operand 62, single buffered']
    #allocation92 [shape = 'u8[512]{0}', space=vmem, size = 0x400, scoped, tag = 'input window, operand 63, single buffered']
    #allocation93 [shape = 's32[1]{0}', space=sflag, size = 0x4, scoped, tag = 'scoped memory for transformer_forward.1']
    #allocation94 [shape = 'u8[512]{0}', space=vmem, size = 0x400, scoped, tag = 'input window, operand 64, single buffered']
    #allocation95 [shape = 'u8[512]{0}', space=vmem, size = 0x400, scoped, tag = 'input window, operand 65, single buffered']
    #allocation96 [shape = 's32[1]{0}', space=sflag, size = 0x4, scoped, tag = 'scoped memory for transformer_forward.1']
    #allocation97 [shape = 'u8[512]{0}', space=vmem, size = 0x400, scoped, tag = 'input window, operand 66, single buffered']
    #allocation98 [shape = 'u8[512]{0}', space=vmem, size = 0x400, scoped, tag = 'input window, operand 67, single buffered']
    #allocation99 [shape = 's32[1]{0}', space=sflag, size = 0x4, scoped, tag = 'scoped memory for transformer_forward.1']
    #allocation100 [shape = 'u8[512]{0}', space=vmem, size = 0x400, scoped, tag = 'input window, operand 68, single buffered']
    #allocation101 [shape = 'u8[16384]{0}', space=vmem, size = 0x4000, scoped, tag = 'input window, operand 70, single buffered']
    #allocation102 [shape = 's32[1]{0}', space=sflag, size = 0x4, scoped, tag = 'scoped memory for transformer_forward.1']
    #allocation103 [shape = 'u8[16384]{0}', space=vmem, size = 0x4000, scoped, tag = 'input window, operand 71, single buffered']
    #allocation104 [shape = 'u8[16384]{0}', space=vmem, size = 0x4000, scoped, tag = 'input window, operand 72, single buffered']
    #allocation105 [shape = 's32[1]{0}', space=sflag, size = 0x4, scoped, tag = 'scoped memory for transformer_forward.1']
    #allocation106 [shape = 'u8[512]{0}', space=vmem, size = 0x400, scoped, tag = 'input window, operand 73, single buffered']
    #allocation107 [shape = 'u8[16384]{0}', space=vmem, size = 0x4000, scoped, tag = 'input window, operand 74, single buffered']
    #allocation108 [shape = 's32[1]{0}', space=sflag, size = 0x4, scoped, tag = 'scoped memory for transformer_forward.1']
    #allocation109 [shape = 'u8[512]{0}', space=vmem, size = 0x400, scoped, tag = 'input window, operand 75, single buffered']
    #allocation110 [shape = 'u8[16384]{0}', space=vmem, size = 0x4000, scoped, tag = 'input window, operand 76, single buffered']
    #allocation111 [shape = 's32[1]{0}', space=sflag, size = 0x4, scoped, tag = 'scoped memory for transformer_forward.1']
    #allocation112 [shape = 'u8[512]{0}', space=vmem, size = 0x400, scoped, tag = 'input window, operand 77, single buffered']
    #allocation113 [shape = 'u8[512]{0}', space=vmem, size = 0x400, scoped, tag = 'input window, operand 78, single buffered']
    #allocation114 [shape = 's32[1]{0}', space=sflag, size = 0x4, scoped, tag = 'scoped memory for transformer_forward.1']
    #allocation115 [shape = 'u8[512]{0}', space=vmem, size = 0x400, scoped, tag = 'input window, operand 79, single buffered']
    #allocation116 [shape = 'u8[512]{0}', space=vmem, size = 0x400, scoped, tag = 'input window, operand 80, single buffered']
    #allocation117 [shape = 's32[1]{0}', space=sflag, size = 0x4, scoped, tag = 'scoped memory for transformer_forward.1']
    #allocation118 [shape = 'u8[512]{0}', space=vmem, size = 0x400, scoped, tag = 'input window, operand 81, single buffered']
    #allocation119 [shape = 'u8[512]{0}', space=vmem, size = 0x400, scoped, tag = 'input window, operand 82, single buffered']
    #allocation120 [shape = 's32[1]{0}', space=sflag, size = 0x4, scoped, tag = 'scoped memory for transformer_forward.1']
    #allocation121 [shape = 'u8[16384]{0}', space=vmem, size = 0x4000, scoped, tag = 'input window, operand 86, single buffered']
    #allocation122 [shape = 'u8[16384]{0}', space=vmem, size = 0x4000, scoped, tag = 'input window, operand 87, single buffered']
    #allocation123 [shape = 's32[1]{0}', space=sflag, size = 0x4, scoped, tag = 'scoped memory for transformer_forward.1']
    #allocation124 [shape = 'u8[16384]{0}', space=vmem, size = 0x4000, scoped, tag = 'input window, operand 88, single buffered']
    %194 = vsyncpa [#allocation4], 0
    %195 = vsyncpa [#allocation6], 0
    %196 = vsyncpa [#allocation9], 0
    %197 = vsyncpa [#allocation12], 0
    %198 = vsyncpa [#allocation15], 0
    %199 = vsyncpa [#allocation18], 0
    %200 = vsyncpa [#allocation21], 0
    %201 = vsyncpa [#allocation24], 0
    %202 = vsyncpa [#allocation27], 0
    %203 = vsyncpa [#allocation30], 0
    %204 = vsyncpa [#allocation33], 0
    %205 = vsyncpa [#allocation36], 0
    %206 = vsyncpa [#allocation39], 0
    %207 = vsyncpa [#allocation42], 0
    %208 = vsyncpa [#allocation45], 0
    %209 = vsyncpa [#allocation48], 0
    %210 = vsyncpa [#allocation51], 0
    %211 = vsyncpa [#allocation54], 0
    %212 = vsyncpa [#allocation57], 0
    %213 = vsyncpa [#allocation60], 0
    %214 = vsyncpa [#allocation63], 0
    %215 = vsyncpa [#allocation66], 0
    %216 = vsyncpa [#allocation69], 0
    %217 = vsyncpa [#allocation72], 0
    %218 = vsyncpa [#allocation75], 0
    %219 = vsyncpa [#allocation78], 0
    %220 = vsyncpa [#allocation81], 0
    %221 = vsyncpa [#allocation84], 0
    %222 = vsyncpa [#allocation87], 0
    %223 = vsyncpa [#allocation90], 0
    %224 = vsyncpa [#allocation93], 0
    %225 = vsyncpa [#allocation96], 0
    %226 = vsyncpa [#allocation99], 0
    %227 = vsyncpa [#allocation102], 0
    %228 = vsyncpa [#allocation105], 0
    %229 = vsyncpa [#allocation108], 0
    %230 = vsyncpa [#allocation111], 0
    %231 = vsyncpa [#allocation114], 0
    %232 = vsyncpa [#allocation117], 0
    %233 = vsyncpa [#allocation120], 0
    %234 = vsyncpa [#allocation123], 0
    // Predicated region
    $region2: #{transformer_forward.1} parent=1 // pred_check
      _
    $region3: #{transformer_forward.1} parent=1 // pred_check_branch
      %236 = sbr.rel (0) target = $region5
    $region4: #{transformer_forward.1} parent=1 // pred_region
      _
    $region5: #{transformer_forward.1} parent=1 // pred_fallthru
      _
    // Predicated region
    $region6: #{transformer_forward.1} parent=1 // pred_check
      _
    $region7: #{transformer_forward.1} parent=1 // pred_check_branch
      %238 = sbr.rel (0) target = $region9
    $region8: #{transformer_forward.1} parent=1 // pred_region
      %s240 = ssub.s32 16, 16
      %241 = vsyncadd [#allocation4], %s240
      %s243 = sshll.u32 [#allocation3], 4
      %s244 = int_to_ptr.vmem [resolvable:$true] %s243
      %246 = dma.hbm_to_vmem [thread:$0]  %s3, 16, %s244, [#allocation4]
    $region9: #{transformer_forward.1} parent=1 // pred_fallthru
      _
    // Predicated region
    $region10: #{transformer_forward.1} parent=1 // pred_check
      _
    $region11: #{transformer_forward.1} parent=1 // pred_check_branch
      %248 = sbr.rel (0) target = $region13
    $region12: #{transformer_forward.1} parent=1 // pred_region
      %s250 = ssub.s32 16, 16
      %251 = vsyncadd [#allocation6], %s250
      %s253 = sshll.u32 [#allocation5], 4
      %s254 = int_to_ptr.vmem [resolvable:$true] %s253
      %256 = dma.hbm_to_vmem [thread:$0]  %s5, 16, %s254, [#allocation6]
    $region13: #{transformer_forward.1} parent=1 // pred_fallthru
      _
    // Predicated region
    $region14: #{transformer_forward.1} parent=1 // pred_check
      _
    $region15: #{transformer_forward.1} parent=1 // pred_check_branch
      %258 = sbr.rel (0) target = $region17
    $region16: #{transformer_forward.1} parent=1 // pred_region
      %s260 = ssub.s32 16, 16
      %261 = vsyncadd [#allocation6], %s260
      %s263 = sshll.u32 [#allocation7], 4
      %s264 = int_to_ptr.vmem [resolvable:$true] %s263
      %266 = dma.hbm_to_vmem [thread:$0]  %s7, 16, %s264, [#allocation6]
    $region17: #{transformer_forward.1} parent=1 // pred_fallthru
      _
    // Predicated region
    $region18: #{transformer_forward.1} parent=1 // pred_check
      _
    $region19: #{transformer_forward.1} parent=1 // pred_check_branch
      %268 = sbr.rel (0) target = $region21
    $region20: #{transformer_forward.1} parent=1 // pred_region
      %s270 = ssub.s32 16, 16
      %271 = vsyncadd [#allocation9], %s270
      %s273 = sshll.u32 [#allocation8], 4
      %s274 = int_to_ptr.vmem [resolvable:$true] %s273
      %276 = dma.hbm_to_vmem [thread:$0]  %s9, 16, %s274, [#allocation9]
    $region21: #{transformer_forward.1} parent=1 // pred_fallthru
      _
    // Predicated region
    $region22: #{transformer_forward.1} parent=1 // pred_check
      _
    $region23: #{transformer_forward.1} parent=1 // pred_check_branch
      %278 = sbr.rel (0) target = $region25
    $region24: #{transformer_forward.1} parent=1 // pred_region
      %s280 = ssub.s32 512, 512
      %281 = vsyncadd [#allocation9], %s280
      %s282 = sshll.u32 [#allocation10], 4
      %s283 = int_to_ptr.vmem [resolvable:$true] %s282
      %288 = dma.hbm_to_vmem [thread:$0]  %s11, 512, %s283, [#allocation9], 128, 128, 8
    $region25: #{transformer_forward.1} parent=1 // pred_fallthru
      _
    // Predicated region
    $region26: #{transformer_forward.1} parent=1 // pred_check
      _
    $region27: #{transformer_forward.1} parent=1 // pred_check_branch
      %290 = sbr.rel (0) target = $region29
    $region28: #{transformer_forward.1} parent=1 // pred_region
      %s292 = ssub.s32 512, 512
      %293 = vsyncadd [#allocation12], %s292
      %s294 = sshll.u32 [#allocation11], 4
      %s295 = int_to_ptr.vmem [resolvable:$true] %s294
      %300 = dma.hbm_to_vmem [thread:$0]  %s13, 512, %s295, [#allocation12], 128, 128, 8
    $region29: #{transformer_forward.1} parent=1 // pred_fallthru
      _
    // Predicated region
    $region30: #{transformer_forward.1} parent=1 // pred_check
      _
    $region31: #{transformer_forward.1} parent=1 // pred_check_branch
      %302 = sbr.rel (0) target = $region33
    $region32: #{transformer_forward.1} parent=1 // pred_region
      %s304 = ssub.s32 512, 512
      %305 = vsyncadd [#allocation12], %s304
      %s306 = sshll.u32 [#allocation13], 4
      %s307 = int_to_ptr.vmem [resolvable:$true] %s306
      %312 = dma.hbm_to_vmem [thread:$0]  %s15, 512, %s307, [#allocation12], 128, 128, 8
    $region33: #{transformer_forward.1} parent=1 // pred_fallthru
      _
    // Predicated region
    $region34: #{transformer_forward.1} parent=1 // pred_check
      _
    $region35: #{transformer_forward.1} parent=1 // pred_check_branch
      %314 = sbr.rel (0) target = $region37
    $region36: #{transformer_forward.1} parent=1 // pred_region
      %s316 = ssub.s32 512, 512
      %317 = vsyncadd [#allocation15], %s316
      %s318 = sshll.u32 [#allocation14], 4
      %s319 = int_to_ptr.vmem [resolvable:$true] %s318
      %324 = dma.hbm_to_vmem [thread:$0]  %s17, 512, %s319, [#allocation15], 128, 128, 8
    $region37: #{transformer_forward.1} parent=1 // pred_fallthru
      _
    // Predicated region
    $region38: #{transformer_forward.1} parent=1 // pred_check
      _
    $region39: #{transformer_forward.1} parent=1 // pred_check_branch
      %326 = sbr.rel (0) target = $region41
    $region40: #{transformer_forward.1} parent=1 // pred_region
      %s328 = ssub.s32 16, 16
      %329 = vsyncadd [#allocation15], %s328
      %s331 = sshll.u32 [#allocation16], 4
      %s332 = int_to_ptr.vmem [resolvable:$true] %s331
      %334 = dma.hbm_to_vmem [thread:$0]  %s19, 16, %s332, [#allocation15]
    $region41: #{transformer_forward.1} parent=1 // pred_fallthru
      _
    // Predicated region
    $region42: #{transformer_forward.1} parent=1 // pred_check
      _
    $region43: #{transformer_forward.1} parent=1 // pred_check_branch
      %336 = sbr.rel (0) target = $region45
    $region44: #{transformer_forward.1} parent=1 // pred_region
      %s338 = ssub.s32 512, 512
      %339 = vsyncadd [#allocation18], %s338
      %s340 = sshll.u32 [#allocation17], 4
      %s341 = int_to_ptr.vmem [resolvable:$true] %s340
      %346 = dma.hbm_to_vmem [thread:$0]  %s21, 512, %s341, [#allocation18], 128, 128, 8
    $region45: #{transformer_forward.1} parent=1 // pred_fallthru
      _
    // Predicated region
    $region46: #{transformer_forward.1} parent=1 // pred_check
      _
    $region47: #{transformer_forward.1} parent=1 // pred_check_branch
      %348 = sbr.rel (0) target = $region49
    $region48: #{transformer_forward.1} parent=1 // pred_region
      %s350 = ssub.s32 16, 16
      %351 = vsyncadd [#allocation18], %s350
      %s353 = sshll.u32 [#allocation19], 4
      %s354 = int_to_ptr.vmem [resolvable:$true] %s353
      %356 = dma.hbm_to_vmem [thread:$0]  %s23, 16, %s354, [#allocation18]
    $region49: #{transformer_forward.1} parent=1 // pred_fallthru
      _
    // Predicated region
    $region50: #{transformer_forward.1} parent=1 // pred_check
      _
    $region51: #{transformer_forward.1} parent=1 // pred_check_branch
      %358 = sbr.rel (0) target = $region53
    $region52: #{transformer_forward.1} parent=1 // pred_region
      _
    $region53: #{transformer_forward.1} parent=1 // pred_fallthru
      _
    // Predicated region
    $region54: #{transformer_forward.1} parent=1 // pred_check
      _
    $region55: #{transformer_forward.1} parent=1 // pred_check_branch
      %360 = sbr.rel (0) target = $region57
    $region56: #{transformer_forward.1} parent=1 // pred_region
      %s362 = ssub.s32 16, 16
      %363 = vsyncadd [#allocation21], %s362
      %s365 = sshll.u32 [#allocation20], 4
      %s366 = int_to_ptr.vmem [resolvable:$true] %s365
      %368 = dma.hbm_to_vmem [thread:$0]  %s27, 16, %s366, [#allocation21]
    $region57: #{transformer_forward.1} parent=1 // pred_fallthru
      _
    // Predicated region
    $region58: #{transformer_forward.1} parent=1 // pred_check
      _
    $region59: #{transformer_forward.1} parent=1 // pred_check_branch
      %370 = sbr.rel (0) target = $region61
    $region60: #{transformer_forward.1} parent=1 // pred_region
      %s372 = ssub.s32 16, 16
      %373 = vsyncadd [#allocation21], %s372
      %s375 = sshll.u32 [#allocation22], 4
      %s376 = int_to_ptr.vmem [resolvable:$true] %s375
      %378 = dma.hbm_to_vmem [thread:$0]  %s29, 16, %s376, [#allocation21]
    $region61: #{transformer_forward.1} parent=1 // pred_fallthru
      _
    // Predicated region
    $region62: #{transformer_forward.1} parent=1 // pred_check
      _
    $region63: #{transformer_forward.1} parent=1 // pred_check_branch
      %380 = sbr.rel (0) target = $region65
    $region64: #{transformer_forward.1} parent=1 // pred_region
      %s382 = ssub.s32 16, 16
      %383 = vsyncadd [#allocation24], %s382
      %s385 = sshll.u32 [#allocation23], 4
      %s386 = int_to_ptr.vmem [resolvable:$true] %s385
      %388 = dma.hbm_to_vmem [thread:$0]  %s31, 16, %s386, [#allocation24]
    $region65: #{transformer_forward.1} parent=1 // pred_fallthru
      _
    // Predicated region
    $region66: #{transformer_forward.1} parent=1 // pred_check
      _
    $region67: #{transformer_forward.1} parent=1 // pred_check_branch
      %390 = sbr.rel (0) target = $region69
    $region68: #{transformer_forward.1} parent=1 // pred_region
      %s392 = ssub.s32 16, 16
      %393 = vsyncadd [#allocation24], %s392
      %s395 = sshll.u32 [#allocation25], 4
      %s396 = int_to_ptr.vmem [resolvable:$true] %s395
      %398 = dma.hbm_to_vmem [thread:$0]  %s33, 16, %s396, [#allocation24]
    $region69: #{transformer_forward.1} parent=1 // pred_fallthru
      _
    // Predicated region
    $region70: #{transformer_forward.1} parent=1 // pred_check
      _
    $region71: #{transformer_forward.1} parent=1 // pred_check_branch
      %400 = sbr.rel (0) target = $region73
    $region72: #{transformer_forward.1} parent=1 // pred_region
      %s402 = ssub.s32 16, 16
      %403 = vsyncadd [#allocation27], %s402
      %s405 = sshll.u32 [#allocation26], 4
      %s406 = int_to_ptr.vmem [resolvable:$true] %s405
      %408 = dma.hbm_to_vmem [thread:$0]  %s35, 16, %s406, [#allocation27]
    $region73: #{transformer_forward.1} parent=1 // pred_fallthru
      _
    // Predicated region
    $region74: #{transformer_forward.1} parent=1 // pred_check
      _
    $region75: #{transformer_forward.1} parent=1 // pred_check_branch
      %410 = sbr.rel (0) target = $region77
    $region76: #{transformer_forward.1} parent=1 // pred_region
      %s412 = ssub.s32 16, 16
      %413 = vsyncadd [#allocation27], %s412
      %s415 = sshll.u32 [#allocation28], 4
      %s416 = int_to_ptr.vmem [resolvable:$true] %s415
      %418 = dma.hbm_to_vmem [thread:$0]  %s37, 16, %s416, [#allocation27]
    $region77: #{transformer_forward.1} parent=1 // pred_fallthru
      _
    // Predicated region
    $region78: #{transformer_forward.1} parent=1 // pred_check
      _
    $region79: #{transformer_forward.1} parent=1 // pred_check_branch
      %420 = sbr.rel (0) target = $region81
    $region80: #{transformer_forward.1} parent=1 // pred_region
      %s422 = ssub.s32 16, 16
      %423 = vsyncadd [#allocation30], %s422
      %s425 = sshll.u32 [#allocation29], 4
      %s426 = int_to_ptr.vmem [resolvable:$true] %s425
      %428 = dma.hbm_to_vmem [thread:$0]  %s39, 16, %s426, [#allocation30]
    $region81: #{transformer_forward.1} parent=1 // pred_fallthru
      _
    // Predicated region
    $region82: #{transformer_forward.1} parent=1 // pred_check
      _
    $region83: #{transformer_forward.1} parent=1 // pred_check_branch
      %430 = sbr.rel (0) target = $region85
    $region84: #{transformer_forward.1} parent=1 // pred_region
      %s432 = ssub.s32 16, 16
      %433 = vsyncadd [#allocation30], %s432
      %s435 = sshll.u32 [#allocation31], 4
      %s436 = int_to_ptr.vmem [resolvable:$true] %s435
      %438 = dma.hbm_to_vmem [thread:$0]  %s41, 16, %s436, [#allocation30]
    $region85: #{transformer_forward.1} parent=1 // pred_fallthru
      _
    // Predicated region
    $region86: #{transformer_forward.1} parent=1 // pred_check
      _
    $region87: #{transformer_forward.1} parent=1 // pred_check_branch
      %440 = sbr.rel (0) target = $region89
    $region88: #{transformer_forward.1} parent=1 // pred_region
      %s442 = ssub.s32 16, 16
      %443 = vsyncadd [#allocation33], %s442
      %s445 = sshll.u32 [#allocation32], 4
      %s446 = int_to_ptr.vmem [resolvable:$true] %s445
      %448 = dma.hbm_to_vmem [thread:$0]  %s43, 16, %s446, [#allocation33]
    $region89: #{transformer_forward.1} parent=1 // pred_fallthru
      _
    // Predicated region
    $region90: #{transformer_forward.1} parent=1 // pred_check
      _
    $region91: #{transformer_forward.1} parent=1 // pred_check_branch
      %450 = sbr.rel (0) target = $region93
    $region92: #{transformer_forward.1} parent=1 // pred_region
      %s452 = ssub.s32 16, 16
      %453 = vsyncadd [#allocation33], %s452
      %s455 = sshll.u32 [#allocation34], 4
      %s456 = int_to_ptr.vmem [resolvable:$true] %s455
      %458 = dma.hbm_to_vmem [thread:$0]  %s45, 16, %s456, [#allocation33]
    $region93: #{transformer_forward.1} parent=1 // pred_fallthru
      _
    // Predicated region
    $region94: #{transformer_forward.1} parent=1 // pred_check
      _
    $region95: #{transformer_forward.1} parent=1 // pred_check_branch
      %460 = sbr.rel (0) target = $region97
    $region96: #{transformer_forward.1} parent=1 // pred_region
      %s462 = ssub.s32 512, 512
      %463 = vsyncadd [#allocation36], %s462
      %s464 = sshll.u32 [#allocation35], 4
      %s465 = int_to_ptr.vmem [resolvable:$true] %s464
      %470 = dma.hbm_to_vmem [thread:$0]  %s47, 512, %s465, [#allocation36], 128, 128, 8
    $region97: #{transformer_forward.1} parent=1 // pred_fallthru
      _
    // Predicated region
    $region98: #{transformer_forward.1} parent=1 // pred_check
      _
    $region99: #{transformer_forward.1} parent=1 // pred_check_branch
      %472 = sbr.rel (0) target = $region101
    $region100: #{transformer_forward.1} parent=1 // pred_region
      %s474 = ssub.s32 512, 512
      %475 = vsyncadd [#allocation36], %s474
      %s476 = sshll.u32 [#allocation37], 4
      %s477 = int_to_ptr.vmem [resolvable:$true] %s476
      %482 = dma.hbm_to_vmem [thread:$0]  %s49, 512, %s477, [#allocation36], 128, 128, 8
    $region101: #{transformer_forward.1} parent=1 // pred_fallthru
      _
    // Predicated region
    $region102: #{transformer_forward.1} parent=1 // pred_check
      _
    $region103: #{transformer_forward.1} parent=1 // pred_check_branch
      %484 = sbr.rel (0) target = $region105
    $region104: #{transformer_forward.1} parent=1 // pred_region
      %s486 = ssub.s32 512, 512
      %487 = vsyncadd [#allocation39], %s486
      %s488 = sshll.u32 [#allocation38], 4
      %s489 = int_to_ptr.vmem [resolvable:$true] %s488
      %494 = dma.hbm_to_vmem [thread:$0]  %s51, 512, %s489, [#allocation39], 128, 128, 8
    $region105: #{transformer_forward.1} parent=1 // pred_fallthru
      _
    // Predicated region
    $region106: #{transformer_forward.1} parent=1 // pred_check
      _
    $region107: #{transformer_forward.1} parent=1 // pred_check_branch
      %496 = sbr.rel (0) target = $region109
    $region108: #{transformer_forward.1} parent=1 // pred_region
      %s498 = ssub.s32 512, 512
      %499 = vsyncadd [#allocation39], %s498
      %s500 = sshll.u32 [#allocation40], 4
      %s501 = int_to_ptr.vmem [resolvable:$true] %s500
      %506 = dma.hbm_to_vmem [thread:$0]  %s53, 512, %s501, [#allocation39], 128, 128, 8
    $region109: #{transformer_forward.1} parent=1 // pred_fallthru
      _
    // Predicated region
    $region110: #{transformer_forward.1} parent=1 // pred_check
      _
    $region111: #{transformer_forward.1} parent=1 // pred_check_branch
      %508 = sbr.rel (0) target = $region113
    $region112: #{transformer_forward.1} parent=1 // pred_region
      %s510 = ssub.s32 16, 16
      %511 = vsyncadd [#allocation42], %s510
      %s513 = sshll.u32 [#allocation41], 4
      %s514 = int_to_ptr.vmem [resolvable:$true] %s513
      %516 = dma.hbm_to_vmem [thread:$0]  %s55, 16, %s514, [#allocation42]
    $region113: #{transformer_forward.1} parent=1 // pred_fallthru
      _
    // Predicated region
    $region114: #{transformer_forward.1} parent=1 // pred_check
      _
    $region115: #{transformer_forward.1} parent=1 // pred_check_branch
      %518 = sbr.rel (0) target = $region117
    $region116: #{transformer_forward.1} parent=1 // pred_region
      %s520 = ssub.s32 16, 16
      %521 = vsyncadd [#allocation42], %s520
      %s523 = sshll.u32 [#allocation43], 4
      %s524 = int_to_ptr.vmem [resolvable:$true] %s523
      %526 = dma.hbm_to_vmem [thread:$0]  %s57, 16, %s524, [#allocation42]
    $region117: #{transformer_forward.1} parent=1 // pred_fallthru
      _
    // Predicated region
    $region118: #{transformer_forward.1} parent=1 // pred_check
      _
    $region119: #{transformer_forward.1} parent=1 // pred_check_branch
      %528 = sbr.rel (0) target = $region121
    $region120: #{transformer_forward.1} parent=1 // pred_region
      %s530 = ssub.s32 16, 16
      %531 = vsyncadd [#allocation45], %s530
      %s533 = sshll.u32 [#allocation44], 4
      %s534 = int_to_ptr.vmem [resolvable:$true] %s533
      %536 = dma.hbm_to_vmem [thread:$0]  %s59, 16, %s534, [#allocation45]
    $region121: #{transformer_forward.1} parent=1 // pred_fallthru
      _
    // Predicated region
    $region122: #{transformer_forward.1} parent=1 // pred_check
      _
    $region123: #{transformer_forward.1} parent=1 // pred_check_branch
      %538 = sbr.rel (0) target = $region125
    $region124: #{transformer_forward.1} parent=1 // pred_region
      %s540 = ssub.s32 16, 16
      %541 = vsyncadd [#allocation45], %s540
      %s543 = sshll.u32 [#allocation46], 4
      %s544 = int_to_ptr.vmem [resolvable:$true] %s543
      %546 = dma.hbm_to_vmem [thread:$0]  %s61, 16, %s544, [#allocation45]
    $region125: #{transformer_forward.1} parent=1 // pred_fallthru
      _
    // Predicated region
    $region126: #{transformer_forward.1} parent=1 // pred_check
      _
    $region127: #{transformer_forward.1} parent=1 // pred_check_branch
      %548 = sbr.rel (0) target = $region129
    $region128: #{transformer_forward.1} parent=1 // pred_region
      _
    $region129: #{transformer_forward.1} parent=1 // pred_fallthru
      _
    // Predicated region
    $region130: #{transformer_forward.1} parent=1 // pred_check
      _
    $region131: #{transformer_forward.1} parent=1 // pred_check_branch
      %550 = sbr.rel (0) target = $region133
    $region132: #{transformer_forward.1} parent=1 // pred_region
      %s552 = ssub.s32 512, 512
      %553 = vsyncadd [#allocation48], %s552
      %s554 = sshll.u32 [#allocation47], 4
      %s555 = int_to_ptr.vmem [resolvable:$true] %s554
      %560 = dma.hbm_to_vmem [thread:$0]  %s65, 512, %s555, [#allocation48], 128, 128, 8
    $region133: #{transformer_forward.1} parent=1 // pred_fallthru
      _
    // Predicated region
    $region134: #{transformer_forward.1} parent=1 // pred_check
      _
    $region135: #{transformer_forward.1} parent=1 // pred_check_branch
      %562 = sbr.rel (0) target = $region137
    $region136: #{transformer_forward.1} parent=1 // pred_region
      %s564 = ssub.s32 512, 512
      %565 = vsyncadd [#allocation48], %s564
      %s566 = sshll.u32 [#allocation49], 4
      %s567 = int_to_ptr.vmem [resolvable:$true] %s566
      %572 = dma.hbm_to_vmem [thread:$0]  %s67, 512, %s567, [#allocation48], 128, 128, 8
    $region137: #{transformer_forward.1} parent=1 // pred_fallthru
      _
    // Predicated region
    $region138: #{transformer_forward.1} parent=1 // pred_check
      _
    $region139: #{transformer_forward.1} parent=1 // pred_check_branch
      %574 = sbr.rel (0) target = $region141
    $region140: #{transformer_forward.1} parent=1 // pred_region
      %s576 = ssub.s32 512, 512
      %577 = vsyncadd [#allocation51], %s576
      %s578 = sshll.u32 [#allocation50], 4
      %s579 = int_to_ptr.vmem [resolvable:$true] %s578
      %584 = dma.hbm_to_vmem [thread:$0]  %s69, 512, %s579, [#allocation51], 128, 128, 8
    $region141: #{transformer_forward.1} parent=1 // pred_fallthru
      _
    // Predicated region
    $region142: #{transformer_forward.1} parent=1 // pred_check
      _
    $region143: #{transformer_forward.1} parent=1 // pred_check_branch
      %586 = sbr.rel (0) target = $region145
    $region144: #{transformer_forward.1} parent=1 // pred_region
      %s588 = ssub.s32 16, 16
      %589 = vsyncadd [#allocation51], %s588
      %s591 = sshll.u32 [#allocation52], 4
      %s592 = int_to_ptr.vmem [resolvable:$true] %s591
      %594 = dma.hbm_to_vmem [thread:$0]  %s71, 16, %s592, [#allocation51]
    $region145: #{transformer_forward.1} parent=1 // pred_fallthru
      _
    // Predicated region
    $region146: #{transformer_forward.1} parent=1 // pred_check
      _
    $region147: #{transformer_forward.1} parent=1 // pred_check_branch
      %596 = sbr.rel (0) target = $region149
    $region148: #{transformer_forward.1} parent=1 // pred_region
      %s598 = ssub.s32 512, 512
      %599 = vsyncadd [#allocation54], %s598
      %s600 = sshll.u32 [#allocation53], 4
      %s601 = int_to_ptr.vmem [resolvable:$true] %s600
      %606 = dma.hbm_to_vmem [thread:$0]  %s73, 512, %s601, [#allocation54], 128, 128, 8
    $region149: #{transformer_forward.1} parent=1 // pred_fallthru
      _
    // Predicated region
    $region150: #{transformer_forward.1} parent=1 // pred_check
      _
    $region151: #{transformer_forward.1} parent=1 // pred_check_branch
      %608 = sbr.rel (0) target = $region153
    $region152: #{transformer_forward.1} parent=1 // pred_region
      %s610 = ssub.s32 16, 16
      %611 = vsyncadd [#allocation54], %s610
      %s613 = sshll.u32 [#allocation55], 4
      %s614 = int_to_ptr.vmem [resolvable:$true] %s613
      %616 = dma.hbm_to_vmem [thread:$0]  %s75, 16, %s614, [#allocation54]
    $region153: #{transformer_forward.1} parent=1 // pred_fallthru
      _
    // Predicated region
    $region154: #{transformer_forward.1} parent=1 // pred_check
      _
    $region155: #{transformer_forward.1} parent=1 // pred_check_branch
      %618 = sbr.rel (0) target = $region157
    $region156: #{transformer_forward.1} parent=1 // pred_region
      %s620 = ssub.s32 512, 512
      %621 = vsyncadd [#allocation57], %s620
      %s622 = sshll.u32 [#allocation56], 4
      %s623 = int_to_ptr.vmem [resolvable:$true] %s622
      %628 = dma.hbm_to_vmem [thread:$0]  %s77, 512, %s623, [#allocation57], 128, 128, 8
    $region157: #{transformer_forward.1} parent=1 // pred_fallthru
      _
    // Predicated region
    $region158: #{transformer_forward.1} parent=1 // pred_check
      _
    $region159: #{transformer_forward.1} parent=1 // pred_check_branch
      %630 = sbr.rel (0) target = $region161
    $region160: #{transformer_forward.1} parent=1 // pred_region
      %s632 = ssub.s32 16, 16
      %633 = vsyncadd [#allocation57], %s632
      %s635 = sshll.u32 [#allocation58], 4
      %s636 = int_to_ptr.vmem [resolvable:$true] %s635
      %638 = dma.hbm_to_vmem [thread:$0]  %s79, 16, %s636, [#allocation57]
    $region161: #{transformer_forward.1} parent=1 // pred_fallthru
      _
    // Predicated region
    $region162: #{transformer_forward.1} parent=1 // pred_check
      _
    $region163: #{transformer_forward.1} parent=1 // pred_check_branch
      %640 = sbr.rel (0) target = $region165
    $region164: #{transformer_forward.1} parent=1 // pred_region
      %s642 = ssub.s32 16, 16
      %643 = vsyncadd [#allocation60], %s642
      %s645 = sshll.u32 [#allocation59], 4
      %s646 = int_to_ptr.vmem [resolvable:$true] %s645
      %648 = dma.hbm_to_vmem [thread:$0]  %s81, 16, %s646, [#allocation60]
    $region165: #{transformer_forward.1} parent=1 // pred_fallthru
      _
    // Predicated region
    $region166: #{transformer_forward.1} parent=1 // pred_check
      _
    $region167: #{transformer_forward.1} parent=1 // pred_check_branch
      %650 = sbr.rel (0) target = $region169
    $region168: #{transformer_forward.1} parent=1 // pred_region
      %s652 = ssub.s32 16, 16
      %653 = vsyncadd [#allocation60], %s652
      %s655 = sshll.u32 [#allocation61], 4
      %s656 = int_to_ptr.vmem [resolvable:$true] %s655
      %658 = dma.hbm_to_vmem [thread:$0]  %s83, 16, %s656, [#allocation60]
    $region169: #{transformer_forward.1} parent=1 // pred_fallthru
      _
    // Predicated region
    $region170: #{transformer_forward.1} parent=1 // pred_check
      _
    $region171: #{transformer_forward.1} parent=1 // pred_check_branch
      %660 = sbr.rel (0) target = $region173
    $region172: #{transformer_forward.1} parent=1 // pred_region
      %s662 = ssub.s32 16, 16
      %663 = vsyncadd [#allocation63], %s662
      %s665 = sshll.u32 [#allocation62], 4
      %s666 = int_to_ptr.vmem [resolvable:$true] %s665
      %668 = dma.hbm_to_vmem [thread:$0]  %s85, 16, %s666, [#allocation63]
    $region173: #{transformer_forward.1} parent=1 // pred_fallthru
      _
    // Predicated region
    $region174: #{transformer_forward.1} parent=1 // pred_check
      _
    $region175: #{transformer_forward.1} parent=1 // pred_check_branch
      %670 = sbr.rel (0) target = $region177
    $region176: #{transformer_forward.1} parent=1 // pred_region
      %s672 = ssub.s32 16, 16
      %673 = vsyncadd [#allocation63], %s672
      %s675 = sshll.u32 [#allocation64], 4
      %s676 = int_to_ptr.vmem [resolvable:$true] %s675
      %678 = dma.hbm_to_vmem [thread:$0]  %s87, 16, %s676, [#allocation63]
    $region177: #{transformer_forward.1} parent=1 // pred_fallthru
      _
    // Predicated region
    $region178: #{transformer_forward.1} parent=1 // pred_check
      _
    $region179: #{transformer_forward.1} parent=1 // pred_check_branch
      %680 = sbr.rel (0) target = $region181
    $region180: #{transformer_forward.1} parent=1 // pred_region
      %s682 = ssub.s32 16, 16
      %683 = vsyncadd [#allocation66], %s682
      %s685 = sshll.u32 [#allocation65], 4
      %s686 = int_to_ptr.vmem [resolvable:$true] %s685
      %688 = dma.hbm_to_vmem [thread:$0]  %s89, 16, %s686, [#allocation66]
    $region181: #{transformer_forward.1} parent=1 // pred_fallthru
      _
    // Predicated region
    $region182: #{transformer_forward.1} parent=1 // pred_check
      _
    $region183: #{transformer_forward.1} parent=1 // pred_check_branch
      %690 = sbr.rel (0) target = $region185
    $region184: #{transformer_forward.1} parent=1 // pred_region
      %s692 = ssub.s32 16, 16
      %693 = vsyncadd [#allocation66], %s692
      %s695 = sshll.u32 [#allocation67], 4
      %s696 = int_to_ptr.vmem [resolvable:$true] %s695
      %698 = dma.hbm_to_vmem [thread:$0]  %s91, 16, %s696, [#allocation66]
    $region185: #{transformer_forward.1} parent=1 // pred_fallthru
      _
    // Predicated region
    $region186: #{transformer_forward.1} parent=1 // pred_check
      _
    $region187: #{transformer_forward.1} parent=1 // pred_check_branch
      %700 = sbr.rel (0) target = $region189
    $region188: #{transformer_forward.1} parent=1 // pred_region
      %s702 = ssub.s32 16, 16
      %703 = vsyncadd [#allocation69], %s702
      %s705 = sshll.u32 [#allocation68], 4
      %s706 = int_to_ptr.vmem [resolvable:$true] %s705
      %708 = dma.hbm_to_vmem [thread:$0]  %s93, 16, %s706, [#allocation69]
    $region189: #{transformer_forward.1} parent=1 // pred_fallthru
      _
    // Predicated region
    $region190: #{transformer_forward.1} parent=1 // pred_check
      _
    $region191: #{transformer_forward.1} parent=1 // pred_check_branch
      %710 = sbr.rel (0) target = $region193
    $region192: #{transformer_forward.1} parent=1 // pred_region
      %s712 = ssub.s32 16, 16
      %713 = vsyncadd [#allocation69], %s712
      %s715 = sshll.u32 [#allocation70], 4
      %s716 = int_to_ptr.vmem [resolvable:$true] %s715
      %718 = dma.hbm_to_vmem [thread:$0]  %s95, 16, %s716, [#allocation69]
    $region193: #{transformer_forward.1} parent=1 // pred_fallthru
      _
    // Predicated region
    $region194: #{transformer_forward.1} parent=1 // pred_check
      _
    $region195: #{transformer_forward.1} parent=1 // pred_check_branch
      %720 = sbr.rel (0) target = $region197
    $region196: #{transformer_forward.1} parent=1 // pred_region
      %s722 = ssub.s32 16, 16
      %723 = vsyncadd [#allocation72], %s722
      %s725 = sshll.u32 [#allocation71], 4
      %s726 = int_to_ptr.vmem [resolvable:$true] %s725
      %728 = dma.hbm_to_vmem [thread:$0]  %s97, 16, %s726, [#allocation72]
    $region197: #{transformer_forward.1} parent=1 // pred_fallthru
      _
    // Predicated region
    $region198: #{transformer_forward.1} parent=1 // pred_check
      _
    $region199: #{transformer_forward.1} parent=1 // pred_check_branch
      %730 = sbr.rel (0) target = $region201
    $region200: #{transformer_forward.1} parent=1 // pred_region
      _
    $region201: #{transformer_forward.1} parent=1 // pred_fallthru
      _
    // Predicated region
    $region202: #{transformer_forward.1} parent=1 // pred_check
      _
    $region203: #{transformer_forward.1} parent=1 // pred_check_branch
      %732 = sbr.rel (0) target = $region205
    $region204: #{transformer_forward.1} parent=1 // pred_region
      %s734 = ssub.s32 512, 512
      %735 = vsyncadd [#allocation72], %s734
      %s736 = sshll.u32 [#allocation73], 4
      %s737 = int_to_ptr.vmem [resolvable:$true] %s736
      %742 = dma.hbm_to_vmem [thread:$0]  %s101, 512, %s737, [#allocation72], 128, 128, 8
    $region205: #{transformer_forward.1} parent=1 // pred_fallthru
      _
    // Predicated region
    $region206: #{transformer_forward.1} parent=1 // pred_check
      _
    $region207: #{transformer_forward.1} parent=1 // pred_check_branch
      %744 = sbr.rel (0) target = $region209
    $region208: #{transformer_forward.1} parent=1 // pred_region
      %s746 = ssub.s32 512, 512
      %747 = vsyncadd [#allocation75], %s746
      %s748 = sshll.u32 [#allocation74], 4
      %s749 = int_to_ptr.vmem [resolvable:$true] %s748
      %754 = dma.hbm_to_vmem [thread:$0]  %s103, 512, %s749, [#allocation75], 128, 128, 8
    $region209: #{transformer_forward.1} parent=1 // pred_fallthru
      _
    // Predicated region
    $region210: #{transformer_forward.1} parent=1 // pred_check
      _
    $region211: #{transformer_forward.1} parent=1 // pred_check_branch
      %756 = sbr.rel (0) target = $region213
    $region212: #{transformer_forward.1} parent=1 // pred_region
      %s758 = ssub.s32 512, 512
      %759 = vsyncadd [#allocation75], %s758
      %s760 = sshll.u32 [#allocation76], 4
      %s761 = int_to_ptr.vmem [resolvable:$true] %s760
      %766 = dma.hbm_to_vmem [thread:$0]  %s105, 512, %s761, [#allocation75], 128, 128, 8
    $region213: #{transformer_forward.1} parent=1 // pred_fallthru
      _
    // Predicated region
    $region214: #{transformer_forward.1} parent=1 // pred_check
      _
    $region215: #{transformer_forward.1} parent=1 // pred_check_branch
      %768 = sbr.rel (0) target = $region217
    $region216: #{transformer_forward.1} parent=1 // pred_region
      %s770 = ssub.s32 16, 16
      %771 = vsyncadd [#allocation78], %s770
      %s773 = sshll.u32 [#allocation77], 4
      %s774 = int_to_ptr.vmem [resolvable:$true] %s773
      %776 = dma.hbm_to_vmem [thread:$0]  %s107, 16, %s774, [#allocation78]
    $region217: #{transformer_forward.1} parent=1 // pred_fallthru
      _
    // Predicated region
    $region218: #{transformer_forward.1} parent=1 // pred_check
      _
    $region219: #{transformer_forward.1} parent=1 // pred_check_branch
      %778 = sbr.rel (0) target = $region221
    $region220: #{transformer_forward.1} parent=1 // pred_region
      %s780 = ssub.s32 16, 16
      %781 = vsyncadd [#allocation78], %s780
      %s783 = sshll.u32 [#allocation79], 4
      %s784 = int_to_ptr.vmem [resolvable:$true] %s783
      %786 = dma.hbm_to_vmem [thread:$0]  %s109, 16, %s784, [#allocation78]
    $region221: #{transformer_forward.1} parent=1 // pred_fallthru
      _
    // Predicated region
    $region222: #{transformer_forward.1} parent=1 // pred_check
      _
    $region223: #{transformer_forward.1} parent=1 // pred_check_branch
      %788 = sbr.rel (0) target = $region225
    $region224: #{transformer_forward.1} parent=1 // pred_region
      %s790 = ssub.s32 16, 16
      %791 = vsyncadd [#allocation81], %s790
      %s793 = sshll.u32 [#allocation80], 4
      %s794 = int_to_ptr.vmem [resolvable:$true] %s793
      %796 = dma.hbm_to_vmem [thread:$0]  %s111, 16, %s794, [#allocation81]
    $region225: #{transformer_forward.1} parent=1 // pred_fallthru
      _
    // Predicated region
    $region226: #{transformer_forward.1} parent=1 // pred_check
      _
    $region227: #{transformer_forward.1} parent=1 // pred_check_branch
      %798 = sbr.rel (0) target = $region229
    $region228: #{transformer_forward.1} parent=1 // pred_region
      %s800 = ssub.s32 16, 16
      %801 = vsyncadd [#allocation81], %s800
      %s803 = sshll.u32 [#allocation82], 4
      %s804 = int_to_ptr.vmem [resolvable:$true] %s803
      %806 = dma.hbm_to_vmem [thread:$0]  %s113, 16, %s804, [#allocation81]
    $region229: #{transformer_forward.1} parent=1 // pred_fallthru
      _
    // Predicated region
    $region230: #{transformer_forward.1} parent=1 // pred_check
      _
    $region231: #{transformer_forward.1} parent=1 // pred_check_branch
      %808 = sbr.rel (0) target = $region233
    $region232: #{transformer_forward.1} parent=1 // pred_region
      %s810 = ssub.s32 16, 16
      %811 = vsyncadd [#allocation84], %s810
      %s813 = sshll.u32 [#allocation83], 4
      %s814 = int_to_ptr.vmem [resolvable:$true] %s813
      %816 = dma.hbm_to_vmem [thread:$0]  %s115, 16, %s814, [#allocation84]
    $region233: #{transformer_forward.1} parent=1 // pred_fallthru
      _
    // Predicated region
    $region234: #{transformer_forward.1} parent=1 // pred_check
      _
    $region235: #{transformer_forward.1} parent=1 // pred_check_branch
      %818 = sbr.rel (0) target = $region237
    $region236: #{transformer_forward.1} parent=1 // pred_region
      %s820 = ssub.s32 512, 512
      %821 = vsyncadd [#allocation84], %s820
      %s822 = sshll.u32 [#allocation85], 4
      %s823 = int_to_ptr.vmem [resolvable:$true] %s822
      %828 = dma.hbm_to_vmem [thread:$0]  %s117, 512, %s823, [#allocation84], 128, 128, 8
    $region237: #{transformer_forward.1} parent=1 // pred_fallthru
      _
    // Predicated region
    $region238: #{transformer_forward.1} parent=1 // pred_check
      _
    $region239: #{transformer_forward.1} parent=1 // pred_check_branch
      %830 = sbr.rel (0) target = $region241
    $region240: #{transformer_forward.1} parent=1 // pred_region
      %s832 = ssub.s32 16, 16
      %833 = vsyncadd [#allocation87], %s832
      %s835 = sshll.u32 [#allocation86], 4
      %s836 = int_to_ptr.vmem [resolvable:$true] %s835
      %838 = dma.hbm_to_vmem [thread:$0]  %s119, 16, %s836, [#allocation87]
    $region241: #{transformer_forward.1} parent=1 // pred_fallthru
      _
    // Predicated region
    $region242: #{transformer_forward.1} parent=1 // pred_check
      _
    $region243: #{transformer_forward.1} parent=1 // pred_check_branch
      %840 = sbr.rel (0) target = $region245
    $region244: #{transformer_forward.1} parent=1 // pred_region
      %s842 = ssub.s32 512, 512
      %843 = vsyncadd [#allocation87], %s842
      %s844 = sshll.u32 [#allocation88], 4
      %s845 = int_to_ptr.vmem [resolvable:$true] %s844
      %850 = dma.hbm_to_vmem [thread:$0]  %s121, 512, %s845, [#allocation87], 128, 128, 8
    $region245: #{transformer_forward.1} parent=1 // pred_fallthru
      _
    // Predicated region
    $region246: #{transformer_forward.1} parent=1 // pred_check
      _
    $region247: #{transformer_forward.1} parent=1 // pred_check_branch
      %852 = sbr.rel (0) target = $region249
    $region248: #{transformer_forward.1} parent=1 // pred_region
      %s854 = ssub.s32 16, 16
      %855 = vsyncadd [#allocation90], %s854
      %s857 = sshll.u32 [#allocation89], 4
      %s858 = int_to_ptr.vmem [resolvable:$true] %s857
      %860 = dma.hbm_to_vmem [thread:$0]  %s123, 16, %s858, [#allocation90]
    $region249: #{transformer_forward.1} parent=1 // pred_fallthru
      _
    // Predicated region
    $region250: #{transformer_forward.1} parent=1 // pred_check
      _
    $region251: #{transformer_forward.1} parent=1 // pred_check_branch
      %862 = sbr.rel (0) target = $region253
    $region252: #{transformer_forward.1} parent=1 // pred_region
      %s864 = ssub.s32 16, 16
      %865 = vsyncadd [#allocation90], %s864
      %s867 = sshll.u32 [#allocation91], 4
      %s868 = int_to_ptr.vmem [resolvable:$true] %s867
      %870 = dma.hbm_to_vmem [thread:$0]  %s125, 16, %s868, [#allocation90]
    $region253: #{transformer_forward.1} parent=1 // pred_fallthru
      _
    // Predicated region
    $region254: #{transformer_forward.1} parent=1 // pred_check
      _
    $region255: #{transformer_forward.1} parent=1 // pred_check_branch
      %872 = sbr.rel (0) target = $region257
    $region256: #{transformer_forward.1} parent=1 // pred_region
      %s874 = ssub.s32 16, 16
      %875 = vsyncadd [#allocation93], %s874
      %s877 = sshll.u32 [#allocation92], 4
      %s878 = int_to_ptr.vmem [resolvable:$true] %s877
      %880 = dma.hbm_to_vmem [thread:$0]  %s127, 16, %s878, [#allocation93]
    $region257: #{transformer_forward.1} parent=1 // pred_fallthru
      _
    // Predicated region
    $region258: #{transformer_forward.1} parent=1 // pred_check
      _
    $region259: #{transformer_forward.1} parent=1 // pred_check_branch
      %882 = sbr.rel (0) target = $region261
    $region260: #{transformer_forward.1} parent=1 // pred_region
      %s884 = ssub.s32 16, 16
      %885 = vsyncadd [#allocation93], %s884
      %s887 = sshll.u32 [#allocation94], 4
      %s888 = int_to_ptr.vmem [resolvable:$true] %s887
      %890 = dma.hbm_to_vmem [thread:$0]  %s129, 16, %s888, [#allocation93]
    $region261: #{transformer_forward.1} parent=1 // pred_fallthru
      _
    // Predicated region
    $region262: #{transformer_forward.1} parent=1 // pred_check
      _
    $region263: #{transformer_forward.1} parent=1 // pred_check_branch
      %892 = sbr.rel (0) target = $region265
    $region264: #{transformer_forward.1} parent=1 // pred_region
      %s894 = ssub.s32 16, 16
      %895 = vsyncadd [#allocation96], %s894
      %s897 = sshll.u32 [#allocation95], 4
      %s898 = int_to_ptr.vmem [resolvable:$true] %s897
      %900 = dma.hbm_to_vmem [thread:$0]  %s131, 16, %s898, [#allocation96]
    $region265: #{transformer_forward.1} parent=1 // pred_fallthru
      _
    // Predicated region
    $region266: #{transformer_forward.1} parent=1 // pred_check
      _
    $region267: #{transformer_forward.1} parent=1 // pred_check_branch
      %902 = sbr.rel (0) target = $region269
    $region268: #{transformer_forward.1} parent=1 // pred_region
      %s904 = ssub.s32 16, 16
      %905 = vsyncadd [#allocation96], %s904
      %s907 = sshll.u32 [#allocation97], 4
      %s908 = int_to_ptr.vmem [resolvable:$true] %s907
      %910 = dma.hbm_to_vmem [thread:$0]  %s133, 16, %s908, [#allocation96]
    $region269: #{transformer_forward.1} parent=1 // pred_fallthru
      _
    // Predicated region
    $region270: #{transformer_forward.1} parent=1 // pred_check
      _
    $region271: #{transformer_forward.1} parent=1 // pred_check_branch
      %912 = sbr.rel (0) target = $region273
    $region272: #{transformer_forward.1} parent=1 // pred_region
      %s914 = ssub.s32 16, 16
      %915 = vsyncadd [#allocation99], %s914
      %s917 = sshll.u32 [#allocation98], 4
      %s918 = int_to_ptr.vmem [resolvable:$true] %s917
      %920 = dma.hbm_to_vmem [thread:$0]  %s135, 16, %s918, [#allocation99]
    $region273: #{transformer_forward.1} parent=1 // pred_fallthru
      _
    // Predicated region
    $region274: #{transformer_forward.1} parent=1 // pred_check
      _
    $region275: #{transformer_forward.1} parent=1 // pred_check_branch
      %922 = sbr.rel (0) target = $region277
    $region276: #{transformer_forward.1} parent=1 // pred_region
      %s924 = ssub.s32 16, 16
      %925 = vsyncadd [#allocation99], %s924
      %s927 = sshll.u32 [#allocation100], 4
      %s928 = int_to_ptr.vmem [resolvable:$true] %s927
      %930 = dma.hbm_to_vmem [thread:$0]  %s137, 16, %s928, [#allocation99]
    $region277: #{transformer_forward.1} parent=1 // pred_fallthru
      _
    // Predicated region
    $region278: #{transformer_forward.1} parent=1 // pred_check
      _
    $region279: #{transformer_forward.1} parent=1 // pred_check_branch
      %932 = sbr.rel (0) target = $region281
    $region280: #{transformer_forward.1} parent=1 // pred_region
      _
    $region281: #{transformer_forward.1} parent=1 // pred_fallthru
      _
    // Predicated region
    $region282: #{transformer_forward.1} parent=1 // pred_check
      _
    $region283: #{transformer_forward.1} parent=1 // pred_check_branch
      %934 = sbr.rel (0) target = $region285
    $region284: #{transformer_forward.1} parent=1 // pred_region
      %s936 = ssub.s32 512, 512
      %937 = vsyncadd [#allocation102], %s936
      %s938 = sshll.u32 [#allocation101], 4
      %s939 = int_to_ptr.vmem [resolvable:$true] %s938
      %944 = dma.hbm_to_vmem [thread:$0]  %s141, 512, %s939, [#allocation102], 128, 128, 8
    $region285: #{transformer_forward.1} parent=1 // pred_fallthru
      _
    // Predicated region
    $region286: #{transformer_forward.1} parent=1 // pred_check
      _
    $region287: #{transformer_forward.1} parent=1 // pred_check_branch
      %946 = sbr.rel (0) target = $region289
    $region288: #{transformer_forward.1} parent=1 // pred_region
      %s948 = ssub.s32 512, 512
      %949 = vsyncadd [#allocation102], %s948
      %s950 = sshll.u32 [#allocation103], 4
      %s951 = int_to_ptr.vmem [resolvable:$true] %s950
      %956 = dma.hbm_to_vmem [thread:$0]  %s143, 512, %s951, [#allocation102], 128, 128, 8
    $region289: #{transformer_forward.1} parent=1 // pred_fallthru
      _
    // Predicated region
    $region290: #{transformer_forward.1} parent=1 // pred_check
      _
    $region291: #{transformer_forward.1} parent=1 // pred_check_branch
      %958 = sbr.rel (0) target = $region293
    $region292: #{transformer_forward.1} parent=1 // pred_region
      %s960 = ssub.s32 512, 512
      %961 = vsyncadd [#allocation105], %s960
      %s962 = sshll.u32 [#allocation104], 4
      %s963 = int_to_ptr.vmem [resolvable:$true] %s962
      %968 = dma.hbm_to_vmem [thread:$0]  %s145, 512, %s963, [#allocation105], 128, 128, 8
    $region293: #{transformer_forward.1} parent=1 // pred_fallthru
      _
    // Predicated region
    $region294: #{transformer_forward.1} parent=1 // pred_check
      _
    $region295: #{transformer_forward.1} parent=1 // pred_check_branch
      %970 = sbr.rel (0) target = $region297
    $region296: #{transformer_forward.1} parent=1 // pred_region
      %s972 = ssub.s32 16, 16
      %973 = vsyncadd [#allocation105], %s972
      %s975 = sshll.u32 [#allocation106], 4
      %s976 = int_to_ptr.vmem [resolvable:$true] %s975
      %978 = dma.hbm_to_vmem [thread:$0]  %s147, 16, %s976, [#allocation105]
    $region297: #{transformer_forward.1} parent=1 // pred_fallthru
      _
    // Predicated region
    $region298: #{transformer_forward.1} parent=1 // pred_check
      _
    $region299: #{transformer_forward.1} parent=1 // pred_check_branch
      %980 = sbr.rel (0) target = $region301
    $region300: #{transformer_forward.1} parent=1 // pred_region
      %s982 = ssub.s32 512, 512
      %983 = vsyncadd [#allocation108], %s982
      %s984 = sshll.u32 [#allocation107], 4
      %s985 = int_to_ptr.vmem [resolvable:$true] %s984
      %990 = dma.hbm_to_vmem [thread:$0]  %s149, 512, %s985, [#allocation108], 128, 128, 8
    $region301: #{transformer_forward.1} parent=1 // pred_fallthru
      _
    // Predicated region
    $region302: #{transformer_forward.1} parent=1 // pred_check
      _
    $region303: #{transformer_forward.1} parent=1 // pred_check_branch
      %992 = sbr.rel (0) target = $region305
    $region304: #{transformer_forward.1} parent=1 // pred_region
      %s994 = ssub.s32 16, 16
      %995 = vsyncadd [#allocation108], %s994
      %s997 = sshll.u32 [#allocation109], 4
      %s998 = int_to_ptr.vmem [resolvable:$true] %s997
      %1000 = dma.hbm_to_vmem [thread:$0]  %s151, 16, %s998, [#allocation108]
    $region305: #{transformer_forward.1} parent=1 // pred_fallthru
      _
    // Predicated region
    $region306: #{transformer_forward.1} parent=1 // pred_check
      _
    $region307: #{transformer_forward.1} parent=1 // pred_check_branch
      %1002 = sbr.rel (0) target = $region309
    $region308: #{transformer_forward.1} parent=1 // pred_region
      %s1004 = ssub.s32 512, 512
      %1005 = vsyncadd [#allocation111], %s1004
      %s1006 = sshll.u32 [#allocation110], 4
      %s1007 = int_to_ptr.vmem [resolvable:$true] %s1006
      %1012 = dma.hbm_to_vmem [thread:$0]  %s153, 512, %s1007, [#allocation111], 128, 128, 8
    $region309: #{transformer_forward.1} parent=1 // pred_fallthru
      _
    // Predicated region
    $region310: #{transformer_forward.1} parent=1 // pred_check
      _
    $region311: #{transformer_forward.1} parent=1 // pred_check_branch
      %1014 = sbr.rel (0) target = $region313
    $region312: #{transformer_forward.1} parent=1 // pred_region
      %s1016 = ssub.s32 16, 16
      %1017 = vsyncadd [#allocation111], %s1016
      %s1019 = sshll.u32 [#allocation112], 4
      %s1020 = int_to_ptr.vmem [resolvable:$true] %s1019
      %1022 = dma.hbm_to_vmem [thread:$0]  %s155, 16, %s1020, [#allocation111]
    $region313: #{transformer_forward.1} parent=1 // pred_fallthru
      _
    // Predicated region
    $region314: #{transformer_forward.1} parent=1 // pred_check
      _
    $region315: #{transformer_forward.1} parent=1 // pred_check_branch
      %1024 = sbr.rel (0) target = $region317
    $region316: #{transformer_forward.1} parent=1 // pred_region
      %s1026 = ssub.s32 16, 16
      %1027 = vsyncadd [#allocation114], %s1026
      %s1029 = sshll.u32 [#allocation113], 4
      %s1030 = int_to_ptr.vmem [resolvable:$true] %s1029
      %1032 = dma.hbm_to_vmem [thread:$0]  %s157, 16, %s1030, [#allocation114]
    $region317: #{transformer_forward.1} parent=1 // pred_fallthru
      _
    // Predicated region
    $region318: #{transformer_forward.1} parent=1 // pred_check
      _
    $region319: #{transformer_forward.1} parent=1 // pred_check_branch
      %1034 = sbr.rel (0) target = $region321
    $region320: #{transformer_forward.1} parent=1 // pred_region
      %s1036 = ssub.s32 16, 16
      %1037 = vsyncadd [#allocation114], %s1036
      %s1039 = sshll.u32 [#allocation115], 4
      %s1040 = int_to_ptr.vmem [resolvable:$true] %s1039
      %1042 = dma.hbm_to_vmem [thread:$0]  %s159, 16, %s1040, [#allocation114]
    $region321: #{transformer_forward.1} parent=1 // pred_fallthru
      _
    // Predicated region
    $region322: #{transformer_forward.1} parent=1 // pred_check
      _
    $region323: #{transformer_forward.1} parent=1 // pred_check_branch
      %1044 = sbr.rel (0) target = $region325
    $region324: #{transformer_forward.1} parent=1 // pred_region
      %s1046 = ssub.s32 16, 16
      %1047 = vsyncadd [#allocation117], %s1046
      %s1049 = sshll.u32 [#allocation116], 4
      %s1050 = int_to_ptr.vmem [resolvable:$true] %s1049
      %1052 = dma.hbm_to_vmem [thread:$0]  %s161, 16, %s1050, [#allocation117]
    $region325: #{transformer_forward.1} parent=1 // pred_fallthru
      _
    // Predicated region
    $region326: #{transformer_forward.1} parent=1 // pred_check
      _
    $region327: #{transformer_forward.1} parent=1 // pred_check_branch
      %1054 = sbr.rel (0) target = $region329
    $region328: #{transformer_forward.1} parent=1 // pred_region
      %s1056 = ssub.s32 16, 16
      %1057 = vsyncadd [#allocation117], %s1056
      %s1059 = sshll.u32 [#allocation118], 4
      %s1060 = int_to_ptr.vmem [resolvable:$true] %s1059
      %1062 = dma.hbm_to_vmem [thread:$0]  %s163, 16, %s1060, [#allocation117]
    $region329: #{transformer_forward.1} parent=1 // pred_fallthru
      _
    // Predicated region
    $region330: #{transformer_forward.1} parent=1 // pred_check
      _
    $region331: #{transformer_forward.1} parent=1 // pred_check_branch
      %1064 = sbr.rel (0) target = $region333
    $region332: #{transformer_forward.1} parent=1 // pred_region
      %s1066 = ssub.s32 16, 16
      %1067 = vsyncadd [#allocation120], %s1066
      %s1069 = sshll.u32 [#allocation119], 4
      %s1070 = int_to_ptr.vmem [resolvable:$true] %s1069
      %1072 = dma.hbm_to_vmem [thread:$0]  %s165, 16, %s1070, [#allocation120]
    $region333: #{transformer_forward.1} parent=1 // pred_fallthru
      _
    // Predicated region
    $region334: #{transformer_forward.1} parent=1 // pred_check
      _
    $region335: #{transformer_forward.1} parent=1 // pred_check_branch
      %1074 = sbr.rel (0) target = $region337
    $region336: #{transformer_forward.1} parent=1 // pred_region
      _
    $region337: #{transformer_forward.1} parent=1 // pred_fallthru
      _
    // Predicated region
    $region338: #{transformer_forward.1} parent=1 // pred_check
      _
    $region339: #{transformer_forward.1} parent=1 // pred_check_branch
      %1076 = sbr.rel (0) target = $region341
    $region340: #{transformer_forward.1} parent=1 // pred_region
      _
    $region341: #{transformer_forward.1} parent=1 // pred_fallthru
      _
    // Predicated region
    $region342: #{transformer_forward.1} parent=1 // pred_check
      _
    $region343: #{transformer_forward.1} parent=1 // pred_check_branch
      %1078 = sbr.rel (0) target = $region345
    $region344: #{transformer_forward.1} parent=1 // pred_region
      _
    $region345: #{transformer_forward.1} parent=1 // pred_fallthru
      _
    // Predicated region
    $region346: #{transformer_forward.1} parent=1 // pred_check
      _
    $region347: #{transformer_forward.1} parent=1 // pred_check_branch
      %1080 = sbr.rel (0) target = $region349
    $region348: #{transformer_forward.1} parent=1 // pred_region
      %s1082 = ssub.s32 512, 512
      %1083 = vsyncadd [#allocation120], %s1082
      %s1084 = sshll.u32 [#allocation121], 4
      %s1085 = int_to_ptr.vmem [resolvable:$true] %s1084
      %1090 = dma.hbm_to_vmem [thread:$0]  %s173, 512, %s1085, [#allocation120], 128, 128, 8
    $region349: #{transformer_forward.1} parent=1 // pred_fallthru
      _
    // Predicated region
    $region350: #{transformer_forward.1} parent=1 // pred_check
      _
    $region351: #{transformer_forward.1} parent=1 // pred_check_branch
      %1092 = sbr.rel (0) target = $region353
    $region352: #{transformer_forward.1} parent=1 // pred_region
      %s1094 = ssub.s32 512, 512
      %1095 = vsyncadd [#allocation123], %s1094
      %s1096 = sshll.u32 [#allocation122], 4
      %s1097 = int_to_ptr.vmem [resolvable:$true] %s1096
      %1102 = dma.hbm_to_vmem [thread:$0]  %s175, 512, %s1097, [#allocation123], 128, 128, 8
    $region353: #{transformer_forward.1} parent=1 // pred_fallthru
      _
    // Predicated region
    $region354: #{transformer_forward.1} parent=1 // pred_check
      _
    $region355: #{transformer_forward.1} parent=1 // pred_check_branch
      %1104 = sbr.rel (0) target = $region357
    $region356: #{transformer_forward.1} parent=1 // pred_region
      %s1106 = ssub.s32 512, 512
      %1107 = vsyncadd [#allocation123], %s1106
      %s1108 = sshll.u32 [#allocation124], 4
      %s1109 = int_to_ptr.vmem [resolvable:$true] %s1108
      %1114 = dma.hbm_to_vmem [thread:$0]  %s177, 512, %s1109, [#allocation123], 128, 128, 8
    $region357: #{transformer_forward.1} parent=1 // pred_fallthru
      _
    // Predicated region
    $region358: #{transformer_forward.1} parent=1 // pred_check
      _
    $region359: #{transformer_forward.1} parent=1 // pred_check_branch
      %1116 = sbr.rel (0) target = $region361
    $region360: #{transformer_forward.1} parent=1 // pred_region
      _
    $region361: #{transformer_forward.1} parent=1 // pred_fallthru
      _
    // Predicated region
    $region362: #{transformer_forward.1} parent=1 // pred_check
      _
    $region363: #{transformer_forward.1} parent=1 // pred_check_branch
      %1118 = sbr.rel (0) target = $region365
    $region364: #{transformer_forward.1} parent=1 // pred_region
      _
    $region365: #{transformer_forward.1} parent=1 // pred_fallthru
      _
    // Predicated region
    $region366: #{transformer_forward.1} parent=1 // pred_check
      _
    $region367: #{transformer_forward.1} parent=1 // pred_check_branch
      %1120 = sbr.rel (0) target = $region369
    $region368: #{transformer_forward.1} parent=1 // pred_region
      _
    $region369: #{transformer_forward.1} parent=1 // pred_fallthru
      _
    // Predicated region
    $region370: #{transformer_forward.1} parent=1 // pred_check
      _
    $region371: #{transformer_forward.1} parent=1 // pred_check_branch
      %1122 = sbr.rel (0) target = $region373
    $region372: #{transformer_forward.1} parent=1 // pred_region
      _
    $region373: #{transformer_forward.1} parent=1 // pred_fallthru
      _
    // Predicated region
    $region374: #{transformer_forward.1} parent=1 // pred_check
      _
    $region375: #{transformer_forward.1} parent=1 // pred_check_branch
      %1124 = sbr.rel (0) target = $region377
    $region376: #{transformer_forward.1} parent=1 // pred_region
      %1125 = dma.done [#allocation4], 16
    $region377: #{transformer_forward.1} parent=1 // pred_fallthru
      _
    // Predicated region
    $region378: #{transformer_forward.1} parent=1 // pred_check
      _
    $region379: #{transformer_forward.1} parent=1 // pred_check_branch
      %1127 = sbr.rel (0) target = $region381
    $region380: #{transformer_forward.1} parent=1 // pred_region
      %1128 = dma.done [#allocation6], 16
    $region381: #{transformer_forward.1} parent=1 // pred_fallthru
      _
    // Predicated region
    $region382: #{transformer_forward.1} parent=1 // pred_check
      _
    $region383: #{transformer_forward.1} parent=1 // pred_check_branch
      %1130 = sbr.rel (0) target = $region385
    $region384: #{transformer_forward.1} parent=1 // pred_region
      %1131 = dma.done [#allocation6], 16
    $region385: #{transformer_forward.1} parent=1 // pred_fallthru
      _
    // Predicated region
    $region386: #{transformer_forward.1} parent=1 // pred_check
      _
    $region387: #{transformer_forward.1} parent=1 // pred_check_branch
      %1133 = sbr.rel (0) target = $region389
    $region388: #{transformer_forward.1} parent=1 // pred_region
      %1134 = dma.done [#allocation9], 16
    $region389: #{transformer_forward.1} parent=1 // pred_fallthru
      _
    // Predicated region
    $region390: #{transformer_forward.1} parent=1 // pred_check
      _
    $region391: #{transformer_forward.1} parent=1 // pred_check_branch
      %1136 = sbr.rel (0) target = $region393
    $region392: #{transformer_forward.1} parent=1 // pred_region
      %1137 = dma.done [#allocation9], 512
    $region393: #{transformer_forward.1} parent=1 // pred_fallthru
      _
    // Predicated region
    $region394: #{transformer_forward.1} parent=1 // pred_check
      _
    $region395: #{transformer_forward.1} parent=1 // pred_check_branch
      %1139 = sbr.rel (0) target = $region397
    $region396: #{transformer_forward.1} parent=1 // pred_region
      %1140 = dma.done [#allocation12], 512
    $region397: #{transformer_forward.1} parent=1 // pred_fallthru
      _
    // Predicated region
    $region398: #{transformer_forward.1} parent=1 // pred_check
      _
    $region399: #{transformer_forward.1} parent=1 // pred_check_branch
      %1142 = sbr.rel (0) target = $region401
    $region400: #{transformer_forward.1} parent=1 // pred_region
      %1143 = dma.done [#allocation12], 512
    $region401: #{transformer_forward.1} parent=1 // pred_fallthru
      _
    // Predicated region
    $region402: #{transformer_forward.1} parent=1 // pred_check
      _
    $region403: #{transformer_forward.1} parent=1 // pred_check_branch
      %1145 = sbr.rel (0) target = $region405
    $region404: #{transformer_forward.1} parent=1 // pred_region
      %1146 = dma.done [#allocation15], 512
    $region405: #{transformer_forward.1} parent=1 // pred_fallthru
      _
    // Predicated region
    $region406: #{transformer_forward.1} parent=1 // pred_check
      _
    $region407: #{transformer_forward.1} parent=1 // pred_check_branch
      %1148 = sbr.rel (0) target = $region409
    $region408: #{transformer_forward.1} parent=1 // pred_region
      %1149 = dma.done [#allocation15], 16
    $region409: #{transformer_forward.1} parent=1 // pred_fallthru
      _
    // Predicated region
    $region410: #{transformer_forward.1} parent=1 // pred_check
      _
    $region411: #{transformer_forward.1} parent=1 // pred_check_branch
      %1151 = sbr.rel (0) target = $region413
    $region412: #{transformer_forward.1} parent=1 // pred_region
      %1152 = dma.done [#allocation18], 512
    $region413: #{transformer_forward.1} parent=1 // pred_fallthru
      _
    // Predicated region
    $region414: #{transformer_forward.1} parent=1 // pred_check
      _
    $region415: #{transformer_forward.1} parent=1 // pred_check_branch
      %1154 = sbr.rel (0) target = $region417
    $region416: #{transformer_forward.1} parent=1 // pred_region
      %1155 = dma.done [#allocation18], 16
    $region417: #{transformer_forward.1} parent=1 // pred_fallthru
      _
    // Predicated region
    $region418: #{transformer_forward.1} parent=1 // pred_check
      _
    $region419: #{transformer_forward.1} parent=1 // pred_check_branch
      %1157 = sbr.rel (0) target = $region421
    $region420: #{transformer_forward.1} parent=1 // pred_region
      %1158 = dma.done [#allocation21], 16
    $region421: #{transformer_forward.1} parent=1 // pred_fallthru
      _
    // Predicated region
    $region422: #{transformer_forward.1} parent=1 // pred_check
      _
    $region423: #{transformer_forward.1} parent=1 // pred_check_branch
      %1160 = sbr.rel (0) target = $region425
    $region424: #{transformer_forward.1} parent=1 // pred_region
      %1161 = dma.done [#allocation21], 16
    $region425: #{transformer_forward.1} parent=1 // pred_fallthru
      _
    // Predicated region
    $region426: #{transformer_forward.1} parent=1 // pred_check
      _
    $region427: #{transformer_forward.1} parent=1 // pred_check_branch
      %1163 = sbr.rel (0) target = $region429
    $region428: #{transformer_forward.1} parent=1 // pred_region
      %1164 = dma.done [#allocation24], 16
    $region429: #{transformer_forward.1} parent=1 // pred_fallthru
      _
    // Predicated region
    $region430: #{transformer_forward.1} parent=1 // pred_check
      _
    $region431: #{transformer_forward.1} parent=1 // pred_check_branch
      %1166 = sbr.rel (0) target = $region433
    $region432: #{transformer_forward.1} parent=1 // pred_region
      %1167 = dma.done [#allocation24], 16
    $region433: #{transformer_forward.1} parent=1 // pred_fallthru
      _
    // Predicated region
    $region434: #{transformer_forward.1} parent=1 // pred_check
      _
    $region435: #{transformer_forward.1} parent=1 // pred_check_branch
      %1169 = sbr.rel (0) target = $region437
    $region436: #{transformer_forward.1} parent=1 // pred_region
      %1170 = dma.done [#allocation27], 16
    $region437: #{transformer_forward.1} parent=1 // pred_fallthru
      _
    // Predicated region
    $region438: #{transformer_forward.1} parent=1 // pred_check
      _
    $region439: #{transformer_forward.1} parent=1 // pred_check_branch
      %1172 = sbr.rel (0) target = $region441
    $region440: #{transformer_forward.1} parent=1 // pred_region
      %1173 = dma.done [#allocation27], 16
    $region441: #{transformer_forward.1} parent=1 // pred_fallthru
      _
    // Predicated region
    $region442: #{transformer_forward.1} parent=1 // pred_check
      _
    $region443: #{transformer_forward.1} parent=1 // pred_check_branch
      %1175 = sbr.rel (0) target = $region445
    $region444: #{transformer_forward.1} parent=1 // pred_region
      %1176 = dma.done [#allocation30], 16
    $region445: #{transformer_forward.1} parent=1 // pred_fallthru
      _
    // Predicated region
    $region446: #{transformer_forward.1} parent=1 // pred_check
      _
    $region447: #{transformer_forward.1} parent=1 // pred_check_branch
      %1178 = sbr.rel (0) target = $region449
    $region448: #{transformer_forward.1} parent=1 // pred_region
      %1179 = dma.done [#allocation30], 16
    $region449: #{transformer_forward.1} parent=1 // pred_fallthru
      _
    // Predicated region
    $region450: #{transformer_forward.1} parent=1 // pred_check
      _
    $region451: #{transformer_forward.1} parent=1 // pred_check_branch
      %1181 = sbr.rel (0) target = $region453
    $region452: #{transformer_forward.1} parent=1 // pred_region
      %1182 = dma.done [#allocation33], 16
    $region453: #{transformer_forward.1} parent=1 // pred_fallthru
      _
    // Predicated region
    $region454: #{transformer_forward.1} parent=1 // pred_check
      _
    $region455: #{transformer_forward.1} parent=1 // pred_check_branch
      %1184 = sbr.rel (0) target = $region457
    $region456: #{transformer_forward.1} parent=1 // pred_region
      %1185 = dma.done [#allocation33], 16
    $region457: #{transformer_forward.1} parent=1 // pred_fallthru
      _
    // Predicated region
    $region458: #{transformer_forward.1} parent=1 // pred_check
      _
    $region459: #{transformer_forward.1} parent=1 // pred_check_branch
      %1187 = sbr.rel (0) target = $region461
    $region460: #{transformer_forward.1} parent=1 // pred_region
      %1188 = dma.done [#allocation36], 512
    $region461: #{transformer_forward.1} parent=1 // pred_fallthru
      _
    // Predicated region
    $region462: #{transformer_forward.1} parent=1 // pred_check
      _
    $region463: #{transformer_forward.1} parent=1 // pred_check_branch
      %1190 = sbr.rel (0) target = $region465
    $region464: #{transformer_forward.1} parent=1 // pred_region
      %1191 = dma.done [#allocation36], 512
    $region465: #{transformer_forward.1} parent=1 // pred_fallthru
      _
    // Predicated region
    $region466: #{transformer_forward.1} parent=1 // pred_check
      _
    $region467: #{transformer_forward.1} parent=1 // pred_check_branch
      %1193 = sbr.rel (0) target = $region469
    $region468: #{transformer_forward.1} parent=1 // pred_region
      %1194 = dma.done [#allocation39], 512
    $region469: #{transformer_forward.1} parent=1 // pred_fallthru
      _
    // Predicated region
    $region470: #{transformer_forward.1} parent=1 // pred_check
      _
    $region471: #{transformer_forward.1} parent=1 // pred_check_branch
      %1196 = sbr.rel (0) target = $region473
    $region472: #{transformer_forward.1} parent=1 // pred_region
      %1197 = dma.done [#allocation39], 512
    $region473: #{transformer_forward.1} parent=1 // pred_fallthru
      _
    // Predicated region
    $region474: #{transformer_forward.1} parent=1 // pred_check
      _
    $region475: #{transformer_forward.1} parent=1 // pred_check_branch
      %1199 = sbr.rel (0) target = $region477
    $region476: #{transformer_forward.1} parent=1 // pred_region
      %1200 = dma.done [#allocation42], 16
    $region477: #{transformer_forward.1} parent=1 // pred_fallthru
      _
    // Predicated region
    $region478: #{transformer_forward.1} parent=1 // pred_check
      _
    $region479: #{transformer_forward.1} parent=1 // pred_check_branch
      %1202 = sbr.rel (0) target = $region481
    $region480: #{transformer_forward.1} parent=1 // pred_region
      %1203 = dma.done [#allocation42], 16
    $region481: #{transformer_forward.1} parent=1 // pred_fallthru
      _
    // Predicated region
    $region482: #{transformer_forward.1} parent=1 // pred_check
      _
    $region483: #{transformer_forward.1} parent=1 // pred_check_branch
      %1205 = sbr.rel (0) target = $region485
    $region484: #{transformer_forward.1} parent=1 // pred_region
      %1206 = dma.done [#allocation45], 16
    $region485: #{transformer_forward.1} parent=1 // pred_fallthru
      _
    // Predicated region
    $region486: #{transformer_forward.1} parent=1 // pred_check
      _
    $region487: #{transformer_forward.1} parent=1 // pred_check_branch
      %1208 = sbr.rel (0) target = $region489
    $region488: #{transformer_forward.1} parent=1 // pred_region
      %1209 = dma.done [#allocation45], 16
    $region489: #{transformer_forward.1} parent=1 // pred_fallthru
      _
    // Predicated region
    $region490: #{transformer_forward.1} parent=1 // pred_check
      _
    $region491: #{transformer_forward.1} parent=1 // pred_check_branch
      %1211 = sbr.rel (0) target = $region493
    $region492: #{transformer_forward.1} parent=1 // pred_region
      %1212 = dma.done [#allocation48], 512
    $region493: #{transformer_forward.1} parent=1 // pred_fallthru
      _
    // Predicated region
    $region494: #{transformer_forward.1} parent=1 // pred_check
      _
    $region495: #{transformer_forward.1} parent=1 // pred_check_branch
      %1214 = sbr.rel (0) target = $region497
    $region496: #{transformer_forward.1} parent=1 // pred_region
      %1215 = dma.done [#allocation48], 512
    $region497: #{transformer_forward.1} parent=1 // pred_fallthru
      _
    // Predicated region
    $region498: #{transformer_forward.1} parent=1 // pred_check
      _
    $region499: #{transformer_forward.1} parent=1 // pred_check_branch
      %1217 = sbr.rel (0) target = $region501
    $region500: #{transformer_forward.1} parent=1 // pred_region
      %1218 = dma.done [#allocation51], 512
    $region501: #{transformer_forward.1} parent=1 // pred_fallthru
      _
    // Predicated region
    $region502: #{transformer_forward.1} parent=1 // pred_check
      _
    $region503: #{transformer_forward.1} parent=1 // pred_check_branch
      %1220 = sbr.rel (0) target = $region505
    $region504: #{transformer_forward.1} parent=1 // pred_region
      %1221 = dma.done [#allocation51], 16
    $region505: #{transformer_forward.1} parent=1 // pred_fallthru
      _
    // Predicated region
    $region506: #{transformer_forward.1} parent=1 // pred_check
      _
    $region507: #{transformer_forward.1} parent=1 // pred_check_branch
      %1223 = sbr.rel (0) target = $region509
    $region508: #{transformer_forward.1} parent=1 // pred_region
      %1224 = dma.done [#allocation54], 512
    $region509: #{transformer_forward.1} parent=1 // pred_fallthru
      _
    // Predicated region
    $region510: #{transformer_forward.1} parent=1 // pred_check
      _
    $region511: #{transformer_forward.1} parent=1 // pred_check_branch
      %1226 = sbr.rel (0) target = $region513
    $region512: #{transformer_forward.1} parent=1 // pred_region
      %1227 = dma.done [#allocation54], 16
    $region513: #{transformer_forward.1} parent=1 // pred_fallthru
      _
    // Predicated region
    $region514: #{transformer_forward.1} parent=1 // pred_check
      _
    $region515: #{transformer_forward.1} parent=1 // pred_check_branch
      %1229 = sbr.rel (0) target = $region517
    $region516: #{transformer_forward.1} parent=1 // pred_region
      %1230 = dma.done [#allocation57], 512
    $region517: #{transformer_forward.1} parent=1 // pred_fallthru
      _
    // Predicated region
    $region518: #{transformer_forward.1} parent=1 // pred_check
      _
    $region519: #{transformer_forward.1} parent=1 // pred_check_branch
      %1232 = sbr.rel (0) target = $region521
    $region520: #{transformer_forward.1} parent=1 // pred_region
      %1233 = dma.done [#allocation57], 16
    $region521: #{transformer_forward.1} parent=1 // pred_fallthru
      _
    // Predicated region
    $region522: #{transformer_forward.1} parent=1 // pred_check
      _
    $region523: #{transformer_forward.1} parent=1 // pred_check_branch
      %1235 = sbr.rel (0) target = $region525
    $region524: #{transformer_forward.1} parent=1 // pred_region
      %1236 = dma.done [#allocation60], 16
    $region525: #{transformer_forward.1} parent=1 // pred_fallthru
      _
    // Predicated region
    $region526: #{transformer_forward.1} parent=1 // pred_check
      _
    $region527: #{transformer_forward.1} parent=1 // pred_check_branch
      %1238 = sbr.rel (0) target = $region529
    $region528: #{transformer_forward.1} parent=1 // pred_region
      %1239 = dma.done [#allocation60], 16
    $region529: #{transformer_forward.1} parent=1 // pred_fallthru
      _
    // Predicated region
    $region530: #{transformer_forward.1} parent=1 // pred_check
      _
    $region531: #{transformer_forward.1} parent=1 // pred_check_branch
      %1241 = sbr.rel (0) target = $region533
    $region532: #{transformer_forward.1} parent=1 // pred_region
      %1242 = dma.done [#allocation63], 16
    $region533: #{transformer_forward.1} parent=1 // pred_fallthru
      _
    // Predicated region
    $region534: #{transformer_forward.1} parent=1 // pred_check
      _
    $region535: #{transformer_forward.1} parent=1 // pred_check_branch
      %1244 = sbr.rel (0) target = $region537
    $region536: #{transformer_forward.1} parent=1 // pred_region
      %1245 = dma.done [#allocation63], 16
    $region537: #{transformer_forward.1} parent=1 // pred_fallthru
      _
    // Predicated region
    $region538: #{transformer_forward.1} parent=1 // pred_check
      _
    $region539: #{transformer_forward.1} parent=1 // pred_check_branch
      %1247 = sbr.rel (0) target = $region541
    $region540: #{transformer_forward.1} parent=1 // pred_region
      %1248 = dma.done [#allocation66], 16
    $region541: #{transformer_forward.1} parent=1 // pred_fallthru
      _
    // Predicated region
    $region542: #{transformer_forward.1} parent=1 // pred_check
      _
    $region543: #{transformer_forward.1} parent=1 // pred_check_branch
      %1250 = sbr.rel (0) target = $region545
    $region544: #{transformer_forward.1} parent=1 // pred_region
      %1251 = dma.done [#allocation66], 16
    $region545: #{transformer_forward.1} parent=1 // pred_fallthru
      _
    // Predicated region
    $region546: #{transformer_forward.1} parent=1 // pred_check
      _
    $region547: #{transformer_forward.1} parent=1 // pred_check_branch
      %1253 = sbr.rel (0) target = $region549
    $region548: #{transformer_forward.1} parent=1 // pred_region
      %1254 = dma.done [#allocation69], 16
    $region549: #{transformer_forward.1} parent=1 // pred_fallthru
      _
    // Predicated region
    $region550: #{transformer_forward.1} parent=1 // pred_check
      _
    $region551: #{transformer_forward.1} parent=1 // pred_check_branch
      %1256 = sbr.rel (0) target = $region553
    $region552: #{transformer_forward.1} parent=1 // pred_region
      %1257 = dma.done [#allocation69], 16
    $region553: #{transformer_forward.1} parent=1 // pred_fallthru
      _
    // Predicated region
    $region554: #{transformer_forward.1} parent=1 // pred_check
      _
    $region555: #{transformer_forward.1} parent=1 // pred_check_branch
      %1259 = sbr.rel (0) target = $region557
    $region556: #{transformer_forward.1} parent=1 // pred_region
      %1260 = dma.done [#allocation72], 16
    $region557: #{transformer_forward.1} parent=1 // pred_fallthru
      _
    // Predicated region
    $region558: #{transformer_forward.1} parent=1 // pred_check
      _
    $region559: #{transformer_forward.1} parent=1 // pred_check_branch
      %1262 = sbr.rel (0) target = $region561
    $region560: #{transformer_forward.1} parent=1 // pred_region
      %1263 = dma.done [#allocation72], 512
    $region561: #{transformer_forward.1} parent=1 // pred_fallthru
      _
    // Predicated region
    $region562: #{transformer_forward.1} parent=1 // pred_check
      _
    $region563: #{transformer_forward.1} parent=1 // pred_check_branch
      %1265 = sbr.rel (0) target = $region565
    $region564: #{transformer_forward.1} parent=1 // pred_region
      %1266 = dma.done [#allocation75], 512
    $region565: #{transformer_forward.1} parent=1 // pred_fallthru
      _
    // Predicated region
    $region566: #{transformer_forward.1} parent=1 // pred_check
      _
    $region567: #{transformer_forward.1} parent=1 // pred_check_branch
      %1268 = sbr.rel (0) target = $region569
    $region568: #{transformer_forward.1} parent=1 // pred_region
      %1269 = dma.done [#allocation75], 512
    $region569: #{transformer_forward.1} parent=1 // pred_fallthru
      _
    // Predicated region
    $region570: #{transformer_forward.1} parent=1 // pred_check
      _
    $region571: #{transformer_forward.1} parent=1 // pred_check_branch
      %1271 = sbr.rel (0) target = $region573
    $region572: #{transformer_forward.1} parent=1 // pred_region
      %1272 = dma.done [#allocation78], 16
    $region573: #{transformer_forward.1} parent=1 // pred_fallthru
      _
    // Predicated region
    $region574: #{transformer_forward.1} parent=1 // pred_check
      _
    $region575: #{transformer_forward.1} parent=1 // pred_check_branch
      %1274 = sbr.rel (0) target = $region577
    $region576: #{transformer_forward.1} parent=1 // pred_region
      %1275 = dma.done [#allocation78], 16
    $region577: #{transformer_forward.1} parent=1 // pred_fallthru
      _
    // Predicated region
    $region578: #{transformer_forward.1} parent=1 // pred_check
      _
    $region579: #{transformer_forward.1} parent=1 // pred_check_branch
      %1277 = sbr.rel (0) target = $region581
    $region580: #{transformer_forward.1} parent=1 // pred_region
      %1278 = dma.done [#allocation81], 16
    $region581: #{transformer_forward.1} parent=1 // pred_fallthru
      _
    // Predicated region
    $region582: #{transformer_forward.1} parent=1 // pred_check
      _
    $region583: #{transformer_forward.1} parent=1 // pred_check_branch
      %1280 = sbr.rel (0) target = $region585
    $region584: #{transformer_forward.1} parent=1 // pred_region
      %1281 = dma.done [#allocation81], 16
    $region585: #{transformer_forward.1} parent=1 // pred_fallthru
      _
    // Predicated region
    $region586: #{transformer_forward.1} parent=1 // pred_check
      _
    $region587: #{transformer_forward.1} parent=1 // pred_check_branch
      %1283 = sbr.rel (0) target = $region589
    $region588: #{transformer_forward.1} parent=1 // pred_region
      %1284 = dma.done [#allocation84], 16
    $region589: #{transformer_forward.1} parent=1 // pred_fallthru
      _
    // Predicated region
    $region590: #{transformer_forward.1} parent=1 // pred_check
      _
    $region591: #{transformer_forward.1} parent=1 // pred_check_branch
      %1286 = sbr.rel (0) target = $region593
    $region592: #{transformer_forward.1} parent=1 // pred_region
      %1287 = dma.done [#allocation84], 512
    $region593: #{transformer_forward.1} parent=1 // pred_fallthru
      _
    // Predicated region
    $region594: #{transformer_forward.1} parent=1 // pred_check
      _
    $region595: #{transformer_forward.1} parent=1 // pred_check_branch
      %1289 = sbr.rel (0) target = $region597
    $region596: #{transformer_forward.1} parent=1 // pred_region
      %1290 = dma.done [#allocation87], 16
    $region597: #{transformer_forward.1} parent=1 // pred_fallthru
      _
    // Predicated region
    $region598: #{transformer_forward.1} parent=1 // pred_check
      _
    $region599: #{transformer_forward.1} parent=1 // pred_check_branch
      %1292 = sbr.rel (0) target = $region601
    $region600: #{transformer_forward.1} parent=1 // pred_region
      %1293 = dma.done [#allocation87], 512
    $region601: #{transformer_forward.1} parent=1 // pred_fallthru
      _
    // Predicated region
    $region602: #{transformer_forward.1} parent=1 // pred_check
      _
    $region603: #{transformer_forward.1} parent=1 // pred_check_branch
      %1295 = sbr.rel (0) target = $region605
    $region604: #{transformer_forward.1} parent=1 // pred_region
      %1296 = dma.done [#allocation90], 16
    $region605: #{transformer_forward.1} parent=1 // pred_fallthru
      _
    // Predicated region
    $region606: #{transformer_forward.1} parent=1 // pred_check
      _
    $region607: #{transformer_forward.1} parent=1 // pred_check_branch
      %1298 = sbr.rel (0) target = $region609
    $region608: #{transformer_forward.1} parent=1 // pred_region
      %1299 = dma.done [#allocation90], 16
    $region609: #{transformer_forward.1} parent=1 // pred_fallthru
      _
    // Predicated region
    $region610: #{transformer_forward.1} parent=1 // pred_check
      _
    $region611: #{transformer_forward.1} parent=1 // pred_check_branch
      %1301 = sbr.rel (0) target = $region613
    $region612: #{transformer_forward.1} parent=1 // pred_region
      %1302 = dma.done [#allocation93], 16
    $region613: #{transformer_forward.1} parent=1 // pred_fallthru
      _
    // Predicated region
    $region614: #{transformer_forward.1} parent=1 // pred_check
      _
    $region615: #{transformer_forward.1} parent=1 // pred_check_branch
      %1304 = sbr.rel (0) target = $region617
    $region616: #{transformer_forward.1} parent=1 // pred_region
      %1305 = dma.done [#allocation93], 16
    $region617: #{transformer_forward.1} parent=1 // pred_fallthru
      _
    // Predicated region
    $region618: #{transformer_forward.1} parent=1 // pred_check
      _
    $region619: #{transformer_forward.1} parent=1 // pred_check_branch
      %1307 = sbr.rel (0) target = $region621
    $region620: #{transformer_forward.1} parent=1 // pred_region
      %1308 = dma.done [#allocation96], 16
    $region621: #{transformer_forward.1} parent=1 // pred_fallthru
      _
    // Predicated region
    $region622: #{transformer_forward.1} parent=1 // pred_check
      _
    $region623: #{transformer_forward.1} parent=1 // pred_check_branch
      %1310 = sbr.rel (0) target = $region625
    $region624: #{transformer_forward.1} parent=1 // pred_region
      %1311 = dma.done [#allocation96], 16
    $region625: #{transformer_forward.1} parent=1 // pred_fallthru
      _
    // Predicated region
    $region626: #{transformer_forward.1} parent=1 // pred_check
      _
    $region627: #{transformer_forward.1} parent=1 // pred_check_branch
      %1313 = sbr.rel (0) target = $region629
    $region628: #{transformer_forward.1} parent=1 // pred_region
      %1314 = dma.done [#allocation99], 16
    $region629: #{transformer_forward.1} parent=1 // pred_fallthru
      _
    // Predicated region
    $region630: #{transformer_forward.1} parent=1 // pred_check
      _
    $region631: #{transformer_forward.1} parent=1 // pred_check_branch
      %1316 = sbr.rel (0) target = $region633
    $region632: #{transformer_forward.1} parent=1 // pred_region
      %1317 = dma.done [#allocation99], 16
    $region633: #{transformer_forward.1} parent=1 // pred_fallthru
      _
    // Predicated region
    $region634: #{transformer_forward.1} parent=1 // pred_check
      _
    $region635: #{transformer_forward.1} parent=1 // pred_check_branch
      %1319 = sbr.rel (0) target = $region637
    $region636: #{transformer_forward.1} parent=1 // pred_region
      %1320 = dma.done [#allocation102], 512
    $region637: #{transformer_forward.1} parent=1 // pred_fallthru
      _
    // Predicated region
    $region638: #{transformer_forward.1} parent=1 // pred_check
      _
    $region639: #{transformer_forward.1} parent=1 // pred_check_branch
      %1322 = sbr.rel (0) target = $region641
    $region640: #{transformer_forward.1} parent=1 // pred_region
      %1323 = dma.done [#allocation102], 512
    $region641: #{transformer_forward.1} parent=1 // pred_fallthru
      _
    // Predicated region
    $region642: #{transformer_forward.1} parent=1 // pred_check
      _
    $region643: #{transformer_forward.1} parent=1 // pred_check_branch
      %1325 = sbr.rel (0) target = $region645
    $region644: #{transformer_forward.1} parent=1 // pred_region
      %1326 = dma.done [#allocation105], 512
    $region645: #{transformer_forward.1} parent=1 // pred_fallthru
      _
    // Predicated region
    $region646: #{transformer_forward.1} parent=1 // pred_check
      _
    $region647: #{transformer_forward.1} parent=1 // pred_check_branch
      %1328 = sbr.rel (0) target = $region649
    $region648: #{transformer_forward.1} parent=1 // pred_region
      %1329 = dma.done [#allocation105], 16
    $region649: #{transformer_forward.1} parent=1 // pred_fallthru
      _
    // Predicated region
    $region650: #{transformer_forward.1} parent=1 // pred_check
      _
    $region651: #{transformer_forward.1} parent=1 // pred_check_branch
      %1331 = sbr.rel (0) target = $region653
    $region652: #{transformer_forward.1} parent=1 // pred_region
      %1332 = dma.done [#allocation108], 512
    $region653: #{transformer_forward.1} parent=1 // pred_fallthru
      _
    // Predicated region
    $region654: #{transformer_forward.1} parent=1 // pred_check
      _
    $region655: #{transformer_forward.1} parent=1 // pred_check_branch
      %1334 = sbr.rel (0) target = $region657
    $region656: #{transformer_forward.1} parent=1 // pred_region
      %1335 = dma.done [#allocation108], 16
    $region657: #{transformer_forward.1} parent=1 // pred_fallthru
      _
    // Predicated region
    $region658: #{transformer_forward.1} parent=1 // pred_check
      _
    $region659: #{transformer_forward.1} parent=1 // pred_check_branch
      %1337 = sbr.rel (0) target = $region661
    $region660: #{transformer_forward.1} parent=1 // pred_region
      %1338 = dma.done [#allocation111], 512
    $region661: #{transformer_forward.1} parent=1 // pred_fallthru
      _
    // Predicated region
    $region662: #{transformer_forward.1} parent=1 // pred_check
      _
    $region663: #{transformer_forward.1} parent=1 // pred_check_branch
      %1340 = sbr.rel (0) target = $region665
    $region664: #{transformer_forward.1} parent=1 // pred_region
      %1341 = dma.done [#allocation111], 16
    $region665: #{transformer_forward.1} parent=1 // pred_fallthru
      _
    // Predicated region
    $region666: #{transformer_forward.1} parent=1 // pred_check
      _
    $region667: #{transformer_forward.1} parent=1 // pred_check_branch
      %1343 = sbr.rel (0) target = $region669
    $region668: #{transformer_forward.1} parent=1 // pred_region
      %1344 = dma.done [#allocation114], 16
    $region669: #{transformer_forward.1} parent=1 // pred_fallthru
      _
    // Predicated region
    $region670: #{transformer_forward.1} parent=1 // pred_check
      _
    $region671: #{transformer_forward.1} parent=1 // pred_check_branch
      %1346 = sbr.rel (0) target = $region673
    $region672: #{transformer_forward.1} parent=1 // pred_region
      %1347 = dma.done [#allocation114], 16
    $region673: #{transformer_forward.1} parent=1 // pred_fallthru
      _
    // Predicated region
    $region674: #{transformer_forward.1} parent=1 // pred_check
      _
    $region675: #{transformer_forward.1} parent=1 // pred_check_branch
      %1349 = sbr.rel (0) target = $region677
    $region676: #{transformer_forward.1} parent=1 // pred_region
      %1350 = dma.done [#allocation117], 16
    $region677: #{transformer_forward.1} parent=1 // pred_fallthru
      _
    // Predicated region
    $region678: #{transformer_forward.1} parent=1 // pred_check
      _
    $region679: #{transformer_forward.1} parent=1 // pred_check_branch
      %1352 = sbr.rel (0) target = $region681
    $region680: #{transformer_forward.1} parent=1 // pred_region
      %1353 = dma.done [#allocation117], 16
    $region681: #{transformer_forward.1} parent=1 // pred_fallthru
      _
    // Predicated region
    $region682: #{transformer_forward.1} parent=1 // pred_check
      _
    $region683: #{transformer_forward.1} parent=1 // pred_check_branch
      %1355 = sbr.rel (0) target = $region685
    $region684: #{transformer_forward.1} parent=1 // pred_region
      %1356 = dma.done [#allocation120], 16
    $region685: #{transformer_forward.1} parent=1 // pred_fallthru
      _
    // Predicated region
    $region686: #{transformer_forward.1} parent=1 // pred_check
      _
    $region687: #{transformer_forward.1} parent=1 // pred_check_branch
      %1358 = sbr.rel (0) target = $region689
    $region688: #{transformer_forward.1} parent=1 // pred_region
      %1359 = dma.done [#allocation120], 512
    $region689: #{transformer_forward.1} parent=1 // pred_fallthru
      _
    // Predicated region
    $region690: #{transformer_forward.1} parent=1 // pred_check
      _
    $region691: #{transformer_forward.1} parent=1 // pred_check_branch
      %1361 = sbr.rel (0) target = $region693
    $region692: #{transformer_forward.1} parent=1 // pred_region
      %1362 = dma.done [#allocation123], 512
    $region693: #{transformer_forward.1} parent=1 // pred_fallthru
      _
    // Predicated region
    $region694: #{transformer_forward.1} parent=1 // pred_check
      _
    $region695: #{transformer_forward.1} parent=1 // pred_check_branch
      %1364 = sbr.rel (0) target = $region697
    $region696: #{transformer_forward.1} parent=1 // pred_region
      %1365 = dma.done [#allocation123], 512
    $region697: #{transformer_forward.1} parent=1 // pred_fallthru
      _
    %v1366 = vld [vmem:[%s1] sm:$0xff]
    %v1367 = vld [vmem:[#allocation82] sm:$0x1]
    %1369 = vset.pattern.permute.xlu0 0
    %1370 = vperm.xlu0 %1369, %v1366
    %v1371 = vpop.permute.xlu0 %1370
    %v1374 = vlaneseq
    %v1375 = vshrl.u32 %v1374, 7
    %v1376 = vsub.s32 0, %v1375
    %v1377 = vrot.slane %v1367, %v1376
    %v1379 = vmul.f32 %v1371, %v1377
    %v1380 = vld [vmem:[#allocation80] sm:$0x1]
    %v1382 = vlaneseq
    %v1383 = vshrl.u32 %v1382, 7
    %v1384 = vsub.s32 0, %v1383
    %v1385 = vrot.slane %v1380, %v1384
    %v1387 = vadd.f32 %v1379, %v1385
    %v1388 = vlaneseq
    %v1389 = vshrl.u32 %v1388, 7
    %v1390 = vlaneseq
    %v1391 = vand.u32 %v1390, 127
    %v1392 = vadd.s32 %v1391, 1
    %vm1393 = vcmp.eq.s32.totalorder %v1389, %v1392
    %v1394 = vsel %vm1393, 1, 0
    %v1395 = vcvt.s32.f32 %v1394
    %vm1396 = vcmask 64512
    %v1398 = vsel %vm1396, %v1395, 0
    %1400 = vmatprep.subr.mxu0 0.0
    %1401 = vmatpush1.msra.mxu0 0.0
    %1402 = vmatprep.subr.mxu0 0.0
    %1403 = vmatpush1.msra.mxu0 0.0
    %1404 = vmatprep.subr.mxu0 0.0
    %1405 = vmatpush1.msra.mxu0 0.0
    %1406 = vmatprep.subr.mxu0 0.0
    %1407 = vmatpush1.msra.mxu0 0.0
    %1408 = vmatprep.subr.mxu0 0.0
    %1409 = vmatpush1.msra.mxu0 0.0
    %1410 = vmatprep.subr.mxu0 0.0
    %1411 = vmatpush1.msra.mxu0 0.0
    %1412 = vmatprep.subr.mxu0 0.0
    %1413 = vmatpush1.msra.mxu0 0.0
    %1414 = vmatprep.subr.mxu0 0.0
    %1415 = vmatpush1.msra.mxu0 0.0
    %1416 = vmatprep.subr.mxu0 0.0
    %1417 = vmatpush1.msra.mxu0 0.0
    %1418 = vmatprep.subr.mxu0 0.0
    %1419 = vmatpush1.msra.mxu0 0.0
    %1420 = vmatprep.subr.mxu0 0.0
    %1421 = vmatpush1.msra.mxu0 0.0
    %1422 = vmatprep.subr.mxu0 0.0
    %1423 = vmatpush1.msra.mxu0 0.0
    %1424 = vmatprep.subr.mxu0 0.0
    %1425 = vmatpush1.msra.mxu0 0.0
    %1426 = vmatprep.subr.mxu0 0.0
    %1427 = vmatpush1.msra.mxu0 0.0
    %1428 = vmatprep.subr.mxu0 0.0
    %1429 = vmatpush1.msra.mxu0 0.0
    %1430 = vmatprep.subr.mxu0 0.0
    %1431 = vmatpush1.msra.mxu0 %v1387
    %1432 = vmatprep.subr.mxu0 0.0
    %1433 = vmatpush2.msra.mxu0 0.0
    %1434 = vmatprep.subr.mxu0 0.0
    %1435 = vmatpush2.msra.mxu0 0.0
    %1436 = vmatprep.subr.mxu0 0.0
    %1437 = vmatpush2.msra.mxu0 0.0
    %1438 = vmatprep.subr.mxu0 0.0
    %1439 = vmatpush2.msra.mxu0 0.0
    %1440 = vmatprep.subr.mxu0 0.0
    %1441 = vmatpush2.msra.mxu0 0.0
    %1442 = vmatprep.subr.mxu0 0.0
    %1443 = vmatpush2.msra.mxu0 0.0
    %1444 = vmatprep.subr.mxu0 0.0
    %1445 = vmatpush2.msra.mxu0 0.0
    %1446 = vmatprep.subr.mxu0 0.0
    %1447 = vmatpush2.msra.mxu0 0.0
    %1448 = vmatprep.subr.mxu0 0.0
    %1449 = vmatpush2.msra.mxu0 0.0
    %1450 = vmatprep.subr.mxu0 0.0
    %1451 = vmatpush2.msra.mxu0 0.0
    %1452 = vmatprep.subr.mxu0 0.0
    %1453 = vmatpush2.msra.mxu0 0.0
    %1454 = vmatprep.subr.mxu0 0.0
    %1455 = vmatpush2.msra.mxu0 0.0
    %1456 = vmatprep.subr.mxu0 0.0
    %1457 = vmatpush2.msra.mxu0 0.0
    %1458 = vmatprep.subr.mxu0 0.0
    %1459 = vmatpush2.msra.mxu0 0.0
    %1460 = vmatprep.subr.mxu0 0.0
    %1461 = vmatpush2.msra.mxu0 0.0
    %1462 = vmatprep.subr.mxu0 0.0
    %1463 = vmatpush2.msra.mxu0 0.0
    %1464 = vmatprep.mubr.f32.mxu0 0.0
    %1465 = vmatmul.mubr.f32.gmra.mxu0 %v1398
    %v1466 = vpop.f32.mrf.mxu0
    %v1467 = vadd.f32 0.0, %v1466
    %v1468 = vpop.f32.mrf.mxu0
    %1469 = vdwg.mxu0
    %v1470 = vld [vmem:[#allocation103] sm:$0xff]
    %v1471 = vld [vmem:[#allocation103 + $0x8] sm:$0xff]
    %v1472 = vld [vmem:[#allocation103 + $0x10] sm:$0xff]
    %v1473 = vld [vmem:[#allocation103 + $0x18] sm:$0xff]
    %v1474 = vld [vmem:[#allocation98] sm:$0x1]
    %v1476 = vlaneseq
    %v1477 = vshrl.u32 %v1476, 7
    %v1478 = vsub.s32 0, %v1477
    %v1479 = vrot.slane %v1474, %v1478
    %vm1481 = vcmask 261120
    %v1483 = vsel %vm1481, %v1387, 0
    %1485 = vmatprep.subr.mxu0 0.0
    %1486 = vmatpush1.msra.mxu0 0.0
    %1487 = vmatprep.subr.mxu0 0.0
    %1488 = vmatpush1.msra.mxu0 0.0
    %1489 = vmatprep.subr.mxu0 0.0
    %1490 = vmatpush1.msra.mxu0 0.0
    %1491 = vmatprep.subr.mxu0 0.0
    %1492 = vmatpush1.msra.mxu0 0.0
    %1493 = vmatprep.subr.mxu0 0.0
    %1494 = vmatpush1.msra.mxu0 0.0
    %1495 = vmatprep.subr.mxu0 0.0
    %1496 = vmatpush1.msra.mxu0 0.0
    %1497 = vmatprep.subr.mxu0 0.0
    %1498 = vmatpush1.msra.mxu0 0.0
    %1499 = vmatprep.subr.mxu0 0.0
    %1500 = vmatpush1.msra.mxu0 0.0
    %1501 = vmatprep.subr.mxu0 0.0
    %1502 = vmatpush1.msra.mxu0 0.0
    %1503 = vmatprep.subr.mxu0 0.0
    %1504 = vmatpush1.msra.mxu0 0.0
    %1505 = vmatprep.subr.mxu0 0.0
    %1506 = vmatpush1.msra.mxu0 0.0
    %1507 = vmatprep.subr.mxu0 0.0
    %1508 = vmatpush1.msra.mxu0 0.0
    %1509 = vmatprep.subr.mxu0 0.0
    %1510 = vmatpush1.msra.mxu0 %v1473
    %1511 = vmatprep.subr.mxu0 0.0
    %1512 = vmatpush1.msra.mxu0 %v1472
    %1513 = vmatprep.subr.mxu0 0.0
    %1514 = vmatpush1.msra.mxu0 %v1471
    %1515 = vmatprep.subr.mxu0 0.0
    %1516 = vmatpush1.msra.mxu0 %v1470
    %1517 = vmatprep.subr.mxu0 0.0
    %1518 = vmatpush2.msra.mxu0 0.0
    %1519 = vmatprep.subr.mxu0 0.0
    %1520 = vmatpush2.msra.mxu0 0.0
    %1521 = vmatprep.subr.mxu0 0.0
    %1522 = vmatpush2.msra.mxu0 0.0
    %1523 = vmatprep.subr.mxu0 0.0
    %1524 = vmatpush2.msra.mxu0 0.0
    %1525 = vmatprep.subr.mxu0 0.0
    %1526 = vmatpush2.msra.mxu0 0.0
    %1527 = vmatprep.subr.mxu0 0.0
    %1528 = vmatpush2.msra.mxu0 0.0
    %1529 = vmatprep.subr.mxu0 0.0
    %1530 = vmatpush2.msra.mxu0 0.0
    %1531 = vmatprep.subr.mxu0 0.0
    %1532 = vmatpush2.msra.mxu0 0.0
    %1533 = vmatprep.subr.mxu0 0.0
    %1534 = vmatpush2.msra.mxu0 0.0
    %1535 = vmatprep.subr.mxu0 0.0
    %1536 = vmatpush2.msra.mxu0 0.0
    %1537 = vmatprep.subr.mxu0 0.0
    %1538 = vmatpush2.msra.mxu0 0.0
    %1539 = vmatprep.subr.mxu0 0.0
    %1540 = vmatpush2.msra.mxu0 0.0
    %1541 = vmatprep.subr.mxu0 0.0
    %1542 = vmatpush2.msra.mxu0 0.0
    %1543 = vmatprep.subr.mxu0 0.0
    %1544 = vmatpush2.msra.mxu0 0.0
    %1545 = vmatprep.subr.mxu0 0.0
    %1546 = vmatpush2.msra.mxu0 0.0
    %1547 = vmatprep.subr.mxu0 0.0
    %1548 = vmatpush2.msra.mxu0 0.0
    %1549 = vmatprep.mubr.f32.mxu0 0.0
    %1550 = vmatmul.mubr.f32.gmra.mxu0 %v1483
    %v1551 = vpop.f32.mrf.mxu0
    %v1552 = vadd.f32 %v1479, %v1551
    %v1553 = vpop.f32.mrf.mxu0
    %1554 = vdwg.mxu0
    %v1555 = vld [vmem:[%s139] sm:$0xff]
    %v1556 = vld [vmem:[%s139 + $0x8] sm:$0xff]
    %v1557 = vld [vmem:[%s139 + $0x10] sm:$0xff]
    %v1558 = vld [vmem:[%s139 + $0x18] sm:$0xff]
    %v1559 = vld [vmem:[#allocation95] sm:$0x1]
    %v1561 = vlaneseq
    %v1562 = vshrl.u32 %v1561, 7
    %v1563 = vsub.s32 0, %v1562
    %v1564 = vrot.slane %v1559, %v1563
    %1566 = vmatprep.subr.mxu0 0.0
    %1567 = vmatpush1.msra.mxu0 0.0
    %1568 = vmatprep.subr.mxu0 0.0
    %1569 = vmatpush1.msra.mxu0 0.0
    %1570 = vmatprep.subr.mxu0 0.0
    %1571 = vmatpush1.msra.mxu0 0.0
    %1572 = vmatprep.subr.mxu0 0.0
    %1573 = vmatpush1.msra.mxu0 0.0
    %1574 = vmatprep.subr.mxu0 0.0
    %1575 = vmatpush1.msra.mxu0 0.0
    %1576 = vmatprep.subr.mxu0 0.0
    %1577 = vmatpush1.msra.mxu0 0.0
    %1578 = vmatprep.subr.mxu0 0.0
    %1579 = vmatpush1.msra.mxu0 0.0
    %1580 = vmatprep.subr.mxu0 0.0
    %1581 = vmatpush1.msra.mxu0 0.0
    %1582 = vmatprep.subr.mxu0 0.0
    %1583 = vmatpush1.msra.mxu0 0.0
    %1584 = vmatprep.subr.mxu0 0.0
    %1585 = vmatpush1.msra.mxu0 0.0
    %1586 = vmatprep.subr.mxu0 0.0
    %1587 = vmatpush1.msra.mxu0 0.0
    %1588 = vmatprep.subr.mxu0 0.0
    %1589 = vmatpush1.msra.mxu0 0.0
    %1590 = vmatprep.subr.mxu0 0.0
    %1591 = vmatpush1.msra.mxu0 %v1558
    %1592 = vmatprep.subr.mxu0 0.0
    %1593 = vmatpush1.msra.mxu0 %v1557
    %1594 = vmatprep.subr.mxu0 0.0
    %1595 = vmatpush1.msra.mxu0 %v1556
    %1596 = vmatprep.subr.mxu0 0.0
    %1597 = vmatpush1.msra.mxu0 %v1555
    %1598 = vmatprep.subr.mxu0 0.0
    %1599 = vmatpush2.msra.mxu0 0.0
    %1600 = vmatprep.subr.mxu0 0.0
    %1601 = vmatpush2.msra.mxu0 0.0
    %1602 = vmatprep.subr.mxu0 0.0
    %1603 = vmatpush2.msra.mxu0 0.0
    %1604 = vmatprep.subr.mxu0 0.0
    %1605 = vmatpush2.msra.mxu0 0.0
    %1606 = vmatprep.subr.mxu0 0.0
    %1607 = vmatpush2.msra.mxu0 0.0
    %1608 = vmatprep.subr.mxu0 0.0
    %1609 = vmatpush2.msra.mxu0 0.0
    %1610 = vmatprep.subr.mxu0 0.0
    %1611 = vmatpush2.msra.mxu0 0.0
    %1612 = vmatprep.subr.mxu0 0.0
    %1613 = vmatpush2.msra.mxu0 0.0
    %1614 = vmatprep.subr.mxu0 0.0
    %1615 = vmatpush2.msra.mxu0 0.0
    %1616 = vmatprep.subr.mxu0 0.0
    %1617 = vmatpush2.msra.mxu0 0.0
    %1618 = vmatprep.subr.mxu0 0.0
    %1619 = vmatpush2.msra.mxu0 0.0
    %1620 = vmatprep.subr.mxu0 0.0
    %1621 = vmatpush2.msra.mxu0 0.0
    %1622 = vmatprep.subr.mxu0 0.0
    %1623 = vmatpush2.msra.mxu0 0.0
    %1624 = vmatprep.subr.mxu0 0.0
    %1625 = vmatpush2.msra.mxu0 0.0
    %1626 = vmatprep.subr.mxu0 0.0
    %1627 = vmatpush2.msra.mxu0 0.0
    %1628 = vmatprep.subr.mxu0 0.0
    %1629 = vmatpush2.msra.mxu0 0.0
    %1630 = vmatprep.mubr.f32.mxu0 0.0
    %1631 = vmatmul.mubr.f32.gmra.mxu0 %v1483
    %v1632 = vpop.f32.mrf.mxu0
    %v1633 = vadd.f32 %v1564, %v1632
    %v1634 = vpop.f32.mrf.mxu0
    %1635 = vdwg.mxu0
    %v1636 = vld [vmem:[#allocation104] sm:$0xff]
    %v1637 = vld [vmem:[#allocation104 + $0x8] sm:$0xff]
    %v1638 = vld [vmem:[#allocation104 + $0x10] sm:$0xff]
    %v1639 = vld [vmem:[#allocation104 + $0x18] sm:$0xff]
    %v1640 = vld [vmem:[#allocation100] sm:$0x1]
    %v1642 = vlaneseq
    %v1643 = vshrl.u32 %v1642, 7
    %v1644 = vsub.s32 0, %v1643
    %v1645 = vrot.slane %v1640, %v1644
    %1647 = vmatprep.subr.mxu0 0.0
    %1648 = vmatpush1.msra.mxu0 0.0
    %1649 = vmatprep.subr.mxu0 0.0
    %1650 = vmatpush1.msra.mxu0 0.0
    %1651 = vmatprep.subr.mxu0 0.0
    %1652 = vmatpush1.msra.mxu0 0.0
    %1653 = vmatprep.subr.mxu0 0.0
    %1654 = vmatpush1.msra.mxu0 0.0
    %1655 = vmatprep.subr.mxu0 0.0
    %1656 = vmatpush1.msra.mxu0 0.0
    %1657 = vmatprep.subr.mxu0 0.0
    %1658 = vmatpush1.msra.mxu0 0.0
    %1659 = vmatprep.subr.mxu0 0.0
    %1660 = vmatpush1.msra.mxu0 0.0
    %1661 = vmatprep.subr.mxu0 0.0
    %1662 = vmatpush1.msra.mxu0 0.0
    %1663 = vmatprep.subr.mxu0 0.0
    %1664 = vmatpush1.msra.mxu0 0.0
    %1665 = vmatprep.subr.mxu0 0.0
    %1666 = vmatpush1.msra.mxu0 0.0
    %1667 = vmatprep.subr.mxu0 0.0
    %1668 = vmatpush1.msra.mxu0 0.0
    %1669 = vmatprep.subr.mxu0 0.0
    %1670 = vmatpush1.msra.mxu0 0.0
    %1671 = vmatprep.subr.mxu0 0.0
    %1672 = vmatpush1.msra.mxu0 %v1639
    %1673 = vmatprep.subr.mxu0 0.0
    %1674 = vmatpush1.msra.mxu0 %v1638
    %1675 = vmatprep.subr.mxu0 0.0
    %1676 = vmatpush1.msra.mxu0 %v1637
    %1677 = vmatprep.subr.mxu0 0.0
    %1678 = vmatpush1.msra.mxu0 %v1636
    %1679 = vmatprep.subr.mxu0 0.0
    %1680 = vmatpush2.msra.mxu0 0.0
    %1681 = vmatprep.subr.mxu0 0.0
    %1682 = vmatpush2.msra.mxu0 0.0
    %1683 = vmatprep.subr.mxu0 0.0
    %1684 = vmatpush2.msra.mxu0 0.0
    %1685 = vmatprep.subr.mxu0 0.0
    %1686 = vmatpush2.msra.mxu0 0.0
    %1687 = vmatprep.subr.mxu0 0.0
    %1688 = vmatpush2.msra.mxu0 0.0
    %1689 = vmatprep.subr.mxu0 0.0
    %1690 = vmatpush2.msra.mxu0 0.0
    %1691 = vmatprep.subr.mxu0 0.0
    %1692 = vmatpush2.msra.mxu0 0.0
    %1693 = vmatprep.subr.mxu0 0.0
    %1694 = vmatpush2.msra.mxu0 0.0
    %1695 = vmatprep.subr.mxu0 0.0
    %1696 = vmatpush2.msra.mxu0 0.0
    %1697 = vmatprep.subr.mxu0 0.0
    %1698 = vmatpush2.msra.mxu0 0.0
    %1699 = vmatprep.subr.mxu0 0.0
    %1700 = vmatpush2.msra.mxu0 0.0
    %1701 = vmatprep.subr.mxu0 0.0
    %1702 = vmatpush2.msra.mxu0 0.0
    %1703 = vmatprep.subr.mxu0 0.0
    %1704 = vmatpush2.msra.mxu0 0.0
    %1705 = vmatprep.subr.mxu0 0.0
    %1706 = vmatpush2.msra.mxu0 0.0
    %1707 = vmatprep.subr.mxu0 0.0
    %1708 = vmatpush2.msra.mxu0 0.0
    %1709 = vmatprep.subr.mxu0 0.0
    %1710 = vmatpush2.msra.mxu0 0.0
    %1711 = vmatprep.mubr.f32.mxu0 0.0
    %1712 = vmatmul.mubr.f32.gmra.mxu0 %v1483
    %v1713 = vpop.f32.mrf.mxu0
    %v1714 = vadd.f32 %v1645, %v1713
    %v1715 = vpop.f32.mrf.mxu0
    %1716 = vdwg.mxu0
    %v1718 = vsel %vm1481, %v1552, 0
    %v1721 = vsel %vm1481, %v1633, 0
    %1723 = vmatprep.subr.mxu0 0.0
    %1724 = vmatpush1.xpose.msra.mxu0 0.0
    %1725 = vmatprep.subr.mxu0 0.0
    %1726 = vmatpush1.xpose.msra.mxu0 0.0
    %1727 = vmatprep.subr.mxu0 0.0
    %1728 = vmatpush1.xpose.msra.mxu0 0.0
    %1729 = vmatprep.subr.mxu0 0.0
    %1730 = vmatpush1.xpose.msra.mxu0 0.0
    %1731 = vmatprep.subr.mxu0 0.0
    %1732 = vmatpush1.xpose.msra.mxu0 0.0
    %1733 = vmatprep.subr.mxu0 0.0
    %1734 = vmatpush1.xpose.msra.mxu0 0.0
    %1735 = vmatprep.subr.mxu0 0.0
    %1736 = vmatpush1.xpose.msra.mxu0 0.0
    %1737 = vmatprep.subr.mxu0 0.0
    %1738 = vmatpush1.xpose.msra.mxu0 0.0
    %1739 = vmatprep.subr.mxu0 0.0
    %1740 = vmatpush1.xpose.msra.mxu0 0.0
    %1741 = vmatprep.subr.mxu0 0.0
    %1742 = vmatpush1.xpose.msra.mxu0 0.0
    %1743 = vmatprep.subr.mxu0 0.0
    %1744 = vmatpush1.xpose.msra.mxu0 0.0
    %1745 = vmatprep.subr.mxu0 0.0
    %1746 = vmatpush1.xpose.msra.mxu0 0.0
    %1747 = vmatprep.subr.mxu0 0.0
    %1748 = vmatpush1.xpose.msra.mxu0 0.0
    %1749 = vmatprep.subr.mxu0 0.0
    %1750 = vmatpush1.xpose.msra.mxu0 0.0
    %1751 = vmatprep.subr.mxu0 0.0
    %1752 = vmatpush1.xpose.msra.mxu0 0.0
    %1753 = vmatprep.subr.mxu0 0.0
    %1754 = vmatpush1.xpose.msra.mxu0 %v1721
    %1755 = vmatprep.subr.mxu0 0.0
    %1756 = vmatpush2.xpose.msra.mxu0 0.0
    %1757 = vmatprep.subr.mxu0 0.0
    %1758 = vmatpush2.xpose.msra.mxu0 0.0
    %1759 = vmatprep.subr.mxu0 0.0
    %1760 = vmatpush2.xpose.msra.mxu0 0.0
    %1761 = vmatprep.subr.mxu0 0.0
    %1762 = vmatpush2.xpose.msra.mxu0 0.0
    %1763 = vmatprep.subr.mxu0 0.0
    %1764 = vmatpush2.xpose.msra.mxu0 0.0
    %1765 = vmatprep.subr.mxu0 0.0
    %1766 = vmatpush2.xpose.msra.mxu0 0.0
    %1767 = vmatprep.subr.mxu0 0.0
    %1768 = vmatpush2.xpose.msra.mxu0 0.0
    %1769 = vmatprep.subr.mxu0 0.0
    %1770 = vmatpush2.xpose.msra.mxu0 0.0
    %1771 = vmatprep.subr.mxu0 0.0
    %1772 = vmatpush2.xpose.msra.mxu0 0.0
    %1773 = vmatprep.subr.mxu0 0.0
    %1774 = vmatpush2.xpose.msra.mxu0 0.0
    %1775 = vmatprep.subr.mxu0 0.0
    %1776 = vmatpush2.xpose.msra.mxu0 0.0
    %1777 = vmatprep.subr.mxu0 0.0
    %1778 = vmatpush2.xpose.msra.mxu0 0.0
    %1779 = vmatprep.subr.mxu0 0.0
    %1780 = vmatpush2.xpose.msra.mxu0 0.0
    %1781 = vmatprep.subr.mxu0 0.0
    %1782 = vmatpush2.xpose.msra.mxu0 0.0
    %1783 = vmatprep.subr.mxu0 0.0
    %1784 = vmatpush2.xpose.msra.mxu0 0.0
    %1785 = vmatprep.subr.mxu0 0.0
    %1786 = vmatpush2.xpose.msra.mxu0 0.0
    %1787 = vmatprep.mubr.f32.mxu0 0.0
    %1788 = vmatmul.mubr.f32.gmra.mxu0 %v1718
    %v1789 = vpop.f32.mrf.mxu0
    %v1790 = vadd.f32 0.0, %v1789
    %v1791 = vpop.f32.mrf.mxu0
    %1792 = vdwg.mxu0
    %v1793 = vmul.f32 %v1790, 0.17677669
    %v1794 = vsel %vm1396, %v1793, -inf
    %1795 = vmax.xlane.f32.xlu0 %v1794
    %v1796 = vpop.xlane.xlu0 %1795
    %v1797 = vsub.f32 %v1793, %v1796
    %v1798 = vmul.f32 %v1797, 1.442695
    %v1799 = vpow.pop %v1798
    %v1800 = vsel %vm1396, %v1799, 0.0
    %1801 = vadd.xlane.f32.xlu0 %v1800
    %v1802 = vpop.xlane.xlu0 %1801
    %v1803 = vrcp.pop %v1802
    %v1804 = vmul.f32 %v1799, %v1803
    %v1806 = vsel %vm1396, %v1804, 0
    %1808 = vmatprep.subr.mxu0 0.0
    %1809 = vmatpush1.msra.mxu0 0.0
    %1810 = vmatprep.subr.mxu0 0.0
    %1811 = vmatpush1.msra.mxu0 0.0
    %1812 = vmatprep.subr.mxu0 0.0
    %1813 = vmatpush1.msra.mxu0 0.0
    %1814 = vmatprep.subr.mxu0 0.0
    %1815 = vmatpush1.msra.mxu0 0.0
    %1816 = vmatprep.subr.mxu0 0.0
    %1817 = vmatpush1.msra.mxu0 0.0
    %1818 = vmatprep.subr.mxu0 0.0
    %1819 = vmatpush1.msra.mxu0 0.0
    %1820 = vmatprep.subr.mxu0 0.0
    %1821 = vmatpush1.msra.mxu0 0.0
    %1822 = vmatprep.subr.mxu0 0.0
    %1823 = vmatpush1.msra.mxu0 0.0
    %1824 = vmatprep.subr.mxu0 0.0
    %1825 = vmatpush1.msra.mxu0 0.0
    %1826 = vmatprep.subr.mxu0 0.0
    %1827 = vmatpush1.msra.mxu0 0.0
    %1828 = vmatprep.subr.mxu0 0.0
    %1829 = vmatpush1.msra.mxu0 0.0
    %1830 = vmatprep.subr.mxu0 0.0
    %1831 = vmatpush1.msra.mxu0 0.0
    %1832 = vmatprep.subr.mxu0 0.0
    %1833 = vmatpush1.msra.mxu0 0.0
    %1834 = vmatprep.subr.mxu0 0.0
    %1835 = vmatpush1.msra.mxu0 0.0
    %1836 = vmatprep.subr.mxu0 0.0
    %1837 = vmatpush1.msra.mxu0 0.0
    %1838 = vmatprep.subr.mxu0 0.0
    %1839 = vmatpush1.msra.mxu0 %v1714
    %1840 = vmatprep.subr.mxu0 0.0
    %1841 = vmatpush2.msra.mxu0 0.0
    %1842 = vmatprep.subr.mxu0 0.0
    %1843 = vmatpush2.msra.mxu0 0.0
    %1844 = vmatprep.subr.mxu0 0.0
    %1845 = vmatpush2.msra.mxu0 0.0
    %1846 = vmatprep.subr.mxu0 0.0
    %1847 = vmatpush2.msra.mxu0 0.0
    %1848 = vmatprep.subr.mxu0 0.0
    %1849 = vmatpush2.msra.mxu0 0.0
    %1850 = vmatprep.subr.mxu0 0.0
    %1851 = vmatpush2.msra.mxu0 0.0
    %1852 = vmatprep.subr.mxu0 0.0
    %1853 = vmatpush2.msra.mxu0 0.0
    %1854 = vmatprep.subr.mxu0 0.0
    %1855 = vmatpush2.msra.mxu0 0.0
    %1856 = vmatprep.subr.mxu0 0.0
    %1857 = vmatpush2.msra.mxu0 0.0
    %1858 = vmatprep.subr.mxu0 0.0
    %1859 = vmatpush2.msra.mxu0 0.0
    %1860 = vmatprep.subr.mxu0 0.0
    %1861 = vmatpush2.msra.mxu0 0.0
    %1862 = vmatprep.subr.mxu0 0.0
    %1863 = vmatpush2.msra.mxu0 0.0
    %1864 = vmatprep.subr.mxu0 0.0
    %1865 = vmatpush2.msra.mxu0 0.0
    %1866 = vmatprep.subr.mxu0 0.0
    %1867 = vmatpush2.msra.mxu0 0.0
    %1868 = vmatprep.subr.mxu0 0.0
    %1869 = vmatpush2.msra.mxu0 0.0
    %1870 = vmatprep.subr.mxu0 0.0
    %1871 = vmatpush2.msra.mxu0 0.0
    %1872 = vmatprep.mubr.f32.mxu0 0.0
    %1873 = vmatmul.mubr.f32.gmra.mxu0 %v1806
    %v1874 = vpop.f32.mrf.mxu0
    %v1875 = vadd.f32 0.0, %v1874
    %v1876 = vpop.f32.mrf.mxu0
    %1877 = vdwg.mxu0
    %v1878 = vld [vmem:[#allocation101] sm:$0xff]
    %v1879 = vld [vmem:[#allocation101 + $0x8] sm:$0xff]
    %v1880 = vld [vmem:[#allocation101 + $0x10] sm:$0xff]
    %v1881 = vld [vmem:[#allocation101 + $0x18] sm:$0xff]
    %v1882 = vld [vmem:[#allocation97] sm:$0x1]
    %v1884 = vlaneseq
    %v1885 = vshrl.u32 %v1884, 7
    %v1886 = vsub.s32 0, %v1885
    %v1887 = vrot.slane %v1882, %v1886
    %v1890 = vsel %vm1481, %v1875, 0
    %1892 = vmatprep.subr.mxu0 0.0
    %1893 = vmatpush1.msra.mxu0 0.0
    %1894 = vmatprep.subr.mxu0 0.0
    %1895 = vmatpush1.msra.mxu0 0.0
    %1896 = vmatprep.subr.mxu0 0.0
    %1897 = vmatpush1.msra.mxu0 0.0
    %1898 = vmatprep.subr.mxu0 0.0
    %1899 = vmatpush1.msra.mxu0 0.0
    %1900 = vmatprep.subr.mxu0 0.0
    %1901 = vmatpush1.msra.mxu0 0.0
    %1902 = vmatprep.subr.mxu0 0.0
    %1903 = vmatpush1.msra.mxu0 0.0
    %1904 = vmatprep.subr.mxu0 0.0
    %1905 = vmatpush1.msra.mxu0 0.0
    %1906 = vmatprep.subr.mxu0 0.0
    %1907 = vmatpush1.msra.mxu0 0.0
    %1908 = vmatprep.subr.mxu0 0.0
    %1909 = vmatpush1.msra.mxu0 0.0
    %1910 = vmatprep.subr.mxu0 0.0
    %1911 = vmatpush1.msra.mxu0 0.0
    %1912 = vmatprep.subr.mxu0 0.0
    %1913 = vmatpush1.msra.mxu0 0.0
    %1914 = vmatprep.subr.mxu0 0.0
    %1915 = vmatpush1.msra.mxu0 0.0
    %1916 = vmatprep.subr.mxu0 0.0
    %1917 = vmatpush1.msra.mxu0 %v1881
    %1918 = vmatprep.subr.mxu0 0.0
    %1919 = vmatpush1.msra.mxu0 %v1880
    %1920 = vmatprep.subr.mxu0 0.0
    %1921 = vmatpush1.msra.mxu0 %v1879
    %1922 = vmatprep.subr.mxu0 0.0
    %1923 = vmatpush1.msra.mxu0 %v1878
    %1924 = vmatprep.subr.mxu0 0.0
    %1925 = vmatpush2.msra.mxu0 0.0
    %1926 = vmatprep.subr.mxu0 0.0
    %1927 = vmatpush2.msra.mxu0 0.0
    %1928 = vmatprep.subr.mxu0 0.0
    %1929 = vmatpush2.msra.mxu0 0.0
    %1930 = vmatprep.subr.mxu0 0.0
    %1931 = vmatpush2.msra.mxu0 0.0
    %1932 = vmatprep.subr.mxu0 0.0
    %1933 = vmatpush2.msra.mxu0 0.0
    %1934 = vmatprep.subr.mxu0 0.0
    %1935 = vmatpush2.msra.mxu0 0.0
    %1936 = vmatprep.subr.mxu0 0.0
    %1937 = vmatpush2.msra.mxu0 0.0
    %1938 = vmatprep.subr.mxu0 0.0
    %1939 = vmatpush2.msra.mxu0 0.0
    %1940 = vmatprep.subr.mxu0 0.0
    %1941 = vmatpush2.msra.mxu0 0.0
    %1942 = vmatprep.subr.mxu0 0.0
    %1943 = vmatpush2.msra.mxu0 0.0
    %1944 = vmatprep.subr.mxu0 0.0
    %1945 = vmatpush2.msra.mxu0 0.0
    %1946 = vmatprep.subr.mxu0 0.0
    %1947 = vmatpush2.msra.mxu0 0.0
    %1948 = vmatprep.subr.mxu0 0.0
    %1949 = vmatpush2.msra.mxu0 0.0
    %1950 = vmatprep.subr.mxu0 0.0
    %1951 = vmatpush2.msra.mxu0 0.0
    %1952 = vmatprep.subr.mxu0 0.0
    %1953 = vmatpush2.msra.mxu0 0.0
    %1954 = vmatprep.subr.mxu0 0.0
    %1955 = vmatpush2.msra.mxu0 0.0
    %1956 = vmatprep.mubr.f32.mxu0 0.0
    %1957 = vmatmul.mubr.f32.gmra.mxu0 %v1890
    %v1958 = vpop.f32.mrf.mxu0
    %v1959 = vadd.f32 %v1887, %v1958
    %v1960 = vpop.f32.mrf.mxu0
    %1961 = vdwg.mxu0
    %v1962 = vadd.f32 %v1387, %v1959
    %v1963 = vld [vmem:[#allocation91] sm:$0x1]
    %v1964 = vld [vmem:[#allocation89] sm:$0x1]
    %v1965 = vsel %vm1481, %v1962, 0.0
    %1966 = vadd.xlane.f32.xlu0 %v1965
    %v1967 = vpop.xlane.xlu0 %1966
    %v1968 = vrcp.pop 32.0
    %v1969 = vmul.f32 %v1967, %v1968
    %v1970 = vsub.f32 %v1962, %v1969
    %v1971 = vmul.f32 %v1970, %v1970
    %v1972 = vsel %vm1481, %v1971, 0.0
    %1973 = vadd.xlane.f32.xlu0 %v1972
    %v1974 = vpop.xlane.xlu0 %1973
    %v1975 = vmul.f32 %v1974, %v1968
    %v1976 = vadd.f32 %v1975, 1e-05
    %v1977 = vrsqrt.pop %v1976
    %v1978 = vmul.f32 %v1970, %v1977
    %v1980 = vlaneseq
    %v1981 = vshrl.u32 %v1980, 7
    %v1982 = vsub.s32 0, %v1981
    %v1983 = vrot.slane %v1963, %v1982
    %v1985 = vmul.f32 %v1978, %v1983
    %v1987 = vlaneseq
    %v1988 = vshrl.u32 %v1987, 7
    %v1989 = vsub.s32 0, %v1988
    %v1990 = vrot.slane %v1964, %v1989
    %v1992 = vadd.f32 %v1985, %v1990
    %v1993 = vld [vmem:[#allocation85] sm:$0xff]
    %v1994 = vld [vmem:[#allocation85 + $0x8] sm:$0xff]
    %v1995 = vld [vmem:[#allocation85 + $0x10] sm:$0xff]
    %v1996 = vld [vmem:[#allocation85 + $0x18] sm:$0xff]
    %v1997 = vld [vmem:[#allocation83] sm:$0x1]
    %v1999 = vlaneseq
    %v2000 = vshrl.u32 %v1999, 7
    %v2001 = vsub.s32 0, %v2000
    %v2002 = vrot.slane %v1997, %v2001
    %v2005 = vsel %vm1481, %v1992, 0
    %2007 = vmatprep.subr.mxu0 0.0
    %2008 = vmatpush1.msra.mxu0 0.0
    %2009 = vmatprep.subr.mxu0 0.0
    %2010 = vmatpush1.msra.mxu0 0.0
    %2011 = vmatprep.subr.mxu0 0.0
    %2012 = vmatpush1.msra.mxu0 0.0
    %2013 = vmatprep.subr.mxu0 0.0
    %2014 = vmatpush1.msra.mxu0 0.0
    %2015 = vmatprep.subr.mxu0 0.0
    %2016 = vmatpush1.msra.mxu0 0.0
    %2017 = vmatprep.subr.mxu0 0.0
    %2018 = vmatpush1.msra.mxu0 0.0
    %2019 = vmatprep.subr.mxu0 0.0
    %2020 = vmatpush1.msra.mxu0 0.0
    %2021 = vmatprep.subr.mxu0 0.0
    %2022 = vmatpush1.msra.mxu0 0.0
    %2023 = vmatprep.subr.mxu0 0.0
    %2024 = vmatpush1.msra.mxu0 0.0
    %2025 = vmatprep.subr.mxu0 0.0
    %2026 = vmatpush1.msra.mxu0 0.0
    %2027 = vmatprep.subr.mxu0 0.0
    %2028 = vmatpush1.msra.mxu0 0.0
    %2029 = vmatprep.subr.mxu0 0.0
    %2030 = vmatpush1.msra.mxu0 0.0
    %2031 = vmatprep.subr.mxu0 0.0
    %2032 = vmatpush1.msra.mxu0 %v1996
    %2033 = vmatprep.subr.mxu0 0.0
    %2034 = vmatpush1.msra.mxu0 %v1995
    %2035 = vmatprep.subr.mxu0 0.0
    %2036 = vmatpush1.msra.mxu0 %v1994
    %2037 = vmatprep.subr.mxu0 0.0
    %2038 = vmatpush1.msra.mxu0 %v1993
    %2039 = vmatprep.subr.mxu0 0.0
    %2040 = vmatpush2.msra.mxu0 0.0
    %2041 = vmatprep.subr.mxu0 0.0
    %2042 = vmatpush2.msra.mxu0 0.0
    %2043 = vmatprep.subr.mxu0 0.0
    %2044 = vmatpush2.msra.mxu0 0.0
    %2045 = vmatprep.subr.mxu0 0.0
    %2046 = vmatpush2.msra.mxu0 0.0
    %2047 = vmatprep.subr.mxu0 0.0
    %2048 = vmatpush2.msra.mxu0 0.0
    %2049 = vmatprep.subr.mxu0 0.0
    %2050 = vmatpush2.msra.mxu0 0.0
    %2051 = vmatprep.subr.mxu0 0.0
    %2052 = vmatpush2.msra.mxu0 0.0
    %2053 = vmatprep.subr.mxu0 0.0
    %2054 = vmatpush2.msra.mxu0 0.0
    %2055 = vmatprep.subr.mxu0 0.0
    %2056 = vmatpush2.msra.mxu0 0.0
    %2057 = vmatprep.subr.mxu0 0.0
    %2058 = vmatpush2.msra.mxu0 0.0
    %2059 = vmatprep.subr.mxu0 0.0
    %2060 = vmatpush2.msra.mxu0 0.0
    %2061 = vmatprep.subr.mxu0 0.0
    %2062 = vmatpush2.msra.mxu0 0.0
    %2063 = vmatprep.subr.mxu0 0.0
    %2064 = vmatpush2.msra.mxu0 0.0
    %2065 = vmatprep.subr.mxu0 0.0
    %2066 = vmatpush2.msra.mxu0 0.0
    %2067 = vmatprep.subr.mxu0 0.0
    %2068 = vmatpush2.msra.mxu0 0.0
    %2069 = vmatprep.subr.mxu0 0.0
    %2070 = vmatpush2.msra.mxu0 0.0
    %2071 = vmatprep.mubr.f32.mxu0 0.0
    %2072 = vmatmul.mubr.f32.gmra.mxu0 %v2005
    %v2073 = vpop.f32.mrf.mxu0
    %v2074 = vadd.f32 %v2002, %v2073
    %v2075 = vpop.f32.mrf.mxu0
    %2076 = vdwg.mxu0
    %v2077 = vmax.f32 %v2074, 0.0
    %v2078 = vld [vmem:[#allocation88] sm:$0xff]
    %v2079 = vld [vmem:[#allocation88 + $0x8] sm:$0xff]
    %v2080 = vld [vmem:[#allocation88 + $0x10] sm:$0xff]
    %v2081 = vld [vmem:[#allocation88 + $0x18] sm:$0xff]
    %v2082 = vld [vmem:[#allocation86] sm:$0x1]
    %v2084 = vlaneseq
    %v2085 = vshrl.u32 %v2084, 7
    %v2086 = vsub.s32 0, %v2085
    %v2087 = vrot.slane %v2082, %v2086
    %v2090 = vsel %vm1481, %v2077, 0
    %2092 = vmatprep.subr.mxu0 0.0
    %2093 = vmatpush1.msra.mxu0 0.0
    %2094 = vmatprep.subr.mxu0 0.0
    %2095 = vmatpush1.msra.mxu0 0.0
    %2096 = vmatprep.subr.mxu0 0.0
    %2097 = vmatpush1.msra.mxu0 0.0
    %2098 = vmatprep.subr.mxu0 0.0
    %2099 = vmatpush1.msra.mxu0 0.0
    %2100 = vmatprep.subr.mxu0 0.0
    %2101 = vmatpush1.msra.mxu0 0.0
    %2102 = vmatprep.subr.mxu0 0.0
    %2103 = vmatpush1.msra.mxu0 0.0
    %2104 = vmatprep.subr.mxu0 0.0
    %2105 = vmatpush1.msra.mxu0 0.0
    %2106 = vmatprep.subr.mxu0 0.0
    %2107 = vmatpush1.msra.mxu0 0.0
    %2108 = vmatprep.subr.mxu0 0.0
    %2109 = vmatpush1.msra.mxu0 0.0
    %2110 = vmatprep.subr.mxu0 0.0
    %2111 = vmatpush1.msra.mxu0 0.0
    %2112 = vmatprep.subr.mxu0 0.0
    %2113 = vmatpush1.msra.mxu0 0.0
    %2114 = vmatprep.subr.mxu0 0.0
    %2115 = vmatpush1.msra.mxu0 0.0
    %2116 = vmatprep.subr.mxu0 0.0
    %2117 = vmatpush1.msra.mxu0 %v2081
    %2118 = vmatprep.subr.mxu0 0.0
    %2119 = vmatpush1.msra.mxu0 %v2080
    %2120 = vmatprep.subr.mxu0 0.0
    %2121 = vmatpush1.msra.mxu0 %v2079
    %2122 = vmatprep.subr.mxu0 0.0
    %2123 = vmatpush1.msra.mxu0 %v2078
    %2124 = vmatprep.subr.mxu0 0.0
    %2125 = vmatpush2.msra.mxu0 0.0
    %2126 = vmatprep.subr.mxu0 0.0
    %2127 = vmatpush2.msra.mxu0 0.0
    %2128 = vmatprep.subr.mxu0 0.0
    %2129 = vmatpush2.msra.mxu0 0.0
    %2130 = vmatprep.subr.mxu0 0.0
    %2131 = vmatpush2.msra.mxu0 0.0
    %2132 = vmatprep.subr.mxu0 0.0
    %2133 = vmatpush2.msra.mxu0 0.0
    %2134 = vmatprep.subr.mxu0 0.0
    %2135 = vmatpush2.msra.mxu0 0.0
    %2136 = vmatprep.subr.mxu0 0.0
    %2137 = vmatpush2.msra.mxu0 0.0
    %2138 = vmatprep.subr.mxu0 0.0
    %2139 = vmatpush2.msra.mxu0 0.0
    %2140 = vmatprep.subr.mxu0 0.0
    %2141 = vmatpush2.msra.mxu0 0.0
    %2142 = vmatprep.subr.mxu0 0.0
    %2143 = vmatpush2.msra.mxu0 0.0
    %2144 = vmatprep.subr.mxu0 0.0
    %2145 = vmatpush2.msra.mxu0 0.0
    %2146 = vmatprep.subr.mxu0 0.0
    %2147 = vmatpush2.msra.mxu0 0.0
    %2148 = vmatprep.subr.mxu0 0.0
    %2149 = vmatpush2.msra.mxu0 0.0
    %2150 = vmatprep.subr.mxu0 0.0
    %2151 = vmatpush2.msra.mxu0 0.0
    %2152 = vmatprep.subr.mxu0 0.0
    %2153 = vmatpush2.msra.mxu0 0.0
    %2154 = vmatprep.subr.mxu0 0.0
    %2155 = vmatpush2.msra.mxu0 0.0
    %2156 = vmatprep.mubr.f32.mxu0 0.0
    %2157 = vmatmul.mubr.f32.gmra.mxu0 %v2090
    %v2158 = vpop.f32.mrf.mxu0
    %v2159 = vadd.f32 %v2087, %v2158
    %v2160 = vpop.f32.mrf.mxu0
    %2161 = vdwg.mxu0
    %v2162 = vadd.f32 %v1992, %v2159
    %v2163 = vld [vmem:[#allocation94] sm:$0x1]
    %v2164 = vld [vmem:[#allocation92] sm:$0x1]
    %v2165 = vsel %vm1481, %v2162, 0.0
    %2166 = vadd.xlane.f32.xlu0 %v2165
    %v2167 = vpop.xlane.xlu0 %2166
    %v2168 = vmul.f32 %v2167, %v1968
    %v2169 = vsub.f32 %v2162, %v2168
    %v2170 = vmul.f32 %v2169, %v2169
    %v2171 = vsel %vm1481, %v2170, 0.0
    %2172 = vadd.xlane.f32.xlu0 %v2171
    %v2173 = vpop.xlane.xlu0 %2172
    %v2174 = vmul.f32 %v2173, %v1968
    %v2175 = vadd.f32 %v2174, 1e-05
    %v2176 = vrsqrt.pop %v2175
    %v2177 = vmul.f32 %v2169, %v2176
    %v2179 = vlaneseq
    %v2180 = vshrl.u32 %v2179, 7
    %v2181 = vsub.s32 0, %v2180
    %v2182 = vrot.slane %v2163, %v2181
    %v2184 = vmul.f32 %v2177, %v2182
    %v2186 = vlaneseq
    %v2187 = vshrl.u32 %v2186, 7
    %v2188 = vsub.s32 0, %v2187
    %v2189 = vrot.slane %v2164, %v2188
    %v2191 = vadd.f32 %v2184, %v2189
    %v2192 = vld [vmem:[#allocation122] sm:$0xff]
    %v2193 = vld [vmem:[#allocation122 + $0x8] sm:$0xff]
    %v2194 = vld [vmem:[#allocation122 + $0x10] sm:$0xff]
    %v2195 = vld [vmem:[#allocation122 + $0x18] sm:$0xff]
    %v2196 = vld [vmem:[%s167] sm:$0x1]
    %v2198 = vlaneseq
    %v2199 = vshrl.u32 %v2198, 7
    %v2200 = vsub.s32 0, %v2199
    %v2201 = vrot.slane %v2196, %v2200
    %v2204 = vsel %vm1481, %v2191, 0
    %2206 = vmatprep.subr.mxu0 0.0
    %2207 = vmatpush1.msra.mxu0 0.0
    %2208 = vmatprep.subr.mxu0 0.0
    %2209 = vmatpush1.msra.mxu0 0.0
    %2210 = vmatprep.subr.mxu0 0.0
    %2211 = vmatpush1.msra.mxu0 0.0
    %2212 = vmatprep.subr.mxu0 0.0
    %2213 = vmatpush1.msra.mxu0 0.0
    %2214 = vmatprep.subr.mxu0 0.0
    %2215 = vmatpush1.msra.mxu0 0.0
    %2216 = vmatprep.subr.mxu0 0.0
    %2217 = vmatpush1.msra.mxu0 0.0
    %2218 = vmatprep.subr.mxu0 0.0
    %2219 = vmatpush1.msra.mxu0 0.0
    %2220 = vmatprep.subr.mxu0 0.0
    %2221 = vmatpush1.msra.mxu0 0.0
    %2222 = vmatprep.subr.mxu0 0.0
    %2223 = vmatpush1.msra.mxu0 0.0
    %2224 = vmatprep.subr.mxu0 0.0
    %2225 = vmatpush1.msra.mxu0 0.0
    %2226 = vmatprep.subr.mxu0 0.0
    %2227 = vmatpush1.msra.mxu0 0.0
    %2228 = vmatprep.subr.mxu0 0.0
    %2229 = vmatpush1.msra.mxu0 0.0
    %2230 = vmatprep.subr.mxu0 0.0
    %2231 = vmatpush1.msra.mxu0 %v2195
    %2232 = vmatprep.subr.mxu0 0.0
    %2233 = vmatpush1.msra.mxu0 %v2194
    %2234 = vmatprep.subr.mxu0 0.0
    %2235 = vmatpush1.msra.mxu0 %v2193
    %2236 = vmatprep.subr.mxu0 0.0
    %2237 = vmatpush1.msra.mxu0 %v2192
    %2238 = vmatprep.subr.mxu0 0.0
    %2239 = vmatpush2.msra.mxu0 0.0
    %2240 = vmatprep.subr.mxu0 0.0
    %2241 = vmatpush2.msra.mxu0 0.0
    %2242 = vmatprep.subr.mxu0 0.0
    %2243 = vmatpush2.msra.mxu0 0.0
    %2244 = vmatprep.subr.mxu0 0.0
    %2245 = vmatpush2.msra.mxu0 0.0
    %2246 = vmatprep.subr.mxu0 0.0
    %2247 = vmatpush2.msra.mxu0 0.0
    %2248 = vmatprep.subr.mxu0 0.0
    %2249 = vmatpush2.msra.mxu0 0.0
    %2250 = vmatprep.subr.mxu0 0.0
    %2251 = vmatpush2.msra.mxu0 0.0
    %2252 = vmatprep.subr.mxu0 0.0
    %2253 = vmatpush2.msra.mxu0 0.0
    %2254 = vmatprep.subr.mxu0 0.0
    %2255 = vmatpush2.msra.mxu0 0.0
    %2256 = vmatprep.subr.mxu0 0.0
    %2257 = vmatpush2.msra.mxu0 0.0
    %2258 = vmatprep.subr.mxu0 0.0
    %2259 = vmatpush2.msra.mxu0 0.0
    %2260 = vmatprep.subr.mxu0 0.0
    %2261 = vmatpush2.msra.mxu0 0.0
    %2262 = vmatprep.subr.mxu0 0.0
    %2263 = vmatpush2.msra.mxu0 0.0
    %2264 = vmatprep.subr.mxu0 0.0
    %2265 = vmatpush2.msra.mxu0 0.0
    %2266 = vmatprep.subr.mxu0 0.0
    %2267 = vmatpush2.msra.mxu0 0.0
    %2268 = vmatprep.subr.mxu0 0.0
    %2269 = vmatpush2.msra.mxu0 0.0
    %2270 = vmatprep.mubr.f32.mxu0 0.0
    %2271 = vmatmul.mubr.f32.gmra.mxu0 %v2204
    %v2272 = vpop.f32.mrf.mxu0
    %v2273 = vadd.f32 %v2201, %v2272
    %v2274 = vpop.f32.mrf.mxu0
    %2275 = vdwg.mxu0
    %v2276 = vld [vmem:[%s171] sm:$0xff]
    %v2277 = vld [vmem:[%s171 + $0x8] sm:$0xff]
    %v2278 = vld [vmem:[%s171 + $0x10] sm:$0xff]
    %v2279 = vld [vmem:[%s171 + $0x18] sm:$0xff]
    %v2280 = vld [vmem:[#allocation118] sm:$0x1]
    %v2282 = vlaneseq
    %v2283 = vshrl.u32 %v2282, 7
    %v2284 = vsub.s32 0, %v2283
    %v2285 = vrot.slane %v2280, %v2284
    %2287 = vmatprep.subr.mxu0 0.0
    %2288 = vmatpush1.msra.mxu0 0.0
    %2289 = vmatprep.subr.mxu0 0.0
    %2290 = vmatpush1.msra.mxu0 0.0
    %2291 = vmatprep.subr.mxu0 0.0
    %2292 = vmatpush1.msra.mxu0 0.0
    %2293 = vmatprep.subr.mxu0 0.0
    %2294 = vmatpush1.msra.mxu0 0.0
    %2295 = vmatprep.subr.mxu0 0.0
    %2296 = vmatpush1.msra.mxu0 0.0
    %2297 = vmatprep.subr.mxu0 0.0
    %2298 = vmatpush1.msra.mxu0 0.0
    %2299 = vmatprep.subr.mxu0 0.0
    %2300 = vmatpush1.msra.mxu0 0.0
    %2301 = vmatprep.subr.mxu0 0.0
    %2302 = vmatpush1.msra.mxu0 0.0
    %2303 = vmatprep.subr.mxu0 0.0
    %2304 = vmatpush1.msra.mxu0 0.0
    %2305 = vmatprep.subr.mxu0 0.0
    %2306 = vmatpush1.msra.mxu0 0.0
    %2307 = vmatprep.subr.mxu0 0.0
    %2308 = vmatpush1.msra.mxu0 0.0
    %2309 = vmatprep.subr.mxu0 0.0
    %2310 = vmatpush1.msra.mxu0 0.0
    %2311 = vmatprep.subr.mxu0 0.0
    %2312 = vmatpush1.msra.mxu0 %v2279
    %2313 = vmatprep.subr.mxu0 0.0
    %2314 = vmatpush1.msra.mxu0 %v2278
    %2315 = vmatprep.subr.mxu0 0.0
    %2316 = vmatpush1.msra.mxu0 %v2277
    %2317 = vmatprep.subr.mxu0 0.0
    %2318 = vmatpush1.msra.mxu0 %v2276
    %2319 = vmatprep.subr.mxu0 0.0
    %2320 = vmatpush2.msra.mxu0 0.0
    %2321 = vmatprep.subr.mxu0 0.0
    %2322 = vmatpush2.msra.mxu0 0.0
    %2323 = vmatprep.subr.mxu0 0.0
    %2324 = vmatpush2.msra.mxu0 0.0
    %2325 = vmatprep.subr.mxu0 0.0
    %2326 = vmatpush2.msra.mxu0 0.0
    %2327 = vmatprep.subr.mxu0 0.0
    %2328 = vmatpush2.msra.mxu0 0.0
    %2329 = vmatprep.subr.mxu0 0.0
    %2330 = vmatpush2.msra.mxu0 0.0
    %2331 = vmatprep.subr.mxu0 0.0
    %2332 = vmatpush2.msra.mxu0 0.0
    %2333 = vmatprep.subr.mxu0 0.0
    %2334 = vmatpush2.msra.mxu0 0.0
    %2335 = vmatprep.subr.mxu0 0.0
    %2336 = vmatpush2.msra.mxu0 0.0
    %2337 = vmatprep.subr.mxu0 0.0
    %2338 = vmatpush2.msra.mxu0 0.0
    %2339 = vmatprep.subr.mxu0 0.0
    %2340 = vmatpush2.msra.mxu0 0.0
    %2341 = vmatprep.subr.mxu0 0.0
    %2342 = vmatpush2.msra.mxu0 0.0
    %2343 = vmatprep.subr.mxu0 0.0
    %2344 = vmatpush2.msra.mxu0 0.0
    %2345 = vmatprep.subr.mxu0 0.0
    %2346 = vmatpush2.msra.mxu0 0.0
    %2347 = vmatprep.subr.mxu0 0.0
    %2348 = vmatpush2.msra.mxu0 0.0
    %2349 = vmatprep.subr.mxu0 0.0
    %2350 = vmatpush2.msra.mxu0 0.0
    %2351 = vmatprep.mubr.f32.mxu0 0.0
    %2352 = vmatmul.mubr.f32.gmra.mxu0 %v2204
    %v2353 = vpop.f32.mrf.mxu0
    %v2354 = vadd.f32 %v2285, %v2353
    %v2355 = vpop.f32.mrf.mxu0
    %2356 = vdwg.mxu0
    %v2357 = vld [vmem:[#allocation124] sm:$0xff]
    %v2358 = vld [vmem:[#allocation124 + $0x8] sm:$0xff]
    %v2359 = vld [vmem:[#allocation124 + $0x10] sm:$0xff]
    %v2360 = vld [vmem:[#allocation124 + $0x18] sm:$0xff]
    %v2361 = vld [vmem:[%s169] sm:$0x1]
    %v2363 = vlaneseq
    %v2364 = vshrl.u32 %v2363, 7
    %v2365 = vsub.s32 0, %v2364
    %v2366 = vrot.slane %v2361, %v2365
    %2368 = vmatprep.subr.mxu0 0.0
    %2369 = vmatpush1.msra.mxu0 0.0
    %2370 = vmatprep.subr.mxu0 0.0
    %2371 = vmatpush1.msra.mxu0 0.0
    %2372 = vmatprep.subr.mxu0 0.0
    %2373 = vmatpush1.msra.mxu0 0.0
    %2374 = vmatprep.subr.mxu0 0.0
    %2375 = vmatpush1.msra.mxu0 0.0
    %2376 = vmatprep.subr.mxu0 0.0
    %2377 = vmatpush1.msra.mxu0 0.0
    %2378 = vmatprep.subr.mxu0 0.0
    %2379 = vmatpush1.msra.mxu0 0.0
    %2380 = vmatprep.subr.mxu0 0.0
    %2381 = vmatpush1.msra.mxu0 0.0
    %2382 = vmatprep.subr.mxu0 0.0
    %2383 = vmatpush1.msra.mxu0 0.0
    %2384 = vmatprep.subr.mxu0 0.0
    %2385 = vmatpush1.msra.mxu0 0.0
    %2386 = vmatprep.subr.mxu0 0.0
    %2387 = vmatpush1.msra.mxu0 0.0
    %2388 = vmatprep.subr.mxu0 0.0
    %2389 = vmatpush1.msra.mxu0 0.0
    %2390 = vmatprep.subr.mxu0 0.0
    %2391 = vmatpush1.msra.mxu0 0.0
    %2392 = vmatprep.subr.mxu0 0.0
    %2393 = vmatpush1.msra.mxu0 %v2360
    %2394 = vmatprep.subr.mxu0 0.0
    %2395 = vmatpush1.msra.mxu0 %v2359
    %2396 = vmatprep.subr.mxu0 0.0
    %2397 = vmatpush1.msra.mxu0 %v2358
    %2398 = vmatprep.subr.mxu0 0.0
    %2399 = vmatpush1.msra.mxu0 %v2357
    %2400 = vmatprep.subr.mxu0 0.0
    %2401 = vmatpush2.msra.mxu0 0.0
    %2402 = vmatprep.subr.mxu0 0.0
    %2403 = vmatpush2.msra.mxu0 0.0
    %2404 = vmatprep.subr.mxu0 0.0
    %2405 = vmatpush2.msra.mxu0 0.0
    %2406 = vmatprep.subr.mxu0 0.0
    %2407 = vmatpush2.msra.mxu0 0.0
    %2408 = vmatprep.subr.mxu0 0.0
    %2409 = vmatpush2.msra.mxu0 0.0
    %2410 = vmatprep.subr.mxu0 0.0
    %2411 = vmatpush2.msra.mxu0 0.0
    %2412 = vmatprep.subr.mxu0 0.0
    %2413 = vmatpush2.msra.mxu0 0.0
    %2414 = vmatprep.subr.mxu0 0.0
    %2415 = vmatpush2.msra.mxu0 0.0
    %2416 = vmatprep.subr.mxu0 0.0
    %2417 = vmatpush2.msra.mxu0 0.0
    %2418 = vmatprep.subr.mxu0 0.0
    %2419 = vmatpush2.msra.mxu0 0.0
    %2420 = vmatprep.subr.mxu0 0.0
    %2421 = vmatpush2.msra.mxu0 0.0
    %2422 = vmatprep.subr.mxu0 0.0
    %2423 = vmatpush2.msra.mxu0 0.0
    %2424 = vmatprep.subr.mxu0 0.0
    %2425 = vmatpush2.msra.mxu0 0.0
    %2426 = vmatprep.subr.mxu0 0.0
    %2427 = vmatpush2.msra.mxu0 0.0
    %2428 = vmatprep.subr.mxu0 0.0
    %2429 = vmatpush2.msra.mxu0 0.0
    %2430 = vmatprep.subr.mxu0 0.0
    %2431 = vmatpush2.msra.mxu0 0.0
    %2432 = vmatprep.mubr.f32.mxu0 0.0
    %2433 = vmatmul.mubr.f32.gmra.mxu0 %v2204
    %v2434 = vpop.f32.mrf.mxu0
    %v2435 = vadd.f32 %v2366, %v2434
    %v2436 = vpop.f32.mrf.mxu0
    %2437 = vdwg.mxu0
    %v2439 = vsel %vm1481, %v2273, 0
    %v2442 = vsel %vm1481, %v2354, 0
    %2444 = vmatprep.subr.mxu0 0.0
    %2445 = vmatpush1.xpose.msra.mxu0 0.0
    %2446 = vmatprep.subr.mxu0 0.0
    %2447 = vmatpush1.xpose.msra.mxu0 0.0
    %2448 = vmatprep.subr.mxu0 0.0
    %2449 = vmatpush1.xpose.msra.mxu0 0.0
    %2450 = vmatprep.subr.mxu0 0.0
    %2451 = vmatpush1.xpose.msra.mxu0 0.0
    %2452 = vmatprep.subr.mxu0 0.0
    %2453 = vmatpush1.xpose.msra.mxu0 0.0
    %2454 = vmatprep.subr.mxu0 0.0
    %2455 = vmatpush1.xpose.msra.mxu0 0.0
    %2456 = vmatprep.subr.mxu0 0.0
    %2457 = vmatpush1.xpose.msra.mxu0 0.0
    %2458 = vmatprep.subr.mxu0 0.0
    %2459 = vmatpush1.xpose.msra.mxu0 0.0
    %2460 = vmatprep.subr.mxu0 0.0
    %2461 = vmatpush1.xpose.msra.mxu0 0.0
    %2462 = vmatprep.subr.mxu0 0.0
    %2463 = vmatpush1.xpose.msra.mxu0 0.0
    %2464 = vmatprep.subr.mxu0 0.0
    %2465 = vmatpush1.xpose.msra.mxu0 0.0
    %2466 = vmatprep.subr.mxu0 0.0
    %2467 = vmatpush1.xpose.msra.mxu0 0.0
    %2468 = vmatprep.subr.mxu0 0.0
    %2469 = vmatpush1.xpose.msra.mxu0 0.0
    %2470 = vmatprep.subr.mxu0 0.0
    %2471 = vmatpush1.xpose.msra.mxu0 0.0
    %2472 = vmatprep.subr.mxu0 0.0
    %2473 = vmatpush1.xpose.msra.mxu0 0.0
    %2474 = vmatprep.subr.mxu0 0.0
    %2475 = vmatpush1.xpose.msra.mxu0 %v2442
    %2476 = vmatprep.subr.mxu0 0.0
    %2477 = vmatpush2.xpose.msra.mxu0 0.0
    %2478 = vmatprep.subr.mxu0 0.0
    %2479 = vmatpush2.xpose.msra.mxu0 0.0
    %2480 = vmatprep.subr.mxu0 0.0
    %2481 = vmatpush2.xpose.msra.mxu0 0.0
    %2482 = vmatprep.subr.mxu0 0.0
    %2483 = vmatpush2.xpose.msra.mxu0 0.0
    %2484 = vmatprep.subr.mxu0 0.0
    %2485 = vmatpush2.xpose.msra.mxu0 0.0
    %2486 = vmatprep.subr.mxu0 0.0
    %2487 = vmatpush2.xpose.msra.mxu0 0.0
    %2488 = vmatprep.subr.mxu0 0.0
    %2489 = vmatpush2.xpose.msra.mxu0 0.0
    %2490 = vmatprep.subr.mxu0 0.0
    %2491 = vmatpush2.xpose.msra.mxu0 0.0
    %2492 = vmatprep.subr.mxu0 0.0
    %2493 = vmatpush2.xpose.msra.mxu0 0.0
    %2494 = vmatprep.subr.mxu0 0.0
    %2495 = vmatpush2.xpose.msra.mxu0 0.0
    %2496 = vmatprep.subr.mxu0 0.0
    %2497 = vmatpush2.xpose.msra.mxu0 0.0
    %2498 = vmatprep.subr.mxu0 0.0
    %2499 = vmatpush2.xpose.msra.mxu0 0.0
    %2500 = vmatprep.subr.mxu0 0.0
    %2501 = vmatpush2.xpose.msra.mxu0 0.0
    %2502 = vmatprep.subr.mxu0 0.0
    %2503 = vmatpush2.xpose.msra.mxu0 0.0
    %2504 = vmatprep.subr.mxu0 0.0
    %2505 = vmatpush2.xpose.msra.mxu0 0.0
    %2506 = vmatprep.subr.mxu0 0.0
    %2507 = vmatpush2.xpose.msra.mxu0 0.0
    %2508 = vmatprep.mubr.f32.mxu0 0.0
    %2509 = vmatmul.mubr.f32.gmra.mxu0 %v2439
    %v2510 = vpop.f32.mrf.mxu0
    %v2511 = vadd.f32 0.0, %v2510
    %v2512 = vpop.f32.mrf.mxu0
    %2513 = vdwg.mxu0
    %v2514 = vmul.f32 %v2511, 0.17677669
    %v2515 = vsel %vm1396, %v2514, -inf
    %2516 = vmax.xlane.f32.xlu0 %v2515
    %v2517 = vpop.xlane.xlu0 %2516
    %v2518 = vsub.f32 %v2514, %v2517
    %v2519 = vmul.f32 %v2518, 1.442695
    %v2520 = vpow.pop %v2519
    %v2521 = vsel %vm1396, %v2520, 0.0
    %2522 = vadd.xlane.f32.xlu0 %v2521
    %v2523 = vpop.xlane.xlu0 %2522
    %v2524 = vrcp.pop %v2523
    %v2525 = vmul.f32 %v2520, %v2524
    %v2527 = vsel %vm1396, %v2525, 0
    %2529 = vmatprep.subr.mxu0 0.0
    %2530 = vmatpush1.msra.mxu0 0.0
    %2531 = vmatprep.subr.mxu0 0.0
    %2532 = vmatpush1.msra.mxu0 0.0
    %2533 = vmatprep.subr.mxu0 0.0
    %2534 = vmatpush1.msra.mxu0 0.0
    %2535 = vmatprep.subr.mxu0 0.0
    %2536 = vmatpush1.msra.mxu0 0.0
    %2537 = vmatprep.subr.mxu0 0.0
    %2538 = vmatpush1.msra.mxu0 0.0
    %2539 = vmatprep.subr.mxu0 0.0
    %2540 = vmatpush1.msra.mxu0 0.0
    %2541 = vmatprep.subr.mxu0 0.0
    %2542 = vmatpush1.msra.mxu0 0.0
    %2543 = vmatprep.subr.mxu0 0.0
    %2544 = vmatpush1.msra.mxu0 0.0
    %2545 = vmatprep.subr.mxu0 0.0
    %2546 = vmatpush1.msra.mxu0 0.0
    %2547 = vmatprep.subr.mxu0 0.0
    %2548 = vmatpush1.msra.mxu0 0.0
    %2549 = vmatprep.subr.mxu0 0.0
    %2550 = vmatpush1.msra.mxu0 0.0
    %2551 = vmatprep.subr.mxu0 0.0
    %2552 = vmatpush1.msra.mxu0 0.0
    %2553 = vmatprep.subr.mxu0 0.0
    %2554 = vmatpush1.msra.mxu0 0.0
    %2555 = vmatprep.subr.mxu0 0.0
    %2556 = vmatpush1.msra.mxu0 0.0
    %2557 = vmatprep.subr.mxu0 0.0
    %2558 = vmatpush1.msra.mxu0 0.0
    %2559 = vmatprep.subr.mxu0 0.0
    %2560 = vmatpush1.msra.mxu0 %v2435
    %2561 = vmatprep.subr.mxu0 0.0
    %2562 = vmatpush2.msra.mxu0 0.0
    %2563 = vmatprep.subr.mxu0 0.0
    %2564 = vmatpush2.msra.mxu0 0.0
    %2565 = vmatprep.subr.mxu0 0.0
    %2566 = vmatpush2.msra.mxu0 0.0
    %2567 = vmatprep.subr.mxu0 0.0
    %2568 = vmatpush2.msra.mxu0 0.0
    %2569 = vmatprep.subr.mxu0 0.0
    %2570 = vmatpush2.msra.mxu0 0.0
    %2571 = vmatprep.subr.mxu0 0.0
    %2572 = vmatpush2.msra.mxu0 0.0
    %2573 = vmatprep.subr.mxu0 0.0
    %2574 = vmatpush2.msra.mxu0 0.0
    %2575 = vmatprep.subr.mxu0 0.0
    %2576 = vmatpush2.msra.mxu0 0.0
    %2577 = vmatprep.subr.mxu0 0.0
    %2578 = vmatpush2.msra.mxu0 0.0
    %2579 = vmatprep.subr.mxu0 0.0
    %2580 = vmatpush2.msra.mxu0 0.0
    %2581 = vmatprep.subr.mxu0 0.0
    %2582 = vmatpush2.msra.mxu0 0.0
    %2583 = vmatprep.subr.mxu0 0.0
    %2584 = vmatpush2.msra.mxu0 0.0
    %2585 = vmatprep.subr.mxu0 0.0
    %2586 = vmatpush2.msra.mxu0 0.0
    %2587 = vmatprep.subr.mxu0 0.0
    %2588 = vmatpush2.msra.mxu0 0.0
    %2589 = vmatprep.subr.mxu0 0.0
    %2590 = vmatpush2.msra.mxu0 0.0
    %2591 = vmatprep.subr.mxu0 0.0
    %2592 = vmatpush2.msra.mxu0 0.0
    %2593 = vmatprep.mubr.f32.mxu0 0.0
    %2594 = vmatmul.mubr.f32.gmra.mxu0 %v2527
    %v2595 = vpop.f32.mrf.mxu0
    %v2596 = vadd.f32 0.0, %v2595
    %v2597 = vpop.f32.mrf.mxu0
    %2598 = vdwg.mxu0
    %v2599 = vld [vmem:[#allocation121] sm:$0xff]
    %v2600 = vld [vmem:[#allocation121 + $0x8] sm:$0xff]
    %v2601 = vld [vmem:[#allocation121 + $0x10] sm:$0xff]
    %v2602 = vld [vmem:[#allocation121 + $0x18] sm:$0xff]
    %v2603 = vld [vmem:[#allocation119] sm:$0x1]
    %v2605 = vlaneseq
    %v2606 = vshrl.u32 %v2605, 7
    %v2607 = vsub.s32 0, %v2606
    %v2608 = vrot.slane %v2603, %v2607
    %v2611 = vsel %vm1481, %v2596, 0
    %2613 = vmatprep.subr.mxu0 0.0
    %2614 = vmatpush1.msra.mxu0 0.0
    %2615 = vmatprep.subr.mxu0 0.0
    %2616 = vmatpush1.msra.mxu0 0.0
    %2617 = vmatprep.subr.mxu0 0.0
    %2618 = vmatpush1.msra.mxu0 0.0
    %2619 = vmatprep.subr.mxu0 0.0
    %2620 = vmatpush1.msra.mxu0 0.0
    %2621 = vmatprep.subr.mxu0 0.0
    %2622 = vmatpush1.msra.mxu0 0.0
    %2623 = vmatprep.subr.mxu0 0.0
    %2624 = vmatpush1.msra.mxu0 0.0
    %2625 = vmatprep.subr.mxu0 0.0
    %2626 = vmatpush1.msra.mxu0 0.0
    %2627 = vmatprep.subr.mxu0 0.0
    %2628 = vmatpush1.msra.mxu0 0.0
    %2629 = vmatprep.subr.mxu0 0.0
    %2630 = vmatpush1.msra.mxu0 0.0
    %2631 = vmatprep.subr.mxu0 0.0
    %2632 = vmatpush1.msra.mxu0 0.0
    %2633 = vmatprep.subr.mxu0 0.0
    %2634 = vmatpush1.msra.mxu0 0.0
    %2635 = vmatprep.subr.mxu0 0.0
    %2636 = vmatpush1.msra.mxu0 0.0
    %2637 = vmatprep.subr.mxu0 0.0
    %2638 = vmatpush1.msra.mxu0 %v2602
    %2639 = vmatprep.subr.mxu0 0.0
    %2640 = vmatpush1.msra.mxu0 %v2601
    %2641 = vmatprep.subr.mxu0 0.0
    %2642 = vmatpush1.msra.mxu0 %v2600
    %2643 = vmatprep.subr.mxu0 0.0
    %2644 = vmatpush1.msra.mxu0 %v2599
    %2645 = vmatprep.subr.mxu0 0.0
    %2646 = vmatpush2.msra.mxu0 0.0
    %2647 = vmatprep.subr.mxu0 0.0
    %2648 = vmatpush2.msra.mxu0 0.0
    %2649 = vmatprep.subr.mxu0 0.0
    %2650 = vmatpush2.msra.mxu0 0.0
    %2651 = vmatprep.subr.mxu0 0.0
    %2652 = vmatpush2.msra.mxu0 0.0
    %2653 = vmatprep.subr.mxu0 0.0
    %2654 = vmatpush2.msra.mxu0 0.0
    %2655 = vmatprep.subr.mxu0 0.0
    %2656 = vmatpush2.msra.mxu0 0.0
    %2657 = vmatprep.subr.mxu0 0.0
    %2658 = vmatpush2.msra.mxu0 0.0
    %2659 = vmatprep.subr.mxu0 0.0
    %2660 = vmatpush2.msra.mxu0 0.0
    %2661 = vmatprep.subr.mxu0 0.0
    %2662 = vmatpush2.msra.mxu0 0.0
    %2663 = vmatprep.subr.mxu0 0.0
    %2664 = vmatpush2.msra.mxu0 0.0
    %2665 = vmatprep.subr.mxu0 0.0
    %2666 = vmatpush2.msra.mxu0 0.0
    %2667 = vmatprep.subr.mxu0 0.0
    %2668 = vmatpush2.msra.mxu0 0.0
    %2669 = vmatprep.subr.mxu0 0.0
    %2670 = vmatpush2.msra.mxu0 0.0
    %2671 = vmatprep.subr.mxu0 0.0
    %2672 = vmatpush2.msra.mxu0 0.0
    %2673 = vmatprep.subr.mxu0 0.0
    %2674 = vmatpush2.msra.mxu0 0.0
    %2675 = vmatprep.subr.mxu0 0.0
    %2676 = vmatpush2.msra.mxu0 0.0
    %2677 = vmatprep.mubr.f32.mxu0 0.0
    %2678 = vmatmul.mubr.f32.gmra.mxu0 %v2611
    %v2679 = vpop.f32.mrf.mxu0
    %v2680 = vadd.f32 %v2608, %v2679
    %v2681 = vpop.f32.mrf.mxu0
    %2682 = vdwg.mxu0
    %v2683 = vadd.f32 %v2191, %v2680
    %v2684 = vld [vmem:[#allocation113] sm:$0x1]
    %v2685 = vld [vmem:[#allocation112] sm:$0x1]
    %v2686 = vsel %vm1481, %v2683, 0.0
    %2687 = vadd.xlane.f32.xlu0 %v2686
    %v2688 = vpop.xlane.xlu0 %2687
    %v2689 = vmul.f32 %v2688, %v1968
    %v2690 = vsub.f32 %v2683, %v2689
    %v2691 = vmul.f32 %v2690, %v2690
    %v2692 = vsel %vm1481, %v2691, 0.0
    %2693 = vadd.xlane.f32.xlu0 %v2692
    %v2694 = vpop.xlane.xlu0 %2693
    %v2695 = vmul.f32 %v2694, %v1968
    %v2696 = vadd.f32 %v2695, 1e-05
    %v2697 = vrsqrt.pop %v2696
    %v2698 = vmul.f32 %v2690, %v2697
    %v2700 = vlaneseq
    %v2701 = vshrl.u32 %v2700, 7
    %v2702 = vsub.s32 0, %v2701
    %v2703 = vrot.slane %v2684, %v2702
    %v2705 = vmul.f32 %v2698, %v2703
    %v2707 = vlaneseq
    %v2708 = vshrl.u32 %v2707, 7
    %v2709 = vsub.s32 0, %v2708
    %v2710 = vrot.slane %v2685, %v2709
    %v2712 = vadd.f32 %v2705, %v2710
    %v2713 = vld [vmem:[#allocation107] sm:$0xff]
    %v2714 = vld [vmem:[#allocation107 + $0x8] sm:$0xff]
    %v2715 = vld [vmem:[#allocation107 + $0x10] sm:$0xff]
    %v2716 = vld [vmem:[#allocation107 + $0x18] sm:$0xff]
    %v2717 = vld [vmem:[#allocation106] sm:$0x1]
    %v2719 = vlaneseq
    %v2720 = vshrl.u32 %v2719, 7
    %v2721 = vsub.s32 0, %v2720
    %v2722 = vrot.slane %v2717, %v2721
    %v2725 = vsel %vm1481, %v2712, 0
    %2727 = vmatprep.subr.mxu0 0.0
    %2728 = vmatpush1.msra.mxu0 0.0
    %2729 = vmatprep.subr.mxu0 0.0
    %2730 = vmatpush1.msra.mxu0 0.0
    %2731 = vmatprep.subr.mxu0 0.0
    %2732 = vmatpush1.msra.mxu0 0.0
    %2733 = vmatprep.subr.mxu0 0.0
    %2734 = vmatpush1.msra.mxu0 0.0
    %2735 = vmatprep.subr.mxu0 0.0
    %2736 = vmatpush1.msra.mxu0 0.0
    %2737 = vmatprep.subr.mxu0 0.0
    %2738 = vmatpush1.msra.mxu0 0.0
    %2739 = vmatprep.subr.mxu0 0.0
    %2740 = vmatpush1.msra.mxu0 0.0
    %2741 = vmatprep.subr.mxu0 0.0
    %2742 = vmatpush1.msra.mxu0 0.0
    %2743 = vmatprep.subr.mxu0 0.0
    %2744 = vmatpush1.msra.mxu0 0.0
    %2745 = vmatprep.subr.mxu0 0.0
    %2746 = vmatpush1.msra.mxu0 0.0
    %2747 = vmatprep.subr.mxu0 0.0
    %2748 = vmatpush1.msra.mxu0 0.0
    %2749 = vmatprep.subr.mxu0 0.0
    %2750 = vmatpush1.msra.mxu0 0.0
    %2751 = vmatprep.subr.mxu0 0.0
    %2752 = vmatpush1.msra.mxu0 %v2716
    %2753 = vmatprep.subr.mxu0 0.0
    %2754 = vmatpush1.msra.mxu0 %v2715
    %2755 = vmatprep.subr.mxu0 0.0
    %2756 = vmatpush1.msra.mxu0 %v2714
    %2757 = vmatprep.subr.mxu0 0.0
    %2758 = vmatpush1.msra.mxu0 %v2713
    %2759 = vmatprep.subr.mxu0 0.0
    %2760 = vmatpush2.msra.mxu0 0.0
    %2761 = vmatprep.subr.mxu0 0.0
    %2762 = vmatpush2.msra.mxu0 0.0
    %2763 = vmatprep.subr.mxu0 0.0
    %2764 = vmatpush2.msra.mxu0 0.0
    %2765 = vmatprep.subr.mxu0 0.0
    %2766 = vmatpush2.msra.mxu0 0.0
    %2767 = vmatprep.subr.mxu0 0.0
    %2768 = vmatpush2.msra.mxu0 0.0
    %2769 = vmatprep.subr.mxu0 0.0
    %2770 = vmatpush2.msra.mxu0 0.0
    %2771 = vmatprep.subr.mxu0 0.0
    %2772 = vmatpush2.msra.mxu0 0.0
    %2773 = vmatprep.subr.mxu0 0.0
    %2774 = vmatpush2.msra.mxu0 0.0
    %2775 = vmatprep.subr.mxu0 0.0
    %2776 = vmatpush2.msra.mxu0 0.0
    %2777 = vmatprep.subr.mxu0 0.0
    %2778 = vmatpush2.msra.mxu0 0.0
    %2779 = vmatprep.subr.mxu0 0.0
    %2780 = vmatpush2.msra.mxu0 0.0
    %2781 = vmatprep.subr.mxu0 0.0
    %2782 = vmatpush2.msra.mxu0 0.0
    %2783 = vmatprep.subr.mxu0 0.0
    %2784 = vmatpush2.msra.mxu0 0.0
    %2785 = vmatprep.subr.mxu0 0.0
    %2786 = vmatpush2.msra.mxu0 0.0
    %2787 = vmatprep.subr.mxu0 0.0
    %2788 = vmatpush2.msra.mxu0 0.0
    %2789 = vmatprep.subr.mxu0 0.0
    %2790 = vmatpush2.msra.mxu0 0.0
    %2791 = vmatprep.mubr.f32.mxu0 0.0
    %2792 = vmatmul.mubr.f32.gmra.mxu0 %v2725
    %v2793 = vpop.f32.mrf.mxu0
    %v2794 = vadd.f32 %v2722, %v2793
    %v2795 = vpop.f32.mrf.mxu0
    %2796 = vdwg.mxu0
    %v2797 = vmax.f32 %v2794, 0.0
    %v2798 = vld [vmem:[#allocation110] sm:$0xff]
    %v2799 = vld [vmem:[#allocation110 + $0x8] sm:$0xff]
    %v2800 = vld [vmem:[#allocation110 + $0x10] sm:$0xff]
    %v2801 = vld [vmem:[#allocation110 + $0x18] sm:$0xff]
    %v2802 = vld [vmem:[#allocation109] sm:$0x1]
    %v2804 = vlaneseq
    %v2805 = vshrl.u32 %v2804, 7
    %v2806 = vsub.s32 0, %v2805
    %v2807 = vrot.slane %v2802, %v2806
    %v2810 = vsel %vm1481, %v2797, 0
    %2812 = vmatprep.subr.mxu0 0.0
    %2813 = vmatpush1.msra.mxu0 0.0
    %2814 = vmatprep.subr.mxu0 0.0
    %2815 = vmatpush1.msra.mxu0 0.0
    %2816 = vmatprep.subr.mxu0 0.0
    %2817 = vmatpush1.msra.mxu0 0.0
    %2818 = vmatprep.subr.mxu0 0.0
    %2819 = vmatpush1.msra.mxu0 0.0
    %2820 = vmatprep.subr.mxu0 0.0
    %2821 = vmatpush1.msra.mxu0 0.0
    %2822 = vmatprep.subr.mxu0 0.0
    %2823 = vmatpush1.msra.mxu0 0.0
    %2824 = vmatprep.subr.mxu0 0.0
    %2825 = vmatpush1.msra.mxu0 0.0
    %2826 = vmatprep.subr.mxu0 0.0
    %2827 = vmatpush1.msra.mxu0 0.0
    %2828 = vmatprep.subr.mxu0 0.0
    %2829 = vmatpush1.msra.mxu0 0.0
    %2830 = vmatprep.subr.mxu0 0.0
    %2831 = vmatpush1.msra.mxu0 0.0
    %2832 = vmatprep.subr.mxu0 0.0
    %2833 = vmatpush1.msra.mxu0 0.0
    %2834 = vmatprep.subr.mxu0 0.0
    %2835 = vmatpush1.msra.mxu0 0.0
    %2836 = vmatprep.subr.mxu0 0.0
    %2837 = vmatpush1.msra.mxu0 %v2801
    %2838 = vmatprep.subr.mxu0 0.0
    %2839 = vmatpush1.msra.mxu0 %v2800
    %2840 = vmatprep.subr.mxu0 0.0
    %2841 = vmatpush1.msra.mxu0 %v2799
    %2842 = vmatprep.subr.mxu0 0.0
    %2843 = vmatpush1.msra.mxu0 %v2798
    %2844 = vmatprep.subr.mxu0 0.0
    %2845 = vmatpush2.msra.mxu0 0.0
    %2846 = vmatprep.subr.mxu0 0.0
    %2847 = vmatpush2.msra.mxu0 0.0
    %2848 = vmatprep.subr.mxu0 0.0
    %2849 = vmatpush2.msra.mxu0 0.0
    %2850 = vmatprep.subr.mxu0 0.0
    %2851 = vmatpush2.msra.mxu0 0.0
    %2852 = vmatprep.subr.mxu0 0.0
    %2853 = vmatpush2.msra.mxu0 0.0
    %2854 = vmatprep.subr.mxu0 0.0
    %2855 = vmatpush2.msra.mxu0 0.0
    %2856 = vmatprep.subr.mxu0 0.0
    %2857 = vmatpush2.msra.mxu0 0.0
    %2858 = vmatprep.subr.mxu0 0.0
    %2859 = vmatpush2.msra.mxu0 0.0
    %2860 = vmatprep.subr.mxu0 0.0
    %2861 = vmatpush2.msra.mxu0 0.0
    %2862 = vmatprep.subr.mxu0 0.0
    %2863 = vmatpush2.msra.mxu0 0.0
    %2864 = vmatprep.subr.mxu0 0.0
    %2865 = vmatpush2.msra.mxu0 0.0
    %2866 = vmatprep.subr.mxu0 0.0
    %2867 = vmatpush2.msra.mxu0 0.0
    %2868 = vmatprep.subr.mxu0 0.0
    %2869 = vmatpush2.msra.mxu0 0.0
    %2870 = vmatprep.subr.mxu0 0.0
    %2871 = vmatpush2.msra.mxu0 0.0
    %2872 = vmatprep.subr.mxu0 0.0
    %2873 = vmatpush2.msra.mxu0 0.0
    %2874 = vmatprep.subr.mxu0 0.0
    %2875 = vmatpush2.msra.mxu0 0.0
    %2876 = vmatprep.mubr.f32.mxu0 0.0
    %2877 = vmatmul.mubr.f32.gmra.mxu0 %v2810
    %v2878 = vpop.f32.mrf.mxu0
    %v2879 = vadd.f32 %v2807, %v2878
    %v2880 = vpop.f32.mrf.mxu0
    %2881 = vdwg.mxu0
    %v2882 = vadd.f32 %v2712, %v2879
    %v2883 = vld [vmem:[#allocation116] sm:$0x1]
    %v2884 = vld [vmem:[#allocation115] sm:$0x1]
    %v2885 = vsel %vm1481, %v2882, 0.0
    %2886 = vadd.xlane.f32.xlu0 %v2885
    %v2887 = vpop.xlane.xlu0 %2886
    %v2888 = vmul.f32 %v2887, %v1968
    %v2889 = vsub.f32 %v2882, %v2888
    %v2890 = vmul.f32 %v2889, %v2889
    %v2891 = vsel %vm1481, %v2890, 0.0
    %2892 = vadd.xlane.f32.xlu0 %v2891
    %v2893 = vpop.xlane.xlu0 %2892
    %v2894 = vmul.f32 %v2893, %v1968
    %v2895 = vadd.f32 %v2894, 1e-05
    %v2896 = vrsqrt.pop %v2895
    %v2897 = vmul.f32 %v2889, %v2896
    %v2899 = vlaneseq
    %v2900 = vshrl.u32 %v2899, 7
    %v2901 = vsub.s32 0, %v2900
    %v2902 = vrot.slane %v2883, %v2901
    %v2904 = vmul.f32 %v2897, %v2902
    %v2906 = vlaneseq
    %v2907 = vshrl.u32 %v2906, 7
    %v2908 = vsub.s32 0, %v2907
    %v2909 = vrot.slane %v2884, %v2908
    %v2911 = vadd.f32 %v2904, %v2909
    %v2912 = vld [vmem:[%s181] sm:$0x1]
    %v2913 = vld [vmem:[%s179] sm:$0x1]
    %v2914 = vsel %vm1481, %v2911, 0.0
    %2915 = vadd.xlane.f32.xlu0 %v2914
    %v2916 = vpop.xlane.xlu0 %2915
    %v2917 = vmul.f32 %v2916, %v1968
    %v2918 = vsub.f32 %v2911, %v2917
    %v2919 = vmul.f32 %v2918, %v2918
    %v2920 = vsel %vm1481, %v2919, 0.0
    %2921 = vadd.xlane.f32.xlu0 %v2920
    %v2922 = vpop.xlane.xlu0 %2921
    %v2923 = vmul.f32 %v2922, %v1968
    %v2924 = vadd.f32 %v2923, 1e-05
    %v2925 = vrsqrt.pop %v2924
    %v2926 = vmul.f32 %v2918, %v2925
    %v2928 = vlaneseq
    %v2929 = vshrl.u32 %v2928, 7
    %v2930 = vsub.s32 0, %v2929
    %v2931 = vrot.slane %v2912, %v2930
    %v2933 = vmul.f32 %v2926, %v2931
    %v2935 = vlaneseq
    %v2936 = vshrl.u32 %v2935, 7
    %v2937 = vsub.s32 0, %v2936
    %v2938 = vrot.slane %v2913, %v2937
    %v2940 = vadd.f32 %v2933, %v2938
    %v2941 = vld [vmem:[#allocation38] sm:$0xff]
    %v2942 = vld [vmem:[#allocation38 + $0x8] sm:$0xff]
    %v2943 = vld [vmem:[#allocation38 + $0x10] sm:$0xff]
    %v2944 = vld [vmem:[#allocation38 + $0x18] sm:$0xff]
    %v2945 = vld [vmem:[#allocation32] sm:$0x1]
    %v2947 = vlaneseq
    %v2948 = vshrl.u32 %v2947, 7
    %v2949 = vsub.s32 0, %v2948
    %v2950 = vrot.slane %v2945, %v2949
    %v2953 = vsel %vm1481, %v1467, 0
    %2955 = vmatprep.subr.mxu0 0.0
    %2956 = vmatpush1.msra.mxu0 0.0
    %2957 = vmatprep.subr.mxu0 0.0
    %2958 = vmatpush1.msra.mxu0 0.0
    %2959 = vmatprep.subr.mxu0 0.0
    %2960 = vmatpush1.msra.mxu0 0.0
    %2961 = vmatprep.subr.mxu0 0.0
    %2962 = vmatpush1.msra.mxu0 0.0
    %2963 = vmatprep.subr.mxu0 0.0
    %2964 = vmatpush1.msra.mxu0 0.0
    %2965 = vmatprep.subr.mxu0 0.0
    %2966 = vmatpush1.msra.mxu0 0.0
    %2967 = vmatprep.subr.mxu0 0.0
    %2968 = vmatpush1.msra.mxu0 0.0
    %2969 = vmatprep.subr.mxu0 0.0
    %2970 = vmatpush1.msra.mxu0 0.0
    %2971 = vmatprep.subr.mxu0 0.0
    %2972 = vmatpush1.msra.mxu0 0.0
    %2973 = vmatprep.subr.mxu0 0.0
    %2974 = vmatpush1.msra.mxu0 0.0
    %2975 = vmatprep.subr.mxu0 0.0
    %2976 = vmatpush1.msra.mxu0 0.0
    %2977 = vmatprep.subr.mxu0 0.0
    %2978 = vmatpush1.msra.mxu0 0.0
    %2979 = vmatprep.subr.mxu0 0.0
    %2980 = vmatpush1.msra.mxu0 %v2944
    %2981 = vmatprep.subr.mxu0 0.0
    %2982 = vmatpush1.msra.mxu0 %v2943
    %2983 = vmatprep.subr.mxu0 0.0
    %2984 = vmatpush1.msra.mxu0 %v2942
    %2985 = vmatprep.subr.mxu0 0.0
    %2986 = vmatpush1.msra.mxu0 %v2941
    %2987 = vmatprep.subr.mxu0 0.0
    %2988 = vmatpush2.msra.mxu0 0.0
    %2989 = vmatprep.subr.mxu0 0.0
    %2990 = vmatpush2.msra.mxu0 0.0
    %2991 = vmatprep.subr.mxu0 0.0
    %2992 = vmatpush2.msra.mxu0 0.0
    %2993 = vmatprep.subr.mxu0 0.0
    %2994 = vmatpush2.msra.mxu0 0.0
    %2995 = vmatprep.subr.mxu0 0.0
    %2996 = vmatpush2.msra.mxu0 0.0
    %2997 = vmatprep.subr.mxu0 0.0
    %2998 = vmatpush2.msra.mxu0 0.0
    %2999 = vmatprep.subr.mxu0 0.0
    %3000 = vmatpush2.msra.mxu0 0.0
    %3001 = vmatprep.subr.mxu0 0.0
    %3002 = vmatpush2.msra.mxu0 0.0
    %3003 = vmatprep.subr.mxu0 0.0
    %3004 = vmatpush2.msra.mxu0 0.0
    %3005 = vmatprep.subr.mxu0 0.0
    %3006 = vmatpush2.msra.mxu0 0.0
    %3007 = vmatprep.subr.mxu0 0.0
    %3008 = vmatpush2.msra.mxu0 0.0
    %3009 = vmatprep.subr.mxu0 0.0
    %3010 = vmatpush2.msra.mxu0 0.0
    %3011 = vmatprep.subr.mxu0 0.0
    %3012 = vmatpush2.msra.mxu0 0.0
    %3013 = vmatprep.subr.mxu0 0.0
    %3014 = vmatpush2.msra.mxu0 0.0
    %3015 = vmatprep.subr.mxu0 0.0
    %3016 = vmatpush2.msra.mxu0 0.0
    %3017 = vmatprep.subr.mxu0 0.0
    %3018 = vmatpush2.msra.mxu0 0.0
    %3019 = vmatprep.mubr.f32.mxu0 0.0
    %3020 = vmatmul.mubr.f32.gmra.mxu0 %v2953
    %v3021 = vpop.f32.mrf.mxu0
    %v3022 = vadd.f32 %v2950, %v3021
    %v3023 = vpop.f32.mrf.mxu0
    %3024 = vdwg.mxu0
    %v3025 = vld [vmem:[#allocation35] sm:$0xff]
    %v3026 = vld [vmem:[#allocation35 + $0x8] sm:$0xff]
    %v3027 = vld [vmem:[#allocation35 + $0x10] sm:$0xff]
    %v3028 = vld [vmem:[#allocation35 + $0x18] sm:$0xff]
    %v3029 = vld [vmem:[#allocation29] sm:$0x1]
    %v3031 = vlaneseq
    %v3032 = vshrl.u32 %v3031, 7
    %v3033 = vsub.s32 0, %v3032
    %v3034 = vrot.slane %v3029, %v3033
    %3036 = vmatprep.subr.mxu0 0.0
    %3037 = vmatpush1.msra.mxu0 0.0
    %3038 = vmatprep.subr.mxu0 0.0
    %3039 = vmatpush1.msra.mxu0 0.0
    %3040 = vmatprep.subr.mxu0 0.0
    %3041 = vmatpush1.msra.mxu0 0.0
    %3042 = vmatprep.subr.mxu0 0.0
    %3043 = vmatpush1.msra.mxu0 0.0
    %3044 = vmatprep.subr.mxu0 0.0
    %3045 = vmatpush1.msra.mxu0 0.0
    %3046 = vmatprep.subr.mxu0 0.0
    %3047 = vmatpush1.msra.mxu0 0.0
    %3048 = vmatprep.subr.mxu0 0.0
    %3049 = vmatpush1.msra.mxu0 0.0
    %3050 = vmatprep.subr.mxu0 0.0
    %3051 = vmatpush1.msra.mxu0 0.0
    %3052 = vmatprep.subr.mxu0 0.0
    %3053 = vmatpush1.msra.mxu0 0.0
    %3054 = vmatprep.subr.mxu0 0.0
    %3055 = vmatpush1.msra.mxu0 0.0
    %3056 = vmatprep.subr.mxu0 0.0
    %3057 = vmatpush1.msra.mxu0 0.0
    %3058 = vmatprep.subr.mxu0 0.0
    %3059 = vmatpush1.msra.mxu0 0.0
    %3060 = vmatprep.subr.mxu0 0.0
    %3061 = vmatpush1.msra.mxu0 %v3028
    %3062 = vmatprep.subr.mxu0 0.0
    %3063 = vmatpush1.msra.mxu0 %v3027
    %3064 = vmatprep.subr.mxu0 0.0
    %3065 = vmatpush1.msra.mxu0 %v3026
    %3066 = vmatprep.subr.mxu0 0.0
    %3067 = vmatpush1.msra.mxu0 %v3025
    %3068 = vmatprep.subr.mxu0 0.0
    %3069 = vmatpush2.msra.mxu0 0.0
    %3070 = vmatprep.subr.mxu0 0.0
    %3071 = vmatpush2.msra.mxu0 0.0
    %3072 = vmatprep.subr.mxu0 0.0
    %3073 = vmatpush2.msra.mxu0 0.0
    %3074 = vmatprep.subr.mxu0 0.0
    %3075 = vmatpush2.msra.mxu0 0.0
    %3076 = vmatprep.subr.mxu0 0.0
    %3077 = vmatpush2.msra.mxu0 0.0
    %3078 = vmatprep.subr.mxu0 0.0
    %3079 = vmatpush2.msra.mxu0 0.0
    %3080 = vmatprep.subr.mxu0 0.0
    %3081 = vmatpush2.msra.mxu0 0.0
    %3082 = vmatprep.subr.mxu0 0.0
    %3083 = vmatpush2.msra.mxu0 0.0
    %3084 = vmatprep.subr.mxu0 0.0
    %3085 = vmatpush2.msra.mxu0 0.0
    %3086 = vmatprep.subr.mxu0 0.0
    %3087 = vmatpush2.msra.mxu0 0.0
    %3088 = vmatprep.subr.mxu0 0.0
    %3089 = vmatpush2.msra.mxu0 0.0
    %3090 = vmatprep.subr.mxu0 0.0
    %3091 = vmatpush2.msra.mxu0 0.0
    %3092 = vmatprep.subr.mxu0 0.0
    %3093 = vmatpush2.msra.mxu0 0.0
    %3094 = vmatprep.subr.mxu0 0.0
    %3095 = vmatpush2.msra.mxu0 0.0
    %3096 = vmatprep.subr.mxu0 0.0
    %3097 = vmatpush2.msra.mxu0 0.0
    %3098 = vmatprep.subr.mxu0 0.0
    %3099 = vmatpush2.msra.mxu0 0.0
    %3100 = vmatprep.mubr.f32.mxu0 0.0
    %3101 = vmatmul.mubr.f32.gmra.mxu0 %v2953
    %v3102 = vpop.f32.mrf.mxu0
    %v3103 = vadd.f32 %v3034, %v3102
    %v3104 = vpop.f32.mrf.mxu0
    %3105 = vdwg.mxu0
    %v3106 = vld [vmem:[#allocation40] sm:$0xff]
    %v3107 = vld [vmem:[#allocation40 + $0x8] sm:$0xff]
    %v3108 = vld [vmem:[#allocation40 + $0x10] sm:$0xff]
    %v3109 = vld [vmem:[#allocation40 + $0x18] sm:$0xff]
    %v3110 = vld [vmem:[#allocation34] sm:$0x1]
    %v3112 = vlaneseq
    %v3113 = vshrl.u32 %v3112, 7
    %v3114 = vsub.s32 0, %v3113
    %v3115 = vrot.slane %v3110, %v3114
    %3117 = vmatprep.subr.mxu0 0.0
    %3118 = vmatpush1.msra.mxu0 0.0
    %3119 = vmatprep.subr.mxu0 0.0
    %3120 = vmatpush1.msra.mxu0 0.0
    %3121 = vmatprep.subr.mxu0 0.0
    %3122 = vmatpush1.msra.mxu0 0.0
    %3123 = vmatprep.subr.mxu0 0.0
    %3124 = vmatpush1.msra.mxu0 0.0
    %3125 = vmatprep.subr.mxu0 0.0
    %3126 = vmatpush1.msra.mxu0 0.0
    %3127 = vmatprep.subr.mxu0 0.0
    %3128 = vmatpush1.msra.mxu0 0.0
    %3129 = vmatprep.subr.mxu0 0.0
    %3130 = vmatpush1.msra.mxu0 0.0
    %3131 = vmatprep.subr.mxu0 0.0
    %3132 = vmatpush1.msra.mxu0 0.0
    %3133 = vmatprep.subr.mxu0 0.0
    %3134 = vmatpush1.msra.mxu0 0.0
    %3135 = vmatprep.subr.mxu0 0.0
    %3136 = vmatpush1.msra.mxu0 0.0
    %3137 = vmatprep.subr.mxu0 0.0
    %3138 = vmatpush1.msra.mxu0 0.0
    %3139 = vmatprep.subr.mxu0 0.0
    %3140 = vmatpush1.msra.mxu0 0.0
    %3141 = vmatprep.subr.mxu0 0.0
    %3142 = vmatpush1.msra.mxu0 %v3109
    %3143 = vmatprep.subr.mxu0 0.0
    %3144 = vmatpush1.msra.mxu0 %v3108
    %3145 = vmatprep.subr.mxu0 0.0
    %3146 = vmatpush1.msra.mxu0 %v3107
    %3147 = vmatprep.subr.mxu0 0.0
    %3148 = vmatpush1.msra.mxu0 %v3106
    %3149 = vmatprep.subr.mxu0 0.0
    %3150 = vmatpush2.msra.mxu0 0.0
    %3151 = vmatprep.subr.mxu0 0.0
    %3152 = vmatpush2.msra.mxu0 0.0
    %3153 = vmatprep.subr.mxu0 0.0
    %3154 = vmatpush2.msra.mxu0 0.0
    %3155 = vmatprep.subr.mxu0 0.0
    %3156 = vmatpush2.msra.mxu0 0.0
    %3157 = vmatprep.subr.mxu0 0.0
    %3158 = vmatpush2.msra.mxu0 0.0
    %3159 = vmatprep.subr.mxu0 0.0
    %3160 = vmatpush2.msra.mxu0 0.0
    %3161 = vmatprep.subr.mxu0 0.0
    %3162 = vmatpush2.msra.mxu0 0.0
    %3163 = vmatprep.subr.mxu0 0.0
    %3164 = vmatpush2.msra.mxu0 0.0
    %3165 = vmatprep.subr.mxu0 0.0
    %3166 = vmatpush2.msra.mxu0 0.0
    %3167 = vmatprep.subr.mxu0 0.0
    %3168 = vmatpush2.msra.mxu0 0.0
    %3169 = vmatprep.subr.mxu0 0.0
    %3170 = vmatpush2.msra.mxu0 0.0
    %3171 = vmatprep.subr.mxu0 0.0
    %3172 = vmatpush2.msra.mxu0 0.0
    %3173 = vmatprep.subr.mxu0 0.0
    %3174 = vmatpush2.msra.mxu0 0.0
    %3175 = vmatprep.subr.mxu0 0.0
    %3176 = vmatpush2.msra.mxu0 0.0
    %3177 = vmatprep.subr.mxu0 0.0
    %3178 = vmatpush2.msra.mxu0 0.0
    %3179 = vmatprep.subr.mxu0 0.0
    %3180 = vmatpush2.msra.mxu0 0.0
    %3181 = vmatprep.mubr.f32.mxu0 0.0
    %3182 = vmatmul.mubr.f32.gmra.mxu0 %v2953
    %v3183 = vpop.f32.mrf.mxu0
    %v3184 = vadd.f32 %v3115, %v3183
    %v3185 = vpop.f32.mrf.mxu0
    %3186 = vdwg.mxu0
    %v3188 = vsel %vm1481, %v3022, 0
    %v3191 = vsel %vm1481, %v3103, 0
    %3193 = vmatprep.subr.mxu0 0.0
    %3194 = vmatpush1.xpose.msra.mxu0 0.0
    %3195 = vmatprep.subr.mxu0 0.0
    %3196 = vmatpush1.xpose.msra.mxu0 0.0
    %3197 = vmatprep.subr.mxu0 0.0
    %3198 = vmatpush1.xpose.msra.mxu0 0.0
    %3199 = vmatprep.subr.mxu0 0.0
    %3200 = vmatpush1.xpose.msra.mxu0 0.0
    %3201 = vmatprep.subr.mxu0 0.0
    %3202 = vmatpush1.xpose.msra.mxu0 0.0
    %3203 = vmatprep.subr.mxu0 0.0
    %3204 = vmatpush1.xpose.msra.mxu0 0.0
    %3205 = vmatprep.subr.mxu0 0.0
    %3206 = vmatpush1.xpose.msra.mxu0 0.0
    %3207 = vmatprep.subr.mxu0 0.0
    %3208 = vmatpush1.xpose.msra.mxu0 0.0
    %3209 = vmatprep.subr.mxu0 0.0
    %3210 = vmatpush1.xpose.msra.mxu0 0.0
    %3211 = vmatprep.subr.mxu0 0.0
    %3212 = vmatpush1.xpose.msra.mxu0 0.0
    %3213 = vmatprep.subr.mxu0 0.0
    %3214 = vmatpush1.xpose.msra.mxu0 0.0
    %3215 = vmatprep.subr.mxu0 0.0
    %3216 = vmatpush1.xpose.msra.mxu0 0.0
    %3217 = vmatprep.subr.mxu0 0.0
    %3218 = vmatpush1.xpose.msra.mxu0 0.0
    %3219 = vmatprep.subr.mxu0 0.0
    %3220 = vmatpush1.xpose.msra.mxu0 0.0
    %3221 = vmatprep.subr.mxu0 0.0
    %3222 = vmatpush1.xpose.msra.mxu0 0.0
    %3223 = vmatprep.subr.mxu0 0.0
    %3224 = vmatpush1.xpose.msra.mxu0 %v3191
    %3225 = vmatprep.subr.mxu0 0.0
    %3226 = vmatpush2.xpose.msra.mxu0 0.0
    %3227 = vmatprep.subr.mxu0 0.0
    %3228 = vmatpush2.xpose.msra.mxu0 0.0
    %3229 = vmatprep.subr.mxu0 0.0
    %3230 = vmatpush2.xpose.msra.mxu0 0.0
    %3231 = vmatprep.subr.mxu0 0.0
    %3232 = vmatpush2.xpose.msra.mxu0 0.0
    %3233 = vmatprep.subr.mxu0 0.0
    %3234 = vmatpush2.xpose.msra.mxu0 0.0
    %3235 = vmatprep.subr.mxu0 0.0
    %3236 = vmatpush2.xpose.msra.mxu0 0.0
    %3237 = vmatprep.subr.mxu0 0.0
    %3238 = vmatpush2.xpose.msra.mxu0 0.0
    %3239 = vmatprep.subr.mxu0 0.0
    %3240 = vmatpush2.xpose.msra.mxu0 0.0
    %3241 = vmatprep.subr.mxu0 0.0
    %3242 = vmatpush2.xpose.msra.mxu0 0.0
    %3243 = vmatprep.subr.mxu0 0.0
    %3244 = vmatpush2.xpose.msra.mxu0 0.0
    %3245 = vmatprep.subr.mxu0 0.0
    %3246 = vmatpush2.xpose.msra.mxu0 0.0
    %3247 = vmatprep.subr.mxu0 0.0
    %3248 = vmatpush2.xpose.msra.mxu0 0.0
    %3249 = vmatprep.subr.mxu0 0.0
    %3250 = vmatpush2.xpose.msra.mxu0 0.0
    %3251 = vmatprep.subr.mxu0 0.0
    %3252 = vmatpush2.xpose.msra.mxu0 0.0
    %3253 = vmatprep.subr.mxu0 0.0
    %3254 = vmatpush2.xpose.msra.mxu0 0.0
    %3255 = vmatprep.subr.mxu0 0.0
    %3256 = vmatpush2.xpose.msra.mxu0 0.0
    %3257 = vmatprep.mubr.f32.mxu0 0.0
    %3258 = vmatmul.mubr.f32.gmra.mxu0 %v3188
    %v3259 = vpop.f32.mrf.mxu0
    %v3260 = vadd.f32 0.0, %v3259
    %v3261 = vpop.f32.mrf.mxu0
    %3262 = vdwg.mxu0
    %v3263 = vmul.f32 %v3260, 0.17677669
    %v3264 = vsel %vm1396, %v3263, -inf
    %3265 = vmax.xlane.f32.xlu0 %v3264
    %v3266 = vpop.xlane.xlu0 %3265
    %v3267 = vsub.f32 %v3263, %v3266
    %v3268 = vmul.f32 %v3267, 1.442695
    %v3269 = vpow.pop %v3268
    %v3270 = vsel %vm1396, %v3269, 0.0
    %3271 = vadd.xlane.f32.xlu0 %v3270
    %v3272 = vpop.xlane.xlu0 %3271
    %v3273 = vrcp.pop %v3272
    %v3274 = vmul.f32 %v3269, %v3273
    %v3276 = vsel %vm1396, %v3274, 0
    %3278 = vmatprep.subr.mxu0 0.0
    %3279 = vmatpush1.msra.mxu0 0.0
    %3280 = vmatprep.subr.mxu0 0.0
    %3281 = vmatpush1.msra.mxu0 0.0
    %3282 = vmatprep.subr.mxu0 0.0
    %3283 = vmatpush1.msra.mxu0 0.0
    %3284 = vmatprep.subr.mxu0 0.0
    %3285 = vmatpush1.msra.mxu0 0.0
    %3286 = vmatprep.subr.mxu0 0.0
    %3287 = vmatpush1.msra.mxu0 0.0
    %3288 = vmatprep.subr.mxu0 0.0
    %3289 = vmatpush1.msra.mxu0 0.0
    %3290 = vmatprep.subr.mxu0 0.0
    %3291 = vmatpush1.msra.mxu0 0.0
    %3292 = vmatprep.subr.mxu0 0.0
    %3293 = vmatpush1.msra.mxu0 0.0
    %3294 = vmatprep.subr.mxu0 0.0
    %3295 = vmatpush1.msra.mxu0 0.0
    %3296 = vmatprep.subr.mxu0 0.0
    %3297 = vmatpush1.msra.mxu0 0.0
    %3298 = vmatprep.subr.mxu0 0.0
    %3299 = vmatpush1.msra.mxu0 0.0
    %3300 = vmatprep.subr.mxu0 0.0
    %3301 = vmatpush1.msra.mxu0 0.0
    %3302 = vmatprep.subr.mxu0 0.0
    %3303 = vmatpush1.msra.mxu0 0.0
    %3304 = vmatprep.subr.mxu0 0.0
    %3305 = vmatpush1.msra.mxu0 0.0
    %3306 = vmatprep.subr.mxu0 0.0
    %3307 = vmatpush1.msra.mxu0 0.0
    %3308 = vmatprep.subr.mxu0 0.0
    %3309 = vmatpush1.msra.mxu0 %v3184
    %3310 = vmatprep.subr.mxu0 0.0
    %3311 = vmatpush2.msra.mxu0 0.0
    %3312 = vmatprep.subr.mxu0 0.0
    %3313 = vmatpush2.msra.mxu0 0.0
    %3314 = vmatprep.subr.mxu0 0.0
    %3315 = vmatpush2.msra.mxu0 0.0
    %3316 = vmatprep.subr.mxu0 0.0
    %3317 = vmatpush2.msra.mxu0 0.0
    %3318 = vmatprep.subr.mxu0 0.0
    %3319 = vmatpush2.msra.mxu0 0.0
    %3320 = vmatprep.subr.mxu0 0.0
    %3321 = vmatpush2.msra.mxu0 0.0
    %3322 = vmatprep.subr.mxu0 0.0
    %3323 = vmatpush2.msra.mxu0 0.0
    %3324 = vmatprep.subr.mxu0 0.0
    %3325 = vmatpush2.msra.mxu0 0.0
    %3326 = vmatprep.subr.mxu0 0.0
    %3327 = vmatpush2.msra.mxu0 0.0
    %3328 = vmatprep.subr.mxu0 0.0
    %3329 = vmatpush2.msra.mxu0 0.0
    %3330 = vmatprep.subr.mxu0 0.0
    %3331 = vmatpush2.msra.mxu0 0.0
    %3332 = vmatprep.subr.mxu0 0.0
    %3333 = vmatpush2.msra.mxu0 0.0
    %3334 = vmatprep.subr.mxu0 0.0
    %3335 = vmatpush2.msra.mxu0 0.0
    %3336 = vmatprep.subr.mxu0 0.0
    %3337 = vmatpush2.msra.mxu0 0.0
    %3338 = vmatprep.subr.mxu0 0.0
    %3339 = vmatpush2.msra.mxu0 0.0
    %3340 = vmatprep.subr.mxu0 0.0
    %3341 = vmatpush2.msra.mxu0 0.0
    %3342 = vmatprep.mubr.f32.mxu0 0.0
    %3343 = vmatmul.mubr.f32.gmra.mxu0 %v3276
    %v3344 = vpop.f32.mrf.mxu0
    %v3345 = vadd.f32 0.0, %v3344
    %v3346 = vpop.f32.mrf.mxu0
    %3347 = vdwg.mxu0
    %v3348 = vld [vmem:[#allocation37] sm:$0xff]
    %v3349 = vld [vmem:[#allocation37 + $0x8] sm:$0xff]
    %v3350 = vld [vmem:[#allocation37 + $0x10] sm:$0xff]
    %v3351 = vld [vmem:[#allocation37 + $0x18] sm:$0xff]
    %v3352 = vld [vmem:[#allocation31] sm:$0x1]
    %v3354 = vlaneseq
    %v3355 = vshrl.u32 %v3354, 7
    %v3356 = vsub.s32 0, %v3355
    %v3357 = vrot.slane %v3352, %v3356
    %v3360 = vsel %vm1481, %v3345, 0
    %3362 = vmatprep.subr.mxu0 0.0
    %3363 = vmatpush1.msra.mxu0 0.0
    %3364 = vmatprep.subr.mxu0 0.0
    %3365 = vmatpush1.msra.mxu0 0.0
    %3366 = vmatprep.subr.mxu0 0.0
    %3367 = vmatpush1.msra.mxu0 0.0
    %3368 = vmatprep.subr.mxu0 0.0
    %3369 = vmatpush1.msra.mxu0 0.0
    %3370 = vmatprep.subr.mxu0 0.0
    %3371 = vmatpush1.msra.mxu0 0.0
    %3372 = vmatprep.subr.mxu0 0.0
    %3373 = vmatpush1.msra.mxu0 0.0
    %3374 = vmatprep.subr.mxu0 0.0
    %3375 = vmatpush1.msra.mxu0 0.0
    %3376 = vmatprep.subr.mxu0 0.0
    %3377 = vmatpush1.msra.mxu0 0.0
    %3378 = vmatprep.subr.mxu0 0.0
    %3379 = vmatpush1.msra.mxu0 0.0
    %3380 = vmatprep.subr.mxu0 0.0
    %3381 = vmatpush1.msra.mxu0 0.0
    %3382 = vmatprep.subr.mxu0 0.0
    %3383 = vmatpush1.msra.mxu0 0.0
    %3384 = vmatprep.subr.mxu0 0.0
    %3385 = vmatpush1.msra.mxu0 0.0
    %3386 = vmatprep.subr.mxu0 0.0
    %3387 = vmatpush1.msra.mxu0 %v3351
    %3388 = vmatprep.subr.mxu0 0.0
    %3389 = vmatpush1.msra.mxu0 %v3350
    %3390 = vmatprep.subr.mxu0 0.0
    %3391 = vmatpush1.msra.mxu0 %v3349
    %3392 = vmatprep.subr.mxu0 0.0
    %3393 = vmatpush1.msra.mxu0 %v3348
    %3394 = vmatprep.subr.mxu0 0.0
    %3395 = vmatpush2.msra.mxu0 0.0
    %3396 = vmatprep.subr.mxu0 0.0
    %3397 = vmatpush2.msra.mxu0 0.0
    %3398 = vmatprep.subr.mxu0 0.0
    %3399 = vmatpush2.msra.mxu0 0.0
    %3400 = vmatprep.subr.mxu0 0.0
    %3401 = vmatpush2.msra.mxu0 0.0
    %3402 = vmatprep.subr.mxu0 0.0
    %3403 = vmatpush2.msra.mxu0 0.0
    %3404 = vmatprep.subr.mxu0 0.0
    %3405 = vmatpush2.msra.mxu0 0.0
    %3406 = vmatprep.subr.mxu0 0.0
    %3407 = vmatpush2.msra.mxu0 0.0
    %3408 = vmatprep.subr.mxu0 0.0
    %3409 = vmatpush2.msra.mxu0 0.0
    %3410 = vmatprep.subr.mxu0 0.0
    %3411 = vmatpush2.msra.mxu0 0.0
    %3412 = vmatprep.subr.mxu0 0.0
    %3413 = vmatpush2.msra.mxu0 0.0
    %3414 = vmatprep.subr.mxu0 0.0
    %3415 = vmatpush2.msra.mxu0 0.0
    %3416 = vmatprep.subr.mxu0 0.0
    %3417 = vmatpush2.msra.mxu0 0.0
    %3418 = vmatprep.subr.mxu0 0.0
    %3419 = vmatpush2.msra.mxu0 0.0
    %3420 = vmatprep.subr.mxu0 0.0
    %3421 = vmatpush2.msra.mxu0 0.0
    %3422 = vmatprep.subr.mxu0 0.0
    %3423 = vmatpush2.msra.mxu0 0.0
    %3424 = vmatprep.subr.mxu0 0.0
    %3425 = vmatpush2.msra.mxu0 0.0
    %3426 = vmatprep.mubr.f32.mxu0 0.0
    %3427 = vmatmul.mubr.f32.gmra.mxu0 %v3360
    %v3428 = vpop.f32.mrf.mxu0
    %v3429 = vadd.f32 %v3357, %v3428
    %v3430 = vpop.f32.mrf.mxu0
    %3431 = vdwg.mxu0
    %v3432 = vadd.f32 %v1467, %v3429
    %v3433 = vld [vmem:[#allocation22] sm:$0x1]
    %v3434 = vld [vmem:[#allocation20] sm:$0x1]
    %v3435 = vsel %vm1481, %v3432, 0.0
    %3436 = vadd.xlane.f32.xlu0 %v3435
    %v3437 = vpop.xlane.xlu0 %3436
    %v3438 = vmul.f32 %v3437, %v1968
    %v3439 = vsub.f32 %v3432, %v3438
    %v3440 = vmul.f32 %v3439, %v3439
    %v3441 = vsel %vm1481, %v3440, 0.0
    %3442 = vadd.xlane.f32.xlu0 %v3441
    %v3443 = vpop.xlane.xlu0 %3442
    %v3444 = vmul.f32 %v3443, %v1968
    %v3445 = vadd.f32 %v3444, 1e-05
    %v3446 = vrsqrt.pop %v3445
    %v3447 = vmul.f32 %v3439, %v3446
    %v3449 = vlaneseq
    %v3450 = vshrl.u32 %v3449, 7
    %v3451 = vsub.s32 0, %v3450
    %v3452 = vrot.slane %v3433, %v3451
    %v3454 = vmul.f32 %v3447, %v3452
    %v3456 = vlaneseq
    %v3457 = vshrl.u32 %v3456, 7
    %v3458 = vsub.s32 0, %v3457
    %v3459 = vrot.slane %v3434, %v3458
    %v3461 = vadd.f32 %v3454, %v3459
    %v3462 = vld [vmem:[#allocation13] sm:$0xff]
    %v3463 = vld [vmem:[#allocation13 + $0x8] sm:$0xff]
    %v3464 = vld [vmem:[#allocation13 + $0x10] sm:$0xff]
    %v3465 = vld [vmem:[#allocation13 + $0x18] sm:$0xff]
    %v3466 = vld [vmem:[#allocation7] sm:$0x1]
    %v3468 = vlaneseq
    %v3469 = vshrl.u32 %v3468, 7
    %v3470 = vsub.s32 0, %v3469
    %v3471 = vrot.slane %v3466, %v3470
    %v3474 = vsel %vm1481, %v3461, 0
    %3476 = vmatprep.subr.mxu0 0.0
    %3477 = vmatpush1.msra.mxu0 0.0
    %3478 = vmatprep.subr.mxu0 0.0
    %3479 = vmatpush1.msra.mxu0 0.0
    %3480 = vmatprep.subr.mxu0 0.0
    %3481 = vmatpush1.msra.mxu0 0.0
    %3482 = vmatprep.subr.mxu0 0.0
    %3483 = vmatpush1.msra.mxu0 0.0
    %3484 = vmatprep.subr.mxu0 0.0
    %3485 = vmatpush1.msra.mxu0 0.0
    %3486 = vmatprep.subr.mxu0 0.0
    %3487 = vmatpush1.msra.mxu0 0.0
    %3488 = vmatprep.subr.mxu0 0.0
    %3489 = vmatpush1.msra.mxu0 0.0
    %3490 = vmatprep.subr.mxu0 0.0
    %3491 = vmatpush1.msra.mxu0 0.0
    %3492 = vmatprep.subr.mxu0 0.0
    %3493 = vmatpush1.msra.mxu0 0.0
    %3494 = vmatprep.subr.mxu0 0.0
    %3495 = vmatpush1.msra.mxu0 0.0
    %3496 = vmatprep.subr.mxu0 0.0
    %3497 = vmatpush1.msra.mxu0 0.0
    %3498 = vmatprep.subr.mxu0 0.0
    %3499 = vmatpush1.msra.mxu0 0.0
    %3500 = vmatprep.subr.mxu0 0.0
    %3501 = vmatpush1.msra.mxu0 %v3465
    %3502 = vmatprep.subr.mxu0 0.0
    %3503 = vmatpush1.msra.mxu0 %v3464
    %3504 = vmatprep.subr.mxu0 0.0
    %3505 = vmatpush1.msra.mxu0 %v3463
    %3506 = vmatprep.subr.mxu0 0.0
    %3507 = vmatpush1.msra.mxu0 %v3462
    %3508 = vmatprep.subr.mxu0 0.0
    %3509 = vmatpush2.msra.mxu0 0.0
    %3510 = vmatprep.subr.mxu0 0.0
    %3511 = vmatpush2.msra.mxu0 0.0
    %3512 = vmatprep.subr.mxu0 0.0
    %3513 = vmatpush2.msra.mxu0 0.0
    %3514 = vmatprep.subr.mxu0 0.0
    %3515 = vmatpush2.msra.mxu0 0.0
    %3516 = vmatprep.subr.mxu0 0.0
    %3517 = vmatpush2.msra.mxu0 0.0
    %3518 = vmatprep.subr.mxu0 0.0
    %3519 = vmatpush2.msra.mxu0 0.0
    %3520 = vmatprep.subr.mxu0 0.0
    %3521 = vmatpush2.msra.mxu0 0.0
    %3522 = vmatprep.subr.mxu0 0.0
    %3523 = vmatpush2.msra.mxu0 0.0
    %3524 = vmatprep.subr.mxu0 0.0
    %3525 = vmatpush2.msra.mxu0 0.0
    %3526 = vmatprep.subr.mxu0 0.0
    %3527 = vmatpush2.msra.mxu0 0.0
    %3528 = vmatprep.subr.mxu0 0.0
    %3529 = vmatpush2.msra.mxu0 0.0
    %3530 = vmatprep.subr.mxu0 0.0
    %3531 = vmatpush2.msra.mxu0 0.0
    %3532 = vmatprep.subr.mxu0 0.0
    %3533 = vmatpush2.msra.mxu0 0.0
    %3534 = vmatprep.subr.mxu0 0.0
    %3535 = vmatpush2.msra.mxu0 0.0
    %3536 = vmatprep.subr.mxu0 0.0
    %3537 = vmatpush2.msra.mxu0 0.0
    %3538 = vmatprep.subr.mxu0 0.0
    %3539 = vmatpush2.msra.mxu0 0.0
    %3540 = vmatprep.mubr.f32.mxu0 0.0
    %3541 = vmatmul.mubr.f32.gmra.mxu0 %v3474
    %v3542 = vpop.f32.mrf.mxu0
    %v3543 = vadd.f32 %v3471, %v3542
    %v3544 = vpop.f32.mrf.mxu0
    %3545 = vdwg.mxu0
    %v3546 = vld [vmem:[#allocation10] sm:$0xff]
    %v3547 = vld [vmem:[#allocation10 + $0x8] sm:$0xff]
    %v3548 = vld [vmem:[#allocation10 + $0x10] sm:$0xff]
    %v3549 = vld [vmem:[#allocation10 + $0x18] sm:$0xff]
    %v3550 = vld [vmem:[#allocation3] sm:$0x1]
    %v3552 = vlaneseq
    %v3553 = vshrl.u32 %v3552, 7
    %v3554 = vsub.s32 0, %v3553
    %v3555 = vrot.slane %v3550, %v3554
    %v3558 = vsel %vm1481, %v2940, 0
    %3560 = vmatprep.subr.mxu0 0.0
    %3561 = vmatpush1.msra.mxu0 0.0
    %3562 = vmatprep.subr.mxu0 0.0
    %3563 = vmatpush1.msra.mxu0 0.0
    %3564 = vmatprep.subr.mxu0 0.0
    %3565 = vmatpush1.msra.mxu0 0.0
    %3566 = vmatprep.subr.mxu0 0.0
    %3567 = vmatpush1.msra.mxu0 0.0
    %3568 = vmatprep.subr.mxu0 0.0
    %3569 = vmatpush1.msra.mxu0 0.0
    %3570 = vmatprep.subr.mxu0 0.0
    %3571 = vmatpush1.msra.mxu0 0.0
    %3572 = vmatprep.subr.mxu0 0.0
    %3573 = vmatpush1.msra.mxu0 0.0
    %3574 = vmatprep.subr.mxu0 0.0
    %3575 = vmatpush1.msra.mxu0 0.0
    %3576 = vmatprep.subr.mxu0 0.0
    %3577 = vmatpush1.msra.mxu0 0.0
    %3578 = vmatprep.subr.mxu0 0.0
    %3579 = vmatpush1.msra.mxu0 0.0
    %3580 = vmatprep.subr.mxu0 0.0
    %3581 = vmatpush1.msra.mxu0 0.0
    %3582 = vmatprep.subr.mxu0 0.0
    %3583 = vmatpush1.msra.mxu0 0.0
    %3584 = vmatprep.subr.mxu0 0.0
    %3585 = vmatpush1.msra.mxu0 %v3549
    %3586 = vmatprep.subr.mxu0 0.0
    %3587 = vmatpush1.msra.mxu0 %v3548
    %3588 = vmatprep.subr.mxu0 0.0
    %3589 = vmatpush1.msra.mxu0 %v3547
    %3590 = vmatprep.subr.mxu0 0.0
    %3591 = vmatpush1.msra.mxu0 %v3546
    %3592 = vmatprep.subr.mxu0 0.0
    %3593 = vmatpush2.msra.mxu0 0.0
    %3594 = vmatprep.subr.mxu0 0.0
    %3595 = vmatpush2.msra.mxu0 0.0
    %3596 = vmatprep.subr.mxu0 0.0
    %3597 = vmatpush2.msra.mxu0 0.0
    %3598 = vmatprep.subr.mxu0 0.0
    %3599 = vmatpush2.msra.mxu0 0.0
    %3600 = vmatprep.subr.mxu0 0.0
    %3601 = vmatpush2.msra.mxu0 0.0
    %3602 = vmatprep.subr.mxu0 0.0
    %3603 = vmatpush2.msra.mxu0 0.0
    %3604 = vmatprep.subr.mxu0 0.0
    %3605 = vmatpush2.msra.mxu0 0.0
    %3606 = vmatprep.subr.mxu0 0.0
    %3607 = vmatpush2.msra.mxu0 0.0
    %3608 = vmatprep.subr.mxu0 0.0
    %3609 = vmatpush2.msra.mxu0 0.0
    %3610 = vmatprep.subr.mxu0 0.0
    %3611 = vmatpush2.msra.mxu0 0.0
    %3612 = vmatprep.subr.mxu0 0.0
    %3613 = vmatpush2.msra.mxu0 0.0
    %3614 = vmatprep.subr.mxu0 0.0
    %3615 = vmatpush2.msra.mxu0 0.0
    %3616 = vmatprep.subr.mxu0 0.0
    %3617 = vmatpush2.msra.mxu0 0.0
    %3618 = vmatprep.subr.mxu0 0.0
    %3619 = vmatpush2.msra.mxu0 0.0
    %3620 = vmatprep.subr.mxu0 0.0
    %3621 = vmatpush2.msra.mxu0 0.0
    %3622 = vmatprep.subr.mxu0 0.0
    %3623 = vmatpush2.msra.mxu0 0.0
    %3624 = vmatprep.mubr.f32.mxu0 0.0
    %3625 = vmatmul.mubr.f32.gmra.mxu0 %v3558
    %v3626 = vpop.f32.mrf.mxu0
    %v3627 = vadd.f32 %v3555, %v3626
    %v3628 = vpop.f32.mrf.mxu0
    %3629 = vdwg.mxu0
    %v3630 = vld [vmem:[#allocation14] sm:$0xff]
    %v3631 = vld [vmem:[#allocation14 + $0x8] sm:$0xff]
    %v3632 = vld [vmem:[#allocation14 + $0x10] sm:$0xff]
    %v3633 = vld [vmem:[#allocation14 + $0x18] sm:$0xff]
    %v3634 = vld [vmem:[#allocation8] sm:$0x1]
    %v3636 = vlaneseq
    %v3637 = vshrl.u32 %v3636, 7
    %v3638 = vsub.s32 0, %v3637
    %v3639 = vrot.slane %v3634, %v3638
    %3641 = vmatprep.subr.mxu0 0.0
    %3642 = vmatpush1.msra.mxu0 0.0
    %3643 = vmatprep.subr.mxu0 0.0
    %3644 = vmatpush1.msra.mxu0 0.0
    %3645 = vmatprep.subr.mxu0 0.0
    %3646 = vmatpush1.msra.mxu0 0.0
    %3647 = vmatprep.subr.mxu0 0.0
    %3648 = vmatpush1.msra.mxu0 0.0
    %3649 = vmatprep.subr.mxu0 0.0
    %3650 = vmatpush1.msra.mxu0 0.0
    %3651 = vmatprep.subr.mxu0 0.0
    %3652 = vmatpush1.msra.mxu0 0.0
    %3653 = vmatprep.subr.mxu0 0.0
    %3654 = vmatpush1.msra.mxu0 0.0
    %3655 = vmatprep.subr.mxu0 0.0
    %3656 = vmatpush1.msra.mxu0 0.0
    %3657 = vmatprep.subr.mxu0 0.0
    %3658 = vmatpush1.msra.mxu0 0.0
    %3659 = vmatprep.subr.mxu0 0.0
    %3660 = vmatpush1.msra.mxu0 0.0
    %3661 = vmatprep.subr.mxu0 0.0
    %3662 = vmatpush1.msra.mxu0 0.0
    %3663 = vmatprep.subr.mxu0 0.0
    %3664 = vmatpush1.msra.mxu0 0.0
    %3665 = vmatprep.subr.mxu0 0.0
    %3666 = vmatpush1.msra.mxu0 %v3633
    %3667 = vmatprep.subr.mxu0 0.0
    %3668 = vmatpush1.msra.mxu0 %v3632
    %3669 = vmatprep.subr.mxu0 0.0
    %3670 = vmatpush1.msra.mxu0 %v3631
    %3671 = vmatprep.subr.mxu0 0.0
    %3672 = vmatpush1.msra.mxu0 %v3630
    %3673 = vmatprep.subr.mxu0 0.0
    %3674 = vmatpush2.msra.mxu0 0.0
    %3675 = vmatprep.subr.mxu0 0.0
    %3676 = vmatpush2.msra.mxu0 0.0
    %3677 = vmatprep.subr.mxu0 0.0
    %3678 = vmatpush2.msra.mxu0 0.0
    %3679 = vmatprep.subr.mxu0 0.0
    %3680 = vmatpush2.msra.mxu0 0.0
    %3681 = vmatprep.subr.mxu0 0.0
    %3682 = vmatpush2.msra.mxu0 0.0
    %3683 = vmatprep.subr.mxu0 0.0
    %3684 = vmatpush2.msra.mxu0 0.0
    %3685 = vmatprep.subr.mxu0 0.0
    %3686 = vmatpush2.msra.mxu0 0.0
    %3687 = vmatprep.subr.mxu0 0.0
    %3688 = vmatpush2.msra.mxu0 0.0
    %3689 = vmatprep.subr.mxu0 0.0
    %3690 = vmatpush2.msra.mxu0 0.0
    %3691 = vmatprep.subr.mxu0 0.0
    %3692 = vmatpush2.msra.mxu0 0.0
    %3693 = vmatprep.subr.mxu0 0.0
    %3694 = vmatpush2.msra.mxu0 0.0
    %3695 = vmatprep.subr.mxu0 0.0
    %3696 = vmatpush2.msra.mxu0 0.0
    %3697 = vmatprep.subr.mxu0 0.0
    %3698 = vmatpush2.msra.mxu0 0.0
    %3699 = vmatprep.subr.mxu0 0.0
    %3700 = vmatpush2.msra.mxu0 0.0
    %3701 = vmatprep.subr.mxu0 0.0
    %3702 = vmatpush2.msra.mxu0 0.0
    %3703 = vmatprep.subr.mxu0 0.0
    %3704 = vmatpush2.msra.mxu0 0.0
    %3705 = vmatprep.mubr.f32.mxu0 0.0
    %3706 = vmatmul.mubr.f32.gmra.mxu0 %v3558
    %v3707 = vpop.f32.mrf.mxu0
    %v3708 = vadd.f32 %v3639, %v3707
    %v3709 = vpop.f32.mrf.mxu0
    %3710 = vdwg.mxu0
    %v3712 = vsel %vm1481, %v3543, 0
    %v3715 = vsel %vm1481, %v3627, 0
    %3717 = vmatprep.subr.mxu0 0.0
    %3718 = vmatpush1.xpose.msra.mxu0 0.0
    %3719 = vmatprep.subr.mxu0 0.0
    %3720 = vmatpush1.xpose.msra.mxu0 0.0
    %3721 = vmatprep.subr.mxu0 0.0
    %3722 = vmatpush1.xpose.msra.mxu0 0.0
    %3723 = vmatprep.subr.mxu0 0.0
    %3724 = vmatpush1.xpose.msra.mxu0 0.0
    %3725 = vmatprep.subr.mxu0 0.0
    %3726 = vmatpush1.xpose.msra.mxu0 0.0
    %3727 = vmatprep.subr.mxu0 0.0
    %3728 = vmatpush1.xpose.msra.mxu0 0.0
    %3729 = vmatprep.subr.mxu0 0.0
    %3730 = vmatpush1.xpose.msra.mxu0 0.0
    %3731 = vmatprep.subr.mxu0 0.0
    %3732 = vmatpush1.xpose.msra.mxu0 0.0
    %3733 = vmatprep.subr.mxu0 0.0
    %3734 = vmatpush1.xpose.msra.mxu0 0.0
    %3735 = vmatprep.subr.mxu0 0.0
    %3736 = vmatpush1.xpose.msra.mxu0 0.0
    %3737 = vmatprep.subr.mxu0 0.0
    %3738 = vmatpush1.xpose.msra.mxu0 0.0
    %3739 = vmatprep.subr.mxu0 0.0
    %3740 = vmatpush1.xpose.msra.mxu0 0.0
    %3741 = vmatprep.subr.mxu0 0.0
    %3742 = vmatpush1.xpose.msra.mxu0 0.0
    %3743 = vmatprep.subr.mxu0 0.0
    %3744 = vmatpush1.xpose.msra.mxu0 0.0
    %3745 = vmatprep.subr.mxu0 0.0
    %3746 = vmatpush1.xpose.msra.mxu0 0.0
    %3747 = vmatprep.subr.mxu0 0.0
    %3748 = vmatpush1.xpose.msra.mxu0 %v3715
    %3749 = vmatprep.subr.mxu0 0.0
    %3750 = vmatpush2.xpose.msra.mxu0 0.0
    %3751 = vmatprep.subr.mxu0 0.0
    %3752 = vmatpush2.xpose.msra.mxu0 0.0
    %3753 = vmatprep.subr.mxu0 0.0
    %3754 = vmatpush2.xpose.msra.mxu0 0.0
    %3755 = vmatprep.subr.mxu0 0.0
    %3756 = vmatpush2.xpose.msra.mxu0 0.0
    %3757 = vmatprep.subr.mxu0 0.0
    %3758 = vmatpush2.xpose.msra.mxu0 0.0
    %3759 = vmatprep.subr.mxu0 0.0
    %3760 = vmatpush2.xpose.msra.mxu0 0.0
    %3761 = vmatprep.subr.mxu0 0.0
    %3762 = vmatpush2.xpose.msra.mxu0 0.0
    %3763 = vmatprep.subr.mxu0 0.0
    %3764 = vmatpush2.xpose.msra.mxu0 0.0
    %3765 = vmatprep.subr.mxu0 0.0
    %3766 = vmatpush2.xpose.msra.mxu0 0.0
    %3767 = vmatprep.subr.mxu0 0.0
    %3768 = vmatpush2.xpose.msra.mxu0 0.0
    %3769 = vmatprep.subr.mxu0 0.0
    %3770 = vmatpush2.xpose.msra.mxu0 0.0
    %3771 = vmatprep.subr.mxu0 0.0
    %3772 = vmatpush2.xpose.msra.mxu0 0.0
    %3773 = vmatprep.subr.mxu0 0.0
    %3774 = vmatpush2.xpose.msra.mxu0 0.0
    %3775 = vmatprep.subr.mxu0 0.0
    %3776 = vmatpush2.xpose.msra.mxu0 0.0
    %3777 = vmatprep.subr.mxu0 0.0
    %3778 = vmatpush2.xpose.msra.mxu0 0.0
    %3779 = vmatprep.subr.mxu0 0.0
    %3780 = vmatpush2.xpose.msra.mxu0 0.0
    %3781 = vmatprep.mubr.f32.mxu0 0.0
    %3782 = vmatmul.mubr.f32.gmra.mxu0 %v3712
    %v3783 = vpop.f32.mrf.mxu0
    %v3784 = vadd.f32 0.0, %v3783
    %v3785 = vpop.f32.mrf.mxu0
    %3786 = vdwg.mxu0
    %v3787 = vmul.f32 %v3784, 0.17677669
    %v3788 = vsel %vm1396, %v3787, -inf
    %3789 = vmax.xlane.f32.xlu0 %v3788
    %v3790 = vpop.xlane.xlu0 %3789
    %v3791 = vsub.f32 %v3787, %v3790
    %v3792 = vmul.f32 %v3791, 1.442695
    %v3793 = vpow.pop %v3792
    %v3794 = vsel %vm1396, %v3793, 0.0
    %3795 = vadd.xlane.f32.xlu0 %v3794
    %v3796 = vpop.xlane.xlu0 %3795
    %v3797 = vrcp.pop %v3796
    %v3798 = vmul.f32 %v3793, %v3797
    %v3800 = vsel %vm1396, %v3798, 0
    %3802 = vmatprep.subr.mxu0 0.0
    %3803 = vmatpush1.msra.mxu0 0.0
    %3804 = vmatprep.subr.mxu0 0.0
    %3805 = vmatpush1.msra.mxu0 0.0
    %3806 = vmatprep.subr.mxu0 0.0
    %3807 = vmatpush1.msra.mxu0 0.0
    %3808 = vmatprep.subr.mxu0 0.0
    %3809 = vmatpush1.msra.mxu0 0.0
    %3810 = vmatprep.subr.mxu0 0.0
    %3811 = vmatpush1.msra.mxu0 0.0
    %3812 = vmatprep.subr.mxu0 0.0
    %3813 = vmatpush1.msra.mxu0 0.0
    %3814 = vmatprep.subr.mxu0 0.0
    %3815 = vmatpush1.msra.mxu0 0.0
    %3816 = vmatprep.subr.mxu0 0.0
    %3817 = vmatpush1.msra.mxu0 0.0
    %3818 = vmatprep.subr.mxu0 0.0
    %3819 = vmatpush1.msra.mxu0 0.0
    %3820 = vmatprep.subr.mxu0 0.0
    %3821 = vmatpush1.msra.mxu0 0.0
    %3822 = vmatprep.subr.mxu0 0.0
    %3823 = vmatpush1.msra.mxu0 0.0
    %3824 = vmatprep.subr.mxu0 0.0
    %3825 = vmatpush1.msra.mxu0 0.0
    %3826 = vmatprep.subr.mxu0 0.0
    %3827 = vmatpush1.msra.mxu0 0.0
    %3828 = vmatprep.subr.mxu0 0.0
    %3829 = vmatpush1.msra.mxu0 0.0
    %3830 = vmatprep.subr.mxu0 0.0
    %3831 = vmatpush1.msra.mxu0 0.0
    %3832 = vmatprep.subr.mxu0 0.0
    %3833 = vmatpush1.msra.mxu0 %v3708
    %3834 = vmatprep.subr.mxu0 0.0
    %3835 = vmatpush2.msra.mxu0 0.0
    %3836 = vmatprep.subr.mxu0 0.0
    %3837 = vmatpush2.msra.mxu0 0.0
    %3838 = vmatprep.subr.mxu0 0.0
    %3839 = vmatpush2.msra.mxu0 0.0
    %3840 = vmatprep.subr.mxu0 0.0
    %3841 = vmatpush2.msra.mxu0 0.0
    %3842 = vmatprep.subr.mxu0 0.0
    %3843 = vmatpush2.msra.mxu0 0.0
    %3844 = vmatprep.subr.mxu0 0.0
    %3845 = vmatpush2.msra.mxu0 0.0
    %3846 = vmatprep.subr.mxu0 0.0
    %3847 = vmatpush2.msra.mxu0 0.0
    %3848 = vmatprep.subr.mxu0 0.0
    %3849 = vmatpush2.msra.mxu0 0.0
    %3850 = vmatprep.subr.mxu0 0.0
    %3851 = vmatpush2.msra.mxu0 0.0
    %3852 = vmatprep.subr.mxu0 0.0
    %3853 = vmatpush2.msra.mxu0 0.0
    %3854 = vmatprep.subr.mxu0 0.0
    %3855 = vmatpush2.msra.mxu0 0.0
    %3856 = vmatprep.subr.mxu0 0.0
    %3857 = vmatpush2.msra.mxu0 0.0
    %3858 = vmatprep.subr.mxu0 0.0
    %3859 = vmatpush2.msra.mxu0 0.0
    %3860 = vmatprep.subr.mxu0 0.0
    %3861 = vmatpush2.msra.mxu0 0.0
    %3862 = vmatprep.subr.mxu0 0.0
    %3863 = vmatpush2.msra.mxu0 0.0
    %3864 = vmatprep.subr.mxu0 0.0
    %3865 = vmatpush2.msra.mxu0 0.0
    %3866 = vmatprep.mubr.f32.mxu0 0.0
    %3867 = vmatmul.mubr.f32.gmra.mxu0 %v3800
    %v3868 = vpop.f32.mrf.mxu0
    %v3869 = vadd.f32 0.0, %v3868
    %v3870 = vpop.f32.mrf.mxu0
    %3871 = vdwg.mxu0
    %v3872 = vld [vmem:[#allocation11] sm:$0xff]
    %v3873 = vld [vmem:[#allocation11 + $0x8] sm:$0xff]
    %v3874 = vld [vmem:[#allocation11 + $0x10] sm:$0xff]
    %v3875 = vld [vmem:[#allocation11 + $0x18] sm:$0xff]
    %v3876 = vld [vmem:[#allocation5] sm:$0x1]
    %v3878 = vlaneseq
    %v3879 = vshrl.u32 %v3878, 7
    %v3880 = vsub.s32 0, %v3879
    %v3881 = vrot.slane %v3876, %v3880
    %v3884 = vsel %vm1481, %v3869, 0
    %3886 = vmatprep.subr.mxu0 0.0
    %3887 = vmatpush1.msra.mxu0 0.0
    %3888 = vmatprep.subr.mxu0 0.0
    %3889 = vmatpush1.msra.mxu0 0.0
    %3890 = vmatprep.subr.mxu0 0.0
    %3891 = vmatpush1.msra.mxu0 0.0
    %3892 = vmatprep.subr.mxu0 0.0
    %3893 = vmatpush1.msra.mxu0 0.0
    %3894 = vmatprep.subr.mxu0 0.0
    %3895 = vmatpush1.msra.mxu0 0.0
    %3896 = vmatprep.subr.mxu0 0.0
    %3897 = vmatpush1.msra.mxu0 0.0
    %3898 = vmatprep.subr.mxu0 0.0
    %3899 = vmatpush1.msra.mxu0 0.0
    %3900 = vmatprep.subr.mxu0 0.0
    %3901 = vmatpush1.msra.mxu0 0.0
    %3902 = vmatprep.subr.mxu0 0.0
    %3903 = vmatpush1.msra.mxu0 0.0
    %3904 = vmatprep.subr.mxu0 0.0
    %3905 = vmatpush1.msra.mxu0 0.0
    %3906 = vmatprep.subr.mxu0 0.0
    %3907 = vmatpush1.msra.mxu0 0.0
    %3908 = vmatprep.subr.mxu0 0.0
    %3909 = vmatpush1.msra.mxu0 0.0
    %3910 = vmatprep.subr.mxu0 0.0
    %3911 = vmatpush1.msra.mxu0 %v3875
    %3912 = vmatprep.subr.mxu0 0.0
    %3913 = vmatpush1.msra.mxu0 %v3874
    %3914 = vmatprep.subr.mxu0 0.0
    %3915 = vmatpush1.msra.mxu0 %v3873
    %3916 = vmatprep.subr.mxu0 0.0
    %3917 = vmatpush1.msra.mxu0 %v3872
    %3918 = vmatprep.subr.mxu0 0.0
    %3919 = vmatpush2.msra.mxu0 0.0
    %3920 = vmatprep.subr.mxu0 0.0
    %3921 = vmatpush2.msra.mxu0 0.0
    %3922 = vmatprep.subr.mxu0 0.0
    %3923 = vmatpush2.msra.mxu0 0.0
    %3924 = vmatprep.subr.mxu0 0.0
    %3925 = vmatpush2.msra.mxu0 0.0
    %3926 = vmatprep.subr.mxu0 0.0
    %3927 = vmatpush2.msra.mxu0 0.0
    %3928 = vmatprep.subr.mxu0 0.0
    %3929 = vmatpush2.msra.mxu0 0.0
    %3930 = vmatprep.subr.mxu0 0.0
    %3931 = vmatpush2.msra.mxu0 0.0
    %3932 = vmatprep.subr.mxu0 0.0
    %3933 = vmatpush2.msra.mxu0 0.0
    %3934 = vmatprep.subr.mxu0 0.0
    %3935 = vmatpush2.msra.mxu0 0.0
    %3936 = vmatprep.subr.mxu0 0.0
    %3937 = vmatpush2.msra.mxu0 0.0
    %3938 = vmatprep.subr.mxu0 0.0
    %3939 = vmatpush2.msra.mxu0 0.0
    %3940 = vmatprep.subr.mxu0 0.0
    %3941 = vmatpush2.msra.mxu0 0.0
    %3942 = vmatprep.subr.mxu0 0.0
    %3943 = vmatpush2.msra.mxu0 0.0
    %3944 = vmatprep.subr.mxu0 0.0
    %3945 = vmatpush2.msra.mxu0 0.0
    %3946 = vmatprep.subr.mxu0 0.0
    %3947 = vmatpush2.msra.mxu0 0.0
    %3948 = vmatprep.subr.mxu0 0.0
    %3949 = vmatpush2.msra.mxu0 0.0
    %3950 = vmatprep.mubr.f32.mxu0 0.0
    %3951 = vmatmul.mubr.f32.gmra.mxu0 %v3884
    %v3952 = vpop.f32.mrf.mxu0
    %v3953 = vadd.f32 %v3881, %v3952
    %v3954 = vpop.f32.mrf.mxu0
    %3955 = vdwg.mxu0
    %v3956 = vadd.f32 %v3461, %v3953
    %v3957 = vld [vmem:[#allocation25] sm:$0x1]
    %v3958 = vld [vmem:[#allocation23] sm:$0x1]
    %v3959 = vsel %vm1481, %v3956, 0.0
    %3960 = vadd.xlane.f32.xlu0 %v3959
    %v3961 = vpop.xlane.xlu0 %3960
    %v3962 = vmul.f32 %v3961, %v1968
    %v3963 = vsub.f32 %v3956, %v3962
    %v3964 = vmul.f32 %v3963, %v3963
    %v3965 = vsel %vm1481, %v3964, 0.0
    %3966 = vadd.xlane.f32.xlu0 %v3965
    %v3967 = vpop.xlane.xlu0 %3966
    %v3968 = vmul.f32 %v3967, %v1968
    %v3969 = vadd.f32 %v3968, 1e-05
    %v3970 = vrsqrt.pop %v3969
    %v3971 = vmul.f32 %v3963, %v3970
    %v3973 = vlaneseq
    %v3974 = vshrl.u32 %v3973, 7
    %v3975 = vsub.s32 0, %v3974
    %v3976 = vrot.slane %v3957, %v3975
    %v3978 = vmul.f32 %v3971, %v3976
    %v3980 = vlaneseq
    %v3981 = vshrl.u32 %v3980, 7
    %v3982 = vsub.s32 0, %v3981
    %v3983 = vrot.slane %v3958, %v3982
    %v3985 = vadd.f32 %v3978, %v3983
    %v3986 = vld [vmem:[#allocation17] sm:$0xff]
    %v3987 = vld [vmem:[#allocation17 + $0x8] sm:$0xff]
    %v3988 = vld [vmem:[#allocation17 + $0x10] sm:$0xff]
    %v3989 = vld [vmem:[#allocation17 + $0x18] sm:$0xff]
    %v3990 = vld [vmem:[#allocation16] sm:$0x1]
    %v3992 = vlaneseq
    %v3993 = vshrl.u32 %v3992, 7
    %v3994 = vsub.s32 0, %v3993
    %v3995 = vrot.slane %v3990, %v3994
    %v3998 = vsel %vm1481, %v3985, 0
    %4000 = vmatprep.subr.mxu0 0.0
    %4001 = vmatpush1.msra.mxu0 0.0
    %4002 = vmatprep.subr.mxu0 0.0
    %4003 = vmatpush1.msra.mxu0 0.0
    %4004 = vmatprep.subr.mxu0 0.0
    %4005 = vmatpush1.msra.mxu0 0.0
    %4006 = vmatprep.subr.mxu0 0.0
    %4007 = vmatpush1.msra.mxu0 0.0
    %4008 = vmatprep.subr.mxu0 0.0
    %4009 = vmatpush1.msra.mxu0 0.0
    %4010 = vmatprep.subr.mxu0 0.0
    %4011 = vmatpush1.msra.mxu0 0.0
    %4012 = vmatprep.subr.mxu0 0.0
    %4013 = vmatpush1.msra.mxu0 0.0
    %4014 = vmatprep.subr.mxu0 0.0
    %4015 = vmatpush1.msra.mxu0 0.0
    %4016 = vmatprep.subr.mxu0 0.0
    %4017 = vmatpush1.msra.mxu0 0.0
    %4018 = vmatprep.subr.mxu0 0.0
    %4019 = vmatpush1.msra.mxu0 0.0
    %4020 = vmatprep.subr.mxu0 0.0
    %4021 = vmatpush1.msra.mxu0 0.0
    %4022 = vmatprep.subr.mxu0 0.0
    %4023 = vmatpush1.msra.mxu0 0.0
    %4024 = vmatprep.subr.mxu0 0.0
    %4025 = vmatpush1.msra.mxu0 %v3989
    %4026 = vmatprep.subr.mxu0 0.0
    %4027 = vmatpush1.msra.mxu0 %v3988
    %4028 = vmatprep.subr.mxu0 0.0
    %4029 = vmatpush1.msra.mxu0 %v3987
    %4030 = vmatprep.subr.mxu0 0.0
    %4031 = vmatpush1.msra.mxu0 %v3986
    %4032 = vmatprep.subr.mxu0 0.0
    %4033 = vmatpush2.msra.mxu0 0.0
    %4034 = vmatprep.subr.mxu0 0.0
    %4035 = vmatpush2.msra.mxu0 0.0
    %4036 = vmatprep.subr.mxu0 0.0
    %4037 = vmatpush2.msra.mxu0 0.0
    %4038 = vmatprep.subr.mxu0 0.0
    %4039 = vmatpush2.msra.mxu0 0.0
    %4040 = vmatprep.subr.mxu0 0.0
    %4041 = vmatpush2.msra.mxu0 0.0
    %4042 = vmatprep.subr.mxu0 0.0
    %4043 = vmatpush2.msra.mxu0 0.0
    %4044 = vmatprep.subr.mxu0 0.0
    %4045 = vmatpush2.msra.mxu0 0.0
    %4046 = vmatprep.subr.mxu0 0.0
    %4047 = vmatpush2.msra.mxu0 0.0
    %4048 = vmatprep.subr.mxu0 0.0
    %4049 = vmatpush2.msra.mxu0 0.0
    %4050 = vmatprep.subr.mxu0 0.0
    %4051 = vmatpush2.msra.mxu0 0.0
    %4052 = vmatprep.subr.mxu0 0.0
    %4053 = vmatpush2.msra.mxu0 0.0
    %4054 = vmatprep.subr.mxu0 0.0
    %4055 = vmatpush2.msra.mxu0 0.0
    %4056 = vmatprep.subr.mxu0 0.0
    %4057 = vmatpush2.msra.mxu0 0.0
    %4058 = vmatprep.subr.mxu0 0.0
    %4059 = vmatpush2.msra.mxu0 0.0
    %4060 = vmatprep.subr.mxu0 0.0
    %4061 = vmatpush2.msra.mxu0 0.0
    %4062 = vmatprep.subr.mxu0 0.0
    %4063 = vmatpush2.msra.mxu0 0.0
    %4064 = vmatprep.mubr.f32.mxu0 0.0
    %4065 = vmatmul.mubr.f32.gmra.mxu0 %v3998
    %v4066 = vpop.f32.mrf.mxu0
    %v4067 = vadd.f32 %v3995, %v4066
    %v4068 = vpop.f32.mrf.mxu0
    %4069 = vdwg.mxu0
    %v4070 = vmax.f32 %v4067, 0.0
    %v4071 = vld [vmem:[%s25] sm:$0xff]
    %v4072 = vld [vmem:[%s25 + $0x8] sm:$0xff]
    %v4073 = vld [vmem:[%s25 + $0x10] sm:$0xff]
    %v4074 = vld [vmem:[%s25 + $0x18] sm:$0xff]
    %v4075 = vld [vmem:[#allocation19] sm:$0x1]
    %v4077 = vlaneseq
    %v4078 = vshrl.u32 %v4077, 7
    %v4079 = vsub.s32 0, %v4078
    %v4080 = vrot.slane %v4075, %v4079
    %v4083 = vsel %vm1481, %v4070, 0
    %4085 = vmatprep.subr.mxu0 0.0
    %4086 = vmatpush1.msra.mxu0 0.0
    %4087 = vmatprep.subr.mxu0 0.0
    %4088 = vmatpush1.msra.mxu0 0.0
    %4089 = vmatprep.subr.mxu0 0.0
    %4090 = vmatpush1.msra.mxu0 0.0
    %4091 = vmatprep.subr.mxu0 0.0
    %4092 = vmatpush1.msra.mxu0 0.0
    %4093 = vmatprep.subr.mxu0 0.0
    %4094 = vmatpush1.msra.mxu0 0.0
    %4095 = vmatprep.subr.mxu0 0.0
    %4096 = vmatpush1.msra.mxu0 0.0
    %4097 = vmatprep.subr.mxu0 0.0
    %4098 = vmatpush1.msra.mxu0 0.0
    %4099 = vmatprep.subr.mxu0 0.0
    %4100 = vmatpush1.msra.mxu0 0.0
    %4101 = vmatprep.subr.mxu0 0.0
    %4102 = vmatpush1.msra.mxu0 0.0
    %4103 = vmatprep.subr.mxu0 0.0
    %4104 = vmatpush1.msra.mxu0 0.0
    %4105 = vmatprep.subr.mxu0 0.0
    %4106 = vmatpush1.msra.mxu0 0.0
    %4107 = vmatprep.subr.mxu0 0.0
    %4108 = vmatpush1.msra.mxu0 0.0
    %4109 = vmatprep.subr.mxu0 0.0
    %4110 = vmatpush1.msra.mxu0 %v4074
    %4111 = vmatprep.subr.mxu0 0.0
    %4112 = vmatpush1.msra.mxu0 %v4073
    %4113 = vmatprep.subr.mxu0 0.0
    %4114 = vmatpush1.msra.mxu0 %v4072
    %4115 = vmatprep.subr.mxu0 0.0
    %4116 = vmatpush1.msra.mxu0 %v4071
    %4117 = vmatprep.subr.mxu0 0.0
    %4118 = vmatpush2.msra.mxu0 0.0
    %4119 = vmatprep.subr.mxu0 0.0
    %4120 = vmatpush2.msra.mxu0 0.0
    %4121 = vmatprep.subr.mxu0 0.0
    %4122 = vmatpush2.msra.mxu0 0.0
    %4123 = vmatprep.subr.mxu0 0.0
    %4124 = vmatpush2.msra.mxu0 0.0
    %4125 = vmatprep.subr.mxu0 0.0
    %4126 = vmatpush2.msra.mxu0 0.0
    %4127 = vmatprep.subr.mxu0 0.0
    %4128 = vmatpush2.msra.mxu0 0.0
    %4129 = vmatprep.subr.mxu0 0.0
    %4130 = vmatpush2.msra.mxu0 0.0
    %4131 = vmatprep.subr.mxu0 0.0
    %4132 = vmatpush2.msra.mxu0 0.0
    %4133 = vmatprep.subr.mxu0 0.0
    %4134 = vmatpush2.msra.mxu0 0.0
    %4135 = vmatprep.subr.mxu0 0.0
    %4136 = vmatpush2.msra.mxu0 0.0
    %4137 = vmatprep.subr.mxu0 0.0
    %4138 = vmatpush2.msra.mxu0 0.0
    %4139 = vmatprep.subr.mxu0 0.0
    %4140 = vmatpush2.msra.mxu0 0.0
    %4141 = vmatprep.subr.mxu0 0.0
    %4142 = vmatpush2.msra.mxu0 0.0
    %4143 = vmatprep.subr.mxu0 0.0
    %4144 = vmatpush2.msra.mxu0 0.0
    %4145 = vmatprep.subr.mxu0 0.0
    %4146 = vmatpush2.msra.mxu0 0.0
    %4147 = vmatprep.subr.mxu0 0.0
    %4148 = vmatpush2.msra.mxu0 0.0
    %4149 = vmatprep.mubr.f32.mxu0 0.0
    %4150 = vmatmul.mubr.f32.gmra.mxu0 %v4083
    %v4151 = vpop.f32.mrf.mxu0
    %v4152 = vadd.f32 %v4080, %v4151
    %v4153 = vpop.f32.mrf.mxu0
    %4154 = vdwg.mxu0
    %v4155 = vadd.f32 %v3985, %v4152
    %v4156 = vld [vmem:[#allocation28] sm:$0x1]
    %v4157 = vld [vmem:[#allocation26] sm:$0x1]
    %v4158 = vsel %vm1481, %v4155, 0.0
    %4159 = vadd.xlane.f32.xlu0 %v4158
    %v4160 = vpop.xlane.xlu0 %4159
    %v4161 = vmul.f32 %v4160, %v1968
    %v4162 = vsub.f32 %v4155, %v4161
    %v4163 = vmul.f32 %v4162, %v4162
    %v4164 = vsel %vm1481, %v4163, 0.0
    %4165 = vadd.xlane.f32.xlu0 %v4164
    %v4166 = vpop.xlane.xlu0 %4165
    %v4167 = vmul.f32 %v4166, %v1968
    %v4168 = vadd.f32 %v4167, 1e-05
    %v4169 = vrsqrt.pop %v4168
    %v4170 = vmul.f32 %v4162, %v4169
    %v4172 = vlaneseq
    %v4173 = vshrl.u32 %v4172, 7
    %v4174 = vsub.s32 0, %v4173
    %v4175 = vrot.slane %v4156, %v4174
    %v4177 = vmul.f32 %v4170, %v4175
    %v4179 = vlaneseq
    %v4180 = vshrl.u32 %v4179, 7
    %v4181 = vsub.s32 0, %v4180
    %v4182 = vrot.slane %v4157, %v4181
    %v4184 = vadd.f32 %v4177, %v4182
    %v4185 = vld [vmem:[#allocation74] sm:$0xff]
    %v4186 = vld [vmem:[#allocation74 + $0x8] sm:$0xff]
    %v4187 = vld [vmem:[#allocation74 + $0x10] sm:$0xff]
    %v4188 = vld [vmem:[#allocation74 + $0x18] sm:$0xff]
    %v4189 = vld [vmem:[#allocation70] sm:$0x1]
    %v4191 = vlaneseq
    %v4192 = vshrl.u32 %v4191, 7
    %v4193 = vsub.s32 0, %v4192
    %v4194 = vrot.slane %v4189, %v4193
    %v4197 = vsel %vm1481, %v4184, 0
    %4199 = vmatprep.subr.mxu0 0.0
    %4200 = vmatpush1.msra.mxu0 0.0
    %4201 = vmatprep.subr.mxu0 0.0
    %4202 = vmatpush1.msra.mxu0 0.0
    %4203 = vmatprep.subr.mxu0 0.0
    %4204 = vmatpush1.msra.mxu0 0.0
    %4205 = vmatprep.subr.mxu0 0.0
    %4206 = vmatpush1.msra.mxu0 0.0
    %4207 = vmatprep.subr.mxu0 0.0
    %4208 = vmatpush1.msra.mxu0 0.0
    %4209 = vmatprep.subr.mxu0 0.0
    %4210 = vmatpush1.msra.mxu0 0.0
    %4211 = vmatprep.subr.mxu0 0.0
    %4212 = vmatpush1.msra.mxu0 0.0
    %4213 = vmatprep.subr.mxu0 0.0
    %4214 = vmatpush1.msra.mxu0 0.0
    %4215 = vmatprep.subr.mxu0 0.0
    %4216 = vmatpush1.msra.mxu0 0.0
    %4217 = vmatprep.subr.mxu0 0.0
    %4218 = vmatpush1.msra.mxu0 0.0
    %4219 = vmatprep.subr.mxu0 0.0
    %4220 = vmatpush1.msra.mxu0 0.0
    %4221 = vmatprep.subr.mxu0 0.0
    %4222 = vmatpush1.msra.mxu0 0.0
    %4223 = vmatprep.subr.mxu0 0.0
    %4224 = vmatpush1.msra.mxu0 %v4188
    %4225 = vmatprep.subr.mxu0 0.0
    %4226 = vmatpush1.msra.mxu0 %v4187
    %4227 = vmatprep.subr.mxu0 0.0
    %4228 = vmatpush1.msra.mxu0 %v4186
    %4229 = vmatprep.subr.mxu0 0.0
    %4230 = vmatpush1.msra.mxu0 %v4185
    %4231 = vmatprep.subr.mxu0 0.0
    %4232 = vmatpush2.msra.mxu0 0.0
    %4233 = vmatprep.subr.mxu0 0.0
    %4234 = vmatpush2.msra.mxu0 0.0
    %4235 = vmatprep.subr.mxu0 0.0
    %4236 = vmatpush2.msra.mxu0 0.0
    %4237 = vmatprep.subr.mxu0 0.0
    %4238 = vmatpush2.msra.mxu0 0.0
    %4239 = vmatprep.subr.mxu0 0.0
    %4240 = vmatpush2.msra.mxu0 0.0
    %4241 = vmatprep.subr.mxu0 0.0
    %4242 = vmatpush2.msra.mxu0 0.0
    %4243 = vmatprep.subr.mxu0 0.0
    %4244 = vmatpush2.msra.mxu0 0.0
    %4245 = vmatprep.subr.mxu0 0.0
    %4246 = vmatpush2.msra.mxu0 0.0
    %4247 = vmatprep.subr.mxu0 0.0
    %4248 = vmatpush2.msra.mxu0 0.0
    %4249 = vmatprep.subr.mxu0 0.0
    %4250 = vmatpush2.msra.mxu0 0.0
    %4251 = vmatprep.subr.mxu0 0.0
    %4252 = vmatpush2.msra.mxu0 0.0
    %4253 = vmatprep.subr.mxu0 0.0
    %4254 = vmatpush2.msra.mxu0 0.0
    %4255 = vmatprep.subr.mxu0 0.0
    %4256 = vmatpush2.msra.mxu0 0.0
    %4257 = vmatprep.subr.mxu0 0.0
    %4258 = vmatpush2.msra.mxu0 0.0
    %4259 = vmatprep.subr.mxu0 0.0
    %4260 = vmatpush2.msra.mxu0 0.0
    %4261 = vmatprep.subr.mxu0 0.0
    %4262 = vmatpush2.msra.mxu0 0.0
    %4263 = vmatprep.mubr.f32.mxu0 0.0
    %4264 = vmatmul.mubr.f32.gmra.mxu0 %v4197
    %v4265 = vpop.f32.mrf.mxu0
    %v4266 = vadd.f32 %v4194, %v4265
    %v4267 = vpop.f32.mrf.mxu0
    %4268 = vdwg.mxu0
    %v4269 = vld [vmem:[%s99] sm:$0xff]
    %v4270 = vld [vmem:[%s99 + $0x8] sm:$0xff]
    %v4271 = vld [vmem:[%s99 + $0x10] sm:$0xff]
    %v4272 = vld [vmem:[%s99 + $0x18] sm:$0xff]
    %v4273 = vld [vmem:[#allocation67] sm:$0x1]
    %v4275 = vlaneseq
    %v4276 = vshrl.u32 %v4275, 7
    %v4277 = vsub.s32 0, %v4276
    %v4278 = vrot.slane %v4273, %v4277
    %4280 = vmatprep.subr.mxu0 0.0
    %4281 = vmatpush1.msra.mxu0 0.0
    %4282 = vmatprep.subr.mxu0 0.0
    %4283 = vmatpush1.msra.mxu0 0.0
    %4284 = vmatprep.subr.mxu0 0.0
    %4285 = vmatpush1.msra.mxu0 0.0
    %4286 = vmatprep.subr.mxu0 0.0
    %4287 = vmatpush1.msra.mxu0 0.0
    %4288 = vmatprep.subr.mxu0 0.0
    %4289 = vmatpush1.msra.mxu0 0.0
    %4290 = vmatprep.subr.mxu0 0.0
    %4291 = vmatpush1.msra.mxu0 0.0
    %4292 = vmatprep.subr.mxu0 0.0
    %4293 = vmatpush1.msra.mxu0 0.0
    %4294 = vmatprep.subr.mxu0 0.0
    %4295 = vmatpush1.msra.mxu0 0.0
    %4296 = vmatprep.subr.mxu0 0.0
    %4297 = vmatpush1.msra.mxu0 0.0
    %4298 = vmatprep.subr.mxu0 0.0
    %4299 = vmatpush1.msra.mxu0 0.0
    %4300 = vmatprep.subr.mxu0 0.0
    %4301 = vmatpush1.msra.mxu0 0.0
    %4302 = vmatprep.subr.mxu0 0.0
    %4303 = vmatpush1.msra.mxu0 0.0
    %4304 = vmatprep.subr.mxu0 0.0
    %4305 = vmatpush1.msra.mxu0 %v4272
    %4306 = vmatprep.subr.mxu0 0.0
    %4307 = vmatpush1.msra.mxu0 %v4271
    %4308 = vmatprep.subr.mxu0 0.0
    %4309 = vmatpush1.msra.mxu0 %v4270
    %4310 = vmatprep.subr.mxu0 0.0
    %4311 = vmatpush1.msra.mxu0 %v4269
    %4312 = vmatprep.subr.mxu0 0.0
    %4313 = vmatpush2.msra.mxu0 0.0
    %4314 = vmatprep.subr.mxu0 0.0
    %4315 = vmatpush2.msra.mxu0 0.0
    %4316 = vmatprep.subr.mxu0 0.0
    %4317 = vmatpush2.msra.mxu0 0.0
    %4318 = vmatprep.subr.mxu0 0.0
    %4319 = vmatpush2.msra.mxu0 0.0
    %4320 = vmatprep.subr.mxu0 0.0
    %4321 = vmatpush2.msra.mxu0 0.0
    %4322 = vmatprep.subr.mxu0 0.0
    %4323 = vmatpush2.msra.mxu0 0.0
    %4324 = vmatprep.subr.mxu0 0.0
    %4325 = vmatpush2.msra.mxu0 0.0
    %4326 = vmatprep.subr.mxu0 0.0
    %4327 = vmatpush2.msra.mxu0 0.0
    %4328 = vmatprep.subr.mxu0 0.0
    %4329 = vmatpush2.msra.mxu0 0.0
    %4330 = vmatprep.subr.mxu0 0.0
    %4331 = vmatpush2.msra.mxu0 0.0
    %4332 = vmatprep.subr.mxu0 0.0
    %4333 = vmatpush2.msra.mxu0 0.0
    %4334 = vmatprep.subr.mxu0 0.0
    %4335 = vmatpush2.msra.mxu0 0.0
    %4336 = vmatprep.subr.mxu0 0.0
    %4337 = vmatpush2.msra.mxu0 0.0
    %4338 = vmatprep.subr.mxu0 0.0
    %4339 = vmatpush2.msra.mxu0 0.0
    %4340 = vmatprep.subr.mxu0 0.0
    %4341 = vmatpush2.msra.mxu0 0.0
    %4342 = vmatprep.subr.mxu0 0.0
    %4343 = vmatpush2.msra.mxu0 0.0
    %4344 = vmatprep.mubr.f32.mxu0 0.0
    %4345 = vmatmul.mubr.f32.gmra.mxu0 %v4197
    %v4346 = vpop.f32.mrf.mxu0
    %v4347 = vadd.f32 %v4278, %v4346
    %v4348 = vpop.f32.mrf.mxu0
    %4349 = vdwg.mxu0
    %v4350 = vld [vmem:[#allocation76] sm:$0xff]
    %v4351 = vld [vmem:[#allocation76 + $0x8] sm:$0xff]
    %v4352 = vld [vmem:[#allocation76 + $0x10] sm:$0xff]
    %v4353 = vld [vmem:[#allocation76 + $0x18] sm:$0xff]
    %v4354 = vld [vmem:[#allocation71] sm:$0x1]
    %v4356 = vlaneseq
    %v4357 = vshrl.u32 %v4356, 7
    %v4358 = vsub.s32 0, %v4357
    %v4359 = vrot.slane %v4354, %v4358
    %4361 = vmatprep.subr.mxu0 0.0
    %4362 = vmatpush1.msra.mxu0 0.0
    %4363 = vmatprep.subr.mxu0 0.0
    %4364 = vmatpush1.msra.mxu0 0.0
    %4365 = vmatprep.subr.mxu0 0.0
    %4366 = vmatpush1.msra.mxu0 0.0
    %4367 = vmatprep.subr.mxu0 0.0
    %4368 = vmatpush1.msra.mxu0 0.0
    %4369 = vmatprep.subr.mxu0 0.0
    %4370 = vmatpush1.msra.mxu0 0.0
    %4371 = vmatprep.subr.mxu0 0.0
    %4372 = vmatpush1.msra.mxu0 0.0
    %4373 = vmatprep.subr.mxu0 0.0
    %4374 = vmatpush1.msra.mxu0 0.0
    %4375 = vmatprep.subr.mxu0 0.0
    %4376 = vmatpush1.msra.mxu0 0.0
    %4377 = vmatprep.subr.mxu0 0.0
    %4378 = vmatpush1.msra.mxu0 0.0
    %4379 = vmatprep.subr.mxu0 0.0
    %4380 = vmatpush1.msra.mxu0 0.0
    %4381 = vmatprep.subr.mxu0 0.0
    %4382 = vmatpush1.msra.mxu0 0.0
    %4383 = vmatprep.subr.mxu0 0.0
    %4384 = vmatpush1.msra.mxu0 0.0
    %4385 = vmatprep.subr.mxu0 0.0
    %4386 = vmatpush1.msra.mxu0 %v4353
    %4387 = vmatprep.subr.mxu0 0.0
    %4388 = vmatpush1.msra.mxu0 %v4352
    %4389 = vmatprep.subr.mxu0 0.0
    %4390 = vmatpush1.msra.mxu0 %v4351
    %4391 = vmatprep.subr.mxu0 0.0
    %4392 = vmatpush1.msra.mxu0 %v4350
    %4393 = vmatprep.subr.mxu0 0.0
    %4394 = vmatpush2.msra.mxu0 0.0
    %4395 = vmatprep.subr.mxu0 0.0
    %4396 = vmatpush2.msra.mxu0 0.0
    %4397 = vmatprep.subr.mxu0 0.0
    %4398 = vmatpush2.msra.mxu0 0.0
    %4399 = vmatprep.subr.mxu0 0.0
    %4400 = vmatpush2.msra.mxu0 0.0
    %4401 = vmatprep.subr.mxu0 0.0
    %4402 = vmatpush2.msra.mxu0 0.0
    %4403 = vmatprep.subr.mxu0 0.0
    %4404 = vmatpush2.msra.mxu0 0.0
    %4405 = vmatprep.subr.mxu0 0.0
    %4406 = vmatpush2.msra.mxu0 0.0
    %4407 = vmatprep.subr.mxu0 0.0
    %4408 = vmatpush2.msra.mxu0 0.0
    %4409 = vmatprep.subr.mxu0 0.0
    %4410 = vmatpush2.msra.mxu0 0.0
    %4411 = vmatprep.subr.mxu0 0.0
    %4412 = vmatpush2.msra.mxu0 0.0
    %4413 = vmatprep.subr.mxu0 0.0
    %4414 = vmatpush2.msra.mxu0 0.0
    %4415 = vmatprep.subr.mxu0 0.0
    %4416 = vmatpush2.msra.mxu0 0.0
    %4417 = vmatprep.subr.mxu0 0.0
    %4418 = vmatpush2.msra.mxu0 0.0
    %4419 = vmatprep.subr.mxu0 0.0
    %4420 = vmatpush2.msra.mxu0 0.0
    %4421 = vmatprep.subr.mxu0 0.0
    %4422 = vmatpush2.msra.mxu0 0.0
    %4423 = vmatprep.subr.mxu0 0.0
    %4424 = vmatpush2.msra.mxu0 0.0
    %4425 = vmatprep.mubr.f32.mxu0 0.0
    %4426 = vmatmul.mubr.f32.gmra.mxu0 %v4197
    %v4427 = vpop.f32.mrf.mxu0
    %v4428 = vadd.f32 %v4359, %v4427
    %v4429 = vpop.f32.mrf.mxu0
    %4430 = vdwg.mxu0
    %v4432 = vsel %vm1481, %v4266, 0
    %v4435 = vsel %vm1481, %v4347, 0
    %4437 = vmatprep.subr.mxu0 0.0
    %4438 = vmatpush1.xpose.msra.mxu0 0.0
    %4439 = vmatprep.subr.mxu0 0.0
    %4440 = vmatpush1.xpose.msra.mxu0 0.0
    %4441 = vmatprep.subr.mxu0 0.0
    %4442 = vmatpush1.xpose.msra.mxu0 0.0
    %4443 = vmatprep.subr.mxu0 0.0
    %4444 = vmatpush1.xpose.msra.mxu0 0.0
    %4445 = vmatprep.subr.mxu0 0.0
    %4446 = vmatpush1.xpose.msra.mxu0 0.0
    %4447 = vmatprep.subr.mxu0 0.0
    %4448 = vmatpush1.xpose.msra.mxu0 0.0
    %4449 = vmatprep.subr.mxu0 0.0
    %4450 = vmatpush1.xpose.msra.mxu0 0.0
    %4451 = vmatprep.subr.mxu0 0.0
    %4452 = vmatpush1.xpose.msra.mxu0 0.0
    %4453 = vmatprep.subr.mxu0 0.0
    %4454 = vmatpush1.xpose.msra.mxu0 0.0
    %4455 = vmatprep.subr.mxu0 0.0
    %4456 = vmatpush1.xpose.msra.mxu0 0.0
    %4457 = vmatprep.subr.mxu0 0.0
    %4458 = vmatpush1.xpose.msra.mxu0 0.0
    %4459 = vmatprep.subr.mxu0 0.0
    %4460 = vmatpush1.xpose.msra.mxu0 0.0
    %4461 = vmatprep.subr.mxu0 0.0
    %4462 = vmatpush1.xpose.msra.mxu0 0.0
    %4463 = vmatprep.subr.mxu0 0.0
    %4464 = vmatpush1.xpose.msra.mxu0 0.0
    %4465 = vmatprep.subr.mxu0 0.0
    %4466 = vmatpush1.xpose.msra.mxu0 0.0
    %4467 = vmatprep.subr.mxu0 0.0
    %4468 = vmatpush1.xpose.msra.mxu0 %v4435
    %4469 = vmatprep.subr.mxu0 0.0
    %4470 = vmatpush2.xpose.msra.mxu0 0.0
    %4471 = vmatprep.subr.mxu0 0.0
    %4472 = vmatpush2.xpose.msra.mxu0 0.0
    %4473 = vmatprep.subr.mxu0 0.0
    %4474 = vmatpush2.xpose.msra.mxu0 0.0
    %4475 = vmatprep.subr.mxu0 0.0
    %4476 = vmatpush2.xpose.msra.mxu0 0.0
    %4477 = vmatprep.subr.mxu0 0.0
    %4478 = vmatpush2.xpose.msra.mxu0 0.0
    %4479 = vmatprep.subr.mxu0 0.0
    %4480 = vmatpush2.xpose.msra.mxu0 0.0
    %4481 = vmatprep.subr.mxu0 0.0
    %4482 = vmatpush2.xpose.msra.mxu0 0.0
    %4483 = vmatprep.subr.mxu0 0.0
    %4484 = vmatpush2.xpose.msra.mxu0 0.0
    %4485 = vmatprep.subr.mxu0 0.0
    %4486 = vmatpush2.xpose.msra.mxu0 0.0
    %4487 = vmatprep.subr.mxu0 0.0
    %4488 = vmatpush2.xpose.msra.mxu0 0.0
    %4489 = vmatprep.subr.mxu0 0.0
    %4490 = vmatpush2.xpose.msra.mxu0 0.0
    %4491 = vmatprep.subr.mxu0 0.0
    %4492 = vmatpush2.xpose.msra.mxu0 0.0
    %4493 = vmatprep.subr.mxu0 0.0
    %4494 = vmatpush2.xpose.msra.mxu0 0.0
    %4495 = vmatprep.subr.mxu0 0.0
    %4496 = vmatpush2.xpose.msra.mxu0 0.0
    %4497 = vmatprep.subr.mxu0 0.0
    %4498 = vmatpush2.xpose.msra.mxu0 0.0
    %4499 = vmatprep.subr.mxu0 0.0
    %4500 = vmatpush2.xpose.msra.mxu0 0.0
    %4501 = vmatprep.mubr.f32.mxu0 0.0
    %4502 = vmatmul.mubr.f32.gmra.mxu0 %v4432
    %v4503 = vpop.f32.mrf.mxu0
    %v4504 = vadd.f32 0.0, %v4503
    %v4505 = vpop.f32.mrf.mxu0
    %4506 = vdwg.mxu0
    %v4507 = vmul.f32 %v4504, 0.17677669
    %v4508 = vsel %vm1396, %v4507, -inf
    %4509 = vmax.xlane.f32.xlu0 %v4508
    %v4510 = vpop.xlane.xlu0 %4509
    %v4511 = vsub.f32 %v4507, %v4510
    %v4512 = vmul.f32 %v4511, 1.442695
    %v4513 = vpow.pop %v4512
    %v4514 = vsel %vm1396, %v4513, 0.0
    %4515 = vadd.xlane.f32.xlu0 %v4514
    %v4516 = vpop.xlane.xlu0 %4515
    %v4517 = vrcp.pop %v4516
    %v4518 = vmul.f32 %v4513, %v4517
    %v4520 = vsel %vm1396, %v4518, 0
    %4522 = vmatprep.subr.mxu0 0.0
    %4523 = vmatpush1.msra.mxu0 0.0
    %4524 = vmatprep.subr.mxu0 0.0
    %4525 = vmatpush1.msra.mxu0 0.0
    %4526 = vmatprep.subr.mxu0 0.0
    %4527 = vmatpush1.msra.mxu0 0.0
    %4528 = vmatprep.subr.mxu0 0.0
    %4529 = vmatpush1.msra.mxu0 0.0
    %4530 = vmatprep.subr.mxu0 0.0
    %4531 = vmatpush1.msra.mxu0 0.0
    %4532 = vmatprep.subr.mxu0 0.0
    %4533 = vmatpush1.msra.mxu0 0.0
    %4534 = vmatprep.subr.mxu0 0.0
    %4535 = vmatpush1.msra.mxu0 0.0
    %4536 = vmatprep.subr.mxu0 0.0
    %4537 = vmatpush1.msra.mxu0 0.0
    %4538 = vmatprep.subr.mxu0 0.0
    %4539 = vmatpush1.msra.mxu0 0.0
    %4540 = vmatprep.subr.mxu0 0.0
    %4541 = vmatpush1.msra.mxu0 0.0
    %4542 = vmatprep.subr.mxu0 0.0
    %4543 = vmatpush1.msra.mxu0 0.0
    %4544 = vmatprep.subr.mxu0 0.0
    %4545 = vmatpush1.msra.mxu0 0.0
    %4546 = vmatprep.subr.mxu0 0.0
    %4547 = vmatpush1.msra.mxu0 0.0
    %4548 = vmatprep.subr.mxu0 0.0
    %4549 = vmatpush1.msra.mxu0 0.0
    %4550 = vmatprep.subr.mxu0 0.0
    %4551 = vmatpush1.msra.mxu0 0.0
    %4552 = vmatprep.subr.mxu0 0.0
    %4553 = vmatpush1.msra.mxu0 %v4428
    %4554 = vmatprep.subr.mxu0 0.0
    %4555 = vmatpush2.msra.mxu0 0.0
    %4556 = vmatprep.subr.mxu0 0.0
    %4557 = vmatpush2.msra.mxu0 0.0
    %4558 = vmatprep.subr.mxu0 0.0
    %4559 = vmatpush2.msra.mxu0 0.0
    %4560 = vmatprep.subr.mxu0 0.0
    %4561 = vmatpush2.msra.mxu0 0.0
    %4562 = vmatprep.subr.mxu0 0.0
    %4563 = vmatpush2.msra.mxu0 0.0
    %4564 = vmatprep.subr.mxu0 0.0
    %4565 = vmatpush2.msra.mxu0 0.0
    %4566 = vmatprep.subr.mxu0 0.0
    %4567 = vmatpush2.msra.mxu0 0.0
    %4568 = vmatprep.subr.mxu0 0.0
    %4569 = vmatpush2.msra.mxu0 0.0
    %4570 = vmatprep.subr.mxu0 0.0
    %4571 = vmatpush2.msra.mxu0 0.0
    %4572 = vmatprep.subr.mxu0 0.0
    %4573 = vmatpush2.msra.mxu0 0.0
    %4574 = vmatprep.subr.mxu0 0.0
    %4575 = vmatpush2.msra.mxu0 0.0
    %4576 = vmatprep.subr.mxu0 0.0
    %4577 = vmatpush2.msra.mxu0 0.0
    %4578 = vmatprep.subr.mxu0 0.0
    %4579 = vmatpush2.msra.mxu0 0.0
    %4580 = vmatprep.subr.mxu0 0.0
    %4581 = vmatpush2.msra.mxu0 0.0
    %4582 = vmatprep.subr.mxu0 0.0
    %4583 = vmatpush2.msra.mxu0 0.0
    %4584 = vmatprep.subr.mxu0 0.0
    %4585 = vmatpush2.msra.mxu0 0.0
    %4586 = vmatprep.mubr.f32.mxu0 0.0
    %4587 = vmatmul.mubr.f32.gmra.mxu0 %v4520
    %v4588 = vpop.f32.mrf.mxu0
    %v4589 = vadd.f32 0.0, %v4588
    %v4590 = vpop.f32.mrf.mxu0
    %4591 = vdwg.mxu0
    %v4592 = vld [vmem:[#allocation73] sm:$0xff]
    %v4593 = vld [vmem:[#allocation73 + $0x8] sm:$0xff]
    %v4594 = vld [vmem:[#allocation73 + $0x10] sm:$0xff]
    %v4595 = vld [vmem:[#allocation73 + $0x18] sm:$0xff]
    %v4596 = vld [vmem:[#allocation68] sm:$0x1]
    %v4598 = vlaneseq
    %v4599 = vshrl.u32 %v4598, 7
    %v4600 = vsub.s32 0, %v4599
    %v4601 = vrot.slane %v4596, %v4600
    %v4604 = vsel %vm1481, %v4589, 0
    %4606 = vmatprep.subr.mxu0 0.0
    %4607 = vmatpush1.msra.mxu0 0.0
    %4608 = vmatprep.subr.mxu0 0.0
    %4609 = vmatpush1.msra.mxu0 0.0
    %4610 = vmatprep.subr.mxu0 0.0
    %4611 = vmatpush1.msra.mxu0 0.0
    %4612 = vmatprep.subr.mxu0 0.0
    %4613 = vmatpush1.msra.mxu0 0.0
    %4614 = vmatprep.subr.mxu0 0.0
    %4615 = vmatpush1.msra.mxu0 0.0
    %4616 = vmatprep.subr.mxu0 0.0
    %4617 = vmatpush1.msra.mxu0 0.0
    %4618 = vmatprep.subr.mxu0 0.0
    %4619 = vmatpush1.msra.mxu0 0.0
    %4620 = vmatprep.subr.mxu0 0.0
    %4621 = vmatpush1.msra.mxu0 0.0
    %4622 = vmatprep.subr.mxu0 0.0
    %4623 = vmatpush1.msra.mxu0 0.0
    %4624 = vmatprep.subr.mxu0 0.0
    %4625 = vmatpush1.msra.mxu0 0.0
    %4626 = vmatprep.subr.mxu0 0.0
    %4627 = vmatpush1.msra.mxu0 0.0
    %4628 = vmatprep.subr.mxu0 0.0
    %4629 = vmatpush1.msra.mxu0 0.0
    %4630 = vmatprep.subr.mxu0 0.0
    %4631 = vmatpush1.msra.mxu0 %v4595
    %4632 = vmatprep.subr.mxu0 0.0
    %4633 = vmatpush1.msra.mxu0 %v4594
    %4634 = vmatprep.subr.mxu0 0.0
    %4635 = vmatpush1.msra.mxu0 %v4593
    %4636 = vmatprep.subr.mxu0 0.0
    %4637 = vmatpush1.msra.mxu0 %v4592
    %4638 = vmatprep.subr.mxu0 0.0
    %4639 = vmatpush2.msra.mxu0 0.0
    %4640 = vmatprep.subr.mxu0 0.0
    %4641 = vmatpush2.msra.mxu0 0.0
    %4642 = vmatprep.subr.mxu0 0.0
    %4643 = vmatpush2.msra.mxu0 0.0
    %4644 = vmatprep.subr.mxu0 0.0
    %4645 = vmatpush2.msra.mxu0 0.0
    %4646 = vmatprep.subr.mxu0 0.0
    %4647 = vmatpush2.msra.mxu0 0.0
    %4648 = vmatprep.subr.mxu0 0.0
    %4649 = vmatpush2.msra.mxu0 0.0
    %4650 = vmatprep.subr.mxu0 0.0
    %4651 = vmatpush2.msra.mxu0 0.0
    %4652 = vmatprep.subr.mxu0 0.0
    %4653 = vmatpush2.msra.mxu0 0.0
    %4654 = vmatprep.subr.mxu0 0.0
    %4655 = vmatpush2.msra.mxu0 0.0
    %4656 = vmatprep.subr.mxu0 0.0
    %4657 = vmatpush2.msra.mxu0 0.0
    %4658 = vmatprep.subr.mxu0 0.0
    %4659 = vmatpush2.msra.mxu0 0.0
    %4660 = vmatprep.subr.mxu0 0.0
    %4661 = vmatpush2.msra.mxu0 0.0
    %4662 = vmatprep.subr.mxu0 0.0
    %4663 = vmatpush2.msra.mxu0 0.0
    %4664 = vmatprep.subr.mxu0 0.0
    %4665 = vmatpush2.msra.mxu0 0.0
    %4666 = vmatprep.subr.mxu0 0.0
    %4667 = vmatpush2.msra.mxu0 0.0
    %4668 = vmatprep.subr.mxu0 0.0
    %4669 = vmatpush2.msra.mxu0 0.0
    %4670 = vmatprep.mubr.f32.mxu0 0.0
    %4671 = vmatmul.mubr.f32.gmra.mxu0 %v4604
    %v4672 = vpop.f32.mrf.mxu0
    %v4673 = vadd.f32 %v4601, %v4672
    %v4674 = vpop.f32.mrf.mxu0
    %4675 = vdwg.mxu0
    %v4676 = vadd.f32 %v4184, %v4673
    %v4677 = vld [vmem:[#allocation59] sm:$0x1]
    %v4678 = vld [vmem:[#allocation58] sm:$0x1]
    %v4679 = vsel %vm1481, %v4676, 0.0
    %4680 = vadd.xlane.f32.xlu0 %v4679
    %v4681 = vpop.xlane.xlu0 %4680
    %v4682 = vmul.f32 %v4681, %v1968
    %v4683 = vsub.f32 %v4676, %v4682
    %v4684 = vmul.f32 %v4683, %v4683
    %v4685 = vsel %vm1481, %v4684, 0.0
    %4686 = vadd.xlane.f32.xlu0 %v4685
    %v4687 = vpop.xlane.xlu0 %4686
    %v4688 = vmul.f32 %v4687, %v1968
    %v4689 = vadd.f32 %v4688, 1e-05
    %v4690 = vrsqrt.pop %v4689
    %v4691 = vmul.f32 %v4683, %v4690
    %v4693 = vlaneseq
    %v4694 = vshrl.u32 %v4693, 7
    %v4695 = vsub.s32 0, %v4694
    %v4696 = vrot.slane %v4677, %v4695
    %v4698 = vmul.f32 %v4691, %v4696
    %v4700 = vlaneseq
    %v4701 = vshrl.u32 %v4700, 7
    %v4702 = vsub.s32 0, %v4701
    %v4703 = vrot.slane %v4678, %v4702
    %v4705 = vadd.f32 %v4698, %v4703
    %v4706 = vld [vmem:[#allocation49] sm:$0xff]
    %v4707 = vld [vmem:[#allocation49 + $0x8] sm:$0xff]
    %v4708 = vld [vmem:[#allocation49 + $0x10] sm:$0xff]
    %v4709 = vld [vmem:[#allocation49 + $0x18] sm:$0xff]
    %v4710 = vld [vmem:[#allocation44] sm:$0x1]
    %v4712 = vlaneseq
    %v4713 = vshrl.u32 %v4712, 7
    %v4714 = vsub.s32 0, %v4713
    %v4715 = vrot.slane %v4710, %v4714
    %v4718 = vsel %vm1481, %v4705, 0
    %4720 = vmatprep.subr.mxu0 0.0
    %4721 = vmatpush1.msra.mxu0 0.0
    %4722 = vmatprep.subr.mxu0 0.0
    %4723 = vmatpush1.msra.mxu0 0.0
    %4724 = vmatprep.subr.mxu0 0.0
    %4725 = vmatpush1.msra.mxu0 0.0
    %4726 = vmatprep.subr.mxu0 0.0
    %4727 = vmatpush1.msra.mxu0 0.0
    %4728 = vmatprep.subr.mxu0 0.0
    %4729 = vmatpush1.msra.mxu0 0.0
    %4730 = vmatprep.subr.mxu0 0.0
    %4731 = vmatpush1.msra.mxu0 0.0
    %4732 = vmatprep.subr.mxu0 0.0
    %4733 = vmatpush1.msra.mxu0 0.0
    %4734 = vmatprep.subr.mxu0 0.0
    %4735 = vmatpush1.msra.mxu0 0.0
    %4736 = vmatprep.subr.mxu0 0.0
    %4737 = vmatpush1.msra.mxu0 0.0
    %4738 = vmatprep.subr.mxu0 0.0
    %4739 = vmatpush1.msra.mxu0 0.0
    %4740 = vmatprep.subr.mxu0 0.0
    %4741 = vmatpush1.msra.mxu0 0.0
    %4742 = vmatprep.subr.mxu0 0.0
    %4743 = vmatpush1.msra.mxu0 0.0
    %4744 = vmatprep.subr.mxu0 0.0
    %4745 = vmatpush1.msra.mxu0 %v4709
    %4746 = vmatprep.subr.mxu0 0.0
    %4747 = vmatpush1.msra.mxu0 %v4708
    %4748 = vmatprep.subr.mxu0 0.0
    %4749 = vmatpush1.msra.mxu0 %v4707
    %4750 = vmatprep.subr.mxu0 0.0
    %4751 = vmatpush1.msra.mxu0 %v4706
    %4752 = vmatprep.subr.mxu0 0.0
    %4753 = vmatpush2.msra.mxu0 0.0
    %4754 = vmatprep.subr.mxu0 0.0
    %4755 = vmatpush2.msra.mxu0 0.0
    %4756 = vmatprep.subr.mxu0 0.0
    %4757 = vmatpush2.msra.mxu0 0.0
    %4758 = vmatprep.subr.mxu0 0.0
    %4759 = vmatpush2.msra.mxu0 0.0
    %4760 = vmatprep.subr.mxu0 0.0
    %4761 = vmatpush2.msra.mxu0 0.0
    %4762 = vmatprep.subr.mxu0 0.0
    %4763 = vmatpush2.msra.mxu0 0.0
    %4764 = vmatprep.subr.mxu0 0.0
    %4765 = vmatpush2.msra.mxu0 0.0
    %4766 = vmatprep.subr.mxu0 0.0
    %4767 = vmatpush2.msra.mxu0 0.0
    %4768 = vmatprep.subr.mxu0 0.0
    %4769 = vmatpush2.msra.mxu0 0.0
    %4770 = vmatprep.subr.mxu0 0.0
    %4771 = vmatpush2.msra.mxu0 0.0
    %4772 = vmatprep.subr.mxu0 0.0
    %4773 = vmatpush2.msra.mxu0 0.0
    %4774 = vmatprep.subr.mxu0 0.0
    %4775 = vmatpush2.msra.mxu0 0.0
    %4776 = vmatprep.subr.mxu0 0.0
    %4777 = vmatpush2.msra.mxu0 0.0
    %4778 = vmatprep.subr.mxu0 0.0
    %4779 = vmatpush2.msra.mxu0 0.0
    %4780 = vmatprep.subr.mxu0 0.0
    %4781 = vmatpush2.msra.mxu0 0.0
    %4782 = vmatprep.subr.mxu0 0.0
    %4783 = vmatpush2.msra.mxu0 0.0
    %4784 = vmatprep.mubr.f32.mxu0 0.0
    %4785 = vmatmul.mubr.f32.gmra.mxu0 %v4718
    %v4786 = vpop.f32.mrf.mxu0
    %v4787 = vadd.f32 %v4715, %v4786
    %v4788 = vpop.f32.mrf.mxu0
    %4789 = vdwg.mxu0
    %v4790 = vld [vmem:[%s63] sm:$0xff]
    %v4791 = vld [vmem:[%s63 + $0x8] sm:$0xff]
    %v4792 = vld [vmem:[%s63 + $0x10] sm:$0xff]
    %v4793 = vld [vmem:[%s63 + $0x18] sm:$0xff]
    %v4794 = vld [vmem:[#allocation41] sm:$0x1]
    %v4796 = vlaneseq
    %v4797 = vshrl.u32 %v4796, 7
    %v4798 = vsub.s32 0, %v4797
    %v4799 = vrot.slane %v4794, %v4798
    %4801 = vmatprep.subr.mxu0 0.0
    %4802 = vmatpush1.msra.mxu0 0.0
    %4803 = vmatprep.subr.mxu0 0.0
    %4804 = vmatpush1.msra.mxu0 0.0
    %4805 = vmatprep.subr.mxu0 0.0
    %4806 = vmatpush1.msra.mxu0 0.0
    %4807 = vmatprep.subr.mxu0 0.0
    %4808 = vmatpush1.msra.mxu0 0.0
    %4809 = vmatprep.subr.mxu0 0.0
    %4810 = vmatpush1.msra.mxu0 0.0
    %4811 = vmatprep.subr.mxu0 0.0
    %4812 = vmatpush1.msra.mxu0 0.0
    %4813 = vmatprep.subr.mxu0 0.0
    %4814 = vmatpush1.msra.mxu0 0.0
    %4815 = vmatprep.subr.mxu0 0.0
    %4816 = vmatpush1.msra.mxu0 0.0
    %4817 = vmatprep.subr.mxu0 0.0
    %4818 = vmatpush1.msra.mxu0 0.0
    %4819 = vmatprep.subr.mxu0 0.0
    %4820 = vmatpush1.msra.mxu0 0.0
    %4821 = vmatprep.subr.mxu0 0.0
    %4822 = vmatpush1.msra.mxu0 0.0
    %4823 = vmatprep.subr.mxu0 0.0
    %4824 = vmatpush1.msra.mxu0 0.0
    %4825 = vmatprep.subr.mxu0 0.0
    %4826 = vmatpush1.msra.mxu0 %v4793
    %4827 = vmatprep.subr.mxu0 0.0
    %4828 = vmatpush1.msra.mxu0 %v4792
    %4829 = vmatprep.subr.mxu0 0.0
    %4830 = vmatpush1.msra.mxu0 %v4791
    %4831 = vmatprep.subr.mxu0 0.0
    %4832 = vmatpush1.msra.mxu0 %v4790
    %4833 = vmatprep.subr.mxu0 0.0
    %4834 = vmatpush2.msra.mxu0 0.0
    %4835 = vmatprep.subr.mxu0 0.0
    %4836 = vmatpush2.msra.mxu0 0.0
    %4837 = vmatprep.subr.mxu0 0.0
    %4838 = vmatpush2.msra.mxu0 0.0
    %4839 = vmatprep.subr.mxu0 0.0
    %4840 = vmatpush2.msra.mxu0 0.0
    %4841 = vmatprep.subr.mxu0 0.0
    %4842 = vmatpush2.msra.mxu0 0.0
    %4843 = vmatprep.subr.mxu0 0.0
    %4844 = vmatpush2.msra.mxu0 0.0
    %4845 = vmatprep.subr.mxu0 0.0
    %4846 = vmatpush2.msra.mxu0 0.0
    %4847 = vmatprep.subr.mxu0 0.0
    %4848 = vmatpush2.msra.mxu0 0.0
    %4849 = vmatprep.subr.mxu0 0.0
    %4850 = vmatpush2.msra.mxu0 0.0
    %4851 = vmatprep.subr.mxu0 0.0
    %4852 = vmatpush2.msra.mxu0 0.0
    %4853 = vmatprep.subr.mxu0 0.0
    %4854 = vmatpush2.msra.mxu0 0.0
    %4855 = vmatprep.subr.mxu0 0.0
    %4856 = vmatpush2.msra.mxu0 0.0
    %4857 = vmatprep.subr.mxu0 0.0
    %4858 = vmatpush2.msra.mxu0 0.0
    %4859 = vmatprep.subr.mxu0 0.0
    %4860 = vmatpush2.msra.mxu0 0.0
    %4861 = vmatprep.subr.mxu0 0.0
    %4862 = vmatpush2.msra.mxu0 0.0
    %4863 = vmatprep.subr.mxu0 0.0
    %4864 = vmatpush2.msra.mxu0 0.0
    %4865 = vmatprep.mubr.f32.mxu0 0.0
    %4866 = vmatmul.mubr.f32.gmra.mxu0 %v3558
    %v4867 = vpop.f32.mrf.mxu0
    %v4868 = vadd.f32 %v4799, %v4867
    %v4869 = vpop.f32.mrf.mxu0
    %4870 = vdwg.mxu0
    %v4871 = vld [vmem:[#allocation50] sm:$0xff]
    %v4872 = vld [vmem:[#allocation50 + $0x8] sm:$0xff]
    %v4873 = vld [vmem:[#allocation50 + $0x10] sm:$0xff]
    %v4874 = vld [vmem:[#allocation50 + $0x18] sm:$0xff]
    %v4875 = vld [vmem:[#allocation46] sm:$0x1]
    %v4877 = vlaneseq
    %v4878 = vshrl.u32 %v4877, 7
    %v4879 = vsub.s32 0, %v4878
    %v4880 = vrot.slane %v4875, %v4879
    %4882 = vmatprep.subr.mxu0 0.0
    %4883 = vmatpush1.msra.mxu0 0.0
    %4884 = vmatprep.subr.mxu0 0.0
    %4885 = vmatpush1.msra.mxu0 0.0
    %4886 = vmatprep.subr.mxu0 0.0
    %4887 = vmatpush1.msra.mxu0 0.0
    %4888 = vmatprep.subr.mxu0 0.0
    %4889 = vmatpush1.msra.mxu0 0.0
    %4890 = vmatprep.subr.mxu0 0.0
    %4891 = vmatpush1.msra.mxu0 0.0
    %4892 = vmatprep.subr.mxu0 0.0
    %4893 = vmatpush1.msra.mxu0 0.0
    %4894 = vmatprep.subr.mxu0 0.0
    %4895 = vmatpush1.msra.mxu0 0.0
    %4896 = vmatprep.subr.mxu0 0.0
    %4897 = vmatpush1.msra.mxu0 0.0
    %4898 = vmatprep.subr.mxu0 0.0
    %4899 = vmatpush1.msra.mxu0 0.0
    %4900 = vmatprep.subr.mxu0 0.0
    %4901 = vmatpush1.msra.mxu0 0.0
    %4902 = vmatprep.subr.mxu0 0.0
    %4903 = vmatpush1.msra.mxu0 0.0
    %4904 = vmatprep.subr.mxu0 0.0
    %4905 = vmatpush1.msra.mxu0 0.0
    %4906 = vmatprep.subr.mxu0 0.0
    %4907 = vmatpush1.msra.mxu0 %v4874
    %4908 = vmatprep.subr.mxu0 0.0
    %4909 = vmatpush1.msra.mxu0 %v4873
    %4910 = vmatprep.subr.mxu0 0.0
    %4911 = vmatpush1.msra.mxu0 %v4872
    %4912 = vmatprep.subr.mxu0 0.0
    %4913 = vmatpush1.msra.mxu0 %v4871
    %4914 = vmatprep.subr.mxu0 0.0
    %4915 = vmatpush2.msra.mxu0 0.0
    %4916 = vmatprep.subr.mxu0 0.0
    %4917 = vmatpush2.msra.mxu0 0.0
    %4918 = vmatprep.subr.mxu0 0.0
    %4919 = vmatpush2.msra.mxu0 0.0
    %4920 = vmatprep.subr.mxu0 0.0
    %4921 = vmatpush2.msra.mxu0 0.0
    %4922 = vmatprep.subr.mxu0 0.0
    %4923 = vmatpush2.msra.mxu0 0.0
    %4924 = vmatprep.subr.mxu0 0.0
    %4925 = vmatpush2.msra.mxu0 0.0
    %4926 = vmatprep.subr.mxu0 0.0
    %4927 = vmatpush2.msra.mxu0 0.0
    %4928 = vmatprep.subr.mxu0 0.0
    %4929 = vmatpush2.msra.mxu0 0.0
    %4930 = vmatprep.subr.mxu0 0.0
    %4931 = vmatpush2.msra.mxu0 0.0
    %4932 = vmatprep.subr.mxu0 0.0
    %4933 = vmatpush2.msra.mxu0 0.0
    %4934 = vmatprep.subr.mxu0 0.0
    %4935 = vmatpush2.msra.mxu0 0.0
    %4936 = vmatprep.subr.mxu0 0.0
    %4937 = vmatpush2.msra.mxu0 0.0
    %4938 = vmatprep.subr.mxu0 0.0
    %4939 = vmatpush2.msra.mxu0 0.0
    %4940 = vmatprep.subr.mxu0 0.0
    %4941 = vmatpush2.msra.mxu0 0.0
    %4942 = vmatprep.subr.mxu0 0.0
    %4943 = vmatpush2.msra.mxu0 0.0
    %4944 = vmatprep.subr.mxu0 0.0
    %4945 = vmatpush2.msra.mxu0 0.0
    %4946 = vmatprep.mubr.f32.mxu0 0.0
    %4947 = vmatmul.mubr.f32.gmra.mxu0 %v3558
    %v4948 = vpop.f32.mrf.mxu0
    %v4949 = vadd.f32 %v4880, %v4948
    %v4950 = vpop.f32.mrf.mxu0
    %4951 = vdwg.mxu0
    %v4953 = vsel %vm1481, %v4787, 0
    %v4956 = vsel %vm1481, %v4868, 0
    %4958 = vmatprep.subr.mxu0 0.0
    %4959 = vmatpush1.xpose.msra.mxu0 0.0
    %4960 = vmatprep.subr.mxu0 0.0
    %4961 = vmatpush1.xpose.msra.mxu0 0.0
    %4962 = vmatprep.subr.mxu0 0.0
    %4963 = vmatpush1.xpose.msra.mxu0 0.0
    %4964 = vmatprep.subr.mxu0 0.0
    %4965 = vmatpush1.xpose.msra.mxu0 0.0
    %4966 = vmatprep.subr.mxu0 0.0
    %4967 = vmatpush1.xpose.msra.mxu0 0.0
    %4968 = vmatprep.subr.mxu0 0.0
    %4969 = vmatpush1.xpose.msra.mxu0 0.0
    %4970 = vmatprep.subr.mxu0 0.0
    %4971 = vmatpush1.xpose.msra.mxu0 0.0
    %4972 = vmatprep.subr.mxu0 0.0
    %4973 = vmatpush1.xpose.msra.mxu0 0.0
    %4974 = vmatprep.subr.mxu0 0.0
    %4975 = vmatpush1.xpose.msra.mxu0 0.0
    %4976 = vmatprep.subr.mxu0 0.0
    %4977 = vmatpush1.xpose.msra.mxu0 0.0
    %4978 = vmatprep.subr.mxu0 0.0
    %4979 = vmatpush1.xpose.msra.mxu0 0.0
    %4980 = vmatprep.subr.mxu0 0.0
    %4981 = vmatpush1.xpose.msra.mxu0 0.0
    %4982 = vmatprep.subr.mxu0 0.0
    %4983 = vmatpush1.xpose.msra.mxu0 0.0
    %4984 = vmatprep.subr.mxu0 0.0
    %4985 = vmatpush1.xpose.msra.mxu0 0.0
    %4986 = vmatprep.subr.mxu0 0.0
    %4987 = vmatpush1.xpose.msra.mxu0 0.0
    %4988 = vmatprep.subr.mxu0 0.0
    %4989 = vmatpush1.xpose.msra.mxu0 %v4956
    %4990 = vmatprep.subr.mxu0 0.0
    %4991 = vmatpush2.xpose.msra.mxu0 0.0
    %4992 = vmatprep.subr.mxu0 0.0
    %4993 = vmatpush2.xpose.msra.mxu0 0.0
    %4994 = vmatprep.subr.mxu0 0.0
    %4995 = vmatpush2.xpose.msra.mxu0 0.0
    %4996 = vmatprep.subr.mxu0 0.0
    %4997 = vmatpush2.xpose.msra.mxu0 0.0
    %4998 = vmatprep.subr.mxu0 0.0
    %4999 = vmatpush2.xpose.msra.mxu0 0.0
    %5000 = vmatprep.subr.mxu0 0.0
    %5001 = vmatpush2.xpose.msra.mxu0 0.0
    %5002 = vmatprep.subr.mxu0 0.0
    %5003 = vmatpush2.xpose.msra.mxu0 0.0
    %5004 = vmatprep.subr.mxu0 0.0
    %5005 = vmatpush2.xpose.msra.mxu0 0.0
    %5006 = vmatprep.subr.mxu0 0.0
    %5007 = vmatpush2.xpose.msra.mxu0 0.0
    %5008 = vmatprep.subr.mxu0 0.0
    %5009 = vmatpush2.xpose.msra.mxu0 0.0
    %5010 = vmatprep.subr.mxu0 0.0
    %5011 = vmatpush2.xpose.msra.mxu0 0.0
    %5012 = vmatprep.subr.mxu0 0.0
    %5013 = vmatpush2.xpose.msra.mxu0 0.0
    %5014 = vmatprep.subr.mxu0 0.0
    %5015 = vmatpush2.xpose.msra.mxu0 0.0
    %5016 = vmatprep.subr.mxu0 0.0
    %5017 = vmatpush2.xpose.msra.mxu0 0.0
    %5018 = vmatprep.subr.mxu0 0.0
    %5019 = vmatpush2.xpose.msra.mxu0 0.0
    %5020 = vmatprep.subr.mxu0 0.0
    %5021 = vmatpush2.xpose.msra.mxu0 0.0
    %5022 = vmatprep.mubr.f32.mxu0 0.0
    %5023 = vmatmul.mubr.f32.gmra.mxu0 %v4953
    %v5024 = vpop.f32.mrf.mxu0
    %v5025 = vadd.f32 0.0, %v5024
    %v5026 = vpop.f32.mrf.mxu0
    %5027 = vdwg.mxu0
    %v5028 = vmul.f32 %v5025, 0.17677669
    %v5029 = vsel %vm1396, %v5028, -inf
    %5030 = vmax.xlane.f32.xlu0 %v5029
    %v5031 = vpop.xlane.xlu0 %5030
    %v5032 = vsub.f32 %v5028, %v5031
    %v5033 = vmul.f32 %v5032, 1.442695
    %v5034 = vpow.pop %v5033
    %v5035 = vsel %vm1396, %v5034, 0.0
    %5036 = vadd.xlane.f32.xlu0 %v5035
    %v5037 = vpop.xlane.xlu0 %5036
    %v5038 = vrcp.pop %v5037
    %v5039 = vmul.f32 %v5034, %v5038
    %v5041 = vsel %vm1396, %v5039, 0
    %5043 = vmatprep.subr.mxu0 0.0
    %5044 = vmatpush1.msra.mxu0 0.0
    %5045 = vmatprep.subr.mxu0 0.0
    %5046 = vmatpush1.msra.mxu0 0.0
    %5047 = vmatprep.subr.mxu0 0.0
    %5048 = vmatpush1.msra.mxu0 0.0
    %5049 = vmatprep.subr.mxu0 0.0
    %5050 = vmatpush1.msra.mxu0 0.0
    %5051 = vmatprep.subr.mxu0 0.0
    %5052 = vmatpush1.msra.mxu0 0.0
    %5053 = vmatprep.subr.mxu0 0.0
    %5054 = vmatpush1.msra.mxu0 0.0
    %5055 = vmatprep.subr.mxu0 0.0
    %5056 = vmatpush1.msra.mxu0 0.0
    %5057 = vmatprep.subr.mxu0 0.0
    %5058 = vmatpush1.msra.mxu0 0.0
    %5059 = vmatprep.subr.mxu0 0.0
    %5060 = vmatpush1.msra.mxu0 0.0
    %5061 = vmatprep.subr.mxu0 0.0
    %5062 = vmatpush1.msra.mxu0 0.0
    %5063 = vmatprep.subr.mxu0 0.0
    %5064 = vmatpush1.msra.mxu0 0.0
    %5065 = vmatprep.subr.mxu0 0.0
    %5066 = vmatpush1.msra.mxu0 0.0
    %5067 = vmatprep.subr.mxu0 0.0
    %5068 = vmatpush1.msra.mxu0 0.0
    %5069 = vmatprep.subr.mxu0 0.0
    %5070 = vmatpush1.msra.mxu0 0.0
    %5071 = vmatprep.subr.mxu0 0.0
    %5072 = vmatpush1.msra.mxu0 0.0
    %5073 = vmatprep.subr.mxu0 0.0
    %5074 = vmatpush1.msra.mxu0 %v4949
    %5075 = vmatprep.subr.mxu0 0.0
    %5076 = vmatpush2.msra.mxu0 0.0
    %5077 = vmatprep.subr.mxu0 0.0
    %5078 = vmatpush2.msra.mxu0 0.0
    %5079 = vmatprep.subr.mxu0 0.0
    %5080 = vmatpush2.msra.mxu0 0.0
    %5081 = vmatprep.subr.mxu0 0.0
    %5082 = vmatpush2.msra.mxu0 0.0
    %5083 = vmatprep.subr.mxu0 0.0
    %5084 = vmatpush2.msra.mxu0 0.0
    %5085 = vmatprep.subr.mxu0 0.0
    %5086 = vmatpush2.msra.mxu0 0.0
    %5087 = vmatprep.subr.mxu0 0.0
    %5088 = vmatpush2.msra.mxu0 0.0
    %5089 = vmatprep.subr.mxu0 0.0
    %5090 = vmatpush2.msra.mxu0 0.0
    %5091 = vmatprep.subr.mxu0 0.0
    %5092 = vmatpush2.msra.mxu0 0.0
    %5093 = vmatprep.subr.mxu0 0.0
    %5094 = vmatpush2.msra.mxu0 0.0
    %5095 = vmatprep.subr.mxu0 0.0
    %5096 = vmatpush2.msra.mxu0 0.0
    %5097 = vmatprep.subr.mxu0 0.0
    %5098 = vmatpush2.msra.mxu0 0.0
    %5099 = vmatprep.subr.mxu0 0.0
    %5100 = vmatpush2.msra.mxu0 0.0
    %5101 = vmatprep.subr.mxu0 0.0
    %5102 = vmatpush2.msra.mxu0 0.0
    %5103 = vmatprep.subr.mxu0 0.0
    %5104 = vmatpush2.msra.mxu0 0.0
    %5105 = vmatprep.subr.mxu0 0.0
    %5106 = vmatpush2.msra.mxu0 0.0
    %5107 = vmatprep.mubr.f32.mxu0 0.0
    %5108 = vmatmul.mubr.f32.gmra.mxu0 %v5041
    %v5109 = vpop.f32.mrf.mxu0
    %v5110 = vadd.f32 0.0, %v5109
    %v5111 = vpop.f32.mrf.mxu0
    %5112 = vdwg.mxu0
    %v5113 = vld [vmem:[#allocation47] sm:$0xff]
    %v5114 = vld [vmem:[#allocation47 + $0x8] sm:$0xff]
    %v5115 = vld [vmem:[#allocation47 + $0x10] sm:$0xff]
    %v5116 = vld [vmem:[#allocation47 + $0x18] sm:$0xff]
    %v5117 = vld [vmem:[#allocation43] sm:$0x1]
    %v5119 = vlaneseq
    %v5120 = vshrl.u32 %v5119, 7
    %v5121 = vsub.s32 0, %v5120
    %v5122 = vrot.slane %v5117, %v5121
    %v5125 = vsel %vm1481, %v5110, 0
    %5127 = vmatprep.subr.mxu0 0.0
    %5128 = vmatpush1.msra.mxu0 0.0
    %5129 = vmatprep.subr.mxu0 0.0
    %5130 = vmatpush1.msra.mxu0 0.0
    %5131 = vmatprep.subr.mxu0 0.0
    %5132 = vmatpush1.msra.mxu0 0.0
    %5133 = vmatprep.subr.mxu0 0.0
    %5134 = vmatpush1.msra.mxu0 0.0
    %5135 = vmatprep.subr.mxu0 0.0
    %5136 = vmatpush1.msra.mxu0 0.0
    %5137 = vmatprep.subr.mxu0 0.0
    %5138 = vmatpush1.msra.mxu0 0.0
    %5139 = vmatprep.subr.mxu0 0.0
    %5140 = vmatpush1.msra.mxu0 0.0
    %5141 = vmatprep.subr.mxu0 0.0
    %5142 = vmatpush1.msra.mxu0 0.0
    %5143 = vmatprep.subr.mxu0 0.0
    %5144 = vmatpush1.msra.mxu0 0.0
    %5145 = vmatprep.subr.mxu0 0.0
    %5146 = vmatpush1.msra.mxu0 0.0
    %5147 = vmatprep.subr.mxu0 0.0
    %5148 = vmatpush1.msra.mxu0 0.0
    %5149 = vmatprep.subr.mxu0 0.0
    %5150 = vmatpush1.msra.mxu0 0.0
    %5151 = vmatprep.subr.mxu0 0.0
    %5152 = vmatpush1.msra.mxu0 %v5116
    %5153 = vmatprep.subr.mxu0 0.0
    %5154 = vmatpush1.msra.mxu0 %v5115
    %5155 = vmatprep.subr.mxu0 0.0
    %5156 = vmatpush1.msra.mxu0 %v5114
    %5157 = vmatprep.subr.mxu0 0.0
    %5158 = vmatpush1.msra.mxu0 %v5113
    %5159 = vmatprep.subr.mxu0 0.0
    %5160 = vmatpush2.msra.mxu0 0.0
    %5161 = vmatprep.subr.mxu0 0.0
    %5162 = vmatpush2.msra.mxu0 0.0
    %5163 = vmatprep.subr.mxu0 0.0
    %5164 = vmatpush2.msra.mxu0 0.0
    %5165 = vmatprep.subr.mxu0 0.0
    %5166 = vmatpush2.msra.mxu0 0.0
    %5167 = vmatprep.subr.mxu0 0.0
    %5168 = vmatpush2.msra.mxu0 0.0
    %5169 = vmatprep.subr.mxu0 0.0
    %5170 = vmatpush2.msra.mxu0 0.0
    %5171 = vmatprep.subr.mxu0 0.0
    %5172 = vmatpush2.msra.mxu0 0.0
    %5173 = vmatprep.subr.mxu0 0.0
    %5174 = vmatpush2.msra.mxu0 0.0
    %5175 = vmatprep.subr.mxu0 0.0
    %5176 = vmatpush2.msra.mxu0 0.0
    %5177 = vmatprep.subr.mxu0 0.0
    %5178 = vmatpush2.msra.mxu0 0.0
    %5179 = vmatprep.subr.mxu0 0.0
    %5180 = vmatpush2.msra.mxu0 0.0
    %5181 = vmatprep.subr.mxu0 0.0
    %5182 = vmatpush2.msra.mxu0 0.0
    %5183 = vmatprep.subr.mxu0 0.0
    %5184 = vmatpush2.msra.mxu0 0.0
    %5185 = vmatprep.subr.mxu0 0.0
    %5186 = vmatpush2.msra.mxu0 0.0
    %5187 = vmatprep.subr.mxu0 0.0
    %5188 = vmatpush2.msra.mxu0 0.0
    %5189 = vmatprep.subr.mxu0 0.0
    %5190 = vmatpush2.msra.mxu0 0.0
    %5191 = vmatprep.mubr.f32.mxu0 0.0
    %5192 = vmatmul.mubr.f32.gmra.mxu0 %v5125
    %v5193 = vpop.f32.mrf.mxu0
    %v5194 = vadd.f32 %v5122, %v5193
    %v5195 = vpop.f32.mrf.mxu0
    %5196 = vdwg.mxu0
    %v5197 = vadd.f32 %v4705, %v5194
    %v5198 = vld [vmem:[#allocation62] sm:$0x1]
    %v5199 = vld [vmem:[#allocation61] sm:$0x1]
    %v5200 = vsel %vm1481, %v5197, 0.0
    %5201 = vadd.xlane.f32.xlu0 %v5200
    %v5202 = vpop.xlane.xlu0 %5201
    %v5203 = vmul.f32 %v5202, %v1968
    %v5204 = vsub.f32 %v5197, %v5203
    %v5205 = vmul.f32 %v5204, %v5204
    %v5206 = vsel %vm1481, %v5205, 0.0
    %5207 = vadd.xlane.f32.xlu0 %v5206
    %v5208 = vpop.xlane.xlu0 %5207
    %v5209 = vmul.f32 %v5208, %v1968
    %v5210 = vadd.f32 %v5209, 1e-05
    %v5211 = vrsqrt.pop %v5210
    %v5212 = vmul.f32 %v5204, %v5211
    %v5214 = vlaneseq
    %v5215 = vshrl.u32 %v5214, 7
    %v5216 = vsub.s32 0, %v5215
    %v5217 = vrot.slane %v5198, %v5216
    %v5219 = vmul.f32 %v5212, %v5217
    %v5221 = vlaneseq
    %v5222 = vshrl.u32 %v5221, 7
    %v5223 = vsub.s32 0, %v5222
    %v5224 = vrot.slane %v5199, %v5223
    %v5226 = vadd.f32 %v5219, %v5224
    %v5227 = vld [vmem:[#allocation53] sm:$0xff]
    %v5228 = vld [vmem:[#allocation53 + $0x8] sm:$0xff]
    %v5229 = vld [vmem:[#allocation53 + $0x10] sm:$0xff]
    %v5230 = vld [vmem:[#allocation53 + $0x18] sm:$0xff]
    %v5231 = vld [vmem:[#allocation52] sm:$0x1]
    %v5233 = vlaneseq
    %v5234 = vshrl.u32 %v5233, 7
    %v5235 = vsub.s32 0, %v5234
    %v5236 = vrot.slane %v5231, %v5235
    %v5239 = vsel %vm1481, %v5226, 0
    %5241 = vmatprep.subr.mxu0 0.0
    %5242 = vmatpush1.msra.mxu0 0.0
    %5243 = vmatprep.subr.mxu0 0.0
    %5244 = vmatpush1.msra.mxu0 0.0
    %5245 = vmatprep.subr.mxu0 0.0
    %5246 = vmatpush1.msra.mxu0 0.0
    %5247 = vmatprep.subr.mxu0 0.0
    %5248 = vmatpush1.msra.mxu0 0.0
    %5249 = vmatprep.subr.mxu0 0.0
    %5250 = vmatpush1.msra.mxu0 0.0
    %5251 = vmatprep.subr.mxu0 0.0
    %5252 = vmatpush1.msra.mxu0 0.0
    %5253 = vmatprep.subr.mxu0 0.0
    %5254 = vmatpush1.msra.mxu0 0.0
    %5255 = vmatprep.subr.mxu0 0.0
    %5256 = vmatpush1.msra.mxu0 0.0
    %5257 = vmatprep.subr.mxu0 0.0
    %5258 = vmatpush1.msra.mxu0 0.0
    %5259 = vmatprep.subr.mxu0 0.0
    %5260 = vmatpush1.msra.mxu0 0.0
    %5261 = vmatprep.subr.mxu0 0.0
    %5262 = vmatpush1.msra.mxu0 0.0
    %5263 = vmatprep.subr.mxu0 0.0
    %5264 = vmatpush1.msra.mxu0 0.0
    %5265 = vmatprep.subr.mxu0 0.0
    %5266 = vmatpush1.msra.mxu0 %v5230
    %5267 = vmatprep.subr.mxu0 0.0
    %5268 = vmatpush1.msra.mxu0 %v5229
    %5269 = vmatprep.subr.mxu0 0.0
    %5270 = vmatpush1.msra.mxu0 %v5228
    %5271 = vmatprep.subr.mxu0 0.0
    %5272 = vmatpush1.msra.mxu0 %v5227
    %5273 = vmatprep.subr.mxu0 0.0
    %5274 = vmatpush2.msra.mxu0 0.0
    %5275 = vmatprep.subr.mxu0 0.0
    %5276 = vmatpush2.msra.mxu0 0.0
    %5277 = vmatprep.subr.mxu0 0.0
    %5278 = vmatpush2.msra.mxu0 0.0
    %5279 = vmatprep.subr.mxu0 0.0
    %5280 = vmatpush2.msra.mxu0 0.0
    %5281 = vmatprep.subr.mxu0 0.0
    %5282 = vmatpush2.msra.mxu0 0.0
    %5283 = vmatprep.subr.mxu0 0.0
    %5284 = vmatpush2.msra.mxu0 0.0
    %5285 = vmatprep.subr.mxu0 0.0
    %5286 = vmatpush2.msra.mxu0 0.0
    %5287 = vmatprep.subr.mxu0 0.0
    %5288 = vmatpush2.msra.mxu0 0.0
    %5289 = vmatprep.subr.mxu0 0.0
    %5290 = vmatpush2.msra.mxu0 0.0
    %5291 = vmatprep.subr.mxu0 0.0
    %5292 = vmatpush2.msra.mxu0 0.0
    %5293 = vmatprep.subr.mxu0 0.0
    %5294 = vmatpush2.msra.mxu0 0.0
    %5295 = vmatprep.subr.mxu0 0.0
    %5296 = vmatpush2.msra.mxu0 0.0
    %5297 = vmatprep.subr.mxu0 0.0
    %5298 = vmatpush2.msra.mxu0 0.0
    %5299 = vmatprep.subr.mxu0 0.0
    %5300 = vmatpush2.msra.mxu0 0.0
    %5301 = vmatprep.subr.mxu0 0.0
    %5302 = vmatpush2.msra.mxu0 0.0
    %5303 = vmatprep.subr.mxu0 0.0
    %5304 = vmatpush2.msra.mxu0 0.0
    %5305 = vmatprep.mubr.f32.mxu0 0.0
    %5306 = vmatmul.mubr.f32.gmra.mxu0 %v5239
    %v5307 = vpop.f32.mrf.mxu0
    %v5308 = vadd.f32 %v5236, %v5307
    %v5309 = vpop.f32.mrf.mxu0
    %5310 = vdwg.mxu0
    %v5311 = vmax.f32 %v5308, 0.0
    %v5312 = vld [vmem:[#allocation56] sm:$0xff]
    %v5313 = vld [vmem:[#allocation56 + $0x8] sm:$0xff]
    %v5314 = vld [vmem:[#allocation56 + $0x10] sm:$0xff]
    %v5315 = vld [vmem:[#allocation56 + $0x18] sm:$0xff]
    %v5316 = vld [vmem:[#allocation55] sm:$0x1]
    %v5318 = vlaneseq
    %v5319 = vshrl.u32 %v5318, 7
    %v5320 = vsub.s32 0, %v5319
    %v5321 = vrot.slane %v5316, %v5320
    %v5324 = vsel %vm1481, %v5311, 0
    %5326 = vmatprep.subr.mxu0 0.0
    %5327 = vmatpush1.msra.mxu0 0.0
    %5328 = vmatprep.subr.mxu0 0.0
    %5329 = vmatpush1.msra.mxu0 0.0
    %5330 = vmatprep.subr.mxu0 0.0
    %5331 = vmatpush1.msra.mxu0 0.0
    %5332 = vmatprep.subr.mxu0 0.0
    %5333 = vmatpush1.msra.mxu0 0.0
    %5334 = vmatprep.subr.mxu0 0.0
    %5335 = vmatpush1.msra.mxu0 0.0
    %5336 = vmatprep.subr.mxu0 0.0
    %5337 = vmatpush1.msra.mxu0 0.0
    %5338 = vmatprep.subr.mxu0 0.0
    %5339 = vmatpush1.msra.mxu0 0.0
    %5340 = vmatprep.subr.mxu0 0.0
    %5341 = vmatpush1.msra.mxu0 0.0
    %5342 = vmatprep.subr.mxu0 0.0
    %5343 = vmatpush1.msra.mxu0 0.0
    %5344 = vmatprep.subr.mxu0 0.0
    %5345 = vmatpush1.msra.mxu0 0.0
    %5346 = vmatprep.subr.mxu0 0.0
    %5347 = vmatpush1.msra.mxu0 0.0
    %5348 = vmatprep.subr.mxu0 0.0
    %5349 = vmatpush1.msra.mxu0 0.0
    %5350 = vmatprep.subr.mxu0 0.0
    %5351 = vmatpush1.msra.mxu0 %v5315
    %5352 = vmatprep.subr.mxu0 0.0
    %5353 = vmatpush1.msra.mxu0 %v5314
    %5354 = vmatprep.subr.mxu0 0.0
    %5355 = vmatpush1.msra.mxu0 %v5313
    %5356 = vmatprep.subr.mxu0 0.0
    %5357 = vmatpush1.msra.mxu0 %v5312
    %5358 = vmatprep.subr.mxu0 0.0
    %5359 = vmatpush2.msra.mxu0 0.0
    %5360 = vmatprep.subr.mxu0 0.0
    %5361 = vmatpush2.msra.mxu0 0.0
    %5362 = vmatprep.subr.mxu0 0.0
    %5363 = vmatpush2.msra.mxu0 0.0
    %5364 = vmatprep.subr.mxu0 0.0
    %5365 = vmatpush2.msra.mxu0 0.0
    %5366 = vmatprep.subr.mxu0 0.0
    %5367 = vmatpush2.msra.mxu0 0.0
    %5368 = vmatprep.subr.mxu0 0.0
    %5369 = vmatpush2.msra.mxu0 0.0
    %5370 = vmatprep.subr.mxu0 0.0
    %5371 = vmatpush2.msra.mxu0 0.0
    %5372 = vmatprep.subr.mxu0 0.0
    %5373 = vmatpush2.msra.mxu0 0.0
    %5374 = vmatprep.subr.mxu0 0.0
    %5375 = vmatpush2.msra.mxu0 0.0
    %5376 = vmatprep.subr.mxu0 0.0
    %5377 = vmatpush2.msra.mxu0 0.0
    %5378 = vmatprep.subr.mxu0 0.0
    %5379 = vmatpush2.msra.mxu0 0.0
    %5380 = vmatprep.subr.mxu0 0.0
    %5381 = vmatpush2.msra.mxu0 0.0
    %5382 = vmatprep.subr.mxu0 0.0
    %5383 = vmatpush2.msra.mxu0 0.0
    %5384 = vmatprep.subr.mxu0 0.0
    %5385 = vmatpush2.msra.mxu0 0.0
    %5386 = vmatprep.subr.mxu0 0.0
    %5387 = vmatpush2.msra.mxu0 0.0
    %5388 = vmatprep.subr.mxu0 0.0
    %5389 = vmatpush2.msra.mxu0 0.0
    %5390 = vmatprep.mubr.f32.mxu0 0.0
    %5391 = vmatmul.mubr.f32.gmra.mxu0 %v5324
    %v5392 = vpop.f32.mrf.mxu0
    %v5393 = vadd.f32 %v5321, %v5392
    %v5394 = vpop.f32.mrf.mxu0
    %5395 = vdwg.mxu0
    %v5396 = vadd.f32 %v5226, %v5393
    %v5397 = vld [vmem:[#allocation65] sm:$0x1]
    %v5398 = vld [vmem:[#allocation64] sm:$0x1]
    %v5399 = vsel %vm1481, %v5396, 0.0
    %5400 = vadd.xlane.f32.xlu0 %v5399
    %v5401 = vpop.xlane.xlu0 %5400
    %v5402 = vmul.f32 %v5401, %v1968
    %v5403 = vsub.f32 %v5396, %v5402
    %v5404 = vmul.f32 %v5403, %v5403
    %v5405 = vsel %vm1481, %v5404, 0.0
    %5406 = vadd.xlane.f32.xlu0 %v5405
    %v5407 = vpop.xlane.xlu0 %5406
    %v5408 = vmul.f32 %v5407, %v1968
    %v5409 = vadd.f32 %v5408, 1e-05
    %v5410 = vrsqrt.pop %v5409
    %v5411 = vmul.f32 %v5403, %v5410
    %v5413 = vlaneseq
    %v5414 = vshrl.u32 %v5413, 7
    %v5415 = vsub.s32 0, %v5414
    %v5416 = vrot.slane %v5397, %v5415
    %v5418 = vmul.f32 %v5411, %v5416
    %v5420 = vlaneseq
    %v5421 = vshrl.u32 %v5420, 7
    %v5422 = vsub.s32 0, %v5421
    %v5423 = vrot.slane %v5398, %v5422
    %v5425 = vadd.f32 %v5418, %v5423
    %v5426 = vld [vmem:[#allocation79] sm:$0x1]
    %v5427 = vld [vmem:[#allocation77] sm:$0x1]
    %v5428 = vsel %vm1481, %v5425, 0.0
    %5429 = vadd.xlane.f32.xlu0 %v5428
    %v5430 = vpop.xlane.xlu0 %5429
    %v5431 = vmul.f32 %v5430, %v1968
    %v5432 = vsub.f32 %v5425, %v5431
    %v5433 = vmul.f32 %v5432, %v5432
    %v5434 = vsel %vm1481, %v5433, 0.0
    %5435 = vadd.xlane.f32.xlu0 %v5434
    %v5436 = vpop.xlane.xlu0 %5435
    %v5437 = vmul.f32 %v5436, %v1968
    %v5438 = vadd.f32 %v5437, 1e-05
    %v5439 = vrsqrt.pop %v5438
    %v5440 = vmul.f32 %v5432, %v5439
    %v5442 = vlaneseq
    %v5443 = vshrl.u32 %v5442, 7
    %v5444 = vsub.s32 0, %v5443
    %v5445 = vrot.slane %v5426, %v5444
    %v5447 = vmul.f32 %v5440, %v5445
    %v5449 = vlaneseq
    %v5450 = vshrl.u32 %v5449, 7
    %v5451 = vsub.s32 0, %v5450
    %v5452 = vrot.slane %v5427, %v5451
    %v5454 = vadd.f32 %v5447, %v5452
    %v5455 = vld [vmem:[%s185] sm:$0x1]
    %v5457 = vlaneseq
    %v5458 = vshrl.u32 %v5457, 7
    %v5459 = vsub.s32 0, %v5458
    %v5460 = vrot.slane %v5455, %v5459
    %v5462 = vmul.f32 %v5454, %v5460
    %v5463 = vsel %vm1481, %v5462, 0.0
    %5464 = vadd.xlane.f32.xlu0 %v5463
    %v5465 = vpop.xlane.xlu0 %5464
    %v5466 = vld [vmem:[#allocation2] sm:$0x1]
    %v5468 = vlaneseq
    %v5469 = vshrl.u32 %v5468, 7
    %v5470 = vsub.s32 0, %v5469
    %v5471 = vrot.slane %v5466, %v5470
    %v5473 = vadd.f32 %v5465, %v5471
    %vm5474 = vcmask 7168
    %5475 = vst.msk [vmem:[%s187] sm:$0xff] %vm5474, %v5473
    // Predicated region
    $region698: #{transformer_forward.1} parent=1 // pred_check
      _
    $region699: #{transformer_forward.1} parent=1 // pred_check_branch
      %5477 = sbr.rel (0) target = $region701
    $region700: #{transformer_forward.1} parent=1 // pred_region
      _
    $region701: #{transformer_forward.1} parent=1 // pred_fallthru
      _
    // Predicated region
    $region702: #{transformer_forward.1} parent=1 // pred_check
      _
    $region703: #{transformer_forward.1} parent=1 // pred_check_branch
      %5479 = sbr.rel (0) target = $region705
    $region704: #{transformer_forward.1} parent=1 // pred_region
      _
    $region705: #{transformer_forward.1} parent=1 // pred_fallthru
      _
    %5480 = vsyncpa [#allocation4], 1
    %5481 = vsyncpa [#allocation6], 1
    %5482 = vsyncpa [#allocation9], 1
    %5483 = vsyncpa [#allocation12], 1
    %5484 = vsyncpa [#allocation15], 1
    %5485 = vsyncpa [#allocation18], 1
    %5486 = vsyncpa [#allocation21], 1
    %5487 = vsyncpa [#allocation24], 1
    %5488 = vsyncpa [#allocation27], 1
    %5489 = vsyncpa [#allocation30], 1
    %5490 = vsyncpa [#allocation33], 1
    %5491 = vsyncpa [#allocation36], 1
    %5492 = vsyncpa [#allocation39], 1
    %5493 = vsyncpa [#allocation42], 1
    %5494 = vsyncpa [#allocation45], 1
    %5495 = vsyncpa [#allocation48], 1
    %5496 = vsyncpa [#allocation51], 1
    %5497 = vsyncpa [#allocation54], 1
    %5498 = vsyncpa [#allocation57], 1
    %5499 = vsyncpa [#allocation60], 1
    %5500 = vsyncpa [#allocation63], 1
    %5501 = vsyncpa [#allocation66], 1
    %5502 = vsyncpa [#allocation69], 1
    %5503 = vsyncpa [#allocation72], 1
    %5504 = vsyncpa [#allocation75], 1
    %5505 = vsyncpa [#allocation78], 1
    %5506 = vsyncpa [#allocation81], 1
    %5507 = vsyncpa [#allocation84], 1
    %5508 = vsyncpa [#allocation87], 1
    %5509 = vsyncpa [#allocation90], 1
    %5510 = vsyncpa [#allocation93], 1
    %5511 = vsyncpa [#allocation96], 1
    %5512 = vsyncpa [#allocation99], 1
    %5513 = vsyncpa [#allocation102], 1
    %5514 = vsyncpa [#allocation105], 1
    %5515 = vsyncpa [#allocation108], 1
    %5516 = vsyncpa [#allocation111], 1
    %5517 = vsyncpa [#allocation114], 1
    %5518 = vsyncpa [#allocation117], 1
    %5519 = vsyncpa [#allocation120], 1
    %5520 = vsyncpa [#allocation123], 1

</llo_original>
